<compile_context>
chip_gen: v7x
topology: tpu7x:2x2x1
jax: 0.10.0
libtpu: 0.0.40
codegen_flags: <defaults>
</compile_context>

<pallas_src>
import math

import jax
import jax.numpy as jnp
from jax.experimental import pallas as pl
from jax.experimental.pallas import tpu as pltpu


def _chip_budget():
    """VMEM limit + tile caps per chip generation (v7x: 64 MiB, v5e/v6e: 128 MiB)."""
    try:
        cap = int(pltpu.get_tpu_info().vmem_capacity_bytes)
    except Exception:  # pragma: no cover - conservative fallback
        cap = 64 * 1024 * 1024
    if cap >= 100 * 1024 * 1024:                       # v5e / v6e (128 MiB)
        return 100 * 1024 * 1024, 2048, 4096, 512
    return 56 * 1024 * 1024, 1024, 2048, 256           # v7x (64 MiB) / unknown


VMEM_LIMIT, CONV_MAX_ROWS, GN_MAX_ROWS, ATTN_MAX_TILE = _chip_budget()


def _row_tile(n, max_rows):
    """Largest tile t dividing n with t <= max_rows and t % 8 == 0 (or t == n)."""
    if n <= max_rows:
        return n
    for cand in range(max_rows, 0, -1):
        if n % cand == 0 and cand % 8 == 0:
            return cand
    return n  # TODO(synk): awkward n falls back to a single whole-axis tile.


def _silu(x):
    # exact x * sigmoid(x) (matches PyTorch's sigmoid_function module)
    return x / (1.0 + jnp.exp(-x))


# ---------------- GroupNorm statistics: per-(batch, channel) sum / sum-of-squares ----------------
def gn_stats(x, *, max_tile_rows=GN_MAX_ROWS):
    """x: (B, HW, C) f32 -> (sum, sumsq), each (B, 1, C) f32 (f32 accumulation)."""
    B, HW, C = x.shape
    tn = _row_tile(HW, max_tile_rows)
    nT = HW // tn

    def kernel(x_ref, s_ref, q_ref):
        t = pl.program_id(1)

        @pl.when(t == 0)
        def _():
            s_ref[...] = jnp.zeros(s_ref.shape, jnp.float32)
            q_ref[...] = jnp.zeros(q_ref.shape, jnp.float32)

        xb = x_ref[0]                                      # (tn, C) f32
        s_ref[0] += jnp.sum(xb, axis=0, keepdims=True)
        q_ref[0] += jnp.sum(xb * xb, axis=0, keepdims=True)

    stat_spec = pl.BlockSpec((1, 1, C), lambda b, t: (b, 0, 0))
    return pl.pallas_call(
        kernel,
        out_shape=(jax.ShapeDtypeStruct((B, 1, C), jnp.float32),
                   jax.ShapeDtypeStruct((B, 1, C), jnp.float32)),
        grid=(B, nT),
        in_specs=[pl.BlockSpec((1, tn, C), lambda b, t: (b, t, 0))],
        out_specs=(stat_spec, stat_spec),
        compiler_params=pltpu.CompilerParams(
            dimension_semantics=("parallel", "arbitrary"),
            vmem_limit_bytes=VMEM_LIMIT),
    )(x)


# ---------------- GroupNorm finalize: (sum, sumsq) -> per-(batch, channel) scale/shift ----------------
def gn_finalize(s, q, gamma, beta, M, MT, count, *, eps=1e-5):
    """Returns (scale, shift), (B,1,C) each: GroupNorm(x)*gamma+beta == x*scale+shift."""
    B, _, C = s.shape
    G = M.shape[1]
    inv_count = 1.0 / float(count)

    def kernel(s_ref, q_ref, g_ref, b_ref, m_ref, mt_ref, sc_ref, sh_ref):
        sg = jnp.dot(s_ref[0], m_ref[...], preferred_element_type=jnp.float32)
        qg = jnp.dot(q_ref[0], m_ref[...], preferred_element_type=jnp.float32)
        mean_g = sg * inv_count
        var_g = qg * inv_count - mean_g * mean_g           # biased variance (PyTorch GN)
        mean_c = jnp.dot(mean_g, mt_ref[...], preferred_element_type=jnp.float32)
        var_c = jnp.dot(var_g, mt_ref[...], preferred_element_type=jnp.float32)
        inv = jax.lax.rsqrt(var_c + eps)
        scale = inv * g_ref[...]
        sc_ref[0] = scale
        sh_ref[0] = b_ref[...] - mean_c * scale

    stat_spec = pl.BlockSpec((1, 1, C), lambda b: (b, 0, 0))
    vec_spec = pl.BlockSpec((1, C), lambda b: (0, 0))
    return pl.pallas_call(
        kernel,
        out_shape=(jax.ShapeDtypeStruct((B, 1, C), jnp.float32),
                   jax.ShapeDtypeStruct((B, 1, C), jnp.float32)),
        grid=(B,),
        in_specs=[stat_spec, stat_spec, vec_spec, vec_spec,
                  pl.BlockSpec((C, G), lambda b: (0, 0)),
                  pl.BlockSpec((G, C), lambda b: (0, 0))],
        out_specs=(stat_spec, stat_spec),
        compiler_params=pltpu.CompilerParams(
            dimension_semantics=("parallel",),
            vmem_limit_bytes=VMEM_LIMIT),
    )(s, q, gamma, beta, M, MT)


# ---------------- fused GN-affine + SiLU + 3x3 conv (+ temb row / fused shortcut / GN-2 stats) ----------------
def conv3x3_fused(x_img, scale, shift, w9, bias, *, H, W, row_add=None,
                  shortcut_x=None, shortcut_w=None, shortcut_b=None,
                  want_stats=False, max_tile_rows=CONV_MAX_ROWS):
    """y = conv3x3(silu(x*scale + shift)) + bias [+ row_add | + shortcut].

    x_img      : (B, H, W, Cin) f32 UNPADDED input; the zero halo is built in
                 VMEM after the affine+SiLU (silu(0)==0), so no HBM pad pass
                 and no interior mask.
    scale/shift: (B, 1, Cin) GroupNorm affine (from gn_finalize).
    w9         : (9*Cin, Cout) conv weights (kh,kw,cin flattened), bias: (Cout,).
    row_add    : optional (B, 1, Cout) broadcast add (time embedding).
    shortcut_x : optional (B, HW, Cx); with shortcut_w a fused 1x1-conv shortcut,
                 without it an identity residual add.
    want_stats : also emit per-(B,C) sum / sumsq of the output (fused GN-2 stats).
    Returns (B, HW, Cout) f32 [, sum (B,1,Cout), sumsq (B,1,Cout)].
    """
    B = x_img.shape[0]
    Cin = x_img.shape[-1]
    Cout = w9.shape[-1]
    HW = H * W

    tH = H
    for cand in range(H, 0, -1):
        if H % cand == 0 and cand * W <= max_tile_rows and ((cand * W) % 8 == 0 or cand == H):
            tH = cand
            break
    nH = H // tH
    tR = tH * W

    has_row_add = row_add is not None
    has_sc_conv = (shortcut_x is not None) and (shortcut_w is not None)
    has_sc_id = (shortcut_x is not None) and (shortcut_w is None)

    def kernel(*refs):
        x_ref, sc_ref, sh_ref, w_ref, b_ref = refs[:5]
        pos = 5
        add_ref = scx_ref = scw_ref = scb_ref = None
        if has_row_add:
            add_ref = refs[pos]; pos += 1
        if has_sc_conv:
            scx_ref, scw_ref, scb_ref = refs[pos:pos + 3]; pos += 3
        elif has_sc_id:
            scx_ref = refs[pos]; pos += 1
        o_ref = refs[pos]; pos += 1
        sum_ref = sq_ref = None
        if want_stats:
            sum_ref, sq_ref = refs[pos:pos + 2]; pos += 2
        xpad_ref, taps_ref = refs[pos:pos + 2]

        i = pl.program_id(1)

        # once per batch: GN affine + SiLU on the whole image, store zero-padded
        # (activated-space zeros) into the VMEM halo scratch
        @pl.when(i == 0)
        def _():
            xpad_ref[...] = jnp.zeros(xpad_ref.shape, xpad_ref.dtype)
            xn = _silu(x_ref[0] * sc_ref[0, 0] + sh_ref[0, 0])
            xpad_ref[1:H + 1, 1:W + 1, :] = xn
            if want_stats:
                sum_ref[...] = jnp.zeros(sum_ref.shape, jnp.float32)
                sq_ref[...] = jnp.zeros(sq_ref.shape, jnp.float32)

        # im2col of this row tile into bf16 scratch -> one K = 9*Cin MXU matmul
        r0 = pl.multiple_of(i * tH, tH)
        for dy in range(3):
            for dx in range(3):
                k = dy * 3 + dx
                taps_ref[:, k * Cin:(k + 1) * Cin] = (
                    xpad_ref[pl.ds(r0 + dy, tH), dx:dx + W, :]
                    .reshape(tR, Cin).astype(jnp.bfloat16))
        acc = jnp.dot(taps_ref[...], w_ref[...],
                      preferred_element_type=jnp.float32)          # (tR, Cout) f32
        acc = acc + b_ref[...]
        if has_row_add:
            acc = acc + add_ref[0]                                  # time-embedding row
        if has_sc_conv:                                             # fused 1x1-conv shortcut
            acc = acc + jnp.dot(scx_ref[0].astype(jnp.bfloat16), scw_ref[...],
                                preferred_element_type=jnp.float32) + scb_ref[...]
        elif has_sc_id:                                              # identity shortcut
            acc = acc + scx_ref[0]
        o_ref[0] = acc.astype(o_ref.dtype)

        if want_stats:                                               # fused GN-2 statistics
            sum_ref[0] += jnp.sum(acc, axis=0, keepdims=True)
            sq_ref[0] += jnp.sum(acc * acc, axis=0, keepdims=True)

    in_specs = [
        # whole unpadded image, resident across the row-tile axis
        pl.BlockSpec((1, H, W, Cin), lambda b, i: (b, 0, 0, 0)),
        pl.BlockSpec((1, 1, Cin), lambda b, i: (b, 0, 0)),
        pl.BlockSpec((1, 1, Cin), lambda b, i: (b, 0, 0)),
        pl.BlockSpec((9 * Cin, Cout), lambda b, i: (0, 0)),
        pl.BlockSpec((1, Cout), lambda b, i: (0, 0)),
    ]
    inputs = [x_img, scale, shift, w9.astype(jnp.bfloat16), bias.reshape(1, Cout)]
    if has_row_add:
        in_specs.append(pl.BlockSpec((1, 1, Cout), lambda b, i: (b, 0, 0)))
        inputs.append(row_add)
    if has_sc_conv:
        Cx = shortcut_x.shape[-1]
        in_specs += [pl.BlockSpec((1, tR, Cx), lambda b, i: (b, i, 0)),
                     pl.BlockSpec((Cx, Cout), lambda b, i: (0, 0)),
                     pl.BlockSpec((1, Cout), lambda b, i: (0, 0))]
        inputs += [shortcut_x, shortcut_w.astype(jnp.bfloat16),
                   shortcut_b.reshape(1, Cout)]
    elif has_sc_id:
        in_specs.append(pl.BlockSpec((1, tR, Cout), lambda b, i: (b, i, 0)))
        inputs.append(shortcut_x)

    o_spec = pl.BlockSpec((1, tR, Cout), lambda b, i: (b, i, 0))
    if want_stats:
        stat_spec = pl.BlockSpec((1, 1, Cout), lambda b, i: (b, 0, 0))
        out_shape = (jax.ShapeDtypeStruct((B, HW, Cout), jnp.float32),
                     jax.ShapeDtypeStruct((B, 1, Cout), jnp.float32),
                     jax.ShapeDtypeStruct((B, 1, Cout), jnp.float32))
        out_specs = (o_spec, stat_spec, stat_spec)
    else:
        out_shape = jax.ShapeDtypeStruct((B, HW, Cout), jnp.float32)
        out_specs = o_spec

    return pl.pallas_call(
        kernel,
        out_shape=out_shape,
        grid=(B, nH),
        in_specs=in_specs,
        out_specs=out_specs,
        scratch_shapes=[pltpu.VMEM((H + 2, W + 2, Cin), jnp.float32),   # activated+padded image
                        pltpu.VMEM((tR, 9 * Cin), jnp.bfloat16)],        # bf16 im2col taps
        compiler_params=pltpu.CompilerParams(
            # row-tile axis 'arbitrary': its image block index ignores i, so a
            # megacore split there (v7x) would duplicate the whole-image DMA.
            dimension_semantics=("parallel", "arbitrary"),
            vmem_limit_bytes=VMEM_LIMIT),
    )(*inputs)


# ---------------- time-embedding projection: all batch rows in one step ----------------
def time_emb_proj(t, w, b):
    B, TC = t.shape
    Cout = w.shape[1]

    def kernel(t_ref, w_ref, b_ref, o_ref):
        tb = _silu(t_ref[...])                                      # SiLU on the input
        o_ref[...] = (jnp.dot(tb.astype(jnp.bfloat16), w_ref[...],
                              preferred_element_type=jnp.float32) + b_ref[...])

    return pl.pallas_call(
        kernel,
        out_shape=jax.ShapeDtypeStruct((B, Cout), jnp.float32),
        compiler_params=pltpu.CompilerParams(vmem_limit_bytes=VMEM_LIMIT),
    )(t, w.astype(jnp.bfloat16), b.reshape(1, Cout))


# ---------------- QKV projection: single (C,3C) matmul, three lane-dense bf16 outputs ----------------
def qkv_proj(x, wqkv, bqkv, *, max_tile_rows=CONV_MAX_ROWS):
    """One projection matmul per row tile (mirrors nn.Linear(n_dim, 3*d_k));
    q columns already carry the softmax scale (folded into the weight/bias)."""
    B, N, C = x.shape
    tn = _row_tile(N, max_tile_rows)
    nT = N // tn

    def kernel(x_ref, w_ref, b_ref, q_ref, k_ref, v_ref):
        xb = x_ref[0].astype(jnp.bfloat16)
        y = jnp.dot(xb, w_ref[...], preferred_element_type=jnp.float32) + b_ref[...]
        q_ref[0] = y[:, :C].astype(q_ref.dtype)
        k_ref[0] = y[:, C:2 * C].astype(k_ref.dtype)
        v_ref[0] = y[:, 2 * C:].astype(v_ref.dtype)

    row_spec = pl.BlockSpec((1, tn, C), lambda b, t: (b, t, 0))
    out_sd = jax.ShapeDtypeStruct((B, N, C), jnp.bfloat16)
    return pl.pallas_call(
        kernel,
        out_shape=(out_sd, out_sd, out_sd),
        grid=(B, nT),
        in_specs=[row_spec,
                  pl.BlockSpec((C, 3 * C), lambda b, t: (0, 0)),
                  pl.BlockSpec((1, 3 * C), lambda b, t: (0, 0))],
        out_specs=(row_spec, row_spec, row_spec),
        compiler_params=pltpu.CompilerParams(
            dimension_semantics=("parallel", "parallel"),
            vmem_limit_bytes=VMEM_LIMIT),
    )(x, wqkv.astype(jnp.bfloat16), bqkv.reshape(1, 3 * C))


# ---------------- flash attention with fused output projection + residual ----------------
def flash_attention_out(q, k, v, out_w, out_b, residual, *, max_tile=ATTN_MAX_TILE):
    """Online-softmax attention over KV tiles; the last KV step applies the
    output Linear and adds the residual (no intermediate attention result in HBM)."""
    B, N, D = q.shape
    C = out_w.shape[-1]
    tq = _row_tile(N, max_tile)
    tk = _row_tile(N, max_tile)
    nQ, nK = N // tq, N // tk

    def kernel(q_ref, k_ref, v_ref, w_ref, b_ref, x_ref, o_ref, m_sc, l_sc, acc_sc):
        kv = pl.program_id(2)

        @pl.when(kv == 0)
        def _():
            m_sc[...] = jnp.full(m_sc.shape, -jnp.inf, jnp.float32)
            l_sc[...] = jnp.zeros(l_sc.shape, jnp.float32)
            acc_sc[...] = jnp.zeros(acc_sc.shape, jnp.float32)

        # q already carries the d_k**-0.5 scale (folded into the projection)
        s = jax.lax.dot_general(q_ref[0], k_ref[0], (((1,), (1,)), ((), ())),
                                preferred_element_type=jnp.float32)
        m_prev = m_sc[...]
        m_new = jnp.maximum(m_prev, jnp.max(s, axis=-1, keepdims=True))
        alpha = jnp.exp(m_prev - m_new)
        p = jnp.exp(s - m_new)
        l_sc[...] = alpha * l_sc[...] + jnp.sum(p, axis=-1, keepdims=True)
        acc_sc[...] = alpha * acc_sc[...] + jnp.dot(
            p.astype(jnp.bfloat16), v_ref[0], preferred_element_type=jnp.float32)
        m_sc[...] = m_new

        @pl.when(kv == pl.num_programs(2) - 1)
        def _():
            att = acc_sc[...] / l_sc[...]                           # exact normalize
            y = jnp.dot(att.astype(jnp.bfloat16), w_ref[...],
                        preferred_element_type=jnp.float32)
            o_ref[0] = (y + b_ref[...] + x_ref[0]).astype(o_ref.dtype)

    q_spec = pl.BlockSpec((1, tq, D), lambda b, qi, ki: (b, qi, 0))
    kv_spec = pl.BlockSpec((1, tk, D), lambda b, qi, ki: (b, ki, 0))
    res_spec = pl.BlockSpec((1, tq, C), lambda b, qi, ki: (b, qi, 0))
    return pl.pallas_call(
        kernel,
        out_shape=jax.ShapeDtypeStruct((B, N, C), jnp.float32),
        grid=(B, nQ, nK),
        in_specs=[q_spec, kv_spec, kv_spec,
                  pl.BlockSpec((D, C), lambda b, qi, ki: (0, 0)),
                  pl.BlockSpec((1, C), lambda b, qi, ki: (0, 0)),
                  res_spec],
        out_specs=res_spec,
        scratch_shapes=[pltpu.VMEM((tq, 1), jnp.float32),
                        pltpu.VMEM((tq, 1), jnp.float32),
                        pltpu.VMEM((tq, D), jnp.float32)],
        compiler_params=pltpu.CompilerParams(
            dimension_semantics=("parallel", "parallel", "arbitrary"),
            vmem_limit_bytes=VMEM_LIMIT),
    )(q, k, v, out_w.astype(jnp.bfloat16), out_b.reshape(1, C), residual)


# ---------------- parameter construction (deterministic, synthetic) ----------------
def group_membership(C, G=32):
    gs = C // G
    m = (jnp.arange(C)[:, None] // gs == jnp.arange(G)[None, :]).astype(jnp.float32)
    return m, m.T


def init_down_block_params(key, in_dim, out_dim, time_channels):
    ks = jax.random.split(key, 8)

    def kaiming(k, shape, fan_in):
        return jax.random.normal(k, shape, jnp.float32) * math.sqrt(2.0 / fan_in)

    def xavier(k, shape):
        fi, fo = shape
        return jax.random.normal(k, shape, jnp.float32) * math.sqrt(2.0 / (fi + fo))

    p = {}
    # ResidualBlock
    p["gn1_g"] = jnp.ones((1, in_dim), jnp.float32)
    p["gn1_b"] = jnp.zeros((1, in_dim), jnp.float32)
    p["conv1_w9"] = kaiming(ks[0], (3, 3, in_dim, out_dim),
                            fan_in=in_dim * 9).reshape(9 * in_dim, out_dim)
    p["conv1_b"] = jnp.zeros((out_dim,), jnp.float32)
    p["gn2_g"] = jnp.ones((1, out_dim), jnp.float32)
    p["gn2_b"] = jnp.zeros((1, out_dim), jnp.float32)
    p["conv2_w9"] = kaiming(ks[1], (3, 3, out_dim, out_dim),
                            fan_in=out_dim * 9).reshape(9 * out_dim, out_dim)
    p["conv2_b"] = jnp.zeros((out_dim,), jnp.float32)
    p["temb_w"] = xavier(ks[2], (time_channels, out_dim))
    p["temb_b"] = jnp.zeros((out_dim,), jnp.float32)
    if in_dim != out_dim:
        p["sc_w"] = kaiming(ks[3], (in_dim, out_dim), fan_in=in_dim)   # 1x1 conv shortcut
        p["sc_b"] = jnp.zeros((out_dim,), jnp.float32)
    # AttentionBlock (n_heads=1, d_k=out_dim); its GroupNorm is unused in forward.
    p["wqkv"] = xavier(ks[4], (out_dim, 3 * out_dim))     # mirrors nn.Linear(n_dim, 3*d_k)
    p["bqkv"] = jnp.zeros((3 * out_dim,), jnp.float32)
    p["out_w"] = xavier(ks[7], (out_dim, out_dim))
    p["out_b"] = jnp.zeros((out_dim,), jnp.float32)
    p["M_in"], p["MT_in"] = group_membership(in_dim)
    p["M_out"], p["MT_out"] = group_membership(out_dim)
    return p


# ---------------- DownBlock forward (ResidualBlock + AttentionBlock) ----------------
def down_block_forward(params, x_nchw, t, *, attn=True):
    B, Cin, H, W = x_nchw.shape
    Cout = params["conv1_w9"].shape[-1]
    HW = H * W
    G = 32
    x_nhwc = jnp.transpose(x_nchw, (0, 2, 3, 1))                    # (B, H, W, Cin)
    x_flat = x_nhwc.reshape(B, HW, Cin)

    # ---- ResidualBlock ----
    s1, q1 = gn_stats(x_flat)
    sc1, sh1 = gn_finalize(s1, q1, params["gn1_g"], params["gn1_b"],
                           params["M_in"], params["MT_in"], count=HW * (Cin // G))
    temb = time_emb_proj(t, params["temb_w"], params["temb_b"]).reshape(B, 1, Cout)
    # conv1(silu(gn1(x))) + bias + time-embedding row; also emits GN-2 statistics.
    h, s2, q2 = conv3x3_fused(x_nhwc, sc1, sh1, params["conv1_w9"], params["conv1_b"],
                              H=H, W=W, row_add=temb, want_stats=True)
    sc2, sh2 = gn_finalize(s2, q2, params["gn2_g"], params["gn2_b"],
                           params["M_out"], params["MT_out"], count=HW * (Cout // G))
    # TODO(synk): nn.Dropout(0.1) treated as identity (eval-mode semantics).
    h_img = h.reshape(B, H, W, Cout)
    if "sc_w" in params:        # 1x1-conv shortcut fused into the conv2 kernel
        res_out = conv3x3_fused(h_img, sc2, sh2, params["conv2_w9"], params["conv2_b"],
                                H=H, W=W, shortcut_x=x_flat,
                                shortcut_w=params["sc_w"], shortcut_b=params["sc_b"])
    else:                       # identity shortcut fused into the conv2 kernel
        res_out = conv3x3_fused(h_img, sc2, sh2, params["conv2_w9"], params["conv2_b"],
                                H=H, W=W, shortcut_x=x_flat)

    if not attn:
        return jnp.transpose(res_out.reshape(B, H, W, Cout), (0, 3, 1, 2))

    # ---- AttentionBlock (n_heads=1, d_k=Cout; self.norm is unused in reference) ----
    scaling = Cout ** -0.5
    col_scale = jnp.concatenate([jnp.full((Cout,), scaling, jnp.float32),
                                 jnp.ones((2 * Cout,), jnp.float32)])
    wqkv = params["wqkv"] * col_scale[None, :]      # fold softmax scale into q columns
    bqkv = params["bqkv"] * col_scale
    q, k, v = qkv_proj(res_out, wqkv, bqkv)
    out_flat = flash_attention_out(q, k, v, params["out_w"], params["out_b"], res_out)
    return jnp.transpose(out_flat.reshape(B, H, W, Cout), (0, 3, 1, 2))


if __name__ == "__main__":
    # GroupNorm(32, C) requires C % 32 == 0; Cout=128 keeps output stores lane-dense.
    B, in_dim, out_dim, time_channels = 2, 64, 128, 64
    H = W = 8
    key = jax.random.PRNGKey(0)
    kx, kt, kp = jax.random.split(key, 3)
    x = jax.random.normal(kx, (B, in_dim, H, W), jnp.float32)   # NCHW, like PyTorch
    t = jax.random.normal(kt, (B, time_channels), jnp.float32)
    params = init_down_block_params(kp, in_dim, out_dim, time_channels)

    out = jax.jit(down_block_forward)(params, x, t)
    jax.block_until_ready(out)
    assert out.shape == (B, out_dim, H, W) and out.dtype == jnp.float32
    print("KERNEL_OK")
</pallas_src>

<mosaic_0001>
module attributes {stable_mosaic.version = 11 : i64} {
  func.func @kernel(%arg0: i32, %arg1: memref<1x1x64xf32, #tpu.memory_space<vmem>>, %arg2: memref<1x1x64xf32, #tpu.memory_space<vmem>>, %arg3: memref<1x64xf32, #tpu.memory_space<vmem>>, %arg4: memref<1x64xf32, #tpu.memory_space<vmem>>, %arg5: memref<64x32xf32, #tpu.memory_space<vmem>>, %arg6: memref<32x64xf32, #tpu.memory_space<vmem>>, %arg7: memref<1x1x64xf32, #tpu.memory_space<vmem>>, %arg8: memref<1x1x64xf32, #tpu.memory_space<vmem>>) attributes {dimension_semantics = [#tpu.dimension_semantics<parallel>], iteration_bounds = array<i64: 2>, scalar_prefetch = 0 : i64, scratch_operands = 0 : i64, tpu.core_type = #tpu.core_type<tc>, window_params = [{transform_indices = @transform_0, window_bounds = array<i64: 1, 1, 64>}, {transform_indices = @transform_1, window_bounds = array<i64: 1, 1, 64>}, {pipeline_mode = #tpu.pipeline_mode<synchronous>, transform_indices = @transform_2, window_bounds = array<i64: 1, 64>}, {pipeline_mode = #tpu.pipeline_mode<synchronous>, transform_indices = @transform_3, window_bounds = array<i64: 1, 64>}, {pipeline_mode = #tpu.pipeline_mode<synchronous>, transform_indices = @transform_4, window_bounds = array<i64: 64, 32>}, {pipeline_mode = #tpu.pipeline_mode<synchronous>, transform_indices = @transform_5, window_bounds = array<i64: 32, 64>}, {transform_indices = @transform_6, window_bounds = array<i64: 1, 1, 64>}, {transform_indices = @transform_7, window_bounds = array<i64: 1, 1, 64>}]} {
    %c0 = arith.constant 0 : index
    %c0_0 = arith.constant 0 : index
    %c0_1 = arith.constant 0 : index
    %0 = vector.load %arg1[%c0, %c0_0, %c0_1] : memref<1x1x64xf32, #tpu.memory_space<vmem>>, vector<1x1x64xf32>
    %1 = vector.shape_cast %0 : vector<1x1x64xf32> to vector<1x64xf32>
    %c0_2 = arith.constant 0 : index
    %c0_3 = arith.constant 0 : index
    %2 = vector.load %arg5[%c0_2, %c0_3] : memref<64x32xf32, #tpu.memory_space<vmem>>, vector<64x32xf32>
    %cst = arith.constant dense<0.000000e+00> : vector<1x32xf32>
    %3 = tpu.matmul %1, %2, %cst {dimension_numbers = #tpu.dot_dimension_numbers<[1], [0], [0], [1], [0, 0, 1, 1], [], []>} : vector<1x64xf32>, vector<64x32xf32>, vector<1x32xf32> -> vector<1x32xf32>
    %c0_4 = arith.constant 0 : index
    %c0_5 = arith.constant 0 : index
    %c0_6 = arith.constant 0 : index
    %4 = vector.load %arg2[%c0_4, %c0_5, %c0_6] : memref<1x1x64xf32, #tpu.memory_space<vmem>>, vector<1x1x64xf32>
    %5 = vector.shape_cast %4 : vector<1x1x64xf32> to vector<1x64xf32>
    %c0_7 = arith.constant 0 : index
    %c0_8 = arith.constant 0 : index
    %6 = vector.load %arg5[%c0_7, %c0_8] : memref<64x32xf32, #tpu.memory_space<vmem>>, vector<64x32xf32>
    %cst_9 = arith.constant dense<0.000000e+00> : vector<1x32xf32>
    %7 = tpu.matmul %5, %6, %cst_9 {dimension_numbers = #tpu.dot_dimension_numbers<[1], [0], [0], [1], [0, 0, 1, 1], [], []>} : vector<1x64xf32>, vector<64x32xf32>, vector<1x32xf32> -> vector<1x32xf32>
    %cst_10 = arith.constant 7.812500e-03 : f32
    %8 = vector.broadcast %cst_10 : f32 to vector<1x32xf32>
    %9 = arith.mulf %3, %8 : vector<1x32xf32>
    %cst_11 = arith.constant 7.812500e-03 : f32
    %10 = vector.broadcast %cst_11 : f32 to vector<1x32xf32>
    %11 = arith.mulf %7, %10 : vector<1x32xf32>
    %12 = arith.mulf %9, %9 : vector<1x32xf32>
    %13 = arith.subf %11, %12 : vector<1x32xf32>
    %c0_12 = arith.constant 0 : index
    %c0_13 = arith.constant 0 : index
    %14 = vector.load %arg6[%c0_12, %c0_13] : memref<32x64xf32, #tpu.memory_space<vmem>>, vector<32x64xf32>
    %cst_14 = arith.constant dense<0.000000e+00> : vector<1x64xf32>
    %15 = tpu.matmul %9, %14, %cst_14 {dimension_numbers = #tpu.dot_dimension_numbers<[1], [0], [0], [1], [0, 0, 1, 1], [], []>} : vector<1x32xf32>, vector<32x64xf32>, vector<1x64xf32> -> vector<1x64xf32>
    %c0_15 = arith.constant 0 : index
    %c0_16 = arith.constant 0 : index
    %16 = vector.load %arg6[%c0_15, %c0_16] : memref<32x64xf32, #tpu.memory_space<vmem>>, vector<32x64xf32>
    %cst_17 = arith.constant dense<0.000000e+00> : vector<1x64xf32>
    %17 = tpu.matmul %13, %16, %cst_17 {dimension_numbers = #tpu.dot_dimension_numbers<[1], [0], [0], [1], [0, 0, 1, 1], [], []>} : vector<1x32xf32>, vector<32x64xf32>, vector<1x64xf32> -> vector<1x64xf32>
    %cst_18 = arith.constant 9.99999974E-6 : f32
    %18 = vector.broadcast %cst_18 : f32 to vector<1x64xf32>
    %19 = arith.addf %17, %18 : vector<1x64xf32>
    %20 = math.rsqrt %19 : vector<1x64xf32>
    %c0_19 = arith.constant 0 : index
    %c0_20 = arith.constant 0 : index
    %21 = vector.load %arg3[%c0_19, %c0_20] : memref<1x64xf32, #tpu.memory_space<vmem>>, vector<1x64xf32>
    %22 = arith.mulf %20, %21 : vector<1x64xf32>
    %c0_21 = arith.constant 0 : index
    %c0_22 = arith.constant 0 : index
    %c0_23 = arith.constant 0 : index
    %23 = vector.load %arg7[%c0_21, %c0_22, %c0_23] : memref<1x1x64xf32, #tpu.memory_space<vmem>>, vector<1x1x64xf32>
    %24 = vector.shape_cast %23 : vector<1x1x64xf32> to vector<1x64xf32>
    %25 = vector.shape_cast %22 : vector<1x64xf32> to vector<1x1x64xf32>
    tpu.vector_store %arg7[%c0_21, %c0_22, %c0_23], %25 {strides = array<i32>} : memref<1x1x64xf32, #tpu.memory_space<vmem>>, vector<1x1x64xf32>,
    %c0_24 = arith.constant 0 : index
    %c0_25 = arith.constant 0 : index
    %26 = vector.load %arg4[%c0_24, %c0_25] : memref<1x64xf32, #tpu.memory_space<vmem>>, vector<1x64xf32>
    %27 = arith.mulf %15, %22 : vector<1x64xf32>
    %28 = arith.subf %26, %27 : vector<1x64xf32>
    %c0_26 = arith.constant 0 : index
    %c0_27 = arith.constant 0 : index
    %c0_28 = arith.constant 0 : index
    %29 = vector.load %arg8[%c0_26, %c0_27, %c0_28] : memref<1x1x64xf32, #tpu.memory_space<vmem>>, vector<1x1x64xf32>
    %30 = vector.shape_cast %29 : vector<1x1x64xf32> to vector<1x64xf32>
    %31 = vector.shape_cast %28 : vector<1x64xf32> to vector<1x1x64xf32>
    tpu.vector_store %arg8[%c0_26, %c0_27, %c0_28], %31 {strides = array<i32>} : memref<1x1x64xf32, #tpu.memory_space<vmem>>, vector<1x1x64xf32>,
    return
  }
  func.func @transform_0(%arg0: i32) -> (i32, i32, i32) {
    %c0_i32 = arith.constant 0 : i32
    %c0_i32_0 = arith.constant 0 : i32
    %c0_i32_1 = arith.constant 0 : i32
    return %arg0, %c0_i32, %c0_i32_0 : i32, i32, i32
  }
  func.func @transform_1(%arg0: i32) -> (i32, i32, i32) {
    %c0_i32 = arith.constant 0 : i32
    %c0_i32_0 = arith.constant 0 : i32
    %c0_i32_1 = arith.constant 0 : i32
    return %arg0, %c0_i32, %c0_i32_0 : i32, i32, i32
  }
  func.func @transform_2(%arg0: i32) -> (i32, i32) {
    %c0_i32 = arith.constant 0 : i32
    %c0_i32_0 = arith.constant 0 : i32
    %c0_i32_1 = arith.constant 0 : i32
    return %c0_i32, %c0_i32_0 : i32, i32
  }
  func.func @transform_3(%arg0: i32) -> (i32, i32) {
    %c0_i32 = arith.constant 0 : i32
    %c0_i32_0 = arith.constant 0 : i32
    %c0_i32_1 = arith.constant 0 : i32
    return %c0_i32, %c0_i32_0 : i32, i32
  }
  func.func @transform_4(%arg0: i32) -> (i32, i32) {
    %c0_i32 = arith.constant 0 : i32
    %c0_i32_0 = arith.constant 0 : i32
    %c0_i32_1 = arith.constant 0 : i32
    return %c0_i32, %c0_i32_0 : i32, i32
  }
  func.func @transform_5(%arg0: i32) -> (i32, i32) {
    %c0_i32 = arith.constant 0 : i32
    %c0_i32_0 = arith.constant 0 : i32
    %c0_i32_1 = arith.constant 0 : i32
    return %c0_i32, %c0_i32_0 : i32, i32
  }
  func.func @transform_6(%arg0: i32) -> (i32, i32, i32) {
    %c0_i32 = arith.constant 0 : i32
    %c0_i32_0 = arith.constant 0 : i32
    %c0_i32_1 = arith.constant 0 : i32
    return %arg0, %c0_i32, %c0_i32_0 : i32, i32, i32
  }
  func.func @transform_7(%arg0: i32) -> (i32, i32, i32) {
    %c0_i32 = arith.constant 0 : i32
    %c0_i32_0 = arith.constant 0 : i32
    %c0_i32_1 = arith.constant 0 : i32
    return %arg0, %c0_i32, %c0_i32_0 : i32, i32, i32
  }
}

module attributes {stable_mosaic.version = 11 : i64} {
  func.func @kernel(%arg0: i32, %arg1: i32, %arg2: memref<1x64x64xf32, #tpu.memory_space<vmem>>, %arg3: memref<1x1x64xf32, #tpu.memory_space<vmem>>, %arg4: memref<1x1x64xf32, #tpu.memory_space<vmem>>) attributes {dimension_semantics = [#tpu.dimension_semantics<parallel>, #tpu.dimension_semantics<arbitrary>], iteration_bounds = array<i64: 2, 1>, scalar_prefetch = 0 : i64, scratch_operands = 0 : i64, tpu.core_type = #tpu.core_type<tc>, window_params = [{transform_indices = @transform_0, window_bounds = array<i64: 1, 64, 64>}, {transform_indices = @transform_1, window_bounds = array<i64: 1, 1, 64>}, {transform_indices = @transform_2, window_bounds = array<i64: 1, 1, 64>}]} {
    %c0_i32 = arith.constant 0 : i32
    %0 = arith.cmpi eq, %arg1, %c0_i32 : i32
    %1 = arith.extui %0 : i1 to i32
    %c0_i32_0 = arith.constant 0 : i32
    %2 = arith.cmpi ne, %1, %c0_i32_0 : i32
    scf.if %2 {
      %cst_16 = arith.constant 0.000000e+00 : f32
      %22 = vector.broadcast %cst_16 : f32 to vector<1x1x64xf32>
      %c0_17 = arith.constant 0 : index
      %c0_18 = arith.constant 0 : index
      %c0_19 = arith.constant 0 : index
      %23 = vector.load %arg3[%c0_17, %c0_18, %c0_19] : memref<1x1x64xf32, #tpu.memory_space<vmem>>, vector<1x1x64xf32>
      tpu.vector_store %arg3[%c0_17, %c0_18, %c0_19], %22 {strides = array<i32>} : memref<1x1x64xf32, #tpu.memory_space<vmem>>, vector<1x1x64xf32>,
      %cst_20 = arith.constant 0.000000e+00 : f32
      %24 = vector.broadcast %cst_20 : f32 to vector<1x1x64xf32>
      %c0_21 = arith.constant 0 : index
      %c0_22 = arith.constant 0 : index
      %c0_23 = arith.constant 0 : index
      %25 = vector.load %arg4[%c0_21, %c0_22, %c0_23] : memref<1x1x64xf32, #tpu.memory_space<vmem>>, vector<1x1x64xf32>
      tpu.vector_store %arg4[%c0_21, %c0_22, %c0_23], %24 {strides = array<i32>} : memref<1x1x64xf32, #tpu.memory_space<vmem>>, vector<1x1x64xf32>,
    } else {
    }
    %c0 = arith.constant 0 : index
    %c0_1 = arith.constant 0 : index
    %c0_2 = arith.constant 0 : index
    %3 = vector.load %arg2[%c0, %c0_1, %c0_2] : memref<1x64x64xf32, #tpu.memory_space<vmem>>, vector<1x64x64xf32>
    %4 = vector.shape_cast %3 : vector<1x64x64xf32> to vector<64x64xf32>
    %c0_3 = arith.constant 0 : index
    %c0_4 = arith.constant 0 : index
    %c0_5 = arith.constant 0 : index
    %5 = vector.load %arg3[%c0_3, %c0_4, %c0_5] : memref<1x1x64xf32, #tpu.memory_space<vmem>>, vector<1x1x64xf32>
    %6 = vector.shape_cast %5 : vector<1x1x64xf32> to vector<1x64xf32>
    %cst = arith.constant dense<0.000000e+00> : vector<64xf32>
    %7 = vector.multi_reduction <add>, %4, %cst [0] : vector<64x64xf32> to vector<64xf32>
    %8 = vector.shape_cast %7 : vector<64xf32> to vector<1x64xf32>
    %9 = arith.addf %6, %8 : vector<1x64xf32>
    %c0_6 = arith.constant 0 : index
    %c0_7 = arith.constant 0 : index
    %c0_8 = arith.constant 0 : index
    %10 = vector.load %arg3[%c0_6, %c0_7, %c0_8] : memref<1x1x64xf32, #tpu.memory_space<vmem>>, vector<1x1x64xf32>
    %11 = vector.shape_cast %10 : vector<1x1x64xf32> to vector<1x64xf32>
    %12 = vector.shape_cast %9 : vector<1x64xf32> to vector<1x1x64xf32>
    tpu.vector_store %arg3[%c0_6, %c0_7, %c0_8], %12 {strides = array<i32>} : memref<1x1x64xf32, #tpu.memory_space<vmem>>, vector<1x1x64xf32>,
    %c0_9 = arith.constant 0 : index
    %c0_10 = arith.constant 0 : index
    %c0_11 = arith.constant 0 : index
    %13 = vector.load %arg4[%c0_9, %c0_10, %c0_11] : memref<1x1x64xf32, #tpu.memory_space<vmem>>, vector<1x1x64xf32>
    %14 = vector.shape_cast %13 : vector<1x1x64xf32> to vector<1x64xf32>
    %15 = arith.mulf %4, %4 : vector<64x64xf32>
    %cst_12 = arith.constant dense<0.000000e+00> : vector<64xf32>
    %16 = vector.multi_reduction <add>, %15, %cst_12 [0] : vector<64x64xf32> to vector<64xf32>
    %17 = vector.shape_cast %16 : vector<64xf32> to vector<1x64xf32>
    %18 = arith.addf %14, %17 : vector<1x64xf32>
    %c0_13 = arith.constant 0 : index
    %c0_14 = arith.constant 0 : index
    %c0_15 = arith.constant 0 : index
    %19 = vector.load %arg4[%c0_13, %c0_14, %c0_15] : memref<1x1x64xf32, #tpu.memory_space<vmem>>, vector<1x1x64xf32>
    %20 = vector.shape_cast %19 : vector<1x1x64xf32> to vector<1x64xf32>
    %21 = vector.shape_cast %18 : vector<1x64xf32> to vector<1x1x64xf32>
    tpu.vector_store %arg4[%c0_13, %c0_14, %c0_15], %21 {strides = array<i32>} : memref<1x1x64xf32, #tpu.memory_space<vmem>>, vector<1x1x64xf32>,
    return
  }
  func.func @transform_0(%arg0: i32, %arg1: i32) -> (i32, i32, i32) {
    %c0_i32 = arith.constant 0 : i32
    %c0_i32_0 = arith.constant 0 : i32
    return %arg0, %arg1, %c0_i32 : i32, i32, i32
  }
  func.func @transform_1(%arg0: i32, %arg1: i32) -> (i32, i32, i32) {
    %c0_i32 = arith.constant 0 : i32
    %c0_i32_0 = arith.constant 0 : i32
    %c0_i32_1 = arith.constant 0 : i32
    return %arg0, %c0_i32, %c0_i32_0 : i32, i32, i32
  }
  func.func @transform_2(%arg0: i32, %arg1: i32) -> (i32, i32, i32) {
    %c0_i32 = arith.constant 0 : i32
    %c0_i32_0 = arith.constant 0 : i32
    %c0_i32_1 = arith.constant 0 : i32
    return %arg0, %c0_i32, %c0_i32_0 : i32, i32, i32
  }
}

module attributes {stable_mosaic.version = 11 : i64} {
  func.func @kernel(%arg0: memref<2x64xf32, #tpu.memory_space<vmem>>, %arg1: memref<64x128xbf16, #tpu.memory_space<vmem>>, %arg2: memref<1x128xf32, #tpu.memory_space<vmem>>, %arg3: memref<2x128xf32, #tpu.memory_space<vmem>>) attributes {dimension_semantics = [], scalar_prefetch = 0 : i64, scratch_operands = 0 : i64, tpu.core_type = #tpu.core_type<tc>} {
    %c0 = arith.constant 0 : index
    %c0_0 = arith.constant 0 : index
    %0 = vector.load %arg0[%c0, %c0_0] : memref<2x64xf32, #tpu.memory_space<vmem>>, vector<2x64xf32>
    %cst = arith.constant 0.000000e+00 : f32
    %1 = vector.broadcast %cst : f32 to vector<2x64xf32>
    %2 = arith.subf %1, %0 : vector<2x64xf32>
    %3 = math.exp %2 : vector<2x64xf32>
    %cst_1 = arith.constant 1.000000e+00 : f32
    %4 = vector.broadcast %cst_1 : f32 to vector<2x64xf32>
    %5 = arith.addf %4, %3 : vector<2x64xf32>
    %6 = arith.divf %0, %5 : vector<2x64xf32>
    %7 = arith.truncf %6 : vector<2x64xf32> to vector<2x64xbf16>
    %c0_2 = arith.constant 0 : index
    %c0_3 = arith.constant 0 : index
    %8 = vector.load %arg1[%c0_2, %c0_3] : memref<64x128xbf16, #tpu.memory_space<vmem>>, vector<64x128xbf16>
    %cst_4 = arith.constant dense<0.000000e+00> : vector<2x128xf32>
    %9 = tpu.matmul %7, %8, %cst_4 {dimension_numbers = #tpu.dot_dimension_numbers<[1], [0], [0], [1], [0, 0, 1, 1], [], []>} : vector<2x64xbf16>, vector<64x128xbf16>, vector<2x128xf32> -> vector<2x128xf32>
    %c0_5 = arith.constant 0 : index
    %c0_6 = arith.constant 0 : index
    %10 = vector.load %arg2[%c0_5, %c0_6] : memref<1x128xf32, #tpu.memory_space<vmem>>, vector<1x128xf32>
    %11 = vector.broadcast %10 : vector<1x128xf32> to vector<2x128xf32>
    %12 = arith.addf %9, %11 : vector<2x128xf32>
    %c0_7 = arith.constant 0 : index
    %c0_8 = arith.constant 0 : index
    %13 = vector.load %arg3[%c0_7, %c0_8] : memref<2x128xf32, #tpu.memory_space<vmem>>, vector<2x128xf32>
    tpu.vector_store %arg3[%c0_7, %c0_8], %12 {strides = array<i32>} : memref<2x128xf32, #tpu.memory_space<vmem>>, vector<2x128xf32>,
    return
  }
}

module attributes {stable_mosaic.version = 11 : i64} {
  func.func @kernel(%arg0: i32, %arg1: i32, %arg2: memref<1x8x8x64xf32, #tpu.memory_space<vmem>>, %arg3: memref<1x1x64xf32, #tpu.memory_space<vmem>>, %arg4: memref<1x1x64xf32, #tpu.memory_space<vmem>>, %arg5: memref<576x128xbf16, #tpu.memory_space<vmem>>, %arg6: memref<1x128xf32, #tpu.memory_space<vmem>>, %arg7: memref<1x1x128xf32, #tpu.memory_space<vmem>>, %arg8: memref<1x64x128xf32, #tpu.memory_space<vmem>>, %arg9: memref<1x1x128xf32, #tpu.memory_space<vmem>>, %arg10: memref<1x1x128xf32, #tpu.memory_space<vmem>>, %arg11: memref<10x10x64xf32, #tpu.memory_space<vmem>>, %arg12: memref<64x576xbf16, #tpu.memory_space<vmem>>) attributes {dimension_semantics = [#tpu.dimension_semantics<parallel>, #tpu.dimension_semantics<arbitrary>], iteration_bounds = array<i64: 2, 1>, scalar_prefetch = 0 : i64, scratch_operands = 2 : i64, tpu.core_type = #tpu.core_type<tc>, window_params = [{transform_indices = @transform_0, window_bounds = array<i64: 1, 8, 8, 64>}, {transform_indices = @transform_1, window_bounds = array<i64: 1, 1, 64>}, {transform_indices = @transform_2, window_bounds = array<i64: 1, 1, 64>}, {pipeline_mode = #tpu.pipeline_mode<synchronous>, transform_indices = @transform_3, window_bounds = array<i64: 576, 128>}, {pipeline_mode = #tpu.pipeline_mode<synchronous>, transform_indices = @transform_4, window_bounds = array<i64: 1, 128>}, {transform_indices = @transform_5, window_bounds = array<i64: 1, 1, 128>}, {transform_indices = @transform_6, window_bounds = array<i64: 1, 64, 128>}, {transform_indices = @transform_7, window_bounds = array<i64: 1, 1, 128>}, {transform_indices = @transform_8, window_bounds = array<i64: 1, 1, 128>}]} {
    %c0_i32 = arith.constant 0 : i32
    %0 = arith.cmpi eq, %arg1, %c0_i32 : i32
    %1 = arith.extui %0 : i1 to i32
    %c0_i32_0 = arith.constant 0 : i32
    %2 = arith.cmpi ne, %1, %c0_i32_0 : i32
    scf.if %2 {
      %cst_59 = arith.constant 0.000000e+00 : f32
      %89 = vector.broadcast %cst_59 : f32 to vector<10x10x64xf32>
      %c0_60 = arith.constant 0 : index
      %c0_61 = arith.constant 0 : index
      %c0_62 = arith.constant 0 : index
      %90 = vector.load %arg11[%c0_60, %c0_61, %c0_62] : memref<10x10x64xf32, #tpu.memory_space<vmem>>, vector<10x10x64xf32>
      tpu.vector_store %arg11[%c0_60, %c0_61, %c0_62], %89 {strides = array<i32>} : memref<10x10x64xf32, #tpu.memory_space<vmem>>, vector<10x10x64xf32>,
      %c0_63 = arith.constant 0 : index
      %c0_64 = arith.constant 0 : index
      %c0_65 = arith.constant 0 : index
      %c0_66 = arith.constant 0 : index
      %91 = vector.load %arg2[%c0_63, %c0_64, %c0_65, %c0_66] : memref<1x8x8x64xf32, #tpu.memory_space<vmem>>, vector<1x8x8x64xf32>
      %92 = vector.shape_cast %91 : vector<1x8x8x64xf32> to vector<8x8x64xf32>
      %c0_67 = arith.constant 0 : index
      %c0_68 = arith.constant 0 : index
      %c0_69 = arith.constant 0 : index
      %93 = vector.load %arg3[%c0_67, %c0_68, %c0_69] : memref<1x1x64xf32, #tpu.memory_space<vmem>>, vector<1x1x64xf32>
      %94 = vector.shape_cast %93 : vector<1x1x64xf32> to vector<64xf32>
      %95 = vector.shape_cast %94 : vector<64xf32> to vector<1x1x64xf32>
      %96 = vector.broadcast %95 : vector<1x1x64xf32> to vector<8x8x64xf32>
      %97 = arith.mulf %92, %96 : vector<8x8x64xf32>
      %c0_70 = arith.constant 0 : index
      %c0_71 = arith.constant 0 : index
      %c0_72 = arith.constant 0 : index
      %98 = vector.load %arg4[%c0_70, %c0_71, %c0_72] : memref<1x1x64xf32, #tpu.memory_space<vmem>>, vector<1x1x64xf32>
      %99 = vector.shape_cast %98 : vector<1x1x64xf32> to vector<64xf32>
      %100 = vector.shape_cast %99 : vector<64xf32> to vector<1x1x64xf32>
      %101 = vector.broadcast %100 : vector<1x1x64xf32> to vector<8x8x64xf32>
      %102 = arith.addf %97, %101 : vector<8x8x64xf32>
      %cst_73 = arith.constant 0.000000e+00 : f32
      %103 = vector.broadcast %cst_73 : f32 to vector<8x8x64xf32>
      %104 = arith.subf %103, %102 : vector<8x8x64xf32>
      %105 = math.exp %104 : vector<8x8x64xf32>
      %cst_74 = arith.constant 1.000000e+00 : f32
      %106 = vector.broadcast %cst_74 : f32 to vector<8x8x64xf32>
      %107 = arith.addf %106, %105 : vector<8x8x64xf32>
      %108 = arith.divf %102, %107 : vector<8x8x64xf32>
      %c1_75 = arith.constant 1 : index
      %c1_76 = arith.constant 1 : index
      %c0_77 = arith.constant 0 : index
      %109 = vector.load %arg11[%c1_75, %c1_76, %c0_77] : memref<10x10x64xf32, #tpu.memory_space<vmem>>, vector<8x8x64xf32>
      tpu.vector_store %arg11[%c1_75, %c1_76, %c0_77], %108 {strides = array<i32>} : memref<10x10x64xf32, #tpu.memory_space<vmem>>, vector<8x8x64xf32>,
      %cst_78 = arith.constant 0.000000e+00 : f32
      %110 = vector.broadcast %cst_78 : f32 to vector<1x1x128xf32>
      %c0_79 = arith.constant 0 : index
      %c0_80 = arith.constant 0 : index
      %c0_81 = arith.constant 0 : index
      %111 = vector.load %arg9[%c0_79, %c0_80, %c0_81] : memref<1x1x128xf32, #tpu.memory_space<vmem>>, vector<1x1x128xf32>
      tpu.vector_store %arg9[%c0_79, %c0_80, %c0_81], %110 {strides = array<i32>} : memref<1x1x128xf32, #tpu.memory_space<vmem>>, vector<1x1x128xf32>,
      %cst_82 = arith.constant 0.000000e+00 : f32
      %112 = vector.broadcast %cst_82 : f32 to vector<1x1x128xf32>
      %c0_83 = arith.constant 0 : index
      %c0_84 = arith.constant 0 : index
      %c0_85 = arith.constant 0 : index
      %113 = vector.load %arg10[%c0_83, %c0_84, %c0_85] : memref<1x1x128xf32, #tpu.memory_space<vmem>>, vector<1x1x128xf32>
      tpu.vector_store %arg10[%c0_83, %c0_84, %c0_85], %112 {strides = array<i32>} : memref<1x1x128xf32, #tpu.memory_space<vmem>>, vector<1x1x128xf32>,
    } else {
    }
    %c8_i32 = arith.constant 8 : i32
    %3 = arith.muli %arg1, %c8_i32 : i32
    %4 = tpu.assume_multiple %3, 8 : i32
    %c0_i32_1 = arith.constant 0 : i32
    %5 = arith.addi %4, %c0_i32_1 : i32
    %6 = arith.index_cast %5 : i32 to index
    %c0 = arith.constant 0 : index
    %c0_2 = arith.constant 0 : index
    %7 = vector.load %arg11[%6, %c0, %c0_2] : memref<10x10x64xf32, #tpu.memory_space<vmem>>, vector<8x8x64xf32>
    %8 = vector.shape_cast %7 : vector<8x8x64xf32> to vector<64x64xf32>
    %9 = arith.truncf %8 : vector<64x64xf32> to vector<64x64xbf16>
    %c0_3 = arith.constant 0 : index
    %c0_4 = arith.constant 0 : index
    %10 = vector.load %arg12[%c0_3, %c0_4] : memref<64x576xbf16, #tpu.memory_space<vmem>>, vector<64x64xbf16>
    tpu.vector_store %arg12[%c0_3, %c0_4], %9 {strides = array<i32>} : memref<64x576xbf16, #tpu.memory_space<vmem>>, vector<64x64xbf16>,
    %c0_i32_5 = arith.constant 0 : i32
    %11 = arith.addi %4, %c0_i32_5 : i32
    %12 = arith.index_cast %11 : i32 to index
    %c1 = arith.constant 1 : index
    %c0_6 = arith.constant 0 : index
    %13 = vector.load %arg11[%12, %c1, %c0_6] : memref<10x10x64xf32, #tpu.memory_space<vmem>>, vector<8x8x64xf32>
    %14 = vector.shape_cast %13 : vector<8x8x64xf32> to vector<64x64xf32>
    %15 = arith.truncf %14 : vector<64x64xf32> to vector<64x64xbf16>
    %c0_7 = arith.constant 0 : index
    %c64 = arith.constant 64 : index
    %16 = vector.load %arg12[%c0_7, %c64] : memref<64x576xbf16, #tpu.memory_space<vmem>>, vector<64x64xbf16>
    tpu.vector_store %arg12[%c0_7, %c64], %15 {strides = array<i32>} : memref<64x576xbf16, #tpu.memory_space<vmem>>, vector<64x64xbf16>,
    %c0_i32_8 = arith.constant 0 : i32
    %17 = arith.addi %4, %c0_i32_8 : i32
    %18 = arith.index_cast %17 : i32 to index
    %c2 = arith.constant 2 : index
    %c0_9 = arith.constant 0 : index
    %19 = vector.load %arg11[%18, %c2, %c0_9] : memref<10x10x64xf32, #tpu.memory_space<vmem>>, vector<8x8x64xf32>
    %20 = vector.shape_cast %19 : vector<8x8x64xf32> to vector<64x64xf32>
    %21 = arith.truncf %20 : vector<64x64xf32> to vector<64x64xbf16>
    %c0_10 = arith.constant 0 : index
    %c128 = arith.constant 128 : index
    %22 = vector.load %arg12[%c0_10, %c128] : memref<64x576xbf16, #tpu.memory_space<vmem>>, vector<64x64xbf16>
    tpu.vector_store %arg12[%c0_10, %c128], %21 {strides = array<i32>} : memref<64x576xbf16, #tpu.memory_space<vmem>>, vector<64x64xbf16>,
    %c1_i32 = arith.constant 1 : i32
    %23 = arith.addi %4, %c1_i32 : i32
    %24 = arith.index_cast %23 : i32 to index
    %c0_11 = arith.constant 0 : index
    %c0_12 = arith.constant 0 : index
    %25 = vector.load %arg11[%24, %c0_11, %c0_12] : memref<10x10x64xf32, #tpu.memory_space<vmem>>, vector<8x8x64xf32>
    %26 = vector.shape_cast %25 : vector<8x8x64xf32> to vector<64x64xf32>
    %27 = arith.truncf %26 : vector<64x64xf32> to vector<64x64xbf16>
    %c0_13 = arith.constant 0 : index
    %c192 = arith.constant 192 : index
    %28 = vector.load %arg12[%c0_13, %c192] : memref<64x576xbf16, #tpu.memory_space<vmem>>, vector<64x64xbf16>
    tpu.vector_store %arg12[%c0_13, %c192], %27 {strides = array<i32>} : memref<64x576xbf16, #tpu.memory_space<vmem>>, vector<64x64xbf16>,
    %c1_i32_14 = arith.constant 1 : i32
    %29 = arith.addi %4, %c1_i32_14 : i32
    %30 = arith.index_cast %29 : i32 to index
    %c1_15 = arith.constant 1 : index
    %c0_16 = arith.constant 0 : index
    %31 = vector.load %arg11[%30, %c1_15, %c0_16] : memref<10x10x64xf32, #tpu.memory_space<vmem>>, vector<8x8x64xf32>
    %32 = vector.shape_cast %31 : vector<8x8x64xf32> to vector<64x64xf32>
    %33 = arith.truncf %32 : vector<64x64xf32> to vector<64x64xbf16>
    %c0_17 = arith.constant 0 : index
    %c256 = arith.constant 256 : index
    %34 = vector.load %arg12[%c0_17, %c256] : memref<64x576xbf16, #tpu.memory_space<vmem>>, vector<64x64xbf16>
    tpu.vector_store %arg12[%c0_17, %c256], %33 {strides = array<i32>} : memref<64x576xbf16, #tpu.memory_space<vmem>>, vector<64x64xbf16>,
    %c1_i32_18 = arith.constant 1 : i32
    %35 = arith.addi %4, %c1_i32_18 : i32
    %36 = arith.index_cast %35 : i32 to index
    %c2_19 = arith.constant 2 : index
    %c0_20 = arith.constant 0 : index
    %37 = vector.load %arg11[%36, %c2_19, %c0_20] : memref<10x10x64xf32, #tpu.memory_space<vmem>>, vector<8x8x64xf32>
    %38 = vector.shape_cast %37 : vector<8x8x64xf32> to vector<64x64xf32>
    %39 = arith.truncf %38 : vector<64x64xf32> to vector<64x64xbf16>
    %c0_21 = arith.constant 0 : index
    %c320 = arith.constant 320 : index
    %40 = vector.load %arg12[%c0_21, %c320] : memref<64x576xbf16, #tpu.memory_space<vmem>>, vector<64x64xbf16>
    tpu.vector_store %arg12[%c0_21, %c320], %39 {strides = array<i32>} : memref<64x576xbf16, #tpu.memory_space<vmem>>, vector<64x64xbf16>,
    %c2_i32 = arith.constant 2 : i32
    %41 = arith.addi %4, %c2_i32 : i32
    %42 = arith.index_cast %41 : i32 to index
    %c0_22 = arith.constant 0 : index
    %c0_23 = arith.constant 0 : index
    %43 = vector.load %arg11[%42, %c0_22, %c0_23] : memref<10x10x64xf32, #tpu.memory_space<vmem>>, vector<8x8x64xf32>
    %44 = vector.shape_cast %43 : vector<8x8x64xf32> to vector<64x64xf32>
    %45 = arith.truncf %44 : vector<64x64xf32> to vector<64x64xbf16>
    %c0_24 = arith.constant 0 : index
    %c384 = arith.constant 384 : index
    %46 = vector.load %arg12[%c0_24, %c384] : memref<64x576xbf16, #tpu.memory_space<vmem>>, vector<64x64xbf16>
    tpu.vector_store %arg12[%c0_24, %c384], %45 {strides = array<i32>} : memref<64x576xbf16, #tpu.memory_space<vmem>>, vector<64x64xbf16>,
    %c2_i32_25 = arith.constant 2 : i32
    %47 = arith.addi %4, %c2_i32_25 : i32
    %48 = arith.index_cast %47 : i32 to index
    %c1_26 = arith.constant 1 : index
    %c0_27 = arith.constant 0 : index
    %49 = vector.load %arg11[%48, %c1_26, %c0_27] : memref<10x10x64xf32, #tpu.memory_space<vmem>>, vector<8x8x64xf32>
    %50 = vector.shape_cast %49 : vector<8x8x64xf32> to vector<64x64xf32>
    %51 = arith.truncf %50 : vector<64x64xf32> to vector<64x64xbf16>
    %c0_28 = arith.constant 0 : index
    %c448 = arith.constant 448 : index
    %52 = vector.load %arg12[%c0_28, %c448] : memref<64x576xbf16, #tpu.memory_space<vmem>>, vector<64x64xbf16>
    tpu.vector_store %arg12[%c0_28, %c448], %51 {strides = array<i32>} : memref<64x576xbf16, #tpu.memory_space<vmem>>, vector<64x64xbf16>,
    %c2_i32_29 = arith.constant 2 : i32
    %53 = arith.addi %4, %c2_i32_29 : i32
    %54 = arith.index_cast %53 : i32 to index
    %c2_30 = arith.constant 2 : index
    %c0_31 = arith.constant 0 : index
    %55 = vector.load %arg11[%54, %c2_30, %c0_31] : memref<10x10x64xf32, #tpu.memory_space<vmem>>, vector<8x8x64xf32>
    %56 = vector.shape_cast %55 : vector<8x8x64xf32> to vector<64x64xf32>
    %57 = arith.truncf %56 : vector<64x64xf32> to vector<64x64xbf16>
    %c0_32 = arith.constant 0 : index
    %c512 = arith.constant 512 : index
    %58 = vector.load %arg12[%c0_32, %c512] : memref<64x576xbf16, #tpu.memory_space<vmem>>, vector<64x64xbf16>
    tpu.vector_store %arg12[%c0_32, %c512], %57 {strides = array<i32>} : memref<64x576xbf16, #tpu.memory_space<vmem>>, vector<64x64xbf16>,
    %c0_33 = arith.constant 0 : index
    %c0_34 = arith.constant 0 : index
    %59 = vector.load %arg12[%c0_33, %c0_34] : memref<64x576xbf16, #tpu.memory_space<vmem>>, vector<64x576xbf16>
    %c0_35 = arith.constant 0 : index
    %c0_36 = arith.constant 0 : index
    %60 = vector.load %arg5[%c0_35, %c0_36] : memref<576x128xbf16, #tpu.memory_space<vmem>>, vector<576x128xbf16>
    %cst = arith.constant dense<0.000000e+00> : vector<64x128xf32>
    %61 = tpu.matmul %59, %60, %cst {dimension_numbers = #tpu.dot_dimension_numbers<[1], [0], [0], [1], [0, 0, 1, 1], [], []>} : vector<64x576xbf16>, vector<576x128xbf16>, vector<64x128xf32> -> vector<64x128xf32>
    %c0_37 = arith.constant 0 : index
    %c0_38 = arith.constant 0 : index
    %62 = vector.load %arg6[%c0_37, %c0_38] : memref<1x128xf32, #tpu.memory_space<vmem>>, vector<1x128xf32>
    %63 = vector.broadcast %62 : vector<1x128xf32> to vector<64x128xf32>
    %64 = arith.addf %61, %63 : vector<64x128xf32>
    %c0_39 = arith.constant 0 : index
    %c0_40 = arith.constant 0 : index
    %c0_41 = arith.constant 0 : index
    %65 = vector.load %arg7[%c0_39, %c0_40, %c0_41] : memref<1x1x128xf32, #tpu.memory_space<vmem>>, vector<1x1x128xf32>
    %66 = vector.shape_cast %65 : vector<1x1x128xf32> to vector<1x128xf32>
    %67 = vector.broadcast %66 : vector<1x128xf32> to vector<64x128xf32>
    %68 = arith.addf %64, %67 : vector<64x128xf32>
    %c0_42 = arith.constant 0 : index
    %c0_43 = arith.constant 0 : index
    %c0_44 = arith.constant 0 : index
    %69 = vector.load %arg8[%c0_42, %c0_43, %c0_44] : memref<1x64x128xf32, #tpu.memory_space<vmem>>, vector<1x64x128xf32>
    %70 = vector.shape_cast %69 : vector<1x64x128xf32> to vector<64x128xf32>
    %71 = vector.shape_cast %68 : vector<64x128xf32> to vector<1x64x128xf32>
    tpu.vector_store %arg8[%c0_42, %c0_43, %c0_44], %71 {strides = array<i32>} : memref<1x64x128xf32, #tpu.memory_space<vmem>>, vector<1x64x128xf32>,
    %c0_45 = arith.constant 0 : index
    %c0_46 = arith.constant 0 : index
    %c0_47 = arith.constant 0 : index
    %72 = vector.load %arg9[%c0_45, %c0_46, %c0_47] : memref<1x1x128xf32, #tpu.memory_space<vmem>>, vector<1x1x128xf32>
    %73 = vector.shape_cast %72 : vector<1x1x128xf32> to vector<1x128xf32>
    %cst_48 = arith.constant dense<0.000000e+00> : vector<128xf32>
    %74 = vector.multi_reduction <add>, %68, %cst_48 [0] : vector<64x128xf32> to vector<128xf32>
    %75 = vector.shape_cast %74 : vector<128xf32> to vector<1x128xf32>
    %76 = arith.addf %73, %75 : vector<1x128xf32>
    %c0_49 = arith.constant 0 : index
    %c0_50 = arith.constant 0 : index
    %c0_51 = arith.constant 0 : index
    %77 = vector.load %arg9[%c0_49, %c0_50, %c0_51] : memref<1x1x128xf32, #tpu.memory_space<vmem>>, vector<1x1x128xf32>
    %78 = vector.shape_cast %77 : vector<1x1x128xf32> to vector<1x128xf32>
    %79 = vector.shape_cast %76 : vector<1x128xf32> to vector<1x1x128xf32>
    tpu.vector_store %arg9[%c0_49, %c0_50, %c0_51], %79 {strides = array<i32>} : memref<1x1x128xf32, #tpu.memory_space<vmem>>, vector<1x1x128xf32>,
    %c0_52 = arith.constant 0 : index
    %c0_53 = arith.constant 0 : index
    %c0_54 = arith.constant 0 : index
    %80 = vector.load %arg10[%c0_52, %c0_53, %c0_54] : memref<1x1x128xf32, #tpu.memory_space<vmem>>, vector<1x1x128xf32>
    %81 = vector.shape_cast %80 : vector<1x1x128xf32> to vector<1x128xf32>
    %82 = arith.mulf %68, %68 : vector<64x128xf32>
    %cst_55 = arith.constant dense<0.000000e+00> : vector<128xf32>
    %83 = vector.multi_reduction <add>, %82, %cst_55 [0] : vector<64x128xf32> to vector<128xf32>
    %84 = vector.shape_cast %83 : vector<128xf32> to vector<1x128xf32>
    %85 = arith.addf %81, %84 : vector<1x128xf32>
    %c0_56 = arith.constant 0 : index
    %c0_57 = arith.constant 0 : index
    %c0_58 = arith.constant 0 : index
    %86 = vector.load %arg10[%c0_56, %c0_57, %c0_58] : memref<1x1x128xf32, #tpu.memory_space<vmem>>, vector<1x1x128xf32>
    %87 = vector.shape_cast %86 : vector<1x1x128xf32> to vector<1x128xf32>
    %88 = vector.shape_cast %85 : vector<1x128xf32> to vector<1x1x128xf32>
    tpu.vector_store %arg10[%c0_56, %c0_57, %c0_58], %88 {strides = array<i32>} : memref<1x1x128xf32, #tpu.memory_space<vmem>>, vector<1x1x128xf32>,
    return
  }
  func.func @transform_0(%arg0: i32, %arg1: i32) -> (i32, i32, i32, i32) {
    %c0_i32 = arith.constant 0 : i32
    %c0_i32_0 = arith.constant 0 : i32
    %c0_i32_1 = arith.constant 0 : i32
    %c0_i32_2 = arith.constant 0 : i32
    return %arg0, %c0_i32, %c0_i32_0, %c0_i32_1 : i32, i32, i32, i32
  }
  func.func @transform_1(%arg0: i32, %arg1: i32) -> (i32, i32, i32) {
    %c0_i32 = arith.constant 0 : i32
    %c0_i32_0 = arith.constant 0 : i32
    %c0_i32_1 = arith.constant 0 : i32
    return %arg0, %c0_i32, %c0_i32_0 : i32, i32, i32
  }
  func.func @transform_2(%arg0: i32, %arg1: i32) -> (i32, i32, i32) {
    %c0_i32 = arith.constant 0 : i32
    %c0_i32_0 = arith.constant 0 : i32
    %c0_i32_1 = arith.constant 0 : i32
    return %arg0, %c0_i32, %c0_i32_0 : i32, i32, i32
  }
  func.func @transform_3(%arg0: i32, %arg1: i32) -> (i32, i32) {
    %c0_i32 = arith.constant 0 : i32
    %c0_i32_0 = arith.constant 0 : i32
    %c0_i32_1 = arith.constant 0 : i32
    return %c0_i32, %c0_i32_0 : i32, i32
  }
  func.func @transform_4(%arg0: i32, %arg1: i32) -> (i32, i32) {
    %c0_i32 = arith.constant 0 : i32
    %c0_i32_0 = arith.constant 0 : i32
    %c0_i32_1 = arith.constant 0 : i32
    return %c0_i32, %c0_i32_0 : i32, i32
  }
  func.func @transform_5(%arg0: i32, %arg1: i32) -> (i32, i32, i32) {
    %c0_i32 = arith.constant 0 : i32
    %c0_i32_0 = arith.constant 0 : i32
    %c0_i32_1 = arith.constant 0 : i32
    return %arg0, %c0_i32, %c0_i32_0 : i32, i32, i32
  }
  func.func @transform_6(%arg0: i32, %arg1: i32) -> (i32, i32, i32) {
    %c0_i32 = arith.constant 0 : i32
    %c0_i32_0 = arith.constant 0 : i32
    return %arg0, %arg1, %c0_i32 : i32, i32, i32
  }
  func.func @transform_7(%arg0: i32, %arg1: i32) -> (i32, i32, i32) {
    %c0_i32 = arith.constant 0 : i32
    %c0_i32_0 = arith.constant 0 : i32
    %c0_i32_1 = arith.constant 0 : i32
    return %arg0, %c0_i32, %c0_i32_0 : i32, i32, i32
  }
  func.func @transform_8(%arg0: i32, %arg1: i32) -> (i32, i32, i32) {
    %c0_i32 = arith.constant 0 : i32
    %c0_i32_0 = arith.constant 0 : i32
    %c0_i32_1 = arith.constant 0 : i32
    return %arg0, %c0_i32, %c0_i32_0 : i32, i32, i32
  }
}

module attributes {stable_mosaic.version = 11 : i64} {
  func.func @kernel(%arg0: i32, %arg1: memref<1x1x128xf32, #tpu.memory_space<vmem>>, %arg2: memref<1x1x128xf32, #tpu.memory_space<vmem>>, %arg3: memref<1x128xf32, #tpu.memory_space<vmem>>, %arg4: memref<1x128xf32, #tpu.memory_space<vmem>>, %arg5: memref<128x32xf32, #tpu.memory_space<vmem>>, %arg6: memref<32x128xf32, #tpu.memory_space<vmem>>, %arg7: memref<1x1x128xf32, #tpu.memory_space<vmem>>, %arg8: memref<1x1x128xf32, #tpu.memory_space<vmem>>) attributes {dimension_semantics = [#tpu.dimension_semantics<parallel>], iteration_bounds = array<i64: 2>, scalar_prefetch = 0 : i64, scratch_operands = 0 : i64, tpu.core_type = #tpu.core_type<tc>, window_params = [{transform_indices = @transform_0, window_bounds = array<i64: 1, 1, 128>}, {transform_indices = @transform_1, window_bounds = array<i64: 1, 1, 128>}, {pipeline_mode = #tpu.pipeline_mode<synchronous>, transform_indices = @transform_2, window_bounds = array<i64: 1, 128>}, {pipeline_mode = #tpu.pipeline_mode<synchronous>, transform_indices = @transform_3, window_bounds = array<i64: 1, 128>}, {pipeline_mode = #tpu.pipeline_mode<synchronous>, transform_indices = @transform_4, window_bounds = array<i64: 128, 32>}, {pipeline_mode = #tpu.pipeline_mode<synchronous>, transform_indices = @transform_5, window_bounds = array<i64: 32, 128>}, {transform_indices = @transform_6, window_bounds = array<i64: 1, 1, 128>}, {transform_indices = @transform_7, window_bounds = array<i64: 1, 1, 128>}]} {
    %c0 = arith.constant 0 : index
    %c0_0 = arith.constant 0 : index
    %c0_1 = arith.constant 0 : index
    %0 = vector.load %arg1[%c0, %c0_0, %c0_1] : memref<1x1x128xf32, #tpu.memory_space<vmem>>, vector<1x1x128xf32>
    %1 = vector.shape_cast %0 : vector<1x1x128xf32> to vector<1x128xf32>
    %c0_2 = arith.constant 0 : index
    %c0_3 = arith.constant 0 : index
    %2 = vector.load %arg5[%c0_2, %c0_3] : memref<128x32xf32, #tpu.memory_space<vmem>>, vector<128x32xf32>
    %cst = arith.constant dense<0.000000e+00> : vector<1x32xf32>
    %3 = tpu.matmul %1, %2, %cst {dimension_numbers = #tpu.dot_dimension_numbers<[1], [0], [0], [1], [0, 0, 1, 1], [], []>} : vector<1x128xf32>, vector<128x32xf32>, vector<1x32xf32> -> vector<1x32xf32>
    %c0_4 = arith.constant 0 : index
    %c0_5 = arith.constant 0 : index
    %c0_6 = arith.constant 0 : index
    %4 = vector.load %arg2[%c0_4, %c0_5, %c0_6] : memref<1x1x128xf32, #tpu.memory_space<vmem>>, vector<1x1x128xf32>
    %5 = vector.shape_cast %4 : vector<1x1x128xf32> to vector<1x128xf32>
    %c0_7 = arith.constant 0 : index
    %c0_8 = arith.constant 0 : index
    %6 = vector.load %arg5[%c0_7, %c0_8] : memref<128x32xf32, #tpu.memory_space<vmem>>, vector<128x32xf32>
    %cst_9 = arith.constant dense<0.000000e+00> : vector<1x32xf32>
    %7 = tpu.matmul %5, %6, %cst_9 {dimension_numbers = #tpu.dot_dimension_numbers<[1], [0], [0], [1], [0, 0, 1, 1], [], []>} : vector<1x128xf32>, vector<128x32xf32>, vector<1x32xf32> -> vector<1x32xf32>
    %cst_10 = arith.constant 3.906250e-03 : f32
    %8 = vector.broadcast %cst_10 : f32 to vector<1x32xf32>
    %9 = arith.mulf %3, %8 : vector<1x32xf32>
    %cst_11 = arith.constant 3.906250e-03 : f32
    %10 = vector.broadcast %cst_11 : f32 to vector<1x32xf32>
    %11 = arith.mulf %7, %10 : vector<1x32xf32>
    %12 = arith.mulf %9, %9 : vector<1x32xf32>
    %13 = arith.subf %11, %12 : vector<1x32xf32>
    %c0_12 = arith.constant 0 : index
    %c0_13 = arith.constant 0 : index
    %14 = vector.load %arg6[%c0_12, %c0_13] : memref<32x128xf32, #tpu.memory_space<vmem>>, vector<32x128xf32>
    %cst_14 = arith.constant dense<0.000000e+00> : vector<1x128xf32>
    %15 = tpu.matmul %9, %14, %cst_14 {dimension_numbers = #tpu.dot_dimension_numbers<[1], [0], [0], [1], [0, 0, 1, 1], [], []>} : vector<1x32xf32>, vector<32x128xf32>, vector<1x128xf32> -> vector<1x128xf32>
    %c0_15 = arith.constant 0 : index
    %c0_16 = arith.constant 0 : index
    %16 = vector.load %arg6[%c0_15, %c0_16] : memref<32x128xf32, #tpu.memory_space<vmem>>, vector<32x128xf32>
    %cst_17 = arith.constant dense<0.000000e+00> : vector<1x128xf32>
    %17 = tpu.matmul %13, %16, %cst_17 {dimension_numbers = #tpu.dot_dimension_numbers<[1], [0], [0], [1], [0, 0, 1, 1], [], []>} : vector<1x32xf32>, vector<32x128xf32>, vector<1x128xf32> -> vector<1x128xf32>
    %cst_18 = arith.constant 9.99999974E-6 : f32
    %18 = vector.broadcast %cst_18 : f32 to vector<1x128xf32>
    %19 = arith.addf %17, %18 : vector<1x128xf32>
    %20 = math.rsqrt %19 : vector<1x128xf32>
    %c0_19 = arith.constant 0 : index
    %c0_20 = arith.constant 0 : index
    %21 = vector.load %arg3[%c0_19, %c0_20] : memref<1x128xf32, #tpu.memory_space<vmem>>, vector<1x128xf32>
    %22 = arith.mulf %20, %21 : vector<1x128xf32>
    %c0_21 = arith.constant 0 : index
    %c0_22 = arith.constant 0 : index
    %c0_23 = arith.constant 0 : index
    %23 = vector.load %arg7[%c0_21, %c0_22, %c0_23] : memref<1x1x128xf32, #tpu.memory_space<vmem>>, vector<1x1x128xf32>
    %24 = vector.shape_cast %23 : vector<1x1x128xf32> to vector<1x128xf32>
    %25 = vector.shape_cast %22 : vector<1x128xf32> to vector<1x1x128xf32>
    tpu.vector_store %arg7[%c0_21, %c0_22, %c0_23], %25 {strides = array<i32>} : memref<1x1x128xf32, #tpu.memory_space<vmem>>, vector<1x1x128xf32>,
    %c0_24 = arith.constant 0 : index
    %c0_25 = arith.constant 0 : index
    %26 = vector.load %arg4[%c0_24, %c0_25] : memref<1x128xf32, #tpu.memory_space<vmem>>, vector<1x128xf32>
    %27 = arith.mulf %15, %22 : vector<1x128xf32>
    %28 = arith.subf %26, %27 : vector<1x128xf32>
    %c0_26 = arith.constant 0 : index
    %c0_27 = arith.constant 0 : index
    %c0_28 = arith.constant 0 : index
    %29 = vector.load %arg8[%c0_26, %c0_27, %c0_28] : memref<1x1x128xf32, #tpu.memory_space<vmem>>, vector<1x1x128xf32>
    %30 = vector.shape_cast %29 : vector<1x1x128xf32> to vector<1x128xf32>
    %31 = vector.shape_cast %28 : vector<1x128xf32> to vector<1x1x128xf32>
    tpu.vector_store %arg8[%c0_26, %c0_27, %c0_28], %31 {strides = array<i32>} : memref<1x1x128xf32, #tpu.memory_space<vmem>>, vector<1x1x128xf32>,
    return
  }
  func.func @transform_0(%arg0: i32) -> (i32, i32, i32) {
    %c0_i32 = arith.constant 0 : i32
    %c0_i32_0 = arith.constant 0 : i32
    %c0_i32_1 = arith.constant 0 : i32
    return %arg0, %c0_i32, %c0_i32_0 : i32, i32, i32
  }
  func.func @transform_1(%arg0: i32) -> (i32, i32, i32) {
    %c0_i32 = arith.constant 0 : i32
    %c0_i32_0 = arith.constant 0 : i32
    %c0_i32_1 = arith.constant 0 : i32
    return %arg0, %c0_i32, %c0_i32_0 : i32, i32, i32
  }
  func.func @transform_2(%arg0: i32) -> (i32, i32) {
    %c0_i32 = arith.constant 0 : i32
    %c0_i32_0 = arith.constant 0 : i32
    %c0_i32_1 = arith.constant 0 : i32
    return %c0_i32, %c0_i32_0 : i32, i32
  }
  func.func @transform_3(%arg0: i32) -> (i32, i32) {
    %c0_i32 = arith.constant 0 : i32
    %c0_i32_0 = arith.constant 0 : i32
    %c0_i32_1 = arith.constant 0 : i32
    return %c0_i32, %c0_i32_0 : i32, i32
  }
  func.func @transform_4(%arg0: i32) -> (i32, i32) {
    %c0_i32 = arith.constant 0 : i32
    %c0_i32_0 = arith.constant 0 : i32
    %c0_i32_1 = arith.constant 0 : i32
    return %c0_i32, %c0_i32_0 : i32, i32
  }
  func.func @transform_5(%arg0: i32) -> (i32, i32) {
    %c0_i32 = arith.constant 0 : i32
    %c0_i32_0 = arith.constant 0 : i32
    %c0_i32_1 = arith.constant 0 : i32
    return %c0_i32, %c0_i32_0 : i32, i32
  }
  func.func @transform_6(%arg0: i32) -> (i32, i32, i32) {
    %c0_i32 = arith.constant 0 : i32
    %c0_i32_0 = arith.constant 0 : i32
    %c0_i32_1 = arith.constant 0 : i32
    return %arg0, %c0_i32, %c0_i32_0 : i32, i32, i32
  }
  func.func @transform_7(%arg0: i32) -> (i32, i32, i32) {
    %c0_i32 = arith.constant 0 : i32
    %c0_i32_0 = arith.constant 0 : i32
    %c0_i32_1 = arith.constant 0 : i32
    return %arg0, %c0_i32, %c0_i32_0 : i32, i32, i32
  }
}

module attributes {stable_mosaic.version = 11 : i64} {
  func.func @kernel(%arg0: i32, %arg1: i32, %arg2: memref<1x8x8x128xf32, #tpu.memory_space<vmem>>, %arg3: memref<1x1x128xf32, #tpu.memory_space<vmem>>, %arg4: memref<1x1x128xf32, #tpu.memory_space<vmem>>, %arg5: memref<1152x128xbf16, #tpu.memory_space<vmem>>, %arg6: memref<1x128xf32, #tpu.memory_space<vmem>>, %arg7: memref<1x64x64xf32, #tpu.memory_space<vmem>>, %arg8: memref<64x128xbf16, #tpu.memory_space<vmem>>, %arg9: memref<1x128xf32, #tpu.memory_space<vmem>>, %arg10: memref<1x64x128xf32, #tpu.memory_space<vmem>>, %arg11: memref<10x10x128xf32, #tpu.memory_space<vmem>>, %arg12: memref<64x1152xbf16, #tpu.memory_space<vmem>>) attributes {dimension_semantics = [#tpu.dimension_semantics<parallel>, #tpu.dimension_semantics<arbitrary>], iteration_bounds = array<i64: 2, 1>, scalar_prefetch = 0 : i64, scratch_operands = 2 : i64, tpu.core_type = #tpu.core_type<tc>, window_params = [{transform_indices = @transform_0, window_bounds = array<i64: 1, 8, 8, 128>}, {transform_indices = @transform_1, window_bounds = array<i64: 1, 1, 128>}, {transform_indices = @transform_2, window_bounds = array<i64: 1, 1, 128>}, {pipeline_mode = #tpu.pipeline_mode<synchronous>, transform_indices = @transform_3, window_bounds = array<i64: 1152, 128>}, {pipeline_mode = #tpu.pipeline_mode<synchronous>, transform_indices = @transform_4, window_bounds = array<i64: 1, 128>}, {transform_indices = @transform_5, window_bounds = array<i64: 1, 64, 64>}, {pipeline_mode = #tpu.pipeline_mode<synchronous>, transform_indices = @transform_6, window_bounds = array<i64: 64, 128>}, {pipeline_mode = #tpu.pipeline_mode<synchronous>, transform_indices = @transform_7, window_bounds = array<i64: 1, 128>}, {transform_indices = @transform_8, window_bounds = array<i64: 1, 64, 128>}]} {
    %c0_i32 = arith.constant 0 : i32
    %0 = arith.cmpi eq, %arg1, %c0_i32 : i32
    %1 = arith.extui %0 : i1 to i32
    %c0_i32_0 = arith.constant 0 : i32
    %2 = arith.cmpi ne, %1, %c0_i32_0 : i32
    scf.if %2 {
      %cst_50 = arith.constant 0.000000e+00 : f32
      %77 = vector.broadcast %cst_50 : f32 to vector<10x10x128xf32>
      %c0_51 = arith.constant 0 : index
      %c0_52 = arith.constant 0 : index
      %c0_53 = arith.constant 0 : index
      %78 = vector.load %arg11[%c0_51, %c0_52, %c0_53] : memref<10x10x128xf32, #tpu.memory_space<vmem>>, vector<10x10x128xf32>
      tpu.vector_store %arg11[%c0_51, %c0_52, %c0_53], %77 {strides = array<i32>} : memref<10x10x128xf32, #tpu.memory_space<vmem>>, vector<10x10x128xf32>,
      %c0_54 = arith.constant 0 : index
      %c0_55 = arith.constant 0 : index
      %c0_56 = arith.constant 0 : index
      %c0_57 = arith.constant 0 : index
      %79 = vector.load %arg2[%c0_54, %c0_55, %c0_56, %c0_57] : memref<1x8x8x128xf32, #tpu.memory_space<vmem>>, vector<1x8x8x128xf32>
      %80 = vector.shape_cast %79 : vector<1x8x8x128xf32> to vector<8x8x128xf32>
      %c0_58 = arith.constant 0 : index
      %c0_59 = arith.constant 0 : index
      %c0_60 = arith.constant 0 : index
      %81 = vector.load %arg3[%c0_58, %c0_59, %c0_60] : memref<1x1x128xf32, #tpu.memory_space<vmem>>, vector<1x1x128xf32>
      %82 = vector.shape_cast %81 : vector<1x1x128xf32> to vector<128xf32>
      %83 = vector.shape_cast %82 : vector<128xf32> to vector<1x1x128xf32>
      %84 = vector.broadcast %83 : vector<1x1x128xf32> to vector<8x8x128xf32>
      %85 = arith.mulf %80, %84 : vector<8x8x128xf32>
      %c0_61 = arith.constant 0 : index
      %c0_62 = arith.constant 0 : index
      %c0_63 = arith.constant 0 : index
      %86 = vector.load %arg4[%c0_61, %c0_62, %c0_63] : memref<1x1x128xf32, #tpu.memory_space<vmem>>, vector<1x1x128xf32>
      %87 = vector.shape_cast %86 : vector<1x1x128xf32> to vector<128xf32>
      %88 = vector.shape_cast %87 : vector<128xf32> to vector<1x1x128xf32>
      %89 = vector.broadcast %88 : vector<1x1x128xf32> to vector<8x8x128xf32>
      %90 = arith.addf %85, %89 : vector<8x8x128xf32>
      %cst_64 = arith.constant 0.000000e+00 : f32
      %91 = vector.broadcast %cst_64 : f32 to vector<8x8x128xf32>
      %92 = arith.subf %91, %90 : vector<8x8x128xf32>
      %93 = math.exp %92 : vector<8x8x128xf32>
      %cst_65 = arith.constant 1.000000e+00 : f32
      %94 = vector.broadcast %cst_65 : f32 to vector<8x8x128xf32>
      %95 = arith.addf %94, %93 : vector<8x8x128xf32>
      %96 = arith.divf %90, %95 : vector<8x8x128xf32>
      %c1_66 = arith.constant 1 : index
      %c1_67 = arith.constant 1 : index
      %c0_68 = arith.constant 0 : index
      %97 = vector.load %arg11[%c1_66, %c1_67, %c0_68] : memref<10x10x128xf32, #tpu.memory_space<vmem>>, vector<8x8x128xf32>
      tpu.vector_store %arg11[%c1_66, %c1_67, %c0_68], %96 {strides = array<i32>} : memref<10x10x128xf32, #tpu.memory_space<vmem>>, vector<8x8x128xf32>,
    } else {
    }
    %c8_i32 = arith.constant 8 : i32
    %3 = arith.muli %arg1, %c8_i32 : i32
    %4 = tpu.assume_multiple %3, 8 : i32
    %c0_i32_1 = arith.constant 0 : i32
    %5 = arith.addi %4, %c0_i32_1 : i32
    %6 = arith.index_cast %5 : i32 to index
    %c0 = arith.constant 0 : index
    %c0_2 = arith.constant 0 : index
    %7 = vector.load %arg11[%6, %c0, %c0_2] : memref<10x10x128xf32, #tpu.memory_space<vmem>>, vector<8x8x128xf32>
    %8 = vector.shape_cast %7 : vector<8x8x128xf32> to vector<64x128xf32>
    %9 = arith.truncf %8 : vector<64x128xf32> to vector<64x128xbf16>
    %c0_3 = arith.constant 0 : index
    %c0_4 = arith.constant 0 : index
    %10 = vector.load %arg12[%c0_3, %c0_4] : memref<64x1152xbf16, #tpu.memory_space<vmem>>, vector<64x128xbf16>
    tpu.vector_store %arg12[%c0_3, %c0_4], %9 {strides = array<i32>} : memref<64x1152xbf16, #tpu.memory_space<vmem>>, vector<64x128xbf16>,
    %c0_i32_5 = arith.constant 0 : i32
    %11 = arith.addi %4, %c0_i32_5 : i32
    %12 = arith.index_cast %11 : i32 to index
    %c1 = arith.constant 1 : index
    %c0_6 = arith.constant 0 : index
    %13 = vector.load %arg11[%12, %c1, %c0_6] : memref<10x10x128xf32, #tpu.memory_space<vmem>>, vector<8x8x128xf32>
    %14 = vector.shape_cast %13 : vector<8x8x128xf32> to vector<64x128xf32>
    %15 = arith.truncf %14 : vector<64x128xf32> to vector<64x128xbf16>
    %c0_7 = arith.constant 0 : index
    %c128 = arith.constant 128 : index
    %16 = vector.load %arg12[%c0_7, %c128] : memref<64x1152xbf16, #tpu.memory_space<vmem>>, vector<64x128xbf16>
    tpu.vector_store %arg12[%c0_7, %c128], %15 {strides = array<i32>} : memref<64x1152xbf16, #tpu.memory_space<vmem>>, vector<64x128xbf16>,
    %c0_i32_8 = arith.constant 0 : i32
    %17 = arith.addi %4, %c0_i32_8 : i32
    %18 = arith.index_cast %17 : i32 to index
    %c2 = arith.constant 2 : index
    %c0_9 = arith.constant 0 : index
    %19 = vector.load %arg11[%18, %c2, %c0_9] : memref<10x10x128xf32, #tpu.memory_space<vmem>>, vector<8x8x128xf32>
    %20 = vector.shape_cast %19 : vector<8x8x128xf32> to vector<64x128xf32>
    %21 = arith.truncf %20 : vector<64x128xf32> to vector<64x128xbf16>
    %c0_10 = arith.constant 0 : index
    %c256 = arith.constant 256 : index
    %22 = vector.load %arg12[%c0_10, %c256] : memref<64x1152xbf16, #tpu.memory_space<vmem>>, vector<64x128xbf16>
    tpu.vector_store %arg12[%c0_10, %c256], %21 {strides = array<i32>} : memref<64x1152xbf16, #tpu.memory_space<vmem>>, vector<64x128xbf16>,
    %c1_i32 = arith.constant 1 : i32
    %23 = arith.addi %4, %c1_i32 : i32
    %24 = arith.index_cast %23 : i32 to index
    %c0_11 = arith.constant 0 : index
    %c0_12 = arith.constant 0 : index
    %25 = vector.load %arg11[%24, %c0_11, %c0_12] : memref<10x10x128xf32, #tpu.memory_space<vmem>>, vector<8x8x128xf32>
    %26 = vector.shape_cast %25 : vector<8x8x128xf32> to vector<64x128xf32>
    %27 = arith.truncf %26 : vector<64x128xf32> to vector<64x128xbf16>
    %c0_13 = arith.constant 0 : index
    %c384 = arith.constant 384 : index
    %28 = vector.load %arg12[%c0_13, %c384] : memref<64x1152xbf16, #tpu.memory_space<vmem>>, vector<64x128xbf16>
    tpu.vector_store %arg12[%c0_13, %c384], %27 {strides = array<i32>} : memref<64x1152xbf16, #tpu.memory_space<vmem>>, vector<64x128xbf16>,
    %c1_i32_14 = arith.constant 1 : i32
    %29 = arith.addi %4, %c1_i32_14 : i32
    %30 = arith.index_cast %29 : i32 to index
    %c1_15 = arith.constant 1 : index
    %c0_16 = arith.constant 0 : index
    %31 = vector.load %arg11[%30, %c1_15, %c0_16] : memref<10x10x128xf32, #tpu.memory_space<vmem>>, vector<8x8x128xf32>
    %32 = vector.shape_cast %31 : vector<8x8x128xf32> to vector<64x128xf32>
    %33 = arith.truncf %32 : vector<64x128xf32> to vector<64x128xbf16>
    %c0_17 = arith.constant 0 : index
    %c512 = arith.constant 512 : index
    %34 = vector.load %arg12[%c0_17, %c512] : memref<64x1152xbf16, #tpu.memory_space<vmem>>, vector<64x128xbf16>
    tpu.vector_store %arg12[%c0_17, %c512], %33 {strides = array<i32>} : memref<64x1152xbf16, #tpu.memory_space<vmem>>, vector<64x128xbf16>,
    %c1_i32_18 = arith.constant 1 : i32
    %35 = arith.addi %4, %c1_i32_18 : i32
    %36 = arith.index_cast %35 : i32 to index
    %c2_19 = arith.constant 2 : index
    %c0_20 = arith.constant 0 : index
    %37 = vector.load %arg11[%36, %c2_19, %c0_20] : memref<10x10x128xf32, #tpu.memory_space<vmem>>, vector<8x8x128xf32>
    %38 = vector.shape_cast %37 : vector<8x8x128xf32> to vector<64x128xf32>
    %39 = arith.truncf %38 : vector<64x128xf32> to vector<64x128xbf16>
    %c0_21 = arith.constant 0 : index
    %c640 = arith.constant 640 : index
    %40 = vector.load %arg12[%c0_21, %c640] : memref<64x1152xbf16, #tpu.memory_space<vmem>>, vector<64x128xbf16>
    tpu.vector_store %arg12[%c0_21, %c640], %39 {strides = array<i32>} : memref<64x1152xbf16, #tpu.memory_space<vmem>>, vector<64x128xbf16>,
    %c2_i32 = arith.constant 2 : i32
    %41 = arith.addi %4, %c2_i32 : i32
    %42 = arith.index_cast %41 : i32 to index
    %c0_22 = arith.constant 0 : index
    %c0_23 = arith.constant 0 : index
    %43 = vector.load %arg11[%42, %c0_22, %c0_23] : memref<10x10x128xf32, #tpu.memory_space<vmem>>, vector<8x8x128xf32>
    %44 = vector.shape_cast %43 : vector<8x8x128xf32> to vector<64x128xf32>
    %45 = arith.truncf %44 : vector<64x128xf32> to vector<64x128xbf16>
    %c0_24 = arith.constant 0 : index
    %c768 = arith.constant 768 : index
    %46 = vector.load %arg12[%c0_24, %c768] : memref<64x1152xbf16, #tpu.memory_space<vmem>>, vector<64x128xbf16>
    tpu.vector_store %arg12[%c0_24, %c768], %45 {strides = array<i32>} : memref<64x1152xbf16, #tpu.memory_space<vmem>>, vector<64x128xbf16>,
    %c2_i32_25 = arith.constant 2 : i32
    %47 = arith.addi %4, %c2_i32_25 : i32
    %48 = arith.index_cast %47 : i32 to index
    %c1_26 = arith.constant 1 : index
    %c0_27 = arith.constant 0 : index
    %49 = vector.load %arg11[%48, %c1_26, %c0_27] : memref<10x10x128xf32, #tpu.memory_space<vmem>>, vector<8x8x128xf32>
    %50 = vector.shape_cast %49 : vector<8x8x128xf32> to vector<64x128xf32>
    %51 = arith.truncf %50 : vector<64x128xf32> to vector<64x128xbf16>
    %c0_28 = arith.constant 0 : index
    %c896 = arith.constant 896 : index
    %52 = vector.load %arg12[%c0_28, %c896] : memref<64x1152xbf16, #tpu.memory_space<vmem>>, vector<64x128xbf16>
    tpu.vector_store %arg12[%c0_28, %c896], %51 {strides = array<i32>} : memref<64x1152xbf16, #tpu.memory_space<vmem>>, vector<64x128xbf16>,
    %c2_i32_29 = arith.constant 2 : i32
    %53 = arith.addi %4, %c2_i32_29 : i32
    %54 = arith.index_cast %53 : i32 to index
    %c2_30 = arith.constant 2 : index
    %c0_31 = arith.constant 0 : index
    %55 = vector.load %arg11[%54, %c2_30, %c0_31] : memref<10x10x128xf32, #tpu.memory_space<vmem>>, vector<8x8x128xf32>
    %56 = vector.shape_cast %55 : vector<8x8x128xf32> to vector<64x128xf32>
    %57 = arith.truncf %56 : vector<64x128xf32> to vector<64x128xbf16>
    %c0_32 = arith.constant 0 : index
    %c1024 = arith.constant 1024 : index
    %58 = vector.load %arg12[%c0_32, %c1024] : memref<64x1152xbf16, #tpu.memory_space<vmem>>, vector<64x128xbf16>
    tpu.vector_store %arg12[%c0_32, %c1024], %57 {strides = array<i32>} : memref<64x1152xbf16, #tpu.memory_space<vmem>>, vector<64x128xbf16>,
    %c0_33 = arith.constant 0 : index
    %c0_34 = arith.constant 0 : index
    %59 = vector.load %arg12[%c0_33, %c0_34] : memref<64x1152xbf16, #tpu.memory_space<vmem>>, vector<64x1152xbf16>
    %c0_35 = arith.constant 0 : index
    %c0_36 = arith.constant 0 : index
    %60 = vector.load %arg5[%c0_35, %c0_36] : memref<1152x128xbf16, #tpu.memory_space<vmem>>, vector<1152x128xbf16>
    %cst = arith.constant dense<0.000000e+00> : vector<64x128xf32>
    %61 = tpu.matmul %59, %60, %cst {dimension_numbers = #tpu.dot_dimension_numbers<[1], [0], [0], [1], [0, 0, 1, 1], [], []>} : vector<64x1152xbf16>, vector<1152x128xbf16>, vector<64x128xf32> -> vector<64x128xf32>
    %c0_37 = arith.constant 0 : index
    %c0_38 = arith.constant 0 : index
    %62 = vector.load %arg6[%c0_37, %c0_38] : memref<1x128xf32, #tpu.memory_space<vmem>>, vector<1x128xf32>
    %63 = vector.broadcast %62 : vector<1x128xf32> to vector<64x128xf32>
    %64 = arith.addf %61, %63 : vector<64x128xf32>
    %c0_39 = arith.constant 0 : index
    %c0_40 = arith.constant 0 : index
    %c0_41 = arith.constant 0 : index
    %65 = vector.load %arg7[%c0_39, %c0_40, %c0_41] : memref<1x64x64xf32, #tpu.memory_space<vmem>>, vector<1x64x64xf32>
    %66 = vector.shape_cast %65 : vector<1x64x64xf32> to vector<64x64xf32>
    %67 = arith.truncf %66 : vector<64x64xf32> to vector<64x64xbf16>
    %c0_42 = arith.constant 0 : index
    %c0_43 = arith.constant 0 : index
    %68 = vector.load %arg8[%c0_42, %c0_43] : memref<64x128xbf16, #tpu.memory_space<vmem>>, vector<64x128xbf16>
    %cst_44 = arith.constant dense<0.000000e+00> : vector<64x128xf32>
    %69 = tpu.matmul %67, %68, %cst_44 {dimension_numbers = #tpu.dot_dimension_numbers<[1], [0], [0], [1], [0, 0, 1, 1], [], []>} : vector<64x64xbf16>, vector<64x128xbf16>, vector<64x128xf32> -> vector<64x128xf32>
    %70 = arith.addf %64, %69 : vector<64x128xf32>
    %c0_45 = arith.constant 0 : index
    %c0_46 = arith.constant 0 : index
    %71 = vector.load %arg9[%c0_45, %c0_46] : memref<1x128xf32, #tpu.memory_space<vmem>>, vector<1x128xf32>
    %72 = vector.broadcast %71 : vector<1x128xf32> to vector<64x128xf32>
    %73 = arith.addf %70, %72 : vector<64x128xf32>
    %c0_47 = arith.constant 0 : index
    %c0_48 = arith.constant 0 : index
    %c0_49 = arith.constant 0 : index
    %74 = vector.load %arg10[%c0_47, %c0_48, %c0_49] : memref<1x64x128xf32, #tpu.memory_space<vmem>>, vector<1x64x128xf32>
    %75 = vector.shape_cast %74 : vector<1x64x128xf32> to vector<64x128xf32>
    %76 = vector.shape_cast %73 : vector<64x128xf32> to vector<1x64x128xf32>
    tpu.vector_store %arg10[%c0_47, %c0_48, %c0_49], %76 {strides = array<i32>} : memref<1x64x128xf32, #tpu.memory_space<vmem>>, vector<1x64x128xf32>,
    return
  }
  func.func @transform_0(%arg0: i32, %arg1: i32) -> (i32, i32, i32, i32) {
    %c0_i32 = arith.constant 0 : i32
    %c0_i32_0 = arith.constant 0 : i32
    %c0_i32_1 = arith.constant 0 : i32
    %c0_i32_2 = arith.constant 0 : i32
    return %arg0, %c0_i32, %c0_i32_0, %c0_i32_1 : i32, i32, i32, i32
  }
  func.func @transform_1(%arg0: i32, %arg1: i32) -> (i32, i32, i32) {
    %c0_i32 = arith.constant 0 : i32
    %c0_i32_0 = arith.constant 0 : i32
    %c0_i32_1 = arith.constant 0 : i32
    return %arg0, %c0_i32, %c0_i32_0 : i32, i32, i32
  }
  func.func @transform_2(%arg0: i32, %arg1: i32) -> (i32, i32, i32) {
    %c0_i32 = arith.constant 0 : i32
    %c0_i32_0 = arith.constant 0 : i32
    %c0_i32_1 = arith.constant 0 : i32
    return %arg0, %c0_i32, %c0_i32_0 : i32, i32, i32
  }
  func.func @transform_3(%arg0: i32, %arg1: i32) -> (i32, i32) {
    %c0_i32 = arith.constant 0 : i32
    %c0_i32_0 = arith.constant 0 : i32
    %c0_i32_1 = arith.constant 0 : i32
    return %c0_i32, %c0_i32_0 : i32, i32
  }
  func.func @transform_4(%arg0: i32, %arg1: i32) -> (i32, i32) {
    %c0_i32 = arith.constant 0 : i32
    %c0_i32_0 = arith.constant 0 : i32
    %c0_i32_1 = arith.constant 0 : i32
    return %c0_i32, %c0_i32_0 : i32, i32
  }
  func.func @transform_5(%arg0: i32, %arg1: i32) -> (i32, i32, i32) {
    %c0_i32 = arith.constant 0 : i32
    %c0_i32_0 = arith.constant 0 : i32
    return %arg0, %arg1, %c0_i32 : i32, i32, i32
  }
  func.func @transform_6(%arg0: i32, %arg1: i32) -> (i32, i32) {
    %c0_i32 = arith.constant 0 : i32
    %c0_i32_0 = arith.constant 0 : i32
    %c0_i32_1 = arith.constant 0 : i32
    return %c0_i32, %c0_i32_0 : i32, i32
  }
  func.func @transform_7(%arg0: i32, %arg1: i32) -> (i32, i32) {
    %c0_i32 = arith.constant 0 : i32
    %c0_i32_0 = arith.constant 0 : i32
    %c0_i32_1 = arith.constant 0 : i32
    return %c0_i32, %c0_i32_0 : i32, i32
  }
  func.func @transform_8(%arg0: i32, %arg1: i32) -> (i32, i32, i32) {
    %c0_i32 = arith.constant 0 : i32
    %c0_i32_0 = arith.constant 0 : i32
    return %arg0, %arg1, %c0_i32 : i32, i32, i32
  }
}

module attributes {stable_mosaic.version = 11 : i64} {
  func.func @kernel(%arg0: i32, %arg1: i32, %arg2: memref<1x64x128xf32, #tpu.memory_space<vmem>>, %arg3: memref<128x384xbf16, #tpu.memory_space<vmem>>, %arg4: memref<1x384xf32, #tpu.memory_space<vmem>>, %arg5: memref<1x64x128xbf16, #tpu.memory_space<vmem>>, %arg6: memref<1x64x128xbf16, #tpu.memory_space<vmem>>, %arg7: memref<1x64x128xbf16, #tpu.memory_space<vmem>>) attributes {dimension_semantics = [#tpu.dimension_semantics<parallel>, #tpu.dimension_semantics<parallel>], iteration_bounds = array<i64: 2, 1>, scalar_prefetch = 0 : i64, scratch_operands = 0 : i64, tpu.core_type = #tpu.core_type<tc>, window_params = [{transform_indices = @transform_0, window_bounds = array<i64: 1, 64, 128>}, {pipeline_mode = #tpu.pipeline_mode<synchronous>, transform_indices = @transform_1, window_bounds = array<i64: 128, 384>}, {pipeline_mode = #tpu.pipeline_mode<synchronous>, transform_indices = @transform_2, window_bounds = array<i64: 1, 384>}, {transform_indices = @transform_3, window_bounds = array<i64: 1, 64, 128>}, {transform_indices = @transform_4, window_bounds = array<i64: 1, 64, 128>}, {transform_indices = @transform_5, window_bounds = array<i64: 1, 64, 128>}]} {
    %c0 = arith.constant 0 : index
    %c0_0 = arith.constant 0 : index
    %c0_1 = arith.constant 0 : index
    %0 = vector.load %arg2[%c0, %c0_0, %c0_1] : memref<1x64x128xf32, #tpu.memory_space<vmem>>, vector<1x64x128xf32>
    %1 = vector.shape_cast %0 : vector<1x64x128xf32> to vector<64x128xf32>
    %2 = arith.truncf %1 : vector<64x128xf32> to vector<64x128xbf16>
    %c0_2 = arith.constant 0 : index
    %c0_3 = arith.constant 0 : index
    %3 = vector.load %arg3[%c0_2, %c0_3] : memref<128x384xbf16, #tpu.memory_space<vmem>>, vector<128x384xbf16>
    %cst = arith.constant dense<0.000000e+00> : vector<64x384xf32>
    %4 = tpu.matmul %2, %3, %cst {dimension_numbers = #tpu.dot_dimension_numbers<[1], [0], [0], [1], [0, 0, 1, 1], [], []>} : vector<64x128xbf16>, vector<128x384xbf16>, vector<64x384xf32> -> vector<64x384xf32>
    %c0_4 = arith.constant 0 : index
    %c0_5 = arith.constant 0 : index
    %5 = vector.load %arg4[%c0_4, %c0_5] : memref<1x384xf32, #tpu.memory_space<vmem>>, vector<1x384xf32>
    %6 = vector.broadcast %5 : vector<1x384xf32> to vector<64x384xf32>
    %7 = arith.addf %4, %6 : vector<64x384xf32>
    %8 = vector.extract_strided_slice %7 {offsets = [0, 0], sizes = [64, 128], strides = [1, 1]} : vector<64x384xf32> to vector<64x128xf32>
    %9 = arith.truncf %8 : vector<64x128xf32> to vector<64x128xbf16>
    %c0_6 = arith.constant 0 : index
    %c0_7 = arith.constant 0 : index
    %c0_8 = arith.constant 0 : index
    %10 = vector.load %arg5[%c0_6, %c0_7, %c0_8] : memref<1x64x128xbf16, #tpu.memory_space<vmem>>, vector<1x64x128xbf16>
    %11 = vector.shape_cast %10 : vector<1x64x128xbf16> to vector<64x128xbf16>
    %12 = vector.shape_cast %9 : vector<64x128xbf16> to vector<1x64x128xbf16>
    tpu.vector_store %arg5[%c0_6, %c0_7, %c0_8], %12 {strides = array<i32>} : memref<1x64x128xbf16, #tpu.memory_space<vmem>>, vector<1x64x128xbf16>,
    %13 = vector.extract_strided_slice %7 {offsets = [0, 128], sizes = [64, 128], strides = [1, 1]} : vector<64x384xf32> to vector<64x128xf32>
    %14 = arith.truncf %13 : vector<64x128xf32> to vector<64x128xbf16>
    %c0_9 = arith.constant 0 : index
    %c0_10 = arith.constant 0 : index
    %c0_11 = arith.constant 0 : index
    %15 = vector.load %arg6[%c0_9, %c0_10, %c0_11] : memref<1x64x128xbf16, #tpu.memory_space<vmem>>, vector<1x64x128xbf16>
    %16 = vector.shape_cast %15 : vector<1x64x128xbf16> to vector<64x128xbf16>
    %17 = vector.shape_cast %14 : vector<64x128xbf16> to vector<1x64x128xbf16>
    tpu.vector_store %arg6[%c0_9, %c0_10, %c0_11], %17 {strides = array<i32>} : memref<1x64x128xbf16, #tpu.memory_space<vmem>>, vector<1x64x128xbf16>,
    %18 = vector.extract_strided_slice %7 {offsets = [0, 256], sizes = [64, 128], strides = [1, 1]} : vector<64x384xf32> to vector<64x128xf32>
    %19 = arith.truncf %18 : vector<64x128xf32> to vector<64x128xbf16>
    %c0_12 = arith.constant 0 : index
    %c0_13 = arith.constant 0 : index
    %c0_14 = arith.constant 0 : index
    %20 = vector.load %arg7[%c0_12, %c0_13, %c0_14] : memref<1x64x128xbf16, #tpu.memory_space<vmem>>, vector<1x64x128xbf16>
    %21 = vector.shape_cast %20 : vector<1x64x128xbf16> to vector<64x128xbf16>
    %22 = vector.shape_cast %19 : vector<64x128xbf16> to vector<1x64x128xbf16>
    tpu.vector_store %arg7[%c0_12, %c0_13, %c0_14], %22 {strides = array<i32>} : memref<1x64x128xbf16, #tpu.memory_space<vmem>>, vector<1x64x128xbf16>,
    return
  }
  func.func @transform_0(%arg0: i32, %arg1: i32) -> (i32, i32, i32) {
    %c0_i32 = arith.constant 0 : i32
    %c0_i32_0 = arith.constant 0 : i32
    return %arg0, %arg1, %c0_i32 : i32, i32, i32
  }
  func.func @transform_1(%arg0: i32, %arg1: i32) -> (i32, i32) {
    %c0_i32 = arith.constant 0 : i32
    %c0_i32_0 = arith.constant 0 : i32
    %c0_i32_1 = arith.constant 0 : i32
    return %c0_i32, %c0_i32_0 : i32, i32
  }
  func.func @transform_2(%arg0: i32, %arg1: i32) -> (i32, i32) {
    %c0_i32 = arith.constant 0 : i32
    %c0_i32_0 = arith.constant 0 : i32
    %c0_i32_1 = arith.constant 0 : i32
    return %c0_i32, %c0_i32_0 : i32, i32
  }
  func.func @transform_3(%arg0: i32, %arg1: i32) -> (i32, i32, i32) {
    %c0_i32 = arith.constant 0 : i32
    %c0_i32_0 = arith.constant 0 : i32
    return %arg0, %arg1, %c0_i32 : i32, i32, i32
  }
  func.func @transform_4(%arg0: i32, %arg1: i32) -> (i32, i32, i32) {
    %c0_i32 = arith.constant 0 : i32
    %c0_i32_0 = arith.constant 0 : i32
    return %arg0, %arg1, %c0_i32 : i32, i32, i32
  }
  func.func @transform_5(%arg0: i32, %arg1: i32) -> (i32, i32, i32) {
    %c0_i32 = arith.constant 0 : i32
    %c0_i32_0 = arith.constant 0 : i32
    return %arg0, %arg1, %c0_i32 : i32, i32, i32
  }
}

module attributes {stable_mosaic.version = 11 : i64} {
  func.func @kernel(%arg0: i32, %arg1: i32, %arg2: i32, %arg3: memref<1x64x128xbf16, #tpu.memory_space<vmem>>, %arg4: memref<1x64x128xbf16, #tpu.memory_space<vmem>>, %arg5: memref<1x64x128xbf16, #tpu.memory_space<vmem>>, %arg6: memref<128x128xbf16, #tpu.memory_space<vmem>>, %arg7: memref<1x128xf32, #tpu.memory_space<vmem>>, %arg8: memref<1x64x128xf32, #tpu.memory_space<vmem>>, %arg9: memref<1x64x128xf32, #tpu.memory_space<vmem>>, %arg10: memref<64x1xf32, #tpu.memory_space<vmem>>, %arg11: memref<64x1xf32, #tpu.memory_space<vmem>>, %arg12: memref<64x128xf32, #tpu.memory_space<vmem>>) attributes {dimension_semantics = [#tpu.dimension_semantics<parallel>, #tpu.dimension_semantics<parallel>, #tpu.dimension_semantics<arbitrary>], iteration_bounds = array<i64: 2, 1, 1>, scalar_prefetch = 0 : i64, scratch_operands = 3 : i64, tpu.core_type = #tpu.core_type<tc>, window_params = [{transform_indices = @transform_0, window_bounds = array<i64: 1, 64, 128>}, {transform_indices = @transform_1, window_bounds = array<i64: 1, 64, 128>}, {transform_indices = @transform_2, window_bounds = array<i64: 1, 64, 128>}, {pipeline_mode = #tpu.pipeline_mode<synchronous>, transform_indices = @transform_3, window_bounds = array<i64: 128, 128>}, {pipeline_mode = #tpu.pipeline_mode<synchronous>, transform_indices = @transform_4, window_bounds = array<i64: 1, 128>}, {transform_indices = @transform_5, window_bounds = array<i64: 1, 64, 128>}, {transform_indices = @transform_6, window_bounds = array<i64: 1, 64, 128>}]} {
    %c0_i32 = arith.constant 0 : i32
    %0 = arith.cmpi eq, %arg2, %c0_i32 : i32
    %1 = arith.extui %0 : i1 to i32
    %c0_i32_0 = arith.constant 0 : i32
    %2 = arith.cmpi ne, %1, %c0_i32_0 : i32
    scf.if %2 {
      %cst_26 = arith.constant 0xFF800000 : f32
      %36 = vector.broadcast %cst_26 : f32 to vector<64x1xf32>
      %c0_27 = arith.constant 0 : index
      %c0_28 = arith.constant 0 : index
      %37 = vector.load %arg10[%c0_27, %c0_28] : memref<64x1xf32, #tpu.memory_space<vmem>>, vector<64x1xf32>
      tpu.vector_store %arg10[%c0_27, %c0_28], %36 {strides = array<i32>} : memref<64x1xf32, #tpu.memory_space<vmem>>, vector<64x1xf32>,
      %cst_29 = arith.constant 0.000000e+00 : f32
      %38 = vector.broadcast %cst_29 : f32 to vector<64x1xf32>
      %c0_30 = arith.constant 0 : index
      %c0_31 = arith.constant 0 : index
      %39 = vector.load %arg11[%c0_30, %c0_31] : memref<64x1xf32, #tpu.memory_space<vmem>>, vector<64x1xf32>
      tpu.vector_store %arg11[%c0_30, %c0_31], %38 {strides = array<i32>} : memref<64x1xf32, #tpu.memory_space<vmem>>, vector<64x1xf32>,
      %cst_32 = arith.constant 0.000000e+00 : f32
      %40 = vector.broadcast %cst_32 : f32 to vector<64x128xf32>
      %c0_33 = arith.constant 0 : index
      %c0_34 = arith.constant 0 : index
      %41 = vector.load %arg12[%c0_33, %c0_34] : memref<64x128xf32, #tpu.memory_space<vmem>>, vector<64x128xf32>
      tpu.vector_store %arg12[%c0_33, %c0_34], %40 {strides = array<i32>} : memref<64x128xf32, #tpu.memory_space<vmem>>, vector<64x128xf32>,
    } else {
    }
    %c0 = arith.constant 0 : index
    %c0_1 = arith.constant 0 : index
    %c0_2 = arith.constant 0 : index
    %3 = vector.load %arg3[%c0, %c0_1, %c0_2] : memref<1x64x128xbf16, #tpu.memory_space<vmem>>, vector<1x64x128xbf16>
    %4 = vector.shape_cast %3 : vector<1x64x128xbf16> to vector<64x128xbf16>
    %c0_3 = arith.constant 0 : index
    %c0_4 = arith.constant 0 : index
    %c0_5 = arith.constant 0 : index
    %5 = vector.load %arg4[%c0_3, %c0_4, %c0_5] : memref<1x64x128xbf16, #tpu.memory_space<vmem>>, vector<1x64x128xbf16>
    %6 = vector.shape_cast %5 : vector<1x64x128xbf16> to vector<64x128xbf16>
    %cst = arith.constant dense<0.000000e+00> : vector<64x64xf32>
    %7 = tpu.matmul %4, %6, %cst {dimension_numbers = #tpu.dot_dimension_numbers<[1], [1], [0], [0], [0, 0, 1, 0], [], []>} : vector<64x128xbf16>, vector<64x128xbf16>, vector<64x64xf32> -> vector<64x64xf32>
    %c0_6 = arith.constant 0 : index
    %c0_7 = arith.constant 0 : index
    %8 = vector.load %arg10[%c0_6, %c0_7] : memref<64x1xf32, #tpu.memory_space<vmem>>, vector<64x1xf32>
    %cst_8 = arith.constant dense<0xFF800000> : vector<64xf32>
    %9 = vector.multi_reduction <maximumf>, %7, %cst_8 [1] : vector<64x64xf32> to vector<64xf32>
    %10 = vector.shape_cast %9 : vector<64xf32> to vector<64x1xf32>
    %11 = arith.maximumf %8, %10 : vector<64x1xf32>
    %12 = arith.subf %8, %11 : vector<64x1xf32>
    %13 = math.exp %12 : vector<64x1xf32>
    %14 = vector.broadcast %11 : vector<64x1xf32> to vector<64x64xf32>
    %15 = arith.subf %7, %14 : vector<64x64xf32>
    %16 = math.exp %15 : vector<64x64xf32>
    %c0_9 = arith.constant 0 : index
    %c0_10 = arith.constant 0 : index
    %17 = vector.load %arg11[%c0_9, %c0_10] : memref<64x1xf32, #tpu.memory_space<vmem>>, vector<64x1xf32>
    %18 = arith.mulf %13, %17 : vector<64x1xf32>
    %cst_11 = arith.constant dense<0.000000e+00> : vector<64xf32>
    %19 = vector.multi_reduction <add>, %16, %cst_11 [1] : vector<64x64xf32> to vector<64xf32>
    %20 = vector.shape_cast %19 : vector<64xf32> to vector<64x1xf32>
    %21 = arith.addf %18, %20 : vector<64x1xf32>
    %c0_12 = arith.constant 0 : index
    %c0_13 = arith.constant 0 : index
    %22 = vector.load %arg11[%c0_12, %c0_13] : memref<64x1xf32, #tpu.memory_space<vmem>>, vector<64x1xf32>
    tpu.vector_store %arg11[%c0_12, %c0_13], %21 {strides = array<i32>} : memref<64x1xf32, #tpu.memory_space<vmem>>, vector<64x1xf32>,
    %c0_14 = arith.constant 0 : index
    %c0_15 = arith.constant 0 : index
    %23 = vector.load %arg12[%c0_14, %c0_15] : memref<64x128xf32, #tpu.memory_space<vmem>>, vector<64x128xf32>
    %24 = vector.broadcast %13 : vector<64x1xf32> to vector<64x128xf32>
    %25 = arith.mulf %24, %23 : vector<64x128xf32>
    %26 = arith.truncf %16 : vector<64x64xf32> to vector<64x64xbf16>
    %c0_16 = arith.constant 0 : index
    %c0_17 = arith.constant 0 : index
    %c0_18 = arith.constant 0 : index
    %27 = vector.load %arg5[%c0_16, %c0_17, %c0_18] : memref<1x64x128xbf16, #tpu.memory_space<vmem>>, vector<1x64x128xbf16>
    %28 = vector.shape_cast %27 : vector<1x64x128xbf16> to vector<64x128xbf16>
    %cst_19 = arith.constant dense<0.000000e+00> : vector<64x128xf32>
    %29 = tpu.matmul %26, %28, %cst_19 {dimension_numbers = #tpu.dot_dimension_numbers<[1], [0], [0], [1], [0, 0, 1, 1], [], []>} : vector<64x64xbf16>, vector<64x128xbf16>, vector<64x128xf32> -> vector<64x128xf32>
    %30 = arith.addf %25, %29 : vector<64x128xf32>
    %c0_20 = arith.constant 0 : index
    %c0_21 = arith.constant 0 : index
    %31 = vector.load %arg12[%c0_20, %c0_21] : memref<64x128xf32, #tpu.memory_space<vmem>>, vector<64x128xf32>
    tpu.vector_store %arg12[%c0_20, %c0_21], %30 {strides = array<i32>} : memref<64x128xf32, #tpu.memory_space<vmem>>, vector<64x128xf32>,
    %c0_22 = arith.constant 0 : index
    %c0_23 = arith.constant 0 : index
    %32 = vector.load %arg10[%c0_22, %c0_23] : memref<64x1xf32, #tpu.memory_space<vmem>>, vector<64x1xf32>
    tpu.vector_store %arg10[%c0_22, %c0_23], %11 {strides = array<i32>} : memref<64x1xf32, #tpu.memory_space<vmem>>, vector<64x1xf32>,
    %c0_i32_24 = arith.constant 0 : i32
    %33 = arith.cmpi eq, %arg2, %c0_i32_24 : i32
    %34 = arith.extui %33 : i1 to i32
    %c0_i32_25 = arith.constant 0 : i32
    %35 = arith.cmpi ne, %34, %c0_i32_25 : i32
    scf.if %35 {
      %c0_26 = arith.constant 0 : index
      %c0_27 = arith.constant 0 : index
      %36 = vector.load %arg12[%c0_26, %c0_27] : memref<64x128xf32, #tpu.memory_space<vmem>>, vector<64x128xf32>
      %c0_28 = arith.constant 0 : index
      %c0_29 = arith.constant 0 : index
      %37 = vector.load %arg11[%c0_28, %c0_29] : memref<64x1xf32, #tpu.memory_space<vmem>>, vector<64x1xf32>
      %38 = vector.broadcast %37 : vector<64x1xf32> to vector<64x128xf32>
      %39 = arith.divf %36, %38 : vector<64x128xf32>
      %40 = arith.truncf %39 : vector<64x128xf32> to vector<64x128xbf16>
      %c0_30 = arith.constant 0 : index
      %c0_31 = arith.constant 0 : index
      %41 = vector.load %arg6[%c0_30, %c0_31] : memref<128x128xbf16, #tpu.memory_space<vmem>>, vector<128x128xbf16>
      %cst_32 = arith.constant dense<0.000000e+00> : vector<64x128xf32>
      %42 = tpu.matmul %40, %41, %cst_32 {dimension_numbers = #tpu.dot_dimension_numbers<[1], [0], [0], [1], [0, 0, 1, 1], [], []>} : vector<64x128xbf16>, vector<128x128xbf16>, vector<64x128xf32> -> vector<64x128xf32>
      %c0_33 = arith.constant 0 : index
      %c0_34 = arith.constant 0 : index
      %43 = vector.load %arg7[%c0_33, %c0_34] : memref<1x128xf32, #tpu.memory_space<vmem>>, vector<1x128xf32>
      %44 = vector.broadcast %43 : vector<1x128xf32> to vector<64x128xf32>
      %45 = arith.addf %42, %44 : vector<64x128xf32>
      %c0_35 = arith.constant 0 : index
      %c0_36 = arith.constant 0 : index
      %c0_37 = arith.constant 0 : index
      %46 = vector.load %arg8[%c0_35, %c0_36, %c0_37] : memref<1x64x128xf32, #tpu.memory_space<vmem>>, vector<1x64x128xf32>
      %47 = vector.shape_cast %46 : vector<1x64x128xf32> to vector<64x128xf32>
      %48 = arith.addf %45, %47 : vector<64x128xf32>
      %c0_38 = arith.constant 0 : index
      %c0_39 = arith.constant 0 : index
      %c0_40 = arith.constant 0 : index
      %49 = vector.load %arg9[%c0_38, %c0_39, %c0_40] : memref<1x64x128xf32, #tpu.memory_space<vmem>>, vector<1x64x128xf32>
      %50 = vector.shape_cast %49 : vector<1x64x128xf32> to vector<64x128xf32>
      %51 = vector.shape_cast %48 : vector<64x128xf32> to vector<1x64x128xf32>
      tpu.vector_store %arg9[%c0_38, %c0_39, %c0_40], %51 {strides = array<i32>} : memref<1x64x128xf32, #tpu.memory_space<vmem>>, vector<1x64x128xf32>,
    } else {
    }
    return
  }
  func.func @transform_0(%arg0: i32, %arg1: i32, %arg2: i32) -> (i32, i32, i32) {
    %c0_i32 = arith.constant 0 : i32
    %c0_i32_0 = arith.constant 0 : i32
    return %arg0, %arg1, %c0_i32 : i32, i32, i32
  }
  func.func @transform_1(%arg0: i32, %arg1: i32, %arg2: i32) -> (i32, i32, i32) {
    %c0_i32 = arith.constant 0 : i32
    %c0_i32_0 = arith.constant 0 : i32
    return %arg0, %arg2, %c0_i32 : i32, i32, i32
  }
  func.func @transform_2(%arg0: i32, %arg1: i32, %arg2: i32) -> (i32, i32, i32) {
    %c0_i32 = arith.constant 0 : i32
    %c0_i32_0 = arith.constant 0 : i32
    return %arg0, %arg2, %c0_i32 : i32, i32, i32
  }
  func.func @transform_3(%arg0: i32, %arg1: i32, %arg2: i32) -> (i32, i32) {
    %c0_i32 = arith.constant 0 : i32
    %c0_i32_0 = arith.constant 0 : i32
    %c0_i32_1 = arith.constant 0 : i32
    return %c0_i32, %c0_i32_0 : i32, i32
  }
  func.func @transform_4(%arg0: i32, %arg1: i32, %arg2: i32) -> (i32, i32) {
    %c0_i32 = arith.constant 0 : i32
    %c0_i32_0 = arith.constant 0 : i32
    %c0_i32_1 = arith.constant 0 : i32
    return %c0_i32, %c0_i32_0 : i32, i32
  }
  func.func @transform_5(%arg0: i32, %arg1: i32, %arg2: i32) -> (i32, i32, i32) {
    %c0_i32 = arith.constant 0 : i32
    %c0_i32_0 = arith.constant 0 : i32
    return %arg0, %arg1, %c0_i32 : i32, i32, i32
  }
  func.func @transform_6(%arg0: i32, %arg1: i32, %arg2: i32) -> (i32, i32, i32) {
    %c0_i32 = arith.constant 0 : i32
    %c0_i32_0 = arith.constant 0 : i32
    return %arg0, %arg1, %c0_i32 : i32, i32, i32
  }
}

</mosaic_0001>

<llo_original>
// kernel: down_block_forward.8
$region0: #{down_block_forward.8}
  #allocation0 [shape = 'u32[]', space=smem, size = 0x4, offset = 0x4, fixed_abs, tag = 'smem constant byte address 0x4 - core index']
  #allocation1 [shape = 'u32[144,128]{1,0:T(1,128)}', space=vmem, size = 0x12000, scoped, tag = 'internal scratch']
  %s0 = inlined_call_operand.hbm [shape: f32[2,64,64], index: 0, kind: input, shape index: {}]
  %s1 = inlined_call_operand.vmem [shape: f32[2,1,64], index: 1, kind: output, shape index: {0}]
  %s2 = inlined_call_operand.vmem [shape: f32[2,1,64], index: 2, kind: output, shape index: {1}]
  %3 = xla_tuple %s1, %s2
  %s4 = sld [smem:[#allocation0]]
  $region53: #{down_block_forward.8} parent=0
    _
  %s6 = ssub.s32 1, %s4
  %s7 = scalar_select 0, %s6, %s4
  $region1: #{down_block_forward.8} parent=0
    #allocation2 [shape = 'u8[65536]{0}', space=vmem, size = 0x10000, scoped, tag = 'input window, operand 0']
    #allocation3 [shape = 's32[2]{0}', space=sflag, size = 0x8, scoped, tag = 'scoped memory for down_block_forward.8']
    %8 = vsyncpa [#allocation3], 0
    %s9 = scalar_lea.sflag [#allocation3], 1
    %10 = vsyncpa %s9, 0
    loop: start=0, step=1, limit=4
    $region2: #{down_block_forward.8} parent=1 // loop_pre_header
      _
    $region3: #{down_block_forward.8} parent=1 // loop_header
      %s12 = sphi 0, %s16
      %p13 = scmp.ge.s32.totalorder %s12, 4
      %s19 = sphi 0, %s31
      %s20 = sphi 0, %s27
      %s21 = sphi 0, %s19
      %s22 = sphi 0, %s20
      %s23 = sphi 0, %s21
      %s24 = sphi 0, %s22
      %s36 = sphi 0, %s38
      %s39 = sphi 0, %s36
      %s40 = sphi 0, %s39
      %s56 = sphi 0, %s40
      %s62 = sphi 0, %s64
      %s65 = sphi 0, %s62
      %s66 = sphi 0, %s65
      %s82 = sphi 0, %s66
      %s88 = sphi 0, %s90
      %s91 = sphi 0, %s88
      %s92 = sphi 0, %s91
      %s108 = sphi 0, %s92
    $region4: #{down_block_forward.8} parent=1 // loop_header_branch
      %15 = sbr.rel (%p13) target = $region8
    $region5: #{down_block_forward.8} parent=1 // loop_body
      %s17 = ssub.s32 %s12, 1
      %s18 = ssub.s32 %s12, 2
      %s25 = sadd.s32 1, %s20
      %p26 = scmp.ge.s32.totalorder %s25, 1
      %s27 = scalar_select %p26, 0, %s25
      %s28 = sadd.s32 1, %s19
      %s29 = scalar_select %p26, %s28, %s19
      %p30 = scmp.ge.s32.totalorder %s29, 2
      %s31 = scalar_select %p30, 0, %s29
      %s32 = ssub.s32 %s19, %s31
      %s33 = ssub.s32 %s20, %s27
      %s34 = sor.u32 %s32, %s33
      %p35 = scmp.eq.s32.totalorder %s34, 0
      %s37 = sadd.s32 %s36, 1
      %s38 = scalar_select %p35, %s36, %s37
      %p41 = pneg %p35
      %p42 = scmp.eq.s32.totalorder %s12, 1
      %p43 = por %p41, %p42
      %p44 = scmp.ne.s32.totalorder %s36, %s39
      %p45 = scmp.eq.s32.totalorder %s12, 0
      %p46 = por %p44, %p45
      %p47 = scmp.ne.s32.totalorder %s36, %s39
      %p48 = scmp.eq.s32.totalorder %s17, 1
      %p49 = por %p47, %p48
      %p50 = scmp.ne.s32.totalorder %s39, %s40
      %p51 = scmp.eq.s32.totalorder %s17, 0
      %p52 = por %p50, %p51
      %p53 = scmp.ne.s32.totalorder %s39, %s40
      %p54 = scmp.eq.s32.totalorder %s18, 1
      %p55 = por %p53, %p54
      %p57 = scmp.ne.s32.totalorder %s40, %s56
      %p58 = scmp.eq.s32.totalorder %s18, 0
      %p59 = por %p57, %p58
      %s60 = ssub.s32 %s19, %s31
      %p61 = scmp.eq.s32.totalorder %s60, 0
      %s63 = sadd.s32 %s62, 1
      %s64 = scalar_select %p61, %s62, %s63
      %p67 = pneg %p61
      %p68 = scmp.eq.s32.totalorder %s12, 1
      %p69 = por %p67, %p68
      %p70 = scmp.ne.s32.totalorder %s62, %s65
      %p71 = scmp.eq.s32.totalorder %s12, 0
      %p72 = por %p70, %p71
      %p73 = scmp.ne.s32.totalorder %s62, %s65
      %p74 = scmp.eq.s32.totalorder %s17, 1
      %p75 = por %p73, %p74
      %p76 = scmp.ne.s32.totalorder %s65, %s66
      %p77 = scmp.eq.s32.totalorder %s17, 0
      %p78 = por %p76, %p77
      %p79 = scmp.ne.s32.totalorder %s65, %s66
      %p80 = scmp.eq.s32.totalorder %s18, 1
      %p81 = por %p79, %p80
      %p83 = scmp.ne.s32.totalorder %s66, %s82
      %p84 = scmp.eq.s32.totalorder %s18, 0
      %p85 = por %p83, %p84
      %s86 = ssub.s32 %s19, %s31
      %p87 = scmp.eq.s32.totalorder %s86, 0
      %s89 = sadd.s32 %s88, 1
      %s90 = scalar_select %p87, %s88, %s89
      %p93 = pneg %p87
      %p94 = scmp.eq.s32.totalorder %s12, 1
      %p95 = por %p93, %p94
      %p96 = scmp.ne.s32.totalorder %s88, %s91
      %p97 = scmp.eq.s32.totalorder %s12, 0
      %p98 = por %p96, %p97
      %p99 = scmp.ne.s32.totalorder %s88, %s91
      %p100 = scmp.eq.s32.totalorder %s17, 1
      %p101 = por %p99, %p100
      %p102 = scmp.ne.s32.totalorder %s91, %s92
      %p103 = scmp.eq.s32.totalorder %s17, 0
      %p104 = por %p102, %p103
      %p105 = scmp.ne.s32.totalorder %s91, %s92
      %p106 = scmp.eq.s32.totalorder %s18, 1
      %p107 = por %p105, %p106
      %p109 = scmp.ne.s32.totalorder %s92, %s108
      %p110 = scmp.eq.s32.totalorder %s18, 0
      %p111 = por %p109, %p110
      %p112 = scmp.le.s32.totalorder 1, %s12
      %p113 = scmp.lt.s32.totalorder %s12, 3
      %p114 = pnand %p112, %p113
      %p115 = pneg %p114
      // Predicated region
      $region9: #{down_block_forward.8} parent=5 // pred_check
        _
      $region10: #{down_block_forward.8} parent=5 // pred_check_branch
        %117 = sbr.rel (%p114) target = $region12
      $region11: #{down_block_forward.8} parent=5 // pred_region
        %s118 = ssub.s32 %s12, 1
      $region12: #{down_block_forward.8} parent=5 // pred_fallthru
        _
      %p119 = scmp.lt.s32.totalorder %s12, 2
      // Predicated region
      $region13: #{down_block_forward.8} parent=5 // pred_check
        %p120 = pneg %p119
      $region14: #{down_block_forward.8} parent=5 // pred_check_branch
        %122 = sbr.rel (%p120) target = $region16
      $region15: #{down_block_forward.8} parent=5 // pred_region
        // Predicated region
        $region17: #{down_block_forward.8} parent=15 // pred_check
          %p123 = pneg %p46
        $region18: #{down_block_forward.8} parent=15 // pred_check_branch
          %125 = sbr.rel (%p123) target = $region20
        $region19: #{down_block_forward.8} parent=15 // pred_region
          %s126 = sand.u32 %s36, 1
          %s127 = scalar_lea.sflag [#allocation3], %s126
          %s128 = sand.u32 %s36, 1
          %s129 = smul.addr %s128, 64
          %s130 = scalar_lea.vmem [#allocation2], %s129
          %s131 = smul.u32 8, %s20
          %s133 = ssub.s32 1024, 1024
          %134 = vsyncadd %s127, %s133
          %s135 = smul.addr %s19, 8
          %s136 = sadd.s32 %s131, %s135
          %s137 = smul.addr %s136, 128
          %s138 = scalar_lea.hbm %s0, %s137
          %s139 = sshll.u32 %s130, 4
          %s140 = int_to_ptr.vmem [resolvable:$true] %s139
          %145 = dma.hbm_to_vmem [thread:$0]  %s138, 1024, %s140, %s127, 128, 128, 8
        $region20: #{down_block_forward.8} parent=15 // pred_fallthru
          _
      $region16: #{down_block_forward.8} parent=5 // pred_fallthru
        _
      %p146 = scmp.le.s32.totalorder 1, %s12
      %p147 = scmp.lt.s32.totalorder %s12, 3
      %p148 = pnand %p146, %p147
      %p149 = pneg %p148
      // Predicated region
      $region21: #{down_block_forward.8} parent=5 // pred_check
        _
      $region22: #{down_block_forward.8} parent=5 // pred_check_branch
        %151 = sbr.rel (%p148) target = $region24
      $region23: #{down_block_forward.8} parent=5 // pred_region
        %s152 = ssub.s32 %s12, 1
        %s153 = sand.u32 %s39, 1
        %s154 = scalar_lea.sflag [#allocation3], %s153
        %s155 = sand.u32 %s39, 1
        %s156 = smul.addr %s155, 64
        %s157 = scalar_lea.vmem [#allocation2], %s156
        // Predicated region
        $region25: #{down_block_forward.8} parent=23 // pred_check
          %p158 = pneg %p52
        $region26: #{down_block_forward.8} parent=23 // pred_check_branch
          %160 = sbr.rel (%p158) target = $region28
        $region27: #{down_block_forward.8} parent=23 // pred_region
          %161 = dma.done %s154, 1024
        $region28: #{down_block_forward.8} parent=23 // pred_fallthru
          _
        %s162 = sand.u32 %s39, 1
        %s163 = scalar_lea.sflag [#allocation3], %s162
        %s164 = sand.u32 %s39, 1
        %s165 = smul.addr %s164, 64
        %s166 = scalar_lea.vmem [#allocation2], %s165
        %p167 = pneg %p52
        %p168 = pneg %p49
        %p169 = pneg %p78
        %p170 = pneg %p75
        %p171 = scmp.lt.s32.totalorder %s21, 1
        %s172 = scalar_select %p171, %s21, 1
        %s173 = scalar_lea.vmem %s1, %s172
        %p174 = pneg %p104
        %p175 = pneg %p101
        %p176 = scmp.lt.s32.totalorder %s21, 1
        %s177 = scalar_select %p176, %s21, 1
        %s178 = scalar_lea.vmem %s2, %s177
        %s179 = smul.u32 8, %s22
        %p180 = scmp.lt.s32.totalorder %s21, 1
        %s181 = scalar_select %p180, %s21, 1
        %s182 = scalar_lea.vmem %s1, %s181
        %p183 = scmp.lt.s32.totalorder %s21, 1
        %s184 = scalar_select %p183, %s21, 1
        %s185 = scalar_lea.vmem %s2, %s184
        %p186 = scmp.eq.s32.totalorder %s22, 0
        // Predicated region
        $region29: #{down_block_forward.8} parent=23 // pred_check
          %p187 = pneg %p186
        $region30: #{down_block_forward.8} parent=23 // pred_check_branch
          %189 = sbr.rel (%p187) target = $region32
        $region31: #{down_block_forward.8} parent=23 // pred_region
          %vm190 = vcmask 516096
          %191 = vst.msk [vmem:[%s182] sm:$0x1] %vm190, 0.0
          %192 = vst.msk [vmem:[%s185] sm:$0x1] %vm190, 0.0
        $region32: #{down_block_forward.8} parent=23 // pred_fallthru
          _
        %v193 = vld [vmem:[%s157] sm:$0xff]
        %v194 = vld [vmem:[%s157 + $0x8] sm:$0xff]
        %v195 = vld [vmem:[%s157 + $0x10] sm:$0xff]
        %v196 = vld [vmem:[%s157 + $0x18] sm:$0xff]
        %v197 = vld [vmem:[%s157 + $0x20] sm:$0xff]
        %v198 = vld [vmem:[%s157 + $0x28] sm:$0xff]
        %v199 = vld [vmem:[%s157 + $0x30] sm:$0xff]
        %v200 = vld [vmem:[%s157 + $0x38] sm:$0xff]
        %v201 = vld [vmem:[%s182] sm:$0x1]
        %vm202 = vcmask 523264
        %v203 = vsel %vm202, %v193, 0.0
        %v204 = vsel %vm202, %v194, 0.0
        %v205 = vadd.f32 %v203, %v204
        %v206 = vsel %vm202, %v195, 0.0
        %v207 = vadd.f32 %v205, %v206
        %v208 = vsel %vm202, %v196, 0.0
        %v209 = vadd.f32 %v207, %v208
        %v210 = vsel %vm202, %v197, 0.0
        %v211 = vadd.f32 %v209, %v210
        %v212 = vsel %vm202, %v198, 0.0
        %v213 = vadd.f32 %v211, %v212
        %v214 = vsel %vm202, %v199, 0.0
        %v215 = vadd.f32 %v213, %v214
        %v216 = vsel %vm202, %v200, 0.0
        %v217 = vadd.f32 %v215, %v216
        %v218 = vrot.slane %v217, 4
        %v219 = vadd.f32 %v217, %v218
        %v220 = vrot.slane %v219, 2
        %v221 = vadd.f32 %v219, %v220
        %v222 = vrot.slane %v221, 1
        %v223 = vadd.f32 %v221, %v222
        %v224 = vadd.f32 %v201, %v223
        %vm225 = vcmask 516096
        %226 = vst.msk [vmem:[%s182] sm:$0x1] %vm225, %v224
        %v227 = vld [vmem:[%s185] sm:$0x1]
        %v228 = vmul.f32 %v193, %v193
        %v229 = vmul.f32 %v194, %v194
        %v230 = vmul.f32 %v195, %v195
        %v231 = vmul.f32 %v196, %v196
        %v232 = vmul.f32 %v197, %v197
        %v233 = vmul.f32 %v198, %v198
        %v234 = vmul.f32 %v199, %v199
        %v235 = vmul.f32 %v200, %v200
        %v236 = vsel %vm202, %v228, 0.0
        %v237 = vsel %vm202, %v229, 0.0
        %v238 = vadd.f32 %v236, %v237
        %v239 = vsel %vm202, %v230, 0.0
        %v240 = vadd.f32 %v238, %v239
        %v241 = vsel %vm202, %v231, 0.0
        %v242 = vadd.f32 %v240, %v241
        %v243 = vsel %vm202, %v232, 0.0
        %v244 = vadd.f32 %v242, %v243
        %v245 = vsel %vm202, %v233, 0.0
        %v246 = vadd.f32 %v244, %v245
        %v247 = vsel %vm202, %v234, 0.0
        %v248 = vadd.f32 %v246, %v247
        %v249 = vsel %vm202, %v235, 0.0
        %v250 = vadd.f32 %v248, %v249
        %v251 = vrot.slane %v250, 4
        %v252 = vadd.f32 %v250, %v251
        %v253 = vrot.slane %v252, 2
        %v254 = vadd.f32 %v252, %v253
        %v255 = vrot.slane %v254, 1
        %v256 = vadd.f32 %v254, %v255
        %v257 = vadd.f32 %v227, %v256
        %258 = vst.msk [vmem:[%s185] sm:$0x1] %vm225, %v257
        %p259 = scmp.lt.s32.totalorder %s21, 1
        %s260 = scalar_select %p259, %s21, 1
        %s261 = scalar_lea.vmem %s1, %s260
        %p262 = scmp.lt.s32.totalorder %s21, 1
        %s263 = scalar_select %p262, %s21, 1
        %s264 = scalar_lea.vmem %s2, %s263
        // Predicated region
        $region33: #{down_block_forward.8} parent=23 // pred_check
          %p265 = pneg %p75
        $region34: #{down_block_forward.8} parent=23 // pred_check_branch
          %267 = sbr.rel (%p265) target = $region36
        $region35: #{down_block_forward.8} parent=23 // pred_region
          _
        $region36: #{down_block_forward.8} parent=23 // pred_fallthru
          _
        // Predicated region
        $region37: #{down_block_forward.8} parent=23 // pred_check
          %p268 = pneg %p101
        $region38: #{down_block_forward.8} parent=23 // pred_check_branch
          %270 = sbr.rel (%p268) target = $region40
        $region39: #{down_block_forward.8} parent=23 // pred_region
          _
        $region40: #{down_block_forward.8} parent=23 // pred_fallthru
          _
      $region24: #{down_block_forward.8} parent=5 // pred_fallthru
        _
      %p271 = scmp.le.s32.totalorder 2, %s12
      // Predicated region
      $region41: #{down_block_forward.8} parent=5 // pred_check
        %p272 = pneg %p271
      $region42: #{down_block_forward.8} parent=5 // pred_check_branch
        %274 = sbr.rel (%p272) target = $region44
      $region43: #{down_block_forward.8} parent=5 // pred_region
        %s275 = ssub.s32 %s12, 2
        // Predicated region
        $region45: #{down_block_forward.8} parent=43 // pred_check
          %p276 = pneg %p81
        $region46: #{down_block_forward.8} parent=43 // pred_check_branch
          %278 = sbr.rel (%p276) target = $region48
        $region47: #{down_block_forward.8} parent=43 // pred_region
          %p279 = scmp.lt.s32.totalorder %s23, 1
          %s280 = scalar_select %p279, %s23, 1
          %s281 = scalar_lea.vmem %s1, %s280
        $region48: #{down_block_forward.8} parent=43 // pred_fallthru
          _
        // Predicated region
        $region49: #{down_block_forward.8} parent=43 // pred_check
          %p282 = pneg %p107
        $region50: #{down_block_forward.8} parent=43 // pred_check_branch
          %284 = sbr.rel (%p282) target = $region52
        $region51: #{down_block_forward.8} parent=43 // pred_region
          %p285 = scmp.lt.s32.totalorder %s23, 1
          %s286 = scalar_select %p285, %s23, 1
          %s287 = scalar_lea.vmem %s2, %s286
        $region52: #{down_block_forward.8} parent=43 // pred_fallthru
          _
      $region44: #{down_block_forward.8} parent=5 // pred_fallthru
        _
    $region6: #{down_block_forward.8} parent=1 // loop_footer
      %s16 = sadd.s32 1, %s12
    $region7: #{down_block_forward.8} parent=1 // loop_footer_branch
      %11 = sbr.rel target = $region3
    $region8: #{down_block_forward.8} parent=1 // loop_exit
      _
    %288 = vsyncpa [#allocation3], 1
    %s289 = scalar_lea.sflag [#allocation3], 1
    %290 = vsyncpa %s289, 1

// kernel: down_block_forward.9
$region0: #{down_block_forward.9}
  #allocation0 [shape = 'u32[]', space=smem, size = 0x4, offset = 0x4, fixed_abs, tag = 'smem constant byte address 0x4 - core index']
  #allocation1 [shape = 'u32[144,128]{1,0:T(1,128)}', space=vmem, size = 0x12000, scoped, tag = 'internal scratch']
  %s0 = inlined_call_operand.vmem [shape: f32[2,1,64], index: 0, kind: input, shape index: {}]
  %s1 = inlined_call_operand.vmem [shape: f32[2,1,64], index: 1, kind: input, shape index: {}]
  %s2 = inlined_call_operand.hbm [shape: f32[1,64], index: 2, kind: input, shape index: {}]
  %s3 = inlined_call_operand.hbm [shape: f32[1,64], index: 3, kind: input, shape index: {}]
  %s4 = inlined_call_operand.vmem [shape: f32[64,32], index: 4, kind: input, shape index: {}]
  %s5 = inlined_call_operand.vmem [shape: f32[32,64], index: 5, kind: input, shape index: {}]
  %s6 = inlined_call_operand.vmem [shape: f32[2,1,64], index: 6, kind: output, shape index: {0}]
  %s7 = inlined_call_operand.vmem [shape: f32[2,1,64], index: 7, kind: output, shape index: {1}]
  %8 = xla_tuple %s6, %s7
  %s9 = sld [smem:[#allocation0]]
  $region73: #{down_block_forward.9} parent=0
    _
  %s11 = ssub.s32 1, %s9
  %s12 = scalar_select 0, %s11, %s9
  $region1: #{down_block_forward.9} parent=0
    #allocation2 [shape = 'u8[512]{0}', space=vmem, size = 0x400, scoped, tag = 'input window, operand 2, single buffered']
    #allocation3 [shape = 's32[2]{0}', space=sflag, size = 0x8, scoped, tag = 'scoped memory for down_block_forward.9']
    #allocation4 [shape = 'u8[512]{0}', space=vmem, size = 0x400, scoped, tag = 'input window, operand 3, single buffered']
    #allocation5 [shape = 's32[1]{0}', space=sflag, size = 0x4, scoped, tag = 'scoped memory for down_block_forward.9']
    %13 = vsyncpa [#allocation3], 0
    %14 = vsyncpa [#allocation5], 0
    loop: start=0, step=1, limit=4
    $region2: #{down_block_forward.9} parent=1 // loop_pre_header
      _
    $region3: #{down_block_forward.9} parent=1 // loop_header
      %s16 = sphi 0, %s20
      %p17 = scmp.ge.s32.totalorder %s16, 4
      %s26 = sphi 0, %s28
      %s29 = sphi 0, %s26
      %s30 = sphi 0, %s29
      %s46 = sphi 0, %s30
      %s52 = sphi 0, %s54
      %s55 = sphi 0, %s52
      %s56 = sphi 0, %s55
      %s72 = sphi 0, %s56
      %s76 = sphi 0, %s76
      %s78 = sphi 0, %s76
      %s79 = sphi 0, %s78
      %s93 = sphi 0, %s79
      %s97 = sphi 0, %s97
      %s99 = sphi 0, %s97
      %s100 = sphi 0, %s99
      %s114 = sphi 0, %s100
      %s118 = sphi 0, %s118
      %s120 = sphi 0, %s118
      %s121 = sphi 0, %s120
      %s135 = sphi 0, %s121
      %s139 = sphi 0, %s139
      %s141 = sphi 0, %s139
      %s142 = sphi 0, %s141
      %s156 = sphi 0, %s142
      %s162 = sphi 0, %s164
      %s165 = sphi 0, %s162
      %s166 = sphi 0, %s165
      %s182 = sphi 0, %s166
      %s188 = sphi 0, %s190
      %s191 = sphi 0, %s188
      %s192 = sphi 0, %s191
      %s208 = sphi 0, %s192
    $region4: #{down_block_forward.9} parent=1 // loop_header_branch
      %19 = sbr.rel (%p17) target = $region8
    $region5: #{down_block_forward.9} parent=1 // loop_body
      %s21 = ssub.s32 %s16, 1
      %s22 = ssub.s32 %s16, 2
      %s23 = sadd.s32 %s16, 1
      %s24 = ssub.s32 %s16, %s23
      %p25 = scmp.eq.s32.totalorder %s24, 0
      %s27 = sadd.s32 %s26, 1
      %s28 = scalar_select %p25, %s26, %s27
      %p31 = pneg %p25
      %p32 = scmp.eq.s32.totalorder %s16, 1
      %p33 = por %p31, %p32
      %p34 = scmp.ne.s32.totalorder %s26, %s29
      %p35 = scmp.eq.s32.totalorder %s16, 0
      %p36 = por %p34, %p35
      %p37 = scmp.ne.s32.totalorder %s26, %s29
      %p38 = scmp.eq.s32.totalorder %s21, 1
      %p39 = por %p37, %p38
      %p40 = scmp.ne.s32.totalorder %s29, %s30
      %p41 = scmp.eq.s32.totalorder %s21, 0
      %p42 = por %p40, %p41
      %p43 = scmp.ne.s32.totalorder %s29, %s30
      %p44 = scmp.eq.s32.totalorder %s22, 1
      %p45 = por %p43, %p44
      %p47 = scmp.ne.s32.totalorder %s30, %s46
      %p48 = scmp.eq.s32.totalorder %s22, 0
      %p49 = por %p47, %p48
      %s50 = ssub.s32 %s16, %s23
      %p51 = scmp.eq.s32.totalorder %s50, 0
      %s53 = sadd.s32 %s52, 1
      %s54 = scalar_select %p51, %s52, %s53
      %p57 = pneg %p51
      %p58 = scmp.eq.s32.totalorder %s16, 1
      %p59 = por %p57, %p58
      %p60 = scmp.ne.s32.totalorder %s52, %s55
      %p61 = scmp.eq.s32.totalorder %s16, 0
      %p62 = por %p60, %p61
      %p63 = scmp.ne.s32.totalorder %s52, %s55
      %p64 = scmp.eq.s32.totalorder %s21, 1
      %p65 = por %p63, %p64
      %p66 = scmp.ne.s32.totalorder %s55, %s56
      %p67 = scmp.eq.s32.totalorder %s21, 0
      %p68 = por %p66, %p67
      %p69 = scmp.ne.s32.totalorder %s55, %s56
      %p70 = scmp.eq.s32.totalorder %s22, 1
      %p71 = por %p69, %p70
      %p73 = scmp.ne.s32.totalorder %s56, %s72
      %p74 = scmp.eq.s32.totalorder %s22, 0
      %p75 = por %p73, %p74
      %s77 = sadd.s32 %s76, 1
      %p80 = scmp.eq.s32.totalorder %s16, 1
      %p81 = scmp.ne.s32.totalorder %s76, %s78
      %p82 = scmp.eq.s32.totalorder %s16, 0
      %p83 = por %p81, %p82
      %p84 = scmp.ne.s32.totalorder %s76, %s78
      %p85 = scmp.eq.s32.totalorder %s21, 1
      %p86 = por %p84, %p85
      %p87 = scmp.ne.s32.totalorder %s78, %s79
      %p88 = scmp.eq.s32.totalorder %s21, 0
      %p89 = por %p87, %p88
      %p90 = scmp.ne.s32.totalorder %s78, %s79
      %p91 = scmp.eq.s32.totalorder %s22, 1
      %p92 = por %p90, %p91
      %p94 = scmp.ne.s32.totalorder %s79, %s93
      %p95 = scmp.eq.s32.totalorder %s22, 0
      %p96 = por %p94, %p95
      %s98 = sadd.s32 %s97, 1
      %p101 = scmp.eq.s32.totalorder %s16, 1
      %p102 = scmp.ne.s32.totalorder %s97, %s99
      %p103 = scmp.eq.s32.totalorder %s16, 0
      %p104 = por %p102, %p103
      %p105 = scmp.ne.s32.totalorder %s97, %s99
      %p106 = scmp.eq.s32.totalorder %s21, 1
      %p107 = por %p105, %p106
      %p108 = scmp.ne.s32.totalorder %s99, %s100
      %p109 = scmp.eq.s32.totalorder %s21, 0
      %p110 = por %p108, %p109
      %p111 = scmp.ne.s32.totalorder %s99, %s100
      %p112 = scmp.eq.s32.totalorder %s22, 1
      %p113 = por %p111, %p112
      %p115 = scmp.ne.s32.totalorder %s100, %s114
      %p116 = scmp.eq.s32.totalorder %s22, 0
      %p117 = por %p115, %p116
      %s119 = sadd.s32 %s118, 1
      %p122 = scmp.eq.s32.totalorder %s16, 1
      %p123 = scmp.ne.s32.totalorder %s118, %s120
      %p124 = scmp.eq.s32.totalorder %s16, 0
      %p125 = por %p123, %p124
      %p126 = scmp.ne.s32.totalorder %s118, %s120
      %p127 = scmp.eq.s32.totalorder %s21, 1
      %p128 = por %p126, %p127
      %p129 = scmp.ne.s32.totalorder %s120, %s121
      %p130 = scmp.eq.s32.totalorder %s21, 0
      %p131 = por %p129, %p130
      %p132 = scmp.ne.s32.totalorder %s120, %s121
      %p133 = scmp.eq.s32.totalorder %s22, 1
      %p134 = por %p132, %p133
      %p136 = scmp.ne.s32.totalorder %s121, %s135
      %p137 = scmp.eq.s32.totalorder %s22, 0
      %p138 = por %p136, %p137
      %s140 = sadd.s32 %s139, 1
      %p143 = scmp.eq.s32.totalorder %s16, 1
      %p144 = scmp.ne.s32.totalorder %s139, %s141
      %p145 = scmp.eq.s32.totalorder %s16, 0
      %p146 = por %p144, %p145
      %p147 = scmp.ne.s32.totalorder %s139, %s141
      %p148 = scmp.eq.s32.totalorder %s21, 1
      %p149 = por %p147, %p148
      %p150 = scmp.ne.s32.totalorder %s141, %s142
      %p151 = scmp.eq.s32.totalorder %s21, 0
      %p152 = por %p150, %p151
      %p153 = scmp.ne.s32.totalorder %s141, %s142
      %p154 = scmp.eq.s32.totalorder %s22, 1
      %p155 = por %p153, %p154
      %p157 = scmp.ne.s32.totalorder %s142, %s156
      %p158 = scmp.eq.s32.totalorder %s22, 0
      %p159 = por %p157, %p158
      %s160 = ssub.s32 %s16, %s23
      %p161 = scmp.eq.s32.totalorder %s160, 0
      %s163 = sadd.s32 %s162, 1
      %s164 = scalar_select %p161, %s162, %s163
      %p167 = pneg %p161
      %p168 = scmp.eq.s32.totalorder %s16, 1
      %p169 = por %p167, %p168
      %p170 = scmp.ne.s32.totalorder %s162, %s165
      %p171 = scmp.eq.s32.totalorder %s16, 0
      %p172 = por %p170, %p171
      %p173 = scmp.ne.s32.totalorder %s162, %s165
      %p174 = scmp.eq.s32.totalorder %s21, 1
      %p175 = por %p173, %p174
      %p176 = scmp.ne.s32.totalorder %s165, %s166
      %p177 = scmp.eq.s32.totalorder %s21, 0
      %p178 = por %p176, %p177
      %p179 = scmp.ne.s32.totalorder %s165, %s166
      %p180 = scmp.eq.s32.totalorder %s22, 1
      %p181 = por %p179, %p180
      %p183 = scmp.ne.s32.totalorder %s166, %s182
      %p184 = scmp.eq.s32.totalorder %s22, 0
      %p185 = por %p183, %p184
      %s186 = ssub.s32 %s16, %s23
      %p187 = scmp.eq.s32.totalorder %s186, 0
      %s189 = sadd.s32 %s188, 1
      %s190 = scalar_select %p187, %s188, %s189
      %p193 = pneg %p187
      %p194 = scmp.eq.s32.totalorder %s16, 1
      %p195 = por %p193, %p194
      %p196 = scmp.ne.s32.totalorder %s188, %s191
      %p197 = scmp.eq.s32.totalorder %s16, 0
      %p198 = por %p196, %p197
      %p199 = scmp.ne.s32.totalorder %s188, %s191
      %p200 = scmp.eq.s32.totalorder %s21, 1
      %p201 = por %p199, %p200
      %p202 = scmp.ne.s32.totalorder %s191, %s192
      %p203 = scmp.eq.s32.totalorder %s21, 0
      %p204 = por %p202, %p203
      %p205 = scmp.ne.s32.totalorder %s191, %s192
      %p206 = scmp.eq.s32.totalorder %s22, 1
      %p207 = por %p205, %p206
      %p209 = scmp.ne.s32.totalorder %s192, %s208
      %p210 = scmp.eq.s32.totalorder %s22, 0
      %p211 = por %p209, %p210
      %p212 = scmp.le.s32.totalorder 1, %s16
      %p213 = scmp.lt.s32.totalorder %s16, 3
      %p214 = pnand %p212, %p213
      %p215 = pneg %p214
      // Predicated region
      $region9: #{down_block_forward.9} parent=5 // pred_check
        _
      $region10: #{down_block_forward.9} parent=5 // pred_check_branch
        %217 = sbr.rel (%p214) target = $region12
      $region11: #{down_block_forward.9} parent=5 // pred_region
        %s218 = ssub.s32 %s16, 1
        // Predicated region
        $region13: #{down_block_forward.9} parent=11 // pred_check
          %p219 = pneg %p89
        $region14: #{down_block_forward.9} parent=11 // pred_check_branch
          %221 = sbr.rel (%p219) target = $region16
        $region15: #{down_block_forward.9} parent=11 // pred_region
          %s223 = ssub.s32 16, 16
          %224 = vsyncadd [#allocation3], %s223
          %s226 = sshll.u32 [#allocation2], 4
          %s227 = int_to_ptr.vmem [resolvable:$true] %s226
          %229 = dma.hbm_to_vmem [thread:$0]  %s2, 16, %s227, [#allocation3]
        $region16: #{down_block_forward.9} parent=11 // pred_fallthru
          _
        // Predicated region
        $region17: #{down_block_forward.9} parent=11 // pred_check
          %p230 = pneg %p110
        $region18: #{down_block_forward.9} parent=11 // pred_check_branch
          %232 = sbr.rel (%p230) target = $region20
        $region19: #{down_block_forward.9} parent=11 // pred_region
          %s234 = ssub.s32 16, 16
          %235 = vsyncadd [#allocation5], %s234
          %s237 = sshll.u32 [#allocation4], 4
          %s238 = int_to_ptr.vmem [resolvable:$true] %s237
          %240 = dma.hbm_to_vmem [thread:$0]  %s3, 16, %s238, [#allocation5]
        $region20: #{down_block_forward.9} parent=11 // pred_fallthru
          _
        // Predicated region
        $region21: #{down_block_forward.9} parent=11 // pred_check
          %p241 = pneg %p131
        $region22: #{down_block_forward.9} parent=11 // pred_check_branch
          %243 = sbr.rel (%p241) target = $region24
        $region23: #{down_block_forward.9} parent=11 // pred_region
          _
        $region24: #{down_block_forward.9} parent=11 // pred_fallthru
          _
        // Predicated region
        $region25: #{down_block_forward.9} parent=11 // pred_check
          %p244 = pneg %p152
        $region26: #{down_block_forward.9} parent=11 // pred_check_branch
          %246 = sbr.rel (%p244) target = $region28
        $region27: #{down_block_forward.9} parent=11 // pred_region
          _
        $region28: #{down_block_forward.9} parent=11 // pred_fallthru
          _
      $region12: #{down_block_forward.9} parent=5 // pred_fallthru
        _
      %p247 = scmp.lt.s32.totalorder %s16, 2
      // Predicated region
      $region29: #{down_block_forward.9} parent=5 // pred_check
        %p248 = pneg %p247
      $region30: #{down_block_forward.9} parent=5 // pred_check_branch
        %250 = sbr.rel (%p248) target = $region32
      $region31: #{down_block_forward.9} parent=5 // pred_region
        // Predicated region
        $region33: #{down_block_forward.9} parent=31 // pred_check
          %p251 = pneg %p36
        $region34: #{down_block_forward.9} parent=31 // pred_check_branch
          %253 = sbr.rel (%p251) target = $region36
        $region35: #{down_block_forward.9} parent=31 // pred_region
          %p254 = scmp.lt.s32.totalorder %s16, 1
          %s255 = scalar_select %p254, %s16, 1
          %s256 = scalar_lea.vmem %s0, %s255
        $region36: #{down_block_forward.9} parent=31 // pred_fallthru
          _
        // Predicated region
        $region37: #{down_block_forward.9} parent=31 // pred_check
          %p257 = pneg %p62
        $region38: #{down_block_forward.9} parent=31 // pred_check_branch
          %259 = sbr.rel (%p257) target = $region40
        $region39: #{down_block_forward.9} parent=31 // pred_region
          %p260 = scmp.lt.s32.totalorder %s16, 1
          %s261 = scalar_select %p260, %s16, 1
          %s262 = scalar_lea.vmem %s1, %s261
        $region40: #{down_block_forward.9} parent=31 // pred_fallthru
          _
      $region32: #{down_block_forward.9} parent=5 // pred_fallthru
        _
      %p263 = scmp.le.s32.totalorder 1, %s16
      %p264 = scmp.lt.s32.totalorder %s16, 3
      %p265 = pnand %p263, %p264
      %p266 = pneg %p265
      // Predicated region
      $region41: #{down_block_forward.9} parent=5 // pred_check
        _
      $region42: #{down_block_forward.9} parent=5 // pred_check_branch
        %268 = sbr.rel (%p265) target = $region44
      $region43: #{down_block_forward.9} parent=5 // pred_region
        %s269 = ssub.s32 %s16, 1
        // Predicated region
        $region45: #{down_block_forward.9} parent=43 // pred_check
          %p270 = pneg %p89
        $region46: #{down_block_forward.9} parent=43 // pred_check_branch
          %272 = sbr.rel (%p270) target = $region48
        $region47: #{down_block_forward.9} parent=43 // pred_region
          %273 = dma.done [#allocation3], 16
        $region48: #{down_block_forward.9} parent=43 // pred_fallthru
          _
        // Predicated region
        $region49: #{down_block_forward.9} parent=43 // pred_check
          %p274 = pneg %p110
        $region50: #{down_block_forward.9} parent=43 // pred_check_branch
          %276 = sbr.rel (%p274) target = $region52
        $region51: #{down_block_forward.9} parent=43 // pred_region
          %277 = dma.done [#allocation5], 16
        $region52: #{down_block_forward.9} parent=43 // pred_fallthru
          _
        %p278 = scmp.lt.s32.totalorder %s21, 1
        %s279 = scalar_select %p278, %s21, 1
        %s280 = scalar_lea.vmem %s0, %s279
        %p281 = pneg %p42
        %p282 = pneg %p39
        %p283 = scmp.lt.s32.totalorder %s21, 1
        %s284 = scalar_select %p283, %s21, 1
        %s285 = scalar_lea.vmem %s1, %s284
        %p286 = pneg %p68
        %p287 = pneg %p65
        %p288 = pneg %p89
        %p289 = pneg %p86
        %p290 = pneg %p110
        %p291 = pneg %p107
        %p292 = pneg %p131
        %p293 = pneg %p128
        %p294 = pneg %p152
        %p295 = pneg %p149
        %p296 = pneg %p178
        %p297 = pneg %p175
        %p298 = scmp.lt.s32.totalorder %s21, 1
        %s299 = scalar_select %p298, %s21, 1
        %s300 = scalar_lea.vmem %s6, %s299
        %p301 = pneg %p204
        %p302 = pneg %p201
        %p303 = scmp.lt.s32.totalorder %s21, 1
        %s304 = scalar_select %p303, %s21, 1
        %s305 = scalar_lea.vmem %s7, %s304
        %p306 = scmp.lt.s32.totalorder %s21, 1
        %s307 = scalar_select %p306, %s21, 1
        %s308 = scalar_lea.vmem %s0, %s307
        %p309 = scmp.lt.s32.totalorder %s21, 1
        %s310 = scalar_select %p309, %s21, 1
        %s311 = scalar_lea.vmem %s1, %s310
        %p312 = scmp.lt.s32.totalorder %s21, 1
        %s313 = scalar_select %p312, %s21, 1
        %s314 = scalar_lea.vmem %s6, %s313
        %p315 = scmp.lt.s32.totalorder %s21, 1
        %s316 = scalar_select %p315, %s21, 1
        %s317 = scalar_lea.vmem %s7, %s316
        %v318 = vld [vmem:[%s308] sm:$0x1]
        %v319 = vld [vmem:[%s4] sm:$0xff]
        %v320 = vld [vmem:[%s4 + $0x8] sm:$0xff]
        %v321 = vld [vmem:[%s4 + $0x10] sm:$0xff]
        %v322 = vld [vmem:[%s4 + $0x18] sm:$0xff]
        %v323 = vld [vmem:[%s4 + $0x20] sm:$0xff]
        %v324 = vld [vmem:[%s4 + $0x28] sm:$0xff]
        %v325 = vld [vmem:[%s4 + $0x30] sm:$0xff]
        %v326 = vld [vmem:[%s4 + $0x38] sm:$0xff]
        %vm327 = vcmask 523264
        %v329 = vsel %vm327, %v318, 0
        %331 = vmatprep.subr.mxu0 0.0
        %332 = vmatpush1.msra.mxu0 %v319
        %333 = vmatprep.subr.mxu0 0.0
        %334 = vmatpush1.msra.mxu0 %v320
        %335 = vmatprep.subr.mxu0 0.0
        %336 = vmatpush1.msra.mxu0 %v321
        %337 = vmatprep.subr.mxu0 0.0
        %338 = vmatpush1.msra.mxu0 %v322
        %339 = vmatprep.subr.mxu0 0.0
        %340 = vmatpush1.msra.mxu0 %v323
        %341 = vmatprep.subr.mxu0 0.0
        %342 = vmatpush1.msra.mxu0 %v324
        %343 = vmatprep.subr.mxu0 0.0
        %344 = vmatpush1.msra.mxu0 %v325
        %345 = vmatprep.subr.mxu0 0.0
        %346 = vmatpush1.msra.mxu0 %v326
        %347 = vmatprep.subr.mxu0 0.0
        %348 = vmatpush1.msra.mxu0 0.0
        %349 = vmatprep.subr.mxu0 0.0
        %350 = vmatpush1.msra.mxu0 0.0
        %351 = vmatprep.subr.mxu0 0.0
        %352 = vmatpush1.msra.mxu0 0.0
        %353 = vmatprep.subr.mxu0 0.0
        %354 = vmatpush1.msra.mxu0 0.0
        %355 = vmatprep.subr.mxu0 0.0
        %356 = vmatpush1.msra.mxu0 0.0
        %357 = vmatprep.subr.mxu0 0.0
        %358 = vmatpush1.msra.mxu0 0.0
        %359 = vmatprep.subr.mxu0 0.0
        %360 = vmatpush1.msra.mxu0 0.0
        %361 = vmatprep.subr.mxu0 0.0
        %362 = vmatpush1.msra.mxu0 0.0
        %363 = vmatprep.subr.mxu0 0.0
        %364 = vmatpush1.msra.mxu0 0.0
        %365 = vmatprep.subr.mxu0 0.0
        %366 = vmatpush1.msra.mxu0 0.0
        %367 = vmatprep.subr.mxu0 0.0
        %368 = vmatpush1.msra.mxu0 0.0
        %369 = vmatprep.subr.mxu0 0.0
        %370 = vmatpush1.msra.mxu0 0.0
        %371 = vmatprep.subr.mxu0 0.0
        %372 = vmatpush1.msra.mxu0 0.0
        %373 = vmatprep.subr.mxu0 0.0
        %374 = vmatpush1.msra.mxu0 0.0
        %375 = vmatprep.subr.mxu0 0.0
        %376 = vmatpush1.msra.mxu0 0.0
        %377 = vmatprep.subr.mxu0 0.0
        %378 = vmatpush1.msra.mxu0 0.0
        %379 = vmatprep.subr.mxu0 0.0
        %380 = vmatpush1.msra.mxu0 0.0
        %381 = vmatprep.subr.mxu0 0.0
        %382 = vmatpush1.msra.mxu0 0.0
        %383 = vmatprep.subr.mxu0 0.0
        %384 = vmatpush1.msra.mxu0 0.0
        %385 = vmatprep.subr.mxu0 0.0
        %386 = vmatpush1.msra.mxu0 0.0
        %387 = vmatprep.subr.mxu0 0.0
        %388 = vmatpush1.msra.mxu0 0.0
        %389 = vmatprep.subr.mxu0 0.0
        %390 = vmatpush1.msra.mxu0 0.0
        %391 = vmatprep.subr.mxu0 0.0
        %392 = vmatpush1.msra.mxu0 0.0
        %393 = vmatprep.subr.mxu0 0.0
        %394 = vmatpush1.msra.mxu0 0.0
        %395 = vmatprep.mubr.f32.mxu0 0.0
        %396 = vmatmul.mubr.f32.gmra.mrb[0].mxu0 %v329
        %v397 = vpop.f32.mrb[0].mxu0
        %v398 = vadd.f32 0.0, %v397
        %v399 = vpop.f32.mrb[0].mxu0
        %400 = vdwg.mxu0
        %v401 = vld [vmem:[%s311] sm:$0x1]
        %v403 = vsel %vm327, %v401, 0
        %405 = vmatprep.subr.mxu0 0.0
        %406 = vmatpush1.msra.mxu0 %v319
        %407 = vmatprep.subr.mxu0 0.0
        %408 = vmatpush1.msra.mxu0 %v320
        %409 = vmatprep.subr.mxu0 0.0
        %410 = vmatpush1.msra.mxu0 %v321
        %411 = vmatprep.subr.mxu0 0.0
        %412 = vmatpush1.msra.mxu0 %v322
        %413 = vmatprep.subr.mxu0 0.0
        %414 = vmatpush1.msra.mxu0 %v323
        %415 = vmatprep.subr.mxu0 0.0
        %416 = vmatpush1.msra.mxu0 %v324
        %417 = vmatprep.subr.mxu0 0.0
        %418 = vmatpush1.msra.mxu0 %v325
        %419 = vmatprep.subr.mxu0 0.0
        %420 = vmatpush1.msra.mxu0 %v326
        %421 = vmatprep.subr.mxu0 0.0
        %422 = vmatpush1.msra.mxu0 0.0
        %423 = vmatprep.subr.mxu0 0.0
        %424 = vmatpush1.msra.mxu0 0.0
        %425 = vmatprep.subr.mxu0 0.0
        %426 = vmatpush1.msra.mxu0 0.0
        %427 = vmatprep.subr.mxu0 0.0
        %428 = vmatpush1.msra.mxu0 0.0
        %429 = vmatprep.subr.mxu0 0.0
        %430 = vmatpush1.msra.mxu0 0.0
        %431 = vmatprep.subr.mxu0 0.0
        %432 = vmatpush1.msra.mxu0 0.0
        %433 = vmatprep.subr.mxu0 0.0
        %434 = vmatpush1.msra.mxu0 0.0
        %435 = vmatprep.subr.mxu0 0.0
        %436 = vmatpush1.msra.mxu0 0.0
        %437 = vmatprep.subr.mxu0 0.0
        %438 = vmatpush1.msra.mxu0 0.0
        %439 = vmatprep.subr.mxu0 0.0
        %440 = vmatpush1.msra.mxu0 0.0
        %441 = vmatprep.subr.mxu0 0.0
        %442 = vmatpush1.msra.mxu0 0.0
        %443 = vmatprep.subr.mxu0 0.0
        %444 = vmatpush1.msra.mxu0 0.0
        %445 = vmatprep.subr.mxu0 0.0
        %446 = vmatpush1.msra.mxu0 0.0
        %447 = vmatprep.subr.mxu0 0.0
        %448 = vmatpush1.msra.mxu0 0.0
        %449 = vmatprep.subr.mxu0 0.0
        %450 = vmatpush1.msra.mxu0 0.0
        %451 = vmatprep.subr.mxu0 0.0
        %452 = vmatpush1.msra.mxu0 0.0
        %453 = vmatprep.subr.mxu0 0.0
        %454 = vmatpush1.msra.mxu0 0.0
        %455 = vmatprep.subr.mxu0 0.0
        %456 = vmatpush1.msra.mxu0 0.0
        %457 = vmatprep.subr.mxu0 0.0
        %458 = vmatpush1.msra.mxu0 0.0
        %459 = vmatprep.subr.mxu0 0.0
        %460 = vmatpush1.msra.mxu0 0.0
        %461 = vmatprep.subr.mxu0 0.0
        %462 = vmatpush1.msra.mxu0 0.0
        %463 = vmatprep.subr.mxu0 0.0
        %464 = vmatpush1.msra.mxu0 0.0
        %465 = vmatprep.subr.mxu0 0.0
        %466 = vmatpush1.msra.mxu0 0.0
        %467 = vmatprep.subr.mxu0 0.0
        %468 = vmatpush1.msra.mxu0 0.0
        %469 = vmatprep.mubr.f32.mxu0 0.0
        %470 = vmatmul.mubr.f32.gmra.mrb[0].mxu0 %v403
        %v471 = vpop.f32.mrb[0].mxu0
        %v472 = vadd.f32 0.0, %v471
        %v473 = vpop.f32.mrb[0].mxu0
        %474 = vdwg.mxu0
        %v475 = vmul.f32 %v398, 0.0078125
        %v476 = vmul.f32 %v472, 0.0078125
        %v477 = vmul.f32 %v475, %v475
        %v478 = vsub.f32 %v476, %v477
        %v479 = vld [vmem:[%s5] sm:$0xff]
        %v480 = vld [vmem:[%s5 + $0x8] sm:$0xff]
        %v481 = vld [vmem:[%s5 + $0x10] sm:$0xff]
        %v482 = vld [vmem:[%s5 + $0x18] sm:$0xff]
        %vm483 = vcmask 261120
        %v485 = vsel %vm483, %v475, 0
        %487 = vmatprep.subr.mxu0 0.0
        %488 = vmatpush1.msra.mxu0 %v479
        %489 = vmatprep.subr.mxu0 0.0
        %490 = vmatpush1.msra.mxu0 %v480
        %491 = vmatprep.subr.mxu0 0.0
        %492 = vmatpush1.msra.mxu0 %v481
        %493 = vmatprep.subr.mxu0 0.0
        %494 = vmatpush1.msra.mxu0 %v482
        %495 = vmatprep.subr.mxu0 0.0
        %496 = vmatpush1.msra.mxu0 0.0
        %497 = vmatprep.subr.mxu0 0.0
        %498 = vmatpush1.msra.mxu0 0.0
        %499 = vmatprep.subr.mxu0 0.0
        %500 = vmatpush1.msra.mxu0 0.0
        %501 = vmatprep.subr.mxu0 0.0
        %502 = vmatpush1.msra.mxu0 0.0
        %503 = vmatprep.subr.mxu0 0.0
        %504 = vmatpush1.msra.mxu0 0.0
        %505 = vmatprep.subr.mxu0 0.0
        %506 = vmatpush1.msra.mxu0 0.0
        %507 = vmatprep.subr.mxu0 0.0
        %508 = vmatpush1.msra.mxu0 0.0
        %509 = vmatprep.subr.mxu0 0.0
        %510 = vmatpush1.msra.mxu0 0.0
        %511 = vmatprep.subr.mxu0 0.0
        %512 = vmatpush1.msra.mxu0 0.0
        %513 = vmatprep.subr.mxu0 0.0
        %514 = vmatpush1.msra.mxu0 0.0
        %515 = vmatprep.subr.mxu0 0.0
        %516 = vmatpush1.msra.mxu0 0.0
        %517 = vmatprep.subr.mxu0 0.0
        %518 = vmatpush1.msra.mxu0 0.0
        %519 = vmatprep.subr.mxu0 0.0
        %520 = vmatpush1.msra.mxu0 0.0
        %521 = vmatprep.subr.mxu0 0.0
        %522 = vmatpush1.msra.mxu0 0.0
        %523 = vmatprep.subr.mxu0 0.0
        %524 = vmatpush1.msra.mxu0 0.0
        %525 = vmatprep.subr.mxu0 0.0
        %526 = vmatpush1.msra.mxu0 0.0
        %527 = vmatprep.subr.mxu0 0.0
        %528 = vmatpush1.msra.mxu0 0.0
        %529 = vmatprep.subr.mxu0 0.0
        %530 = vmatpush1.msra.mxu0 0.0
        %531 = vmatprep.subr.mxu0 0.0
        %532 = vmatpush1.msra.mxu0 0.0
        %533 = vmatprep.subr.mxu0 0.0
        %534 = vmatpush1.msra.mxu0 0.0
        %535 = vmatprep.subr.mxu0 0.0
        %536 = vmatpush1.msra.mxu0 0.0
        %537 = vmatprep.subr.mxu0 0.0
        %538 = vmatpush1.msra.mxu0 0.0
        %539 = vmatprep.subr.mxu0 0.0
        %540 = vmatpush1.msra.mxu0 0.0
        %541 = vmatprep.subr.mxu0 0.0
        %542 = vmatpush1.msra.mxu0 0.0
        %543 = vmatprep.subr.mxu0 0.0
        %544 = vmatpush1.msra.mxu0 0.0
        %545 = vmatprep.subr.mxu0 0.0
        %546 = vmatpush1.msra.mxu0 0.0
        %547 = vmatprep.subr.mxu0 0.0
        %548 = vmatpush1.msra.mxu0 0.0
        %549 = vmatprep.subr.mxu0 0.0
        %550 = vmatpush1.msra.mxu0 0.0
        %551 = vmatprep.mubr.f32.mxu0 0.0
        %552 = vmatmul.mubr.f32.gmra.mrb[0].mxu0 %v485
        %v553 = vpop.f32.mrb[0].mxu0
        %v554 = vadd.f32 0.0, %v553
        %v555 = vpop.f32.mrb[0].mxu0
        %556 = vdwg.mxu0
        %v558 = vsel %vm483, %v478, 0
        %560 = vmatprep.subr.mxu0 0.0
        %561 = vmatpush1.msra.mxu0 %v479
        %562 = vmatprep.subr.mxu0 0.0
        %563 = vmatpush1.msra.mxu0 %v480
        %564 = vmatprep.subr.mxu0 0.0
        %565 = vmatpush1.msra.mxu0 %v481
        %566 = vmatprep.subr.mxu0 0.0
        %567 = vmatpush1.msra.mxu0 %v482
        %568 = vmatprep.subr.mxu0 0.0
        %569 = vmatpush1.msra.mxu0 0.0
        %570 = vmatprep.subr.mxu0 0.0
        %571 = vmatpush1.msra.mxu0 0.0
        %572 = vmatprep.subr.mxu0 0.0
        %573 = vmatpush1.msra.mxu0 0.0
        %574 = vmatprep.subr.mxu0 0.0
        %575 = vmatpush1.msra.mxu0 0.0
        %576 = vmatprep.subr.mxu0 0.0
        %577 = vmatpush1.msra.mxu0 0.0
        %578 = vmatprep.subr.mxu0 0.0
        %579 = vmatpush1.msra.mxu0 0.0
        %580 = vmatprep.subr.mxu0 0.0
        %581 = vmatpush1.msra.mxu0 0.0
        %582 = vmatprep.subr.mxu0 0.0
        %583 = vmatpush1.msra.mxu0 0.0
        %584 = vmatprep.subr.mxu0 0.0
        %585 = vmatpush1.msra.mxu0 0.0
        %586 = vmatprep.subr.mxu0 0.0
        %587 = vmatpush1.msra.mxu0 0.0
        %588 = vmatprep.subr.mxu0 0.0
        %589 = vmatpush1.msra.mxu0 0.0
        %590 = vmatprep.subr.mxu0 0.0
        %591 = vmatpush1.msra.mxu0 0.0
        %592 = vmatprep.subr.mxu0 0.0
        %593 = vmatpush1.msra.mxu0 0.0
        %594 = vmatprep.subr.mxu0 0.0
        %595 = vmatpush1.msra.mxu0 0.0
        %596 = vmatprep.subr.mxu0 0.0
        %597 = vmatpush1.msra.mxu0 0.0
        %598 = vmatprep.subr.mxu0 0.0
        %599 = vmatpush1.msra.mxu0 0.0
        %600 = vmatprep.subr.mxu0 0.0
        %601 = vmatpush1.msra.mxu0 0.0
        %602 = vmatprep.subr.mxu0 0.0
        %603 = vmatpush1.msra.mxu0 0.0
        %604 = vmatprep.subr.mxu0 0.0
        %605 = vmatpush1.msra.mxu0 0.0
        %606 = vmatprep.subr.mxu0 0.0
        %607 = vmatpush1.msra.mxu0 0.0
        %608 = vmatprep.subr.mxu0 0.0
        %609 = vmatpush1.msra.mxu0 0.0
        %610 = vmatprep.subr.mxu0 0.0
        %611 = vmatpush1.msra.mxu0 0.0
        %612 = vmatprep.subr.mxu0 0.0
        %613 = vmatpush1.msra.mxu0 0.0
        %614 = vmatprep.subr.mxu0 0.0
        %615 = vmatpush1.msra.mxu0 0.0
        %616 = vmatprep.subr.mxu0 0.0
        %617 = vmatpush1.msra.mxu0 0.0
        %618 = vmatprep.subr.mxu0 0.0
        %619 = vmatpush1.msra.mxu0 0.0
        %620 = vmatprep.subr.mxu0 0.0
        %621 = vmatpush1.msra.mxu0 0.0
        %622 = vmatprep.subr.mxu0 0.0
        %623 = vmatpush1.msra.mxu0 0.0
        %624 = vmatprep.mubr.f32.mxu0 0.0
        %625 = vmatmul.mubr.f32.gmra.mrb[0].mxu0 %v558
        %v626 = vpop.f32.mrb[0].mxu0
        %v627 = vadd.f32 1e-05, %v626
        %v628 = vpop.f32.mrb[0].mxu0
        %629 = vdwg.mxu0
        %v630 = vrsqrt.pop %v627
        %v631 = vld [vmem:[#allocation2] sm:$0x1]
        %v632 = vmul.f32 %v630, %v631
        %vm633 = vcmask 516096
        %634 = vst.msk [vmem:[%s314] sm:$0x1] %vm633, %v632
        %v635 = vld [vmem:[#allocation4] sm:$0x1]
        %v636 = vmul.f32 %v554, %v632
        %v637 = vsub.f32 %v635, %v636
        %638 = vst.msk [vmem:[%s317] sm:$0x1] %vm633, %v637
        %p639 = scmp.lt.s32.totalorder %s21, 1
        %s640 = scalar_select %p639, %s21, 1
        %s641 = scalar_lea.vmem %s6, %s640
        %p642 = scmp.lt.s32.totalorder %s21, 1
        %s643 = scalar_select %p642, %s21, 1
        %s644 = scalar_lea.vmem %s7, %s643
        // Predicated region
        $region53: #{down_block_forward.9} parent=43 // pred_check
          %p645 = pneg %p175
        $region54: #{down_block_forward.9} parent=43 // pred_check_branch
          %647 = sbr.rel (%p645) target = $region56
        $region55: #{down_block_forward.9} parent=43 // pred_region
          _
        $region56: #{down_block_forward.9} parent=43 // pred_fallthru
          _
        // Predicated region
        $region57: #{down_block_forward.9} parent=43 // pred_check
          %p648 = pneg %p201
        $region58: #{down_block_forward.9} parent=43 // pred_check_branch
          %650 = sbr.rel (%p648) target = $region60
        $region59: #{down_block_forward.9} parent=43 // pred_region
          _
        $region60: #{down_block_forward.9} parent=43 // pred_fallthru
          _
      $region44: #{down_block_forward.9} parent=5 // pred_fallthru
        _
      %p651 = scmp.le.s32.totalorder 2, %s16
      // Predicated region
      $region61: #{down_block_forward.9} parent=5 // pred_check
        %p652 = pneg %p651
      $region62: #{down_block_forward.9} parent=5 // pred_check_branch
        %654 = sbr.rel (%p652) target = $region64
      $region63: #{down_block_forward.9} parent=5 // pred_region
        %s655 = ssub.s32 %s16, 2
        // Predicated region
        $region65: #{down_block_forward.9} parent=63 // pred_check
          %p656 = pneg %p181
        $region66: #{down_block_forward.9} parent=63 // pred_check_branch
          %658 = sbr.rel (%p656) target = $region68
        $region67: #{down_block_forward.9} parent=63 // pred_region
          %p659 = scmp.lt.s32.totalorder %s22, 1
          %s660 = scalar_select %p659, %s22, 1
          %s661 = scalar_lea.vmem %s6, %s660
        $region68: #{down_block_forward.9} parent=63 // pred_fallthru
          _
        // Predicated region
        $region69: #{down_block_forward.9} parent=63 // pred_check
          %p662 = pneg %p207
        $region70: #{down_block_forward.9} parent=63 // pred_check_branch
          %664 = sbr.rel (%p662) target = $region72
        $region71: #{down_block_forward.9} parent=63 // pred_region
          %p665 = scmp.lt.s32.totalorder %s22, 1
          %s666 = scalar_select %p665, %s22, 1
          %s667 = scalar_lea.vmem %s7, %s666
        $region72: #{down_block_forward.9} parent=63 // pred_fallthru
          _
      $region64: #{down_block_forward.9} parent=5 // pred_fallthru
        _
    $region6: #{down_block_forward.9} parent=1 // loop_footer
      %s20 = sadd.s32 1, %s16
    $region7: #{down_block_forward.9} parent=1 // loop_footer_branch
      %15 = sbr.rel target = $region3
    $region8: #{down_block_forward.9} parent=1 // loop_exit
      _
    %668 = vsyncpa [#allocation3], 1
    %s669 = scalar_lea.sflag [#allocation3], 1
    %670 = vsyncpa %s669, 1
    %671 = vsyncpa [#allocation5], 1

// kernel: down_block_forward.10
$region0: #{down_block_forward.10}
  #allocation0 [shape = 'u32[]', space=smem, size = 0x4, offset = 0x4, fixed_abs, tag = 'smem constant byte address 0x4 - core index']
  #allocation1 [shape = 'u32[144,128]{1,0:T(1,128)}', space=vmem, size = 0x12000, scoped, tag = 'internal scratch']
  %s0 = inlined_call_operand.vmem [shape: f32[2,64], index: 0, kind: input, shape index: {}]
  %s1 = inlined_call_operand.vmem [shape: bf16[64,128], index: 1, kind: input, shape index: {}]
  %s2 = inlined_call_operand.vmem [shape: f32[1,128], index: 2, kind: input, shape index: {}]
  %s3 = inlined_call_operand.vmem [shape: f32[2,128], index: 3, kind: output, shape index: {}]
  %s4 = sld [smem:[#allocation0]]
  $region22: #{down_block_forward.10} parent=0
    _
  %s6 = ssub.s32 1, %s4
  %s7 = scalar_select 0, %s6, %s4
  // Predicated region
  $region2: #{down_block_forward.10} parent=0 // pred_check
    _
  $region3: #{down_block_forward.10} parent=0 // pred_check_branch
    %9 = sbr.rel (0) target = $region5
  $region4: #{down_block_forward.10} parent=0 // pred_region
    _
  $region5: #{down_block_forward.10} parent=0 // pred_fallthru
    _
  // Predicated region
  $region6: #{down_block_forward.10} parent=0 // pred_check
    _
  $region7: #{down_block_forward.10} parent=0 // pred_check_branch
    %11 = sbr.rel (0) target = $region9
  $region8: #{down_block_forward.10} parent=0 // pred_region
    _
  $region9: #{down_block_forward.10} parent=0 // pred_fallthru
    _
  // Predicated region
  $region10: #{down_block_forward.10} parent=0 // pred_check
    _
  $region11: #{down_block_forward.10} parent=0 // pred_check_branch
    %13 = sbr.rel (0) target = $region13
  $region12: #{down_block_forward.10} parent=0 // pred_region
    _
  $region13: #{down_block_forward.10} parent=0 // pred_fallthru
    _
  %v15 = vld [vmem:[%s0] sm:$0x3]
  %v16 = vsub.f32 0.0, %v15
  %v17 = vmul.f32 %v16, 1.442695
  %v18 = vpow.pop %v17
  %v19 = vadd.f32 %v18, 1.0
  %v20 = vrcp.pop %v19
  %v21 = vmul.f32 %v15, %v20
  %v22 = vpack.c.bf16 %v21, %v21
  %v23 = vld [vmem:[%s1] sm:$0xf]
  %v24 = vld [vmem:[%s1 + $0x4] sm:$0xf]
  %v25 = vld [vmem:[%s1 + $0x8] sm:$0xf]
  %v26 = vld [vmem:[%s1 + $0xc] sm:$0xf]
  %v27 = vld [vmem:[%s1 + $0x10] sm:$0xf]
  %v28 = vld [vmem:[%s1 + $0x14] sm:$0xf]
  %v29 = vld [vmem:[%s1 + $0x18] sm:$0xf]
  %v30 = vld [vmem:[%s1 + $0x1c] sm:$0xf]
  %v31 = vld [vmem:[%s2] sm:$0x1]
  %v33 = vlaneseq
  %v34 = vshrl.u32 %v33, 7
  %v35 = vsub.s32 0, %v34
  %v36 = vrot.slane %v31, %v35
  %v46 = vunpack.c.l.b16 %v23
  %v47 = vunpack.c.l.b16 %v24
  %v48 = vunpack.c.l.b16 %v25
  %v49 = vunpack.c.l.b16 %v26
  %v50 = vunpack.c.l.b16 %v27
  %v51 = vunpack.c.l.b16 %v28
  %v52 = vunpack.c.l.b16 %v29
  %v53 = vunpack.c.l.b16 %v30
  %v54 = vpack.c.b16 %v47, %v46
  %v55 = vpack.c.b16 %v49, %v48
  %v56 = vpack.c.b16 %v51, %v50
  %v57 = vpack.c.b16 %v53, %v52
  %vm62 = vcmask 523264
  %v64 = vsel %vm62, %v22, 0
  %66 = vmatprep.subr.bf16.mxu0 0
  %67 = vmatpush1.bf16.msra.mxu0 %v54
  %68 = vmatprep.subr.bf16.mxu0 0
  %69 = vmatpush1.bf16.msra.mxu0 %v55
  %70 = vmatprep.subr.bf16.mxu0 0
  %71 = vmatpush1.bf16.msra.mxu0 %v56
  %72 = vmatprep.subr.bf16.mxu0 0
  %73 = vmatpush1.bf16.msra.mxu0 %v57
  %74 = vmatprep.subr.bf16.mxu0 0
  %75 = vmatpush1.bf16.msra.mxu0 0
  %76 = vmatprep.subr.bf16.mxu0 0
  %77 = vmatpush1.bf16.msra.mxu0 0
  %78 = vmatprep.subr.bf16.mxu0 0
  %79 = vmatpush1.bf16.msra.mxu0 0
  %80 = vmatprep.subr.bf16.mxu0 0
  %81 = vmatpush1.bf16.msra.mxu0 0
  %82 = vmatprep.subr.bf16.mxu0 0
  %83 = vmatpush1.bf16.msra.mxu0 0
  %84 = vmatprep.subr.bf16.mxu0 0
  %85 = vmatpush1.bf16.msra.mxu0 0
  %86 = vmatprep.subr.bf16.mxu0 0
  %87 = vmatpush1.bf16.msra.mxu0 0
  %88 = vmatprep.subr.bf16.mxu0 0
  %89 = vmatpush1.bf16.msra.mxu0 0
  %90 = vmatprep.subr.bf16.mxu0 0
  %91 = vmatpush1.bf16.msra.mxu0 0
  %92 = vmatprep.subr.bf16.mxu0 0
  %93 = vmatpush1.bf16.msra.mxu0 0
  %94 = vmatprep.subr.bf16.mxu0 0
  %95 = vmatpush1.bf16.msra.mxu0 0
  %96 = vmatprep.subr.bf16.mxu0 0
  %97 = vmatpush1.bf16.msra.mxu0 0
  %98 = vmatprep.mubr.bf16.mxu0 0
  %99 = vmatmul.mubr.bf16.gmra.mrb[0].mxu0 %v64
  %v100 = vpop.f32.mrb[0].mxu0
  %v101 = vadd.f32 %v36, %v100
  %v102 = vpop.f32.mrb[0].mxu0
  %v103 = vpop.f32.mrb[0].mxu0
  %v104 = vpop.f32.mrb[0].mxu0
  %105 = vdwg.mxu0
  %106 = vst [vmem:[%s3] sm:$0x3] %v101
  // Predicated region
  $region14: #{down_block_forward.10} parent=0 // pred_check
    _
  $region15: #{down_block_forward.10} parent=0 // pred_check_branch
    %108 = sbr.rel (0) target = $region17
  $region16: #{down_block_forward.10} parent=0 // pred_region
    _
  $region17: #{down_block_forward.10} parent=0 // pred_fallthru
    _
  // Predicated region
  $region18: #{down_block_forward.10} parent=0 // pred_check
    _
  $region19: #{down_block_forward.10} parent=0 // pred_check_branch
    %110 = sbr.rel (0) target = $region21
  $region20: #{down_block_forward.10} parent=0 // pred_region
    _
  $region21: #{down_block_forward.10} parent=0 // pred_fallthru
    _

// kernel: mul.9
$region0: #{mul.9}
  #allocation0 [shape = 's32[1]{0}', space=sflag, size = 0x4, scoped, tag = 'scoped memory for mul.9']
  %s0 = inlined_call_operand.vmem [shape: f32[384], index: 0, kind: input, shape index: {}]
  %s1 = inlined_call_operand.vmem [shape: f32[384], index: 1, kind: input, shape index: {}]
  %s2 = inlined_call_operand.vmem [shape: f32[384], index: 2, kind: output, shape index: {}]
  %v3 = vld [vmem:[%s0] sm:$0x7]
  %v4 = vld [vmem:[%s1] sm:$0x7]
  %5 = xla_tuple %v3, %v4
  %6 = xla_tuple %5
  %v7 = vmul.f32 %v3, %v4
  %8 = xla_tuple %v7
  %9 = vst [vmem:[%s2] sm:$0xf] %v7

// kernel: down_block_forward.12
$region0: #{down_block_forward.12}
  #allocation0 [shape = 'u32[]', space=smem, size = 0x4, offset = 0x4, fixed_abs, tag = 'smem constant byte address 0x4 - core index']
  #allocation1 [shape = 'u32[144,128]{1,0:T(1,128)}', space=vmem, size = 0x12000, scoped, tag = 'internal scratch']
  %s0 = inlined_call_operand.vmem [shape: f32[2,1,128], index: 0, kind: input, shape index: {}]
  %s1 = inlined_call_operand.vmem [shape: f32[2,1,128], index: 1, kind: input, shape index: {}]
  %s2 = inlined_call_operand.vmem [shape: f32[1,128], index: 2, kind: input, shape index: {}]
  %s3 = inlined_call_operand.vmem [shape: f32[1,128], index: 3, kind: input, shape index: {}]
  %s4 = inlined_call_operand.vmem [shape: f32[128,32], index: 4, kind: input, shape index: {}]
  %s5 = inlined_call_operand.vmem [shape: f32[32,128], index: 5, kind: input, shape index: {}]
  %s6 = inlined_call_operand.vmem [shape: f32[2,1,128], index: 6, kind: output, shape index: {0}]
  %s7 = inlined_call_operand.vmem [shape: f32[2,1,128], index: 7, kind: output, shape index: {1}]
  %8 = xla_tuple %s6, %s7
  %s9 = sld [smem:[#allocation0]]
  $region65: #{down_block_forward.12} parent=0
    _
  %s11 = ssub.s32 1, %s9
  %s12 = scalar_select 0, %s11, %s9
  loop: start=0, step=1, limit=4
  $region2: #{down_block_forward.12} parent=0 // loop_pre_header
    _
  $region3: #{down_block_forward.12} parent=0 // loop_header
    %s14 = sphi 0, %s18
    %p15 = scmp.ge.s32.totalorder %s14, 4
    %s24 = sphi 0, %s26
    %s27 = sphi 0, %s24
    %s28 = sphi 0, %s27
    %s44 = sphi 0, %s28
    %s50 = sphi 0, %s52
    %s53 = sphi 0, %s50
    %s54 = sphi 0, %s53
    %s70 = sphi 0, %s54
    %s74 = sphi 0, %s74
    %s76 = sphi 0, %s74
    %s77 = sphi 0, %s76
    %s91 = sphi 0, %s77
    %s95 = sphi 0, %s95
    %s97 = sphi 0, %s95
    %s98 = sphi 0, %s97
    %s112 = sphi 0, %s98
    %s116 = sphi 0, %s116
    %s118 = sphi 0, %s116
    %s119 = sphi 0, %s118
    %s133 = sphi 0, %s119
    %s137 = sphi 0, %s137
    %s139 = sphi 0, %s137
    %s140 = sphi 0, %s139
    %s154 = sphi 0, %s140
    %s160 = sphi 0, %s162
    %s163 = sphi 0, %s160
    %s164 = sphi 0, %s163
    %s180 = sphi 0, %s164
    %s186 = sphi 0, %s188
    %s189 = sphi 0, %s186
    %s190 = sphi 0, %s189
    %s206 = sphi 0, %s190
  $region4: #{down_block_forward.12} parent=0 // loop_header_branch
    %17 = sbr.rel (%p15) target = $region8
  $region5: #{down_block_forward.12} parent=0 // loop_body
    %s19 = ssub.s32 %s14, 1
    %s20 = ssub.s32 %s14, 2
    %s21 = sadd.s32 %s14, 1
    %s22 = ssub.s32 %s14, %s21
    %p23 = scmp.eq.s32.totalorder %s22, 0
    %s25 = sadd.s32 %s24, 1
    %s26 = scalar_select %p23, %s24, %s25
    %p29 = pneg %p23
    %p30 = scmp.eq.s32.totalorder %s14, 1
    %p31 = por %p29, %p30
    %p32 = scmp.ne.s32.totalorder %s24, %s27
    %p33 = scmp.eq.s32.totalorder %s14, 0
    %p34 = por %p32, %p33
    %p35 = scmp.ne.s32.totalorder %s24, %s27
    %p36 = scmp.eq.s32.totalorder %s19, 1
    %p37 = por %p35, %p36
    %p38 = scmp.ne.s32.totalorder %s27, %s28
    %p39 = scmp.eq.s32.totalorder %s19, 0
    %p40 = por %p38, %p39
    %p41 = scmp.ne.s32.totalorder %s27, %s28
    %p42 = scmp.eq.s32.totalorder %s20, 1
    %p43 = por %p41, %p42
    %p45 = scmp.ne.s32.totalorder %s28, %s44
    %p46 = scmp.eq.s32.totalorder %s20, 0
    %p47 = por %p45, %p46
    %s48 = ssub.s32 %s14, %s21
    %p49 = scmp.eq.s32.totalorder %s48, 0
    %s51 = sadd.s32 %s50, 1
    %s52 = scalar_select %p49, %s50, %s51
    %p55 = pneg %p49
    %p56 = scmp.eq.s32.totalorder %s14, 1
    %p57 = por %p55, %p56
    %p58 = scmp.ne.s32.totalorder %s50, %s53
    %p59 = scmp.eq.s32.totalorder %s14, 0
    %p60 = por %p58, %p59
    %p61 = scmp.ne.s32.totalorder %s50, %s53
    %p62 = scmp.eq.s32.totalorder %s19, 1
    %p63 = por %p61, %p62
    %p64 = scmp.ne.s32.totalorder %s53, %s54
    %p65 = scmp.eq.s32.totalorder %s19, 0
    %p66 = por %p64, %p65
    %p67 = scmp.ne.s32.totalorder %s53, %s54
    %p68 = scmp.eq.s32.totalorder %s20, 1
    %p69 = por %p67, %p68
    %p71 = scmp.ne.s32.totalorder %s54, %s70
    %p72 = scmp.eq.s32.totalorder %s20, 0
    %p73 = por %p71, %p72
    %s75 = sadd.s32 %s74, 1
    %p78 = scmp.eq.s32.totalorder %s14, 1
    %p79 = scmp.ne.s32.totalorder %s74, %s76
    %p80 = scmp.eq.s32.totalorder %s14, 0
    %p81 = por %p79, %p80
    %p82 = scmp.ne.s32.totalorder %s74, %s76
    %p83 = scmp.eq.s32.totalorder %s19, 1
    %p84 = por %p82, %p83
    %p85 = scmp.ne.s32.totalorder %s76, %s77
    %p86 = scmp.eq.s32.totalorder %s19, 0
    %p87 = por %p85, %p86
    %p88 = scmp.ne.s32.totalorder %s76, %s77
    %p89 = scmp.eq.s32.totalorder %s20, 1
    %p90 = por %p88, %p89
    %p92 = scmp.ne.s32.totalorder %s77, %s91
    %p93 = scmp.eq.s32.totalorder %s20, 0
    %p94 = por %p92, %p93
    %s96 = sadd.s32 %s95, 1
    %p99 = scmp.eq.s32.totalorder %s14, 1
    %p100 = scmp.ne.s32.totalorder %s95, %s97
    %p101 = scmp.eq.s32.totalorder %s14, 0
    %p102 = por %p100, %p101
    %p103 = scmp.ne.s32.totalorder %s95, %s97
    %p104 = scmp.eq.s32.totalorder %s19, 1
    %p105 = por %p103, %p104
    %p106 = scmp.ne.s32.totalorder %s97, %s98
    %p107 = scmp.eq.s32.totalorder %s19, 0
    %p108 = por %p106, %p107
    %p109 = scmp.ne.s32.totalorder %s97, %s98
    %p110 = scmp.eq.s32.totalorder %s20, 1
    %p111 = por %p109, %p110
    %p113 = scmp.ne.s32.totalorder %s98, %s112
    %p114 = scmp.eq.s32.totalorder %s20, 0
    %p115 = por %p113, %p114
    %s117 = sadd.s32 %s116, 1
    %p120 = scmp.eq.s32.totalorder %s14, 1
    %p121 = scmp.ne.s32.totalorder %s116, %s118
    %p122 = scmp.eq.s32.totalorder %s14, 0
    %p123 = por %p121, %p122
    %p124 = scmp.ne.s32.totalorder %s116, %s118
    %p125 = scmp.eq.s32.totalorder %s19, 1
    %p126 = por %p124, %p125
    %p127 = scmp.ne.s32.totalorder %s118, %s119
    %p128 = scmp.eq.s32.totalorder %s19, 0
    %p129 = por %p127, %p128
    %p130 = scmp.ne.s32.totalorder %s118, %s119
    %p131 = scmp.eq.s32.totalorder %s20, 1
    %p132 = por %p130, %p131
    %p134 = scmp.ne.s32.totalorder %s119, %s133
    %p135 = scmp.eq.s32.totalorder %s20, 0
    %p136 = por %p134, %p135
    %s138 = sadd.s32 %s137, 1
    %p141 = scmp.eq.s32.totalorder %s14, 1
    %p142 = scmp.ne.s32.totalorder %s137, %s139
    %p143 = scmp.eq.s32.totalorder %s14, 0
    %p144 = por %p142, %p143
    %p145 = scmp.ne.s32.totalorder %s137, %s139
    %p146 = scmp.eq.s32.totalorder %s19, 1
    %p147 = por %p145, %p146
    %p148 = scmp.ne.s32.totalorder %s139, %s140
    %p149 = scmp.eq.s32.totalorder %s19, 0
    %p150 = por %p148, %p149
    %p151 = scmp.ne.s32.totalorder %s139, %s140
    %p152 = scmp.eq.s32.totalorder %s20, 1
    %p153 = por %p151, %p152
    %p155 = scmp.ne.s32.totalorder %s140, %s154
    %p156 = scmp.eq.s32.totalorder %s20, 0
    %p157 = por %p155, %p156
    %s158 = ssub.s32 %s14, %s21
    %p159 = scmp.eq.s32.totalorder %s158, 0
    %s161 = sadd.s32 %s160, 1
    %s162 = scalar_select %p159, %s160, %s161
    %p165 = pneg %p159
    %p166 = scmp.eq.s32.totalorder %s14, 1
    %p167 = por %p165, %p166
    %p168 = scmp.ne.s32.totalorder %s160, %s163
    %p169 = scmp.eq.s32.totalorder %s14, 0
    %p170 = por %p168, %p169
    %p171 = scmp.ne.s32.totalorder %s160, %s163
    %p172 = scmp.eq.s32.totalorder %s19, 1
    %p173 = por %p171, %p172
    %p174 = scmp.ne.s32.totalorder %s163, %s164
    %p175 = scmp.eq.s32.totalorder %s19, 0
    %p176 = por %p174, %p175
    %p177 = scmp.ne.s32.totalorder %s163, %s164
    %p178 = scmp.eq.s32.totalorder %s20, 1
    %p179 = por %p177, %p178
    %p181 = scmp.ne.s32.totalorder %s164, %s180
    %p182 = scmp.eq.s32.totalorder %s20, 0
    %p183 = por %p181, %p182
    %s184 = ssub.s32 %s14, %s21
    %p185 = scmp.eq.s32.totalorder %s184, 0
    %s187 = sadd.s32 %s186, 1
    %s188 = scalar_select %p185, %s186, %s187
    %p191 = pneg %p185
    %p192 = scmp.eq.s32.totalorder %s14, 1
    %p193 = por %p191, %p192
    %p194 = scmp.ne.s32.totalorder %s186, %s189
    %p195 = scmp.eq.s32.totalorder %s14, 0
    %p196 = por %p194, %p195
    %p197 = scmp.ne.s32.totalorder %s186, %s189
    %p198 = scmp.eq.s32.totalorder %s19, 1
    %p199 = por %p197, %p198
    %p200 = scmp.ne.s32.totalorder %s189, %s190
    %p201 = scmp.eq.s32.totalorder %s19, 0
    %p202 = por %p200, %p201
    %p203 = scmp.ne.s32.totalorder %s189, %s190
    %p204 = scmp.eq.s32.totalorder %s20, 1
    %p205 = por %p203, %p204
    %p207 = scmp.ne.s32.totalorder %s190, %s206
    %p208 = scmp.eq.s32.totalorder %s20, 0
    %p209 = por %p207, %p208
    %p210 = scmp.le.s32.totalorder 1, %s14
    %p211 = scmp.lt.s32.totalorder %s14, 3
    %p212 = pnand %p210, %p211
    %p213 = pneg %p212
    // Predicated region
    $region9: #{down_block_forward.12} parent=5 // pred_check
      _
    $region10: #{down_block_forward.12} parent=5 // pred_check_branch
      %215 = sbr.rel (%p212) target = $region12
    $region11: #{down_block_forward.12} parent=5 // pred_region
      %s216 = ssub.s32 %s14, 1
      // Predicated region
      $region13: #{down_block_forward.12} parent=11 // pred_check
        %p217 = pneg %p87
      $region14: #{down_block_forward.12} parent=11 // pred_check_branch
        %219 = sbr.rel (%p217) target = $region16
      $region15: #{down_block_forward.12} parent=11 // pred_region
        _
      $region16: #{down_block_forward.12} parent=11 // pred_fallthru
        _
      // Predicated region
      $region17: #{down_block_forward.12} parent=11 // pred_check
        %p220 = pneg %p108
      $region18: #{down_block_forward.12} parent=11 // pred_check_branch
        %222 = sbr.rel (%p220) target = $region20
      $region19: #{down_block_forward.12} parent=11 // pred_region
        _
      $region20: #{down_block_forward.12} parent=11 // pred_fallthru
        _
      // Predicated region
      $region21: #{down_block_forward.12} parent=11 // pred_check
        %p223 = pneg %p129
      $region22: #{down_block_forward.12} parent=11 // pred_check_branch
        %225 = sbr.rel (%p223) target = $region24
      $region23: #{down_block_forward.12} parent=11 // pred_region
        _
      $region24: #{down_block_forward.12} parent=11 // pred_fallthru
        _
      // Predicated region
      $region25: #{down_block_forward.12} parent=11 // pred_check
        %p226 = pneg %p150
      $region26: #{down_block_forward.12} parent=11 // pred_check_branch
        %228 = sbr.rel (%p226) target = $region28
      $region27: #{down_block_forward.12} parent=11 // pred_region
        _
      $region28: #{down_block_forward.12} parent=11 // pred_fallthru
        _
    $region12: #{down_block_forward.12} parent=5 // pred_fallthru
      _
    %p229 = scmp.lt.s32.totalorder %s14, 2
    // Predicated region
    $region29: #{down_block_forward.12} parent=5 // pred_check
      %p230 = pneg %p229
    $region30: #{down_block_forward.12} parent=5 // pred_check_branch
      %232 = sbr.rel (%p230) target = $region32
    $region31: #{down_block_forward.12} parent=5 // pred_region
      // Predicated region
      $region33: #{down_block_forward.12} parent=31 // pred_check
        %p233 = pneg %p34
      $region34: #{down_block_forward.12} parent=31 // pred_check_branch
        %235 = sbr.rel (%p233) target = $region36
      $region35: #{down_block_forward.12} parent=31 // pred_region
        %p236 = scmp.lt.s32.totalorder %s14, 1
        %s237 = scalar_select %p236, %s14, 1
        %s238 = scalar_lea.vmem %s0, %s237
      $region36: #{down_block_forward.12} parent=31 // pred_fallthru
        _
      // Predicated region
      $region37: #{down_block_forward.12} parent=31 // pred_check
        %p239 = pneg %p60
      $region38: #{down_block_forward.12} parent=31 // pred_check_branch
        %241 = sbr.rel (%p239) target = $region40
      $region39: #{down_block_forward.12} parent=31 // pred_region
        %p242 = scmp.lt.s32.totalorder %s14, 1
        %s243 = scalar_select %p242, %s14, 1
        %s244 = scalar_lea.vmem %s1, %s243
      $region40: #{down_block_forward.12} parent=31 // pred_fallthru
        _
    $region32: #{down_block_forward.12} parent=5 // pred_fallthru
      _
    %p245 = scmp.le.s32.totalorder 1, %s14
    %p246 = scmp.lt.s32.totalorder %s14, 3
    %p247 = pnand %p245, %p246
    %p248 = pneg %p247
    // Predicated region
    $region41: #{down_block_forward.12} parent=5 // pred_check
      _
    $region42: #{down_block_forward.12} parent=5 // pred_check_branch
      %250 = sbr.rel (%p247) target = $region44
    $region43: #{down_block_forward.12} parent=5 // pred_region
      %s251 = ssub.s32 %s14, 1
      %p252 = scmp.lt.s32.totalorder %s19, 1
      %s253 = scalar_select %p252, %s19, 1
      %s254 = scalar_lea.vmem %s0, %s253
      %p255 = pneg %p40
      %p256 = pneg %p37
      %p257 = scmp.lt.s32.totalorder %s19, 1
      %s258 = scalar_select %p257, %s19, 1
      %s259 = scalar_lea.vmem %s1, %s258
      %p260 = pneg %p66
      %p261 = pneg %p63
      %p262 = pneg %p87
      %p263 = pneg %p84
      %p264 = pneg %p108
      %p265 = pneg %p105
      %p266 = pneg %p129
      %p267 = pneg %p126
      %p268 = pneg %p150
      %p269 = pneg %p147
      %p270 = pneg %p176
      %p271 = pneg %p173
      %p272 = scmp.lt.s32.totalorder %s19, 1
      %s273 = scalar_select %p272, %s19, 1
      %s274 = scalar_lea.vmem %s6, %s273
      %p275 = pneg %p202
      %p276 = pneg %p199
      %p277 = scmp.lt.s32.totalorder %s19, 1
      %s278 = scalar_select %p277, %s19, 1
      %s279 = scalar_lea.vmem %s7, %s278
      %p280 = scmp.lt.s32.totalorder %s19, 1
      %s281 = scalar_select %p280, %s19, 1
      %s282 = scalar_lea.vmem %s0, %s281
      %p283 = scmp.lt.s32.totalorder %s19, 1
      %s284 = scalar_select %p283, %s19, 1
      %s285 = scalar_lea.vmem %s1, %s284
      %p286 = scmp.lt.s32.totalorder %s19, 1
      %s287 = scalar_select %p286, %s19, 1
      %s288 = scalar_lea.vmem %s6, %s287
      %p289 = scmp.lt.s32.totalorder %s19, 1
      %s290 = scalar_select %p289, %s19, 1
      %s291 = scalar_lea.vmem %s7, %s290
      %v292 = vld [vmem:[%s282] sm:$0x1]
      %v293 = vld [vmem:[%s4] sm:$0xff]
      %v294 = vld [vmem:[%s4 + $0x8] sm:$0xff]
      %v295 = vld [vmem:[%s4 + $0x10] sm:$0xff]
      %v296 = vld [vmem:[%s4 + $0x18] sm:$0xff]
      %v297 = vld [vmem:[%s4 + $0x20] sm:$0xff]
      %v298 = vld [vmem:[%s4 + $0x28] sm:$0xff]
      %v299 = vld [vmem:[%s4 + $0x30] sm:$0xff]
      %v300 = vld [vmem:[%s4 + $0x38] sm:$0xff]
      %v301 = vld [vmem:[%s4 + $0x40] sm:$0xff]
      %v302 = vld [vmem:[%s4 + $0x48] sm:$0xff]
      %v303 = vld [vmem:[%s4 + $0x50] sm:$0xff]
      %v304 = vld [vmem:[%s4 + $0x58] sm:$0xff]
      %v305 = vld [vmem:[%s4 + $0x60] sm:$0xff]
      %v306 = vld [vmem:[%s4 + $0x68] sm:$0xff]
      %v307 = vld [vmem:[%s4 + $0x70] sm:$0xff]
      %v308 = vld [vmem:[%s4 + $0x78] sm:$0xff]
      %309 = vmatprep.subr.mxu0 0.0
      %310 = vmatpush1.msra.mxu0 %v293
      %311 = vmatprep.subr.mxu0 0.0
      %312 = vmatpush1.msra.mxu0 %v294
      %313 = vmatprep.subr.mxu0 0.0
      %314 = vmatpush1.msra.mxu0 %v295
      %315 = vmatprep.subr.mxu0 0.0
      %316 = vmatpush1.msra.mxu0 %v296
      %317 = vmatprep.subr.mxu0 0.0
      %318 = vmatpush1.msra.mxu0 %v297
      %319 = vmatprep.subr.mxu0 0.0
      %320 = vmatpush1.msra.mxu0 %v298
      %321 = vmatprep.subr.mxu0 0.0
      %322 = vmatpush1.msra.mxu0 %v299
      %323 = vmatprep.subr.mxu0 0.0
      %324 = vmatpush1.msra.mxu0 %v300
      %325 = vmatprep.subr.mxu0 0.0
      %326 = vmatpush1.msra.mxu0 %v301
      %327 = vmatprep.subr.mxu0 0.0
      %328 = vmatpush1.msra.mxu0 %v302
      %329 = vmatprep.subr.mxu0 0.0
      %330 = vmatpush1.msra.mxu0 %v303
      %331 = vmatprep.subr.mxu0 0.0
      %332 = vmatpush1.msra.mxu0 %v304
      %333 = vmatprep.subr.mxu0 0.0
      %334 = vmatpush1.msra.mxu0 %v305
      %335 = vmatprep.subr.mxu0 0.0
      %336 = vmatpush1.msra.mxu0 %v306
      %337 = vmatprep.subr.mxu0 0.0
      %338 = vmatpush1.msra.mxu0 %v307
      %339 = vmatprep.subr.mxu0 0.0
      %340 = vmatpush1.msra.mxu0 %v308
      %341 = vmatprep.subr.mxu0 0.0
      %342 = vmatpush1.msra.mxu0 0.0
      %343 = vmatprep.subr.mxu0 0.0
      %344 = vmatpush1.msra.mxu0 0.0
      %345 = vmatprep.subr.mxu0 0.0
      %346 = vmatpush1.msra.mxu0 0.0
      %347 = vmatprep.subr.mxu0 0.0
      %348 = vmatpush1.msra.mxu0 0.0
      %349 = vmatprep.subr.mxu0 0.0
      %350 = vmatpush1.msra.mxu0 0.0
      %351 = vmatprep.subr.mxu0 0.0
      %352 = vmatpush1.msra.mxu0 0.0
      %353 = vmatprep.subr.mxu0 0.0
      %354 = vmatpush1.msra.mxu0 0.0
      %355 = vmatprep.subr.mxu0 0.0
      %356 = vmatpush1.msra.mxu0 0.0
      %357 = vmatprep.subr.mxu0 0.0
      %358 = vmatpush1.msra.mxu0 0.0
      %359 = vmatprep.subr.mxu0 0.0
      %360 = vmatpush1.msra.mxu0 0.0
      %361 = vmatprep.subr.mxu0 0.0
      %362 = vmatpush1.msra.mxu0 0.0
      %363 = vmatprep.subr.mxu0 0.0
      %364 = vmatpush1.msra.mxu0 0.0
      %365 = vmatprep.subr.mxu0 0.0
      %366 = vmatpush1.msra.mxu0 0.0
      %367 = vmatprep.subr.mxu0 0.0
      %368 = vmatpush1.msra.mxu0 0.0
      %369 = vmatprep.subr.mxu0 0.0
      %370 = vmatpush1.msra.mxu0 0.0
      %371 = vmatprep.subr.mxu0 0.0
      %372 = vmatpush1.msra.mxu0 0.0
      %373 = vmatprep.mubr.f32.mxu0 0.0
      %374 = vmatmul.mubr.f32.gmra.mrb[0].mxu0 %v292
      %v375 = vpop.f32.mrb[0].mxu0
      %v376 = vadd.f32 0.0, %v375
      %v377 = vpop.f32.mrb[0].mxu0
      %378 = vdwg.mxu0
      %v379 = vld [vmem:[%s285] sm:$0x1]
      %380 = vmatprep.subr.mxu0 0.0
      %381 = vmatpush1.msra.mxu0 %v293
      %382 = vmatprep.subr.mxu0 0.0
      %383 = vmatpush1.msra.mxu0 %v294
      %384 = vmatprep.subr.mxu0 0.0
      %385 = vmatpush1.msra.mxu0 %v295
      %386 = vmatprep.subr.mxu0 0.0
      %387 = vmatpush1.msra.mxu0 %v296
      %388 = vmatprep.subr.mxu0 0.0
      %389 = vmatpush1.msra.mxu0 %v297
      %390 = vmatprep.subr.mxu0 0.0
      %391 = vmatpush1.msra.mxu0 %v298
      %392 = vmatprep.subr.mxu0 0.0
      %393 = vmatpush1.msra.mxu0 %v299
      %394 = vmatprep.subr.mxu0 0.0
      %395 = vmatpush1.msra.mxu0 %v300
      %396 = vmatprep.subr.mxu0 0.0
      %397 = vmatpush1.msra.mxu0 %v301
      %398 = vmatprep.subr.mxu0 0.0
      %399 = vmatpush1.msra.mxu0 %v302
      %400 = vmatprep.subr.mxu0 0.0
      %401 = vmatpush1.msra.mxu0 %v303
      %402 = vmatprep.subr.mxu0 0.0
      %403 = vmatpush1.msra.mxu0 %v304
      %404 = vmatprep.subr.mxu0 0.0
      %405 = vmatpush1.msra.mxu0 %v305
      %406 = vmatprep.subr.mxu0 0.0
      %407 = vmatpush1.msra.mxu0 %v306
      %408 = vmatprep.subr.mxu0 0.0
      %409 = vmatpush1.msra.mxu0 %v307
      %410 = vmatprep.subr.mxu0 0.0
      %411 = vmatpush1.msra.mxu0 %v308
      %412 = vmatprep.subr.mxu0 0.0
      %413 = vmatpush1.msra.mxu0 0.0
      %414 = vmatprep.subr.mxu0 0.0
      %415 = vmatpush1.msra.mxu0 0.0
      %416 = vmatprep.subr.mxu0 0.0
      %417 = vmatpush1.msra.mxu0 0.0
      %418 = vmatprep.subr.mxu0 0.0
      %419 = vmatpush1.msra.mxu0 0.0
      %420 = vmatprep.subr.mxu0 0.0
      %421 = vmatpush1.msra.mxu0 0.0
      %422 = vmatprep.subr.mxu0 0.0
      %423 = vmatpush1.msra.mxu0 0.0
      %424 = vmatprep.subr.mxu0 0.0
      %425 = vmatpush1.msra.mxu0 0.0
      %426 = vmatprep.subr.mxu0 0.0
      %427 = vmatpush1.msra.mxu0 0.0
      %428 = vmatprep.subr.mxu0 0.0
      %429 = vmatpush1.msra.mxu0 0.0
      %430 = vmatprep.subr.mxu0 0.0
      %431 = vmatpush1.msra.mxu0 0.0
      %432 = vmatprep.subr.mxu0 0.0
      %433 = vmatpush1.msra.mxu0 0.0
      %434 = vmatprep.subr.mxu0 0.0
      %435 = vmatpush1.msra.mxu0 0.0
      %436 = vmatprep.subr.mxu0 0.0
      %437 = vmatpush1.msra.mxu0 0.0
      %438 = vmatprep.subr.mxu0 0.0
      %439 = vmatpush1.msra.mxu0 0.0
      %440 = vmatprep.subr.mxu0 0.0
      %441 = vmatpush1.msra.mxu0 0.0
      %442 = vmatprep.subr.mxu0 0.0
      %443 = vmatpush1.msra.mxu0 0.0
      %444 = vmatprep.mubr.f32.mxu0 0.0
      %445 = vmatmul.mubr.f32.gmra.mrb[0].mxu0 %v379
      %v446 = vpop.f32.mrb[0].mxu0
      %v447 = vadd.f32 0.0, %v446
      %v448 = vpop.f32.mrb[0].mxu0
      %449 = vdwg.mxu0
      %v450 = vmul.f32 %v376, 0.00390625
      %v451 = vmul.f32 %v447, 0.00390625
      %v452 = vmul.f32 %v450, %v450
      %v453 = vsub.f32 %v451, %v452
      %v454 = vld [vmem:[%s5] sm:$0xff]
      %v455 = vld [vmem:[%s5 + $0x8] sm:$0xff]
      %v456 = vld [vmem:[%s5 + $0x10] sm:$0xff]
      %v457 = vld [vmem:[%s5 + $0x18] sm:$0xff]
      %vm458 = vcmask 261120
      %v460 = vsel %vm458, %v450, 0
      %462 = vmatprep.subr.mxu0 0.0
      %463 = vmatpush1.msra.mxu0 %v454
      %464 = vmatprep.subr.mxu0 0.0
      %465 = vmatpush1.msra.mxu0 %v455
      %466 = vmatprep.subr.mxu0 0.0
      %467 = vmatpush1.msra.mxu0 %v456
      %468 = vmatprep.subr.mxu0 0.0
      %469 = vmatpush1.msra.mxu0 %v457
      %470 = vmatprep.subr.mxu0 0.0
      %471 = vmatpush1.msra.mxu0 0.0
      %472 = vmatprep.subr.mxu0 0.0
      %473 = vmatpush1.msra.mxu0 0.0
      %474 = vmatprep.subr.mxu0 0.0
      %475 = vmatpush1.msra.mxu0 0.0
      %476 = vmatprep.subr.mxu0 0.0
      %477 = vmatpush1.msra.mxu0 0.0
      %478 = vmatprep.subr.mxu0 0.0
      %479 = vmatpush1.msra.mxu0 0.0
      %480 = vmatprep.subr.mxu0 0.0
      %481 = vmatpush1.msra.mxu0 0.0
      %482 = vmatprep.subr.mxu0 0.0
      %483 = vmatpush1.msra.mxu0 0.0
      %484 = vmatprep.subr.mxu0 0.0
      %485 = vmatpush1.msra.mxu0 0.0
      %486 = vmatprep.subr.mxu0 0.0
      %487 = vmatpush1.msra.mxu0 0.0
      %488 = vmatprep.subr.mxu0 0.0
      %489 = vmatpush1.msra.mxu0 0.0
      %490 = vmatprep.subr.mxu0 0.0
      %491 = vmatpush1.msra.mxu0 0.0
      %492 = vmatprep.subr.mxu0 0.0
      %493 = vmatpush1.msra.mxu0 0.0
      %494 = vmatprep.subr.mxu0 0.0
      %495 = vmatpush1.msra.mxu0 0.0
      %496 = vmatprep.subr.mxu0 0.0
      %497 = vmatpush1.msra.mxu0 0.0
      %498 = vmatprep.subr.mxu0 0.0
      %499 = vmatpush1.msra.mxu0 0.0
      %500 = vmatprep.subr.mxu0 0.0
      %501 = vmatpush1.msra.mxu0 0.0
      %502 = vmatprep.subr.mxu0 0.0
      %503 = vmatpush1.msra.mxu0 0.0
      %504 = vmatprep.subr.mxu0 0.0
      %505 = vmatpush1.msra.mxu0 0.0
      %506 = vmatprep.subr.mxu0 0.0
      %507 = vmatpush1.msra.mxu0 0.0
      %508 = vmatprep.subr.mxu0 0.0
      %509 = vmatpush1.msra.mxu0 0.0
      %510 = vmatprep.subr.mxu0 0.0
      %511 = vmatpush1.msra.mxu0 0.0
      %512 = vmatprep.subr.mxu0 0.0
      %513 = vmatpush1.msra.mxu0 0.0
      %514 = vmatprep.subr.mxu0 0.0
      %515 = vmatpush1.msra.mxu0 0.0
      %516 = vmatprep.subr.mxu0 0.0
      %517 = vmatpush1.msra.mxu0 0.0
      %518 = vmatprep.subr.mxu0 0.0
      %519 = vmatpush1.msra.mxu0 0.0
      %520 = vmatprep.subr.mxu0 0.0
      %521 = vmatpush1.msra.mxu0 0.0
      %522 = vmatprep.subr.mxu0 0.0
      %523 = vmatpush1.msra.mxu0 0.0
      %524 = vmatprep.subr.mxu0 0.0
      %525 = vmatpush1.msra.mxu0 0.0
      %526 = vmatprep.mubr.f32.mxu0 0.0
      %527 = vmatmul.mubr.f32.gmra.mrb[0].mxu0 %v460
      %v528 = vpop.f32.mrb[0].mxu0
      %v529 = vadd.f32 0.0, %v528
      %v530 = vpop.f32.mrb[0].mxu0
      %531 = vdwg.mxu0
      %v533 = vsel %vm458, %v453, 0
      %535 = vmatprep.subr.mxu0 0.0
      %536 = vmatpush1.msra.mxu0 %v454
      %537 = vmatprep.subr.mxu0 0.0
      %538 = vmatpush1.msra.mxu0 %v455
      %539 = vmatprep.subr.mxu0 0.0
      %540 = vmatpush1.msra.mxu0 %v456
      %541 = vmatprep.subr.mxu0 0.0
      %542 = vmatpush1.msra.mxu0 %v457
      %543 = vmatprep.subr.mxu0 0.0
      %544 = vmatpush1.msra.mxu0 0.0
      %545 = vmatprep.subr.mxu0 0.0
      %546 = vmatpush1.msra.mxu0 0.0
      %547 = vmatprep.subr.mxu0 0.0
      %548 = vmatpush1.msra.mxu0 0.0
      %549 = vmatprep.subr.mxu0 0.0
      %550 = vmatpush1.msra.mxu0 0.0
      %551 = vmatprep.subr.mxu0 0.0
      %552 = vmatpush1.msra.mxu0 0.0
      %553 = vmatprep.subr.mxu0 0.0
      %554 = vmatpush1.msra.mxu0 0.0
      %555 = vmatprep.subr.mxu0 0.0
      %556 = vmatpush1.msra.mxu0 0.0
      %557 = vmatprep.subr.mxu0 0.0
      %558 = vmatpush1.msra.mxu0 0.0
      %559 = vmatprep.subr.mxu0 0.0
      %560 = vmatpush1.msra.mxu0 0.0
      %561 = vmatprep.subr.mxu0 0.0
      %562 = vmatpush1.msra.mxu0 0.0
      %563 = vmatprep.subr.mxu0 0.0
      %564 = vmatpush1.msra.mxu0 0.0
      %565 = vmatprep.subr.mxu0 0.0
      %566 = vmatpush1.msra.mxu0 0.0
      %567 = vmatprep.subr.mxu0 0.0
      %568 = vmatpush1.msra.mxu0 0.0
      %569 = vmatprep.subr.mxu0 0.0
      %570 = vmatpush1.msra.mxu0 0.0
      %571 = vmatprep.subr.mxu0 0.0
      %572 = vmatpush1.msra.mxu0 0.0
      %573 = vmatprep.subr.mxu0 0.0
      %574 = vmatpush1.msra.mxu0 0.0
      %575 = vmatprep.subr.mxu0 0.0
      %576 = vmatpush1.msra.mxu0 0.0
      %577 = vmatprep.subr.mxu0 0.0
      %578 = vmatpush1.msra.mxu0 0.0
      %579 = vmatprep.subr.mxu0 0.0
      %580 = vmatpush1.msra.mxu0 0.0
      %581 = vmatprep.subr.mxu0 0.0
      %582 = vmatpush1.msra.mxu0 0.0
      %583 = vmatprep.subr.mxu0 0.0
      %584 = vmatpush1.msra.mxu0 0.0
      %585 = vmatprep.subr.mxu0 0.0
      %586 = vmatpush1.msra.mxu0 0.0
      %587 = vmatprep.subr.mxu0 0.0
      %588 = vmatpush1.msra.mxu0 0.0
      %589 = vmatprep.subr.mxu0 0.0
      %590 = vmatpush1.msra.mxu0 0.0
      %591 = vmatprep.subr.mxu0 0.0
      %592 = vmatpush1.msra.mxu0 0.0
      %593 = vmatprep.subr.mxu0 0.0
      %594 = vmatpush1.msra.mxu0 0.0
      %595 = vmatprep.subr.mxu0 0.0
      %596 = vmatpush1.msra.mxu0 0.0
      %597 = vmatprep.subr.mxu0 0.0
      %598 = vmatpush1.msra.mxu0 0.0
      %599 = vmatprep.mubr.f32.mxu0 0.0
      %600 = vmatmul.mubr.f32.gmra.mrb[0].mxu0 %v533
      %v601 = vpop.f32.mrb[0].mxu0
      %v602 = vadd.f32 1e-05, %v601
      %v603 = vpop.f32.mrb[0].mxu0
      %604 = vdwg.mxu0
      %v605 = vrsqrt.pop %v602
      %v606 = vld [vmem:[%s2] sm:$0x1]
      %v607 = vmul.f32 %v605, %v606
      %608 = vst [vmem:[%s288] sm:$0x1] %v607
      %v609 = vld [vmem:[%s3] sm:$0x1]
      %v610 = vmul.f32 %v529, %v607
      %v611 = vsub.f32 %v609, %v610
      %612 = vst [vmem:[%s291] sm:$0x1] %v611
      %p613 = scmp.lt.s32.totalorder %s19, 1
      %s614 = scalar_select %p613, %s19, 1
      %s615 = scalar_lea.vmem %s6, %s614
      %p616 = scmp.lt.s32.totalorder %s19, 1
      %s617 = scalar_select %p616, %s19, 1
      %s618 = scalar_lea.vmem %s7, %s617
      // Predicated region
      $region45: #{down_block_forward.12} parent=43 // pred_check
        %p619 = pneg %p173
      $region46: #{down_block_forward.12} parent=43 // pred_check_branch
        %621 = sbr.rel (%p619) target = $region48
      $region47: #{down_block_forward.12} parent=43 // pred_region
        _
      $region48: #{down_block_forward.12} parent=43 // pred_fallthru
        _
      // Predicated region
      $region49: #{down_block_forward.12} parent=43 // pred_check
        %p622 = pneg %p199
      $region50: #{down_block_forward.12} parent=43 // pred_check_branch
        %624 = sbr.rel (%p622) target = $region52
      $region51: #{down_block_forward.12} parent=43 // pred_region
        _
      $region52: #{down_block_forward.12} parent=43 // pred_fallthru
        _
    $region44: #{down_block_forward.12} parent=5 // pred_fallthru
      _
    %p625 = scmp.le.s32.totalorder 2, %s14
    // Predicated region
    $region53: #{down_block_forward.12} parent=5 // pred_check
      %p626 = pneg %p625
    $region54: #{down_block_forward.12} parent=5 // pred_check_branch
      %628 = sbr.rel (%p626) target = $region56
    $region55: #{down_block_forward.12} parent=5 // pred_region
      %s629 = ssub.s32 %s14, 2
      // Predicated region
      $region57: #{down_block_forward.12} parent=55 // pred_check
        %p630 = pneg %p179
      $region58: #{down_block_forward.12} parent=55 // pred_check_branch
        %632 = sbr.rel (%p630) target = $region60
      $region59: #{down_block_forward.12} parent=55 // pred_region
        %p633 = scmp.lt.s32.totalorder %s20, 1
        %s634 = scalar_select %p633, %s20, 1
        %s635 = scalar_lea.vmem %s6, %s634
      $region60: #{down_block_forward.12} parent=55 // pred_fallthru
        _
      // Predicated region
      $region61: #{down_block_forward.12} parent=55 // pred_check
        %p636 = pneg %p205
      $region62: #{down_block_forward.12} parent=55 // pred_check_branch
        %638 = sbr.rel (%p636) target = $region64
      $region63: #{down_block_forward.12} parent=55 // pred_region
        %p639 = scmp.lt.s32.totalorder %s20, 1
        %s640 = scalar_select %p639, %s20, 1
        %s641 = scalar_lea.vmem %s7, %s640
      $region64: #{down_block_forward.12} parent=55 // pred_fallthru
        _
    $region56: #{down_block_forward.12} parent=5 // pred_fallthru
      _
  $region6: #{down_block_forward.12} parent=0 // loop_footer
    %s18 = sadd.s32 1, %s14
  $region7: #{down_block_forward.12} parent=0 // loop_footer_branch
    %13 = sbr.rel target = $region3
  $region8: #{down_block_forward.12} parent=0 // loop_exit
    _

// kernel: down_block_forward.11
$region0: #{down_block_forward.11}
  #allocation0 [shape = 'u32[]', space=smem, size = 0x4, offset = 0x4, fixed_abs, tag = 'smem constant byte address 0x4 - core index']
  #allocation1 [shape = 'u32[144,128]{1,0:T(1,128)}', space=vmem, size = 0x12000, scoped, tag = 'internal scratch']
  #allocation2 [shape = 'f32[10,10,64]{2,1,0:T(8,128)}', space=vmem, size = 0x14000, scoped, tag = 'scratch operand']
  #allocation3 [shape = 'bf16[64,576]{1,0:T(16,128)(2,1)}', space=vmem, size = 0x14000, scoped, tag = 'scratch operand']
  %s0 = inlined_call_operand.vmem [shape: f32[2,8,8,64], index: 0, kind: input, shape index: {}]
  %s1 = inlined_call_operand.vmem [shape: f32[2,1,64], index: 1, kind: input, shape index: {}]
  %s2 = inlined_call_operand.vmem [shape: f32[2,1,64], index: 2, kind: input, shape index: {}]
  %s3 = inlined_call_operand.vmem [shape: bf16[576,128], index: 3, kind: input, shape index: {}]
  %s4 = inlined_call_operand.vmem [shape: f32[1,128], index: 4, kind: input, shape index: {}]
  %s5 = inlined_call_operand.vmem [shape: f32[2,1,128], index: 5, kind: input, shape index: {}]
  %s6 = inlined_call_operand.vmem [shape: f32[2,64,128], index: 6, kind: output, shape index: {0}]
  %s7 = inlined_call_operand.vmem [shape: f32[2,1,128], index: 7, kind: output, shape index: {1}]
  %s8 = inlined_call_operand.vmem [shape: f32[2,1,128], index: 8, kind: output, shape index: {2}]
  %9 = xla_tuple %s6, %s7, %s8
  %s10 = sld [smem:[#allocation0]]
  $region77: #{down_block_forward.11} parent=0
    _
  %s12 = ssub.s32 1, %s10
  %s13 = scalar_select 0, %s12, %s10
  loop: start=0, step=1, limit=4
  $region2: #{down_block_forward.11} parent=0 // loop_pre_header
    _
  $region3: #{down_block_forward.11} parent=0 // loop_header
    %s15 = sphi 0, %s19
    %p16 = scmp.ge.s32.totalorder %s15, 4
    %s22 = sphi 0, %s34
    %s23 = sphi 0, %s30
    %s24 = sphi 0, %s22
    %s25 = sphi 0, %s23
    %s26 = sphi 0, %s24
    %s27 = sphi 0, %s25
    %s37 = sphi 0, %s39
    %s40 = sphi 0, %s37
    %s41 = sphi 0, %s40
    %s57 = sphi 0, %s41
    %s63 = sphi 0, %s65
    %s66 = sphi 0, %s63
    %s67 = sphi 0, %s66
    %s83 = sphi 0, %s67
    %s89 = sphi 0, %s91
    %s92 = sphi 0, %s89
    %s93 = sphi 0, %s92
    %s109 = sphi 0, %s93
    %s113 = sphi 0, %s113
    %s115 = sphi 0, %s113
    %s116 = sphi 0, %s115
    %s130 = sphi 0, %s116
    %s134 = sphi 0, %s134
    %s136 = sphi 0, %s134
    %s137 = sphi 0, %s136
    %s151 = sphi 0, %s137
    %s157 = sphi 0, %s159
    %s160 = sphi 0, %s157
    %s161 = sphi 0, %s160
    %s177 = sphi 0, %s161
    %s185 = sphi 0, %s187
    %s188 = sphi 0, %s185
    %s189 = sphi 0, %s188
    %s205 = sphi 0, %s189
    %s211 = sphi 0, %s213
    %s214 = sphi 0, %s211
    %s215 = sphi 0, %s214
    %s231 = sphi 0, %s215
    %s237 = sphi 0, %s239
    %s240 = sphi 0, %s237
    %s241 = sphi 0, %s240
    %s257 = sphi 0, %s241
  $region4: #{down_block_forward.11} parent=0 // loop_header_branch
    %18 = sbr.rel (%p16) target = $region8
  $region5: #{down_block_forward.11} parent=0 // loop_body
    %s20 = ssub.s32 %s15, 1
    %s21 = ssub.s32 %s15, 2
    %s28 = sadd.s32 1, %s23
    %p29 = scmp.ge.s32.totalorder %s28, 1
    %s30 = scalar_select %p29, 0, %s28
    %s31 = sadd.s32 1, %s22
    %s32 = scalar_select %p29, %s31, %s22
    %p33 = scmp.ge.s32.totalorder %s32, 2
    %s34 = scalar_select %p33, 0, %s32
    %s35 = ssub.s32 %s22, %s34
    %p36 = scmp.eq.s32.totalorder %s35, 0
    %s38 = sadd.s32 %s37, 1
    %s39 = scalar_select %p36, %s37, %s38
    %p42 = pneg %p36
    %p43 = scmp.eq.s32.totalorder %s15, 1
    %p44 = por %p42, %p43
    %p45 = scmp.ne.s32.totalorder %s37, %s40
    %p46 = scmp.eq.s32.totalorder %s15, 0
    %p47 = por %p45, %p46
    %p48 = scmp.ne.s32.totalorder %s37, %s40
    %p49 = scmp.eq.s32.totalorder %s20, 1
    %p50 = por %p48, %p49
    %p51 = scmp.ne.s32.totalorder %s40, %s41
    %p52 = scmp.eq.s32.totalorder %s20, 0
    %p53 = por %p51, %p52
    %p54 = scmp.ne.s32.totalorder %s40, %s41
    %p55 = scmp.eq.s32.totalorder %s21, 1
    %p56 = por %p54, %p55
    %p58 = scmp.ne.s32.totalorder %s41, %s57
    %p59 = scmp.eq.s32.totalorder %s21, 0
    %p60 = por %p58, %p59
    %s61 = ssub.s32 %s22, %s34
    %p62 = scmp.eq.s32.totalorder %s61, 0
    %s64 = sadd.s32 %s63, 1
    %s65 = scalar_select %p62, %s63, %s64
    %p68 = pneg %p62
    %p69 = scmp.eq.s32.totalorder %s15, 1
    %p70 = por %p68, %p69
    %p71 = scmp.ne.s32.totalorder %s63, %s66
    %p72 = scmp.eq.s32.totalorder %s15, 0
    %p73 = por %p71, %p72
    %p74 = scmp.ne.s32.totalorder %s63, %s66
    %p75 = scmp.eq.s32.totalorder %s20, 1
    %p76 = por %p74, %p75
    %p77 = scmp.ne.s32.totalorder %s66, %s67
    %p78 = scmp.eq.s32.totalorder %s20, 0
    %p79 = por %p77, %p78
    %p80 = scmp.ne.s32.totalorder %s66, %s67
    %p81 = scmp.eq.s32.totalorder %s21, 1
    %p82 = por %p80, %p81
    %p84 = scmp.ne.s32.totalorder %s67, %s83
    %p85 = scmp.eq.s32.totalorder %s21, 0
    %p86 = por %p84, %p85
    %s87 = ssub.s32 %s22, %s34
    %p88 = scmp.eq.s32.totalorder %s87, 0
    %s90 = sadd.s32 %s89, 1
    %s91 = scalar_select %p88, %s89, %s90
    %p94 = pneg %p88
    %p95 = scmp.eq.s32.totalorder %s15, 1
    %p96 = por %p94, %p95
    %p97 = scmp.ne.s32.totalorder %s89, %s92
    %p98 = scmp.eq.s32.totalorder %s15, 0
    %p99 = por %p97, %p98
    %p100 = scmp.ne.s32.totalorder %s89, %s92
    %p101 = scmp.eq.s32.totalorder %s20, 1
    %p102 = por %p100, %p101
    %p103 = scmp.ne.s32.totalorder %s92, %s93
    %p104 = scmp.eq.s32.totalorder %s20, 0
    %p105 = por %p103, %p104
    %p106 = scmp.ne.s32.totalorder %s92, %s93
    %p107 = scmp.eq.s32.totalorder %s21, 1
    %p108 = por %p106, %p107
    %p110 = scmp.ne.s32.totalorder %s93, %s109
    %p111 = scmp.eq.s32.totalorder %s21, 0
    %p112 = por %p110, %p111
    %s114 = sadd.s32 %s113, 1
    %p117 = scmp.eq.s32.totalorder %s15, 1
    %p118 = scmp.ne.s32.totalorder %s113, %s115
    %p119 = scmp.eq.s32.totalorder %s15, 0
    %p120 = por %p118, %p119
    %p121 = scmp.ne.s32.totalorder %s113, %s115
    %p122 = scmp.eq.s32.totalorder %s20, 1
    %p123 = por %p121, %p122
    %p124 = scmp.ne.s32.totalorder %s115, %s116
    %p125 = scmp.eq.s32.totalorder %s20, 0
    %p126 = por %p124, %p125
    %p127 = scmp.ne.s32.totalorder %s115, %s116
    %p128 = scmp.eq.s32.totalorder %s21, 1
    %p129 = por %p127, %p128
    %p131 = scmp.ne.s32.totalorder %s116, %s130
    %p132 = scmp.eq.s32.totalorder %s21, 0
    %p133 = por %p131, %p132
    %s135 = sadd.s32 %s134, 1
    %p138 = scmp.eq.s32.totalorder %s15, 1
    %p139 = scmp.ne.s32.totalorder %s134, %s136
    %p140 = scmp.eq.s32.totalorder %s15, 0
    %p141 = por %p139, %p140
    %p142 = scmp.ne.s32.totalorder %s134, %s136
    %p143 = scmp.eq.s32.totalorder %s20, 1
    %p144 = por %p142, %p143
    %p145 = scmp.ne.s32.totalorder %s136, %s137
    %p146 = scmp.eq.s32.totalorder %s20, 0
    %p147 = por %p145, %p146
    %p148 = scmp.ne.s32.totalorder %s136, %s137
    %p149 = scmp.eq.s32.totalorder %s21, 1
    %p150 = por %p148, %p149
    %p152 = scmp.ne.s32.totalorder %s137, %s151
    %p153 = scmp.eq.s32.totalorder %s21, 0
    %p154 = por %p152, %p153
    %s155 = ssub.s32 %s22, %s34
    %p156 = scmp.eq.s32.totalorder %s155, 0
    %s158 = sadd.s32 %s157, 1
    %s159 = scalar_select %p156, %s157, %s158
    %p162 = pneg %p156
    %p163 = scmp.eq.s32.totalorder %s15, 1
    %p164 = por %p162, %p163
    %p165 = scmp.ne.s32.totalorder %s157, %s160
    %p166 = scmp.eq.s32.totalorder %s15, 0
    %p167 = por %p165, %p166
    %p168 = scmp.ne.s32.totalorder %s157, %s160
    %p169 = scmp.eq.s32.totalorder %s20, 1
    %p170 = por %p168, %p169
    %p171 = scmp.ne.s32.totalorder %s160, %s161
    %p172 = scmp.eq.s32.totalorder %s20, 0
    %p173 = por %p171, %p172
    %p174 = scmp.ne.s32.totalorder %s160, %s161
    %p175 = scmp.eq.s32.totalorder %s21, 1
    %p176 = por %p174, %p175
    %p178 = scmp.ne.s32.totalorder %s161, %s177
    %p179 = scmp.eq.s32.totalorder %s21, 0
    %p180 = por %p178, %p179
    %s181 = ssub.s32 %s22, %s34
    %s182 = ssub.s32 %s23, %s30
    %s183 = sor.u32 %s181, %s182
    %p184 = scmp.eq.s32.totalorder %s183, 0
    %s186 = sadd.s32 %s185, 1
    %s187 = scalar_select %p184, %s185, %s186
    %p190 = pneg %p184
    %p191 = scmp.eq.s32.totalorder %s15, 1
    %p192 = por %p190, %p191
    %p193 = scmp.ne.s32.totalorder %s185, %s188
    %p194 = scmp.eq.s32.totalorder %s15, 0
    %p195 = por %p193, %p194
    %p196 = scmp.ne.s32.totalorder %s185, %s188
    %p197 = scmp.eq.s32.totalorder %s20, 1
    %p198 = por %p196, %p197
    %p199 = scmp.ne.s32.totalorder %s188, %s189
    %p200 = scmp.eq.s32.totalorder %s20, 0
    %p201 = por %p199, %p200
    %p202 = scmp.ne.s32.totalorder %s188, %s189
    %p203 = scmp.eq.s32.totalorder %s21, 1
    %p204 = por %p202, %p203
    %p206 = scmp.ne.s32.totalorder %s189, %s205
    %p207 = scmp.eq.s32.totalorder %s21, 0
    %p208 = por %p206, %p207
    %s209 = ssub.s32 %s22, %s34
    %p210 = scmp.eq.s32.totalorder %s209, 0
    %s212 = sadd.s32 %s211, 1
    %s213 = scalar_select %p210, %s211, %s212
    %p216 = pneg %p210
    %p217 = scmp.eq.s32.totalorder %s15, 1
    %p218 = por %p216, %p217
    %p219 = scmp.ne.s32.totalorder %s211, %s214
    %p220 = scmp.eq.s32.totalorder %s15, 0
    %p221 = por %p219, %p220
    %p222 = scmp.ne.s32.totalorder %s211, %s214
    %p223 = scmp.eq.s32.totalorder %s20, 1
    %p224 = por %p222, %p223
    %p225 = scmp.ne.s32.totalorder %s214, %s215
    %p226 = scmp.eq.s32.totalorder %s20, 0
    %p227 = por %p225, %p226
    %p228 = scmp.ne.s32.totalorder %s214, %s215
    %p229 = scmp.eq.s32.totalorder %s21, 1
    %p230 = por %p228, %p229
    %p232 = scmp.ne.s32.totalorder %s215, %s231
    %p233 = scmp.eq.s32.totalorder %s21, 0
    %p234 = por %p232, %p233
    %s235 = ssub.s32 %s22, %s34
    %p236 = scmp.eq.s32.totalorder %s235, 0
    %s238 = sadd.s32 %s237, 1
    %s239 = scalar_select %p236, %s237, %s238
    %p242 = pneg %p236
    %p243 = scmp.eq.s32.totalorder %s15, 1
    %p244 = por %p242, %p243
    %p245 = scmp.ne.s32.totalorder %s237, %s240
    %p246 = scmp.eq.s32.totalorder %s15, 0
    %p247 = por %p245, %p246
    %p248 = scmp.ne.s32.totalorder %s237, %s240
    %p249 = scmp.eq.s32.totalorder %s20, 1
    %p250 = por %p248, %p249
    %p251 = scmp.ne.s32.totalorder %s240, %s241
    %p252 = scmp.eq.s32.totalorder %s20, 0
    %p253 = por %p251, %p252
    %p254 = scmp.ne.s32.totalorder %s240, %s241
    %p255 = scmp.eq.s32.totalorder %s21, 1
    %p256 = por %p254, %p255
    %p258 = scmp.ne.s32.totalorder %s241, %s257
    %p259 = scmp.eq.s32.totalorder %s21, 0
    %p260 = por %p258, %p259
    %p261 = scmp.le.s32.totalorder 1, %s15
    %p262 = scmp.lt.s32.totalorder %s15, 3
    %p263 = pnand %p261, %p262
    %p264 = pneg %p263
    // Predicated region
    $region9: #{down_block_forward.11} parent=5 // pred_check
      _
    $region10: #{down_block_forward.11} parent=5 // pred_check_branch
      %266 = sbr.rel (%p263) target = $region12
    $region11: #{down_block_forward.11} parent=5 // pred_region
      %s267 = ssub.s32 %s15, 1
      // Predicated region
      $region13: #{down_block_forward.11} parent=11 // pred_check
        %p268 = pneg %p126
      $region14: #{down_block_forward.11} parent=11 // pred_check_branch
        %270 = sbr.rel (%p268) target = $region16
      $region15: #{down_block_forward.11} parent=11 // pred_region
        _
      $region16: #{down_block_forward.11} parent=11 // pred_fallthru
        _
      // Predicated region
      $region17: #{down_block_forward.11} parent=11 // pred_check
        %p271 = pneg %p147
      $region18: #{down_block_forward.11} parent=11 // pred_check_branch
        %273 = sbr.rel (%p271) target = $region20
      $region19: #{down_block_forward.11} parent=11 // pred_region
        _
      $region20: #{down_block_forward.11} parent=11 // pred_fallthru
        _
    $region12: #{down_block_forward.11} parent=5 // pred_fallthru
      _
    %p274 = scmp.lt.s32.totalorder %s15, 2
    // Predicated region
    $region21: #{down_block_forward.11} parent=5 // pred_check
      %p275 = pneg %p274
    $region22: #{down_block_forward.11} parent=5 // pred_check_branch
      %277 = sbr.rel (%p275) target = $region24
    $region23: #{down_block_forward.11} parent=5 // pred_region
      // Predicated region
      $region25: #{down_block_forward.11} parent=23 // pred_check
        %p278 = pneg %p47
      $region26: #{down_block_forward.11} parent=23 // pred_check_branch
        %280 = sbr.rel (%p278) target = $region28
      $region27: #{down_block_forward.11} parent=23 // pred_region
        %p281 = scmp.lt.s32.totalorder %s22, 1
        %s282 = scalar_select %p281, %s22, 1
        %s283 = smul.addr %s282, 8
        %s284 = smul.addr %s283, 8
        %s285 = scalar_lea.vmem %s0, %s284
      $region28: #{down_block_forward.11} parent=23 // pred_fallthru
        _
      // Predicated region
      $region29: #{down_block_forward.11} parent=23 // pred_check
        %p286 = pneg %p73
      $region30: #{down_block_forward.11} parent=23 // pred_check_branch
        %288 = sbr.rel (%p286) target = $region32
      $region31: #{down_block_forward.11} parent=23 // pred_region
        %p289 = scmp.lt.s32.totalorder %s22, 1
        %s290 = scalar_select %p289, %s22, 1
        %s291 = scalar_lea.vmem %s1, %s290
      $region32: #{down_block_forward.11} parent=23 // pred_fallthru
        _
      // Predicated region
      $region33: #{down_block_forward.11} parent=23 // pred_check
        %p292 = pneg %p99
      $region34: #{down_block_forward.11} parent=23 // pred_check_branch
        %294 = sbr.rel (%p292) target = $region36
      $region35: #{down_block_forward.11} parent=23 // pred_region
        %p295 = scmp.lt.s32.totalorder %s22, 1
        %s296 = scalar_select %p295, %s22, 1
        %s297 = scalar_lea.vmem %s2, %s296
      $region36: #{down_block_forward.11} parent=23 // pred_fallthru
        _
      // Predicated region
      $region37: #{down_block_forward.11} parent=23 // pred_check
        %p298 = pneg %p167
      $region38: #{down_block_forward.11} parent=23 // pred_check_branch
        %300 = sbr.rel (%p298) target = $region40
      $region39: #{down_block_forward.11} parent=23 // pred_region
        %p301 = scmp.lt.s32.totalorder %s22, 1
        %s302 = scalar_select %p301, %s22, 1
        %s303 = scalar_lea.vmem %s5, %s302
      $region40: #{down_block_forward.11} parent=23 // pred_fallthru
        _
    $region24: #{down_block_forward.11} parent=5 // pred_fallthru
      _
    %p304 = scmp.le.s32.totalorder 1, %s15
    %p305 = scmp.lt.s32.totalorder %s15, 3
    %p306 = pnand %p304, %p305
    %p307 = pneg %p306
    // Predicated region
    $region41: #{down_block_forward.11} parent=5 // pred_check
      _
    $region42: #{down_block_forward.11} parent=5 // pred_check_branch
      %309 = sbr.rel (%p306) target = $region44
    $region43: #{down_block_forward.11} parent=5 // pred_region
      %s310 = ssub.s32 %s15, 1
      %p311 = scmp.lt.s32.totalorder %s24, 1
      %s312 = scalar_select %p311, %s24, 1
      %s313 = smul.addr %s312, 8
      %s314 = smul.addr %s313, 8
      %s315 = scalar_lea.vmem %s0, %s314
      %p316 = pneg %p53
      %p317 = pneg %p50
      %p318 = scmp.lt.s32.totalorder %s24, 1
      %s319 = scalar_select %p318, %s24, 1
      %s320 = scalar_lea.vmem %s1, %s319
      %p321 = pneg %p79
      %p322 = pneg %p76
      %p323 = scmp.lt.s32.totalorder %s24, 1
      %s324 = scalar_select %p323, %s24, 1
      %s325 = scalar_lea.vmem %s2, %s324
      %p326 = pneg %p105
      %p327 = pneg %p102
      %p328 = pneg %p126
      %p329 = pneg %p123
      %p330 = pneg %p147
      %p331 = pneg %p144
      %p332 = scmp.lt.s32.totalorder %s24, 1
      %s333 = scalar_select %p332, %s24, 1
      %s334 = scalar_lea.vmem %s5, %s333
      %p335 = pneg %p173
      %p336 = pneg %p170
      %p337 = pneg %p201
      %p338 = pneg %p198
      %s339 = smul.u32 8, %s25
      %p340 = scmp.lt.s32.totalorder %s24, 1
      %s341 = scalar_select %p340, %s24, 1
      %p342 = scmp.lt.s32.totalorder %s339, 7
      %s343 = scalar_select %p342, %s339, 7
      %s344 = smul.addr %s341, 8
      %s345 = sadd.s32 %s343, %s344
      %s346 = smul.addr %s345, 8
      %s347 = scalar_lea.vmem %s6, %s346
      %p348 = pneg %p227
      %p349 = pneg %p224
      %p350 = scmp.lt.s32.totalorder %s24, 1
      %s351 = scalar_select %p350, %s24, 1
      %s352 = scalar_lea.vmem %s7, %s351
      %p353 = pneg %p253
      %p354 = pneg %p250
      %p355 = scmp.lt.s32.totalorder %s24, 1
      %s356 = scalar_select %p355, %s24, 1
      %s357 = scalar_lea.vmem %s8, %s356
      %p358 = scmp.lt.s32.totalorder %s24, 1
      %s359 = scalar_select %p358, %s24, 1
      %s360 = smul.addr %s359, 8
      %s361 = smul.addr %s360, 8
      %s362 = scalar_lea.vmem %s0, %s361
      %p363 = scmp.lt.s32.totalorder %s24, 1
      %s364 = scalar_select %p363, %s24, 1
      %s365 = scalar_lea.vmem %s1, %s364
      %p366 = scmp.lt.s32.totalorder %s24, 1
      %s367 = scalar_select %p366, %s24, 1
      %s368 = scalar_lea.vmem %s2, %s367
      %p369 = scmp.lt.s32.totalorder %s24, 1
      %s370 = scalar_select %p369, %s24, 1
      %s371 = scalar_lea.vmem %s5, %s370
      %s372 = smul.u32 8, %s25
      %p373 = scmp.lt.s32.totalorder %s24, 1
      %s374 = scalar_select %p373, %s24, 1
      %p375 = scmp.lt.s32.totalorder %s372, 7
      %s376 = scalar_select %p375, %s372, 7
      %s377 = smul.addr %s374, 8
      %s378 = sadd.s32 %s376, %s377
      %s379 = smul.addr %s378, 8
      %s380 = scalar_lea.vmem %s6, %s379
      %s381 = smul.u32 8, %s25
      %p382 = scmp.lt.s32.totalorder %s24, 1
      %s383 = scalar_select %p382, %s24, 1
      %s384 = scalar_lea.vmem %s7, %s383
      %p385 = scmp.lt.s32.totalorder %s24, 1
      %s386 = scalar_select %p385, %s24, 1
      %s387 = scalar_lea.vmem %s8, %s386
      %p389 = scmp.eq.s32.totalorder %s25, 0
      // Predicated region
      $region45: #{down_block_forward.11} parent=43 // pred_check
        %p390 = pneg %p389
      $region46: #{down_block_forward.11} parent=43 // pred_check_branch
        %392 = sbr.rel (%p390) target = $region48
      $region47: #{down_block_forward.11} parent=43 // pred_region
        %vm393 = vcmask 523264
        %394 = vst.msk [vmem:[#allocation2] sm:$0xff] %vm393, 0.0
        %vm395 = vcmask 517120
        %396 = vst.msk [vmem:[#allocation2 + $0x8] sm:$0x3] %vm395, 0.0
        %397 = vst.msk [vmem:[#allocation2 + $0x10] sm:$0xff] %vm393, 0.0
        %398 = vst.msk [vmem:[#allocation2 + $0x18] sm:$0x3] %vm395, 0.0
        %399 = vst.msk [vmem:[#allocation2 + $0x20] sm:$0xff] %vm393, 0.0
        %400 = vst.msk [vmem:[#allocation2 + $0x28] sm:$0x3] %vm395, 0.0
        %401 = vst.msk [vmem:[#allocation2 + $0x30] sm:$0xff] %vm393, 0.0
        %402 = vst.msk [vmem:[#allocation2 + $0x38] sm:$0x3] %vm395, 0.0
        %403 = vst.msk [vmem:[#allocation2 + $0x40] sm:$0xff] %vm393, 0.0
        %404 = vst.msk [vmem:[#allocation2 + $0x48] sm:$0x3] %vm395, 0.0
        %405 = vst.msk [vmem:[#allocation2 + $0x50] sm:$0xff] %vm393, 0.0
        %406 = vst.msk [vmem:[#allocation2 + $0x58] sm:$0x3] %vm395, 0.0
        %407 = vst.msk [vmem:[#allocation2 + $0x60] sm:$0xff] %vm393, 0.0
        %408 = vst.msk [vmem:[#allocation2 + $0x68] sm:$0x3] %vm395, 0.0
        %409 = vst.msk [vmem:[#allocation2 + $0x70] sm:$0xff] %vm393, 0.0
        %410 = vst.msk [vmem:[#allocation2 + $0x78] sm:$0x3] %vm395, 0.0
        %411 = vst.msk [vmem:[#allocation2 + $0x80] sm:$0xff] %vm393, 0.0
        %412 = vst.msk [vmem:[#allocation2 + $0x88] sm:$0x3] %vm395, 0.0
        %413 = vst.msk [vmem:[#allocation2 + $0x90] sm:$0xff] %vm393, 0.0
        %414 = vst.msk [vmem:[#allocation2 + $0x98] sm:$0x3] %vm395, 0.0
        %v415 = vld [vmem:[%s362] sm:$0xff]
        %v416 = vld [vmem:[%s362 + $0x8] sm:$0xff]
        %v417 = vld [vmem:[%s362 + $0x10] sm:$0xff]
        %v418 = vld [vmem:[%s362 + $0x18] sm:$0xff]
        %v419 = vld [vmem:[%s362 + $0x20] sm:$0xff]
        %v420 = vld [vmem:[%s362 + $0x28] sm:$0xff]
        %v421 = vld [vmem:[%s362 + $0x30] sm:$0xff]
        %v422 = vld [vmem:[%s362 + $0x38] sm:$0xff]
        %v423 = vld [vmem:[%s365] sm:$0x1]
        %v425 = vlaneseq
        %v426 = vshrl.u32 %v425, 7
        %v427 = vsub.s32 0, %v426
        %v428 = vrot.slane %v423, %v427
        %v430 = vmul.f32 %v415, %v428
        %v431 = vmul.f32 %v416, %v428
        %v432 = vmul.f32 %v417, %v428
        %v433 = vmul.f32 %v418, %v428
        %v434 = vmul.f32 %v419, %v428
        %v435 = vmul.f32 %v420, %v428
        %v436 = vmul.f32 %v421, %v428
        %v437 = vmul.f32 %v422, %v428
        %v438 = vld [vmem:[%s368] sm:$0x1]
        %v440 = vlaneseq
        %v441 = vshrl.u32 %v440, 7
        %v442 = vsub.s32 0, %v441
        %v443 = vrot.slane %v438, %v442
        %v445 = vadd.f32 %v430, %v443
        %v446 = vadd.f32 %v431, %v443
        %v447 = vadd.f32 %v432, %v443
        %v448 = vadd.f32 %v433, %v443
        %v449 = vadd.f32 %v434, %v443
        %v450 = vadd.f32 %v435, %v443
        %v451 = vadd.f32 %v436, %v443
        %v452 = vadd.f32 %v437, %v443
        %v453 = vsub.f32 0.0, %v445
        %v454 = vsub.f32 0.0, %v446
        %v455 = vsub.f32 0.0, %v447
        %v456 = vsub.f32 0.0, %v448
        %v457 = vsub.f32 0.0, %v449
        %v458 = vsub.f32 0.0, %v450
        %v459 = vsub.f32 0.0, %v451
        %v460 = vsub.f32 0.0, %v452
        %v461 = vmul.f32 %v453, 1.442695
        %v462 = vpow.pop %v461
        %v463 = vmul.f32 %v454, 1.442695
        %v464 = vpow.pop %v463
        %v465 = vmul.f32 %v455, 1.442695
        %v466 = vpow.pop %v465
        %v467 = vmul.f32 %v456, 1.442695
        %v468 = vpow.pop %v467
        %v469 = vmul.f32 %v457, 1.442695
        %v470 = vpow.pop %v469
        %v471 = vmul.f32 %v458, 1.442695
        %v472 = vpow.pop %v471
        %v473 = vmul.f32 %v459, 1.442695
        %v474 = vpow.pop %v473
        %v475 = vmul.f32 %v460, 1.442695
        %v476 = vpow.pop %v475
        %v477 = vadd.f32 %v462, 1.0
        %v478 = vadd.f32 %v464, 1.0
        %v479 = vadd.f32 %v466, 1.0
        %v480 = vadd.f32 %v468, 1.0
        %v481 = vadd.f32 %v470, 1.0
        %v482 = vadd.f32 %v472, 1.0
        %v483 = vadd.f32 %v474, 1.0
        %v484 = vadd.f32 %v476, 1.0
        %v485 = vrcp.pop %v477
        %v486 = vmul.f32 %v445, %v485
        %v487 = vrcp.pop %v478
        %v488 = vmul.f32 %v446, %v487
        %v489 = vrcp.pop %v479
        %v490 = vmul.f32 %v447, %v489
        %v491 = vrcp.pop %v480
        %v492 = vmul.f32 %v448, %v491
        %v493 = vrcp.pop %v481
        %v494 = vmul.f32 %v449, %v493
        %v495 = vrcp.pop %v482
        %v496 = vmul.f32 %v450, %v495
        %v497 = vrcp.pop %v483
        %v498 = vmul.f32 %v451, %v497
        %v499 = vrcp.pop %v484
        %v500 = vmul.f32 %v452, %v499
        %s501 = scalar_lea.vmem [#allocation2], 16
        %502 = vst.msk [vmem:[%s501 + $0x1] sm:$0xff] %vm393, %v486
        %503 = vst.msk [vmem:[%s501 + $0x11] sm:$0xff] %vm393, %v488
        %504 = vst.msk [vmem:[%s501 + $0x21] sm:$0xff] %vm393, %v490
        %505 = vst.msk [vmem:[%s501 + $0x31] sm:$0xff] %vm393, %v492
        %506 = vst.msk [vmem:[%s501 + $0x41] sm:$0xff] %vm393, %v494
        %507 = vst.msk [vmem:[%s501 + $0x51] sm:$0xff] %vm393, %v496
        %508 = vst.msk [vmem:[%s501 + $0x61] sm:$0xff] %vm393, %v498
        %509 = vst.msk [vmem:[%s501 + $0x71] sm:$0xff] %vm393, %v500
        %510 = vst [vmem:[%s384] sm:$0x1] 0.0
        %511 = vst [vmem:[%s387] sm:$0x1] 0.0
      $region48: #{down_block_forward.11} parent=43 // pred_fallthru
        _
      %s512 = smul.u32 %s25, 8
      %s513 = smul.u32 %s512, 16
      %s514 = scalar_lea.vmem [#allocation2], %s513
      %v515 = vld [vmem:[%s514] sm:$0xff]
      %v516 = vld [vmem:[%s514 + $0x10] sm:$0xff]
      %v517 = vld [vmem:[%s514 + $0x20] sm:$0xff]
      %v518 = vld [vmem:[%s514 + $0x30] sm:$0xff]
      %v519 = vld [vmem:[%s514 + $0x40] sm:$0xff]
      %v520 = vld [vmem:[%s514 + $0x50] sm:$0xff]
      %v521 = vld [vmem:[%s514 + $0x60] sm:$0xff]
      %v522 = vld [vmem:[%s514 + $0x70] sm:$0xff]
      %v523 = vpack.c.bf16 %v516, %v515
      %v524 = vpack.c.bf16 %v518, %v517
      %v525 = vpack.c.bf16 %v520, %v519
      %v526 = vpack.c.bf16 %v522, %v521
      %vm527 = vcmask 523264
      %528 = vst.msk [vmem:[#allocation3] sm:$0xff] %vm527, %v523
      %529 = vst.msk [vmem:[#allocation3 + $0x28] sm:$0xff] %vm527, %v524
      %530 = vst.msk [vmem:[#allocation3 + $0x50] sm:$0xff] %vm527, %v525
      %531 = vst.msk [vmem:[#allocation3 + $0x78] sm:$0xff] %vm527, %v526
      %v532 = vld [vmem:[%s514 + $0x1] sm:$0xff]
      %v533 = vld [vmem:[%s514 + $0x11] sm:$0xff]
      %v534 = vld [vmem:[%s514 + $0x21] sm:$0xff]
      %v535 = vld [vmem:[%s514 + $0x31] sm:$0xff]
      %v536 = vld [vmem:[%s514 + $0x41] sm:$0xff]
      %v537 = vld [vmem:[%s514 + $0x51] sm:$0xff]
      %v538 = vld [vmem:[%s514 + $0x61] sm:$0xff]
      %v539 = vld [vmem:[%s514 + $0x71] sm:$0xff]
      %v540 = vpack.c.bf16 %v533, %v532
      %v541 = vpack.c.bf16 %v535, %v534
      %v542 = vpack.c.bf16 %v537, %v536
      %v543 = vpack.c.bf16 %v539, %v538
      %548 = vrot.lane.b32.xlu0 %v540, 64
      %v549 = vpop.permute.xlu0 %548
      %550 = vrot.lane.b32.xlu0 %v541, 64
      %v551 = vpop.permute.xlu0 %550
      %552 = vrot.lane.b32.xlu0 %v542, 64
      %v553 = vpop.permute.xlu0 %552
      %554 = vrot.lane.b32.xlu0 %v543, 64
      %v555 = vpop.permute.xlu0 %554
      %vm560 = vcmask 1048064
      %561 = vst.msk [vmem:[#allocation3] sm:$0xff] %vm560, %v549
      %562 = vst.msk [vmem:[#allocation3 + $0x28] sm:$0xff] %vm560, %v551
      %563 = vst.msk [vmem:[#allocation3 + $0x50] sm:$0xff] %vm560, %v553
      %564 = vst.msk [vmem:[#allocation3 + $0x78] sm:$0xff] %vm560, %v555
      %v565 = vld [vmem:[%s514 + $0x2] sm:$0xff]
      %v566 = vld [vmem:[%s514 + $0x12] sm:$0xff]
      %v567 = vld [vmem:[%s514 + $0x22] sm:$0xff]
      %v568 = vld [vmem:[%s514 + $0x32] sm:$0xff]
      %v569 = vld [vmem:[%s514 + $0x42] sm:$0xff]
      %v570 = vld [vmem:[%s514 + $0x52] sm:$0xff]
      %v571 = vld [vmem:[%s514 + $0x62] sm:$0xff]
      %v572 = vld [vmem:[%s514 + $0x72] sm:$0xff]
      %v573 = vpack.c.bf16 %v566, %v565
      %v574 = vpack.c.bf16 %v568, %v567
      %v575 = vpack.c.bf16 %v570, %v569
      %v576 = vpack.c.bf16 %v572, %v571
      %577 = vst.msk [vmem:[#allocation3 + $0x8] sm:$0xff] %vm527, %v573
      %578 = vst.msk [vmem:[#allocation3 + $0x30] sm:$0xff] %vm527, %v574
      %579 = vst.msk [vmem:[#allocation3 + $0x58] sm:$0xff] %vm527, %v575
      %580 = vst.msk [vmem:[#allocation3 + $0x80] sm:$0xff] %vm527, %v576
      %s581 = sadd.s32 %s512, 1
      %s582 = smul.u32 %s581, 16
      %s583 = scalar_lea.vmem [#allocation2], %s582
      %v584 = vld [vmem:[%s583] sm:$0xff]
      %v585 = vld [vmem:[%s583 + $0x10] sm:$0xff]
      %v586 = vld [vmem:[%s583 + $0x20] sm:$0xff]
      %v587 = vld [vmem:[%s583 + $0x30] sm:$0xff]
      %v588 = vld [vmem:[%s583 + $0x40] sm:$0xff]
      %v589 = vld [vmem:[%s583 + $0x50] sm:$0xff]
      %v590 = vld [vmem:[%s583 + $0x60] sm:$0xff]
      %v591 = vld [vmem:[%s583 + $0x70] sm:$0xff]
      %v592 = vpack.c.bf16 %v585, %v584
      %v593 = vpack.c.bf16 %v587, %v586
      %v594 = vpack.c.bf16 %v589, %v588
      %v595 = vpack.c.bf16 %v591, %v590
      %600 = vrot.lane.b32.xlu0 %v592, 64
      %v601 = vpop.permute.xlu0 %600
      %602 = vrot.lane.b32.xlu0 %v593, 64
      %v603 = vpop.permute.xlu0 %602
      %604 = vrot.lane.b32.xlu0 %v594, 64
      %v605 = vpop.permute.xlu0 %604
      %606 = vrot.lane.b32.xlu0 %v595, 64
      %v607 = vpop.permute.xlu0 %606
      %612 = vst.msk [vmem:[#allocation3 + $0x8] sm:$0xff] %vm560, %v601
      %613 = vst.msk [vmem:[#allocation3 + $0x30] sm:$0xff] %vm560, %v603
      %614 = vst.msk [vmem:[#allocation3 + $0x58] sm:$0xff] %vm560, %v605
      %615 = vst.msk [vmem:[#allocation3 + $0x80] sm:$0xff] %vm560, %v607
      %v616 = vld [vmem:[%s583 + $0x1] sm:$0xff]
      %v617 = vld [vmem:[%s583 + $0x11] sm:$0xff]
      %v618 = vld [vmem:[%s583 + $0x21] sm:$0xff]
      %v619 = vld [vmem:[%s583 + $0x31] sm:$0xff]
      %v620 = vld [vmem:[%s583 + $0x41] sm:$0xff]
      %v621 = vld [vmem:[%s583 + $0x51] sm:$0xff]
      %v622 = vld [vmem:[%s583 + $0x61] sm:$0xff]
      %v623 = vld [vmem:[%s583 + $0x71] sm:$0xff]
      %v624 = vpack.c.bf16 %v617, %v616
      %v625 = vpack.c.bf16 %v619, %v618
      %v626 = vpack.c.bf16 %v621, %v620
      %v627 = vpack.c.bf16 %v623, %v622
      %628 = vst.msk [vmem:[#allocation3 + $0x10] sm:$0xff] %vm527, %v624
      %629 = vst.msk [vmem:[#allocation3 + $0x38] sm:$0xff] %vm527, %v625
      %630 = vst.msk [vmem:[#allocation3 + $0x60] sm:$0xff] %vm527, %v626
      %631 = vst.msk [vmem:[#allocation3 + $0x88] sm:$0xff] %vm527, %v627
      %v632 = vld [vmem:[%s583 + $0x2] sm:$0xff]
      %v633 = vld [vmem:[%s583 + $0x12] sm:$0xff]
      %v634 = vld [vmem:[%s583 + $0x22] sm:$0xff]
      %v635 = vld [vmem:[%s583 + $0x32] sm:$0xff]
      %v636 = vld [vmem:[%s583 + $0x42] sm:$0xff]
      %v637 = vld [vmem:[%s583 + $0x52] sm:$0xff]
      %v638 = vld [vmem:[%s583 + $0x62] sm:$0xff]
      %v639 = vld [vmem:[%s583 + $0x72] sm:$0xff]
      %v640 = vpack.c.bf16 %v633, %v632
      %v641 = vpack.c.bf16 %v635, %v634
      %v642 = vpack.c.bf16 %v637, %v636
      %v643 = vpack.c.bf16 %v639, %v638
      %648 = vrot.lane.b32.xlu0 %v640, 64
      %v649 = vpop.permute.xlu0 %648
      %650 = vrot.lane.b32.xlu0 %v641, 64
      %v651 = vpop.permute.xlu0 %650
      %652 = vrot.lane.b32.xlu0 %v642, 64
      %v653 = vpop.permute.xlu0 %652
      %654 = vrot.lane.b32.xlu0 %v643, 64
      %v655 = vpop.permute.xlu0 %654
      %660 = vst.msk [vmem:[#allocation3 + $0x10] sm:$0xff] %vm560, %v649
      %661 = vst.msk [vmem:[#allocation3 + $0x38] sm:$0xff] %vm560, %v651
      %662 = vst.msk [vmem:[#allocation3 + $0x60] sm:$0xff] %vm560, %v653
      %663 = vst.msk [vmem:[#allocation3 + $0x88] sm:$0xff] %vm560, %v655
      %s664 = sadd.s32 %s512, 2
      %s665 = smul.u32 %s664, 16
      %s666 = scalar_lea.vmem [#allocation2], %s665
      %v667 = vld [vmem:[%s666] sm:$0xff]
      %v668 = vld [vmem:[%s666 + $0x10] sm:$0xff]
      %v669 = vld [vmem:[%s666 + $0x20] sm:$0xff]
      %v670 = vld [vmem:[%s666 + $0x30] sm:$0xff]
      %v671 = vld [vmem:[%s666 + $0x40] sm:$0xff]
      %v672 = vld [vmem:[%s666 + $0x50] sm:$0xff]
      %v673 = vld [vmem:[%s666 + $0x60] sm:$0xff]
      %v674 = vld [vmem:[%s666 + $0x70] sm:$0xff]
      %v675 = vpack.c.bf16 %v668, %v667
      %v676 = vpack.c.bf16 %v670, %v669
      %v677 = vpack.c.bf16 %v672, %v671
      %v678 = vpack.c.bf16 %v674, %v673
      %679 = vst.msk [vmem:[#allocation3 + $0x18] sm:$0xff] %vm527, %v675
      %680 = vst.msk [vmem:[#allocation3 + $0x40] sm:$0xff] %vm527, %v676
      %681 = vst.msk [vmem:[#allocation3 + $0x68] sm:$0xff] %vm527, %v677
      %682 = vst.msk [vmem:[#allocation3 + $0x90] sm:$0xff] %vm527, %v678
      %v683 = vld [vmem:[%s666 + $0x1] sm:$0xff]
      %v684 = vld [vmem:[%s666 + $0x11] sm:$0xff]
      %v685 = vld [vmem:[%s666 + $0x21] sm:$0xff]
      %v686 = vld [vmem:[%s666 + $0x31] sm:$0xff]
      %v687 = vld [vmem:[%s666 + $0x41] sm:$0xff]
      %v688 = vld [vmem:[%s666 + $0x51] sm:$0xff]
      %v689 = vld [vmem:[%s666 + $0x61] sm:$0xff]
      %v690 = vld [vmem:[%s666 + $0x71] sm:$0xff]
      %v691 = vpack.c.bf16 %v684, %v683
      %v692 = vpack.c.bf16 %v686, %v685
      %v693 = vpack.c.bf16 %v688, %v687
      %v694 = vpack.c.bf16 %v690, %v689
      %699 = vrot.lane.b32.xlu0 %v691, 64
      %v700 = vpop.permute.xlu0 %699
      %701 = vrot.lane.b32.xlu0 %v692, 64
      %v702 = vpop.permute.xlu0 %701
      %703 = vrot.lane.b32.xlu0 %v693, 64
      %v704 = vpop.permute.xlu0 %703
      %705 = vrot.lane.b32.xlu0 %v694, 64
      %v706 = vpop.permute.xlu0 %705
      %711 = vst.msk [vmem:[#allocation3 + $0x18] sm:$0xff] %vm560, %v700
      %712 = vst.msk [vmem:[#allocation3 + $0x40] sm:$0xff] %vm560, %v702
      %713 = vst.msk [vmem:[#allocation3 + $0x68] sm:$0xff] %vm560, %v704
      %714 = vst.msk [vmem:[#allocation3 + $0x90] sm:$0xff] %vm560, %v706
      %v715 = vld [vmem:[%s666 + $0x2] sm:$0xff]
      %v716 = vld [vmem:[%s666 + $0x12] sm:$0xff]
      %v717 = vld [vmem:[%s666 + $0x22] sm:$0xff]
      %v718 = vld [vmem:[%s666 + $0x32] sm:$0xff]
      %v719 = vld [vmem:[%s666 + $0x42] sm:$0xff]
      %v720 = vld [vmem:[%s666 + $0x52] sm:$0xff]
      %v721 = vld [vmem:[%s666 + $0x62] sm:$0xff]
      %v722 = vld [vmem:[%s666 + $0x72] sm:$0xff]
      %v723 = vpack.c.bf16 %v716, %v715
      %v724 = vpack.c.bf16 %v718, %v717
      %v725 = vpack.c.bf16 %v720, %v719
      %v726 = vpack.c.bf16 %v722, %v721
      %727 = vst.msk [vmem:[#allocation3 + $0x20] sm:$0xff] %vm527, %v723
      %728 = vst.msk [vmem:[#allocation3 + $0x48] sm:$0xff] %vm527, %v724
      %729 = vst.msk [vmem:[#allocation3 + $0x70] sm:$0xff] %vm527, %v725
      %730 = vst.msk [vmem:[#allocation3 + $0x98] sm:$0xff] %vm527, %v726
      %v731 = vld [vmem:[#allocation3] sm:$0xff]
      %v732 = vld [vmem:[#allocation3 + $0x8] sm:$0xff]
      %v733 = vld [vmem:[#allocation3 + $0x10] sm:$0xff]
      %v734 = vld [vmem:[#allocation3 + $0x18] sm:$0xff]
      %v735 = vld [vmem:[#allocation3 + $0x20] sm:$0xff]
      %v736 = vld [vmem:[#allocation3 + $0x28] sm:$0xff]
      %v737 = vld [vmem:[#allocation3 + $0x30] sm:$0xff]
      %v738 = vld [vmem:[#allocation3 + $0x38] sm:$0xff]
      %v739 = vld [vmem:[#allocation3 + $0x40] sm:$0xff]
      %v740 = vld [vmem:[#allocation3 + $0x48] sm:$0xff]
      %v741 = vld [vmem:[#allocation3 + $0x50] sm:$0xff]
      %v742 = vld [vmem:[#allocation3 + $0x58] sm:$0xff]
      %v743 = vld [vmem:[#allocation3 + $0x60] sm:$0xff]
      %v744 = vld [vmem:[#allocation3 + $0x68] sm:$0xff]
      %v745 = vld [vmem:[#allocation3 + $0x70] sm:$0xff]
      %v746 = vld [vmem:[#allocation3 + $0x78] sm:$0xff]
      %v747 = vld [vmem:[#allocation3 + $0x80] sm:$0xff]
      %v748 = vld [vmem:[#allocation3 + $0x88] sm:$0xff]
      %v749 = vld [vmem:[#allocation3 + $0x90] sm:$0xff]
      %v750 = vld [vmem:[#allocation3 + $0x98] sm:$0xff]
      %v751 = vld [vmem:[%s3] sm:$0xf]
      %v752 = vld [vmem:[%s3 + $0x4] sm:$0xf]
      %v753 = vld [vmem:[%s3 + $0x8] sm:$0xf]
      %v754 = vld [vmem:[%s3 + $0xc] sm:$0xf]
      %v755 = vld [vmem:[%s3 + $0x10] sm:$0xf]
      %v756 = vld [vmem:[%s3 + $0x14] sm:$0xf]
      %v757 = vld [vmem:[%s3 + $0x18] sm:$0xf]
      %v758 = vld [vmem:[%s3 + $0x1c] sm:$0xf]
      %v759 = vld [vmem:[%s3 + $0x20] sm:$0xf]
      %v760 = vld [vmem:[%s3 + $0x24] sm:$0xf]
      %v761 = vld [vmem:[%s3 + $0x28] sm:$0xf]
      %v762 = vld [vmem:[%s3 + $0x2c] sm:$0xf]
      %v763 = vld [vmem:[%s3 + $0x30] sm:$0xf]
      %v764 = vld [vmem:[%s3 + $0x34] sm:$0xf]
      %v765 = vld [vmem:[%s3 + $0x38] sm:$0xf]
      %v766 = vld [vmem:[%s3 + $0x3c] sm:$0xf]
      %v767 = vld [vmem:[%s3 + $0x40] sm:$0xf]
      %v768 = vld [vmem:[%s3 + $0x44] sm:$0xf]
      %v769 = vld [vmem:[%s3 + $0x48] sm:$0xf]
      %v770 = vld [vmem:[%s3 + $0x4c] sm:$0xf]
      %v771 = vld [vmem:[%s3 + $0x50] sm:$0xf]
      %v772 = vld [vmem:[%s3 + $0x54] sm:$0xf]
      %v773 = vld [vmem:[%s3 + $0x58] sm:$0xf]
      %v774 = vld [vmem:[%s3 + $0x5c] sm:$0xf]
      %v775 = vld [vmem:[%s3 + $0x60] sm:$0xf]
      %v776 = vld [vmem:[%s3 + $0x64] sm:$0xf]
      %v777 = vld [vmem:[%s3 + $0x68] sm:$0xf]
      %v778 = vld [vmem:[%s3 + $0x6c] sm:$0xf]
      %v779 = vld [vmem:[%s3 + $0x70] sm:$0xf]
      %v780 = vld [vmem:[%s3 + $0x74] sm:$0xf]
      %v781 = vld [vmem:[%s3 + $0x78] sm:$0xf]
      %v782 = vld [vmem:[%s3 + $0x7c] sm:$0xf]
      %v783 = vld [vmem:[%s3 + $0x80] sm:$0xf]
      %v784 = vld [vmem:[%s3 + $0x84] sm:$0xf]
      %v785 = vld [vmem:[%s3 + $0x88] sm:$0xf]
      %v786 = vld [vmem:[%s3 + $0x8c] sm:$0xf]
      %v787 = vld [vmem:[%s3 + $0x90] sm:$0xf]
      %v788 = vld [vmem:[%s3 + $0x94] sm:$0xf]
      %v789 = vld [vmem:[%s3 + $0x98] sm:$0xf]
      %v790 = vld [vmem:[%s3 + $0x9c] sm:$0xf]
      %v791 = vld [vmem:[%s3 + $0xa0] sm:$0xf]
      %v792 = vld [vmem:[%s3 + $0xa4] sm:$0xf]
      %v793 = vld [vmem:[%s3 + $0xa8] sm:$0xf]
      %v794 = vld [vmem:[%s3 + $0xac] sm:$0xf]
      %v795 = vld [vmem:[%s3 + $0xb0] sm:$0xf]
      %v796 = vld [vmem:[%s3 + $0xb4] sm:$0xf]
      %v797 = vld [vmem:[%s3 + $0xb8] sm:$0xf]
      %v798 = vld [vmem:[%s3 + $0xbc] sm:$0xf]
      %v799 = vld [vmem:[%s3 + $0xc0] sm:$0xf]
      %v800 = vld [vmem:[%s3 + $0xc4] sm:$0xf]
      %v801 = vld [vmem:[%s3 + $0xc8] sm:$0xf]
      %v802 = vld [vmem:[%s3 + $0xcc] sm:$0xf]
      %v803 = vld [vmem:[%s3 + $0xd0] sm:$0xf]
      %v804 = vld [vmem:[%s3 + $0xd4] sm:$0xf]
      %v805 = vld [vmem:[%s3 + $0xd8] sm:$0xf]
      %v806 = vld [vmem:[%s3 + $0xdc] sm:$0xf]
      %v807 = vld [vmem:[%s3 + $0xe0] sm:$0xf]
      %v808 = vld [vmem:[%s3 + $0xe4] sm:$0xf]
      %v809 = vld [vmem:[%s3 + $0xe8] sm:$0xf]
      %v810 = vld [vmem:[%s3 + $0xec] sm:$0xf]
      %v811 = vld [vmem:[%s3 + $0xf0] sm:$0xf]
      %v812 = vld [vmem:[%s3 + $0xf4] sm:$0xf]
      %v813 = vld [vmem:[%s3 + $0xf8] sm:$0xf]
      %v814 = vld [vmem:[%s3 + $0xfc] sm:$0xf]
      %v815 = vld [vmem:[%s3 + $0x100] sm:$0xf]
      %v816 = vld [vmem:[%s3 + $0x104] sm:$0xf]
      %v817 = vld [vmem:[%s3 + $0x108] sm:$0xf]
      %v818 = vld [vmem:[%s3 + $0x10c] sm:$0xf]
      %v819 = vld [vmem:[%s3 + $0x110] sm:$0xf]
      %v820 = vld [vmem:[%s3 + $0x114] sm:$0xf]
      %v821 = vld [vmem:[%s3 + $0x118] sm:$0xf]
      %v822 = vld [vmem:[%s3 + $0x11c] sm:$0xf]
      %v823 = vld [vmem:[%s4] sm:$0x1]
      %v825 = vlaneseq
      %v826 = vshrl.u32 %v825, 7
      %v827 = vsub.s32 0, %v826
      %v828 = vrot.slane %v823, %v827
      %v902 = vunpack.c.l.b16 %v751
      %v903 = vunpack.c.l.b16 %v752
      %v904 = vunpack.c.l.b16 %v753
      %v905 = vunpack.c.l.b16 %v754
      %v906 = vunpack.c.l.b16 %v755
      %v907 = vunpack.c.l.b16 %v756
      %v908 = vunpack.c.l.b16 %v757
      %v909 = vunpack.c.l.b16 %v758
      %v910 = vunpack.c.l.b16 %v759
      %v911 = vunpack.c.l.b16 %v760
      %v912 = vunpack.c.l.b16 %v761
      %v913 = vunpack.c.l.b16 %v762
      %v914 = vunpack.c.l.b16 %v763
      %v915 = vunpack.c.l.b16 %v764
      %v916 = vunpack.c.l.b16 %v765
      %v917 = vunpack.c.l.b16 %v766
      %v918 = vunpack.c.l.b16 %v767
      %v919 = vunpack.c.l.b16 %v768
      %v920 = vunpack.c.l.b16 %v769
      %v921 = vunpack.c.l.b16 %v770
      %v922 = vunpack.c.l.b16 %v771
      %v923 = vunpack.c.l.b16 %v772
      %v924 = vunpack.c.l.b16 %v773
      %v925 = vunpack.c.l.b16 %v774
      %v926 = vunpack.c.l.b16 %v775
      %v927 = vunpack.c.l.b16 %v776
      %v928 = vunpack.c.l.b16 %v777
      %v929 = vunpack.c.l.b16 %v778
      %v930 = vunpack.c.l.b16 %v779
      %v931 = vunpack.c.l.b16 %v780
      %v932 = vunpack.c.l.b16 %v781
      %v933 = vunpack.c.l.b16 %v782
      %v934 = vunpack.c.l.b16 %v783
      %v935 = vunpack.c.l.b16 %v784
      %v936 = vunpack.c.l.b16 %v785
      %v937 = vunpack.c.l.b16 %v786
      %v938 = vunpack.c.l.b16 %v787
      %v939 = vunpack.c.l.b16 %v788
      %v940 = vunpack.c.l.b16 %v789
      %v941 = vunpack.c.l.b16 %v790
      %v942 = vunpack.c.l.b16 %v791
      %v943 = vunpack.c.l.b16 %v792
      %v944 = vunpack.c.l.b16 %v793
      %v945 = vunpack.c.l.b16 %v794
      %v946 = vunpack.c.l.b16 %v795
      %v947 = vunpack.c.l.b16 %v796
      %v948 = vunpack.c.l.b16 %v797
      %v949 = vunpack.c.l.b16 %v798
      %v950 = vunpack.c.l.b16 %v799
      %v951 = vunpack.c.l.b16 %v800
      %v952 = vunpack.c.l.b16 %v801
      %v953 = vunpack.c.l.b16 %v802
      %v954 = vunpack.c.l.b16 %v803
      %v955 = vunpack.c.l.b16 %v804
      %v956 = vunpack.c.l.b16 %v805
      %v957 = vunpack.c.l.b16 %v806
      %v958 = vunpack.c.l.b16 %v807
      %v959 = vunpack.c.l.b16 %v808
      %v960 = vunpack.c.l.b16 %v809
      %v961 = vunpack.c.l.b16 %v810
      %v962 = vunpack.c.l.b16 %v811
      %v963 = vunpack.c.l.b16 %v812
      %v964 = vunpack.c.l.b16 %v813
      %v965 = vunpack.c.l.b16 %v814
      %v966 = vunpack.c.l.b16 %v815
      %v967 = vunpack.c.l.b16 %v816
      %v968 = vunpack.c.l.b16 %v817
      %v969 = vunpack.c.l.b16 %v818
      %v970 = vunpack.c.l.b16 %v819
      %v971 = vunpack.c.l.b16 %v820
      %v972 = vunpack.c.l.b16 %v821
      %v973 = vunpack.c.l.b16 %v822
      %v974 = vpack.c.b16 %v903, %v902
      %v975 = vpack.c.b16 %v905, %v904
      %v976 = vpack.c.b16 %v907, %v906
      %v977 = vpack.c.b16 %v909, %v908
      %v978 = vpack.c.b16 %v911, %v910
      %v979 = vpack.c.b16 %v913, %v912
      %v980 = vpack.c.b16 %v915, %v914
      %v981 = vpack.c.b16 %v917, %v916
      %v982 = vpack.c.b16 %v919, %v918
      %v983 = vpack.c.b16 %v921, %v920
      %v984 = vpack.c.b16 %v923, %v922
      %v985 = vpack.c.b16 %v925, %v924
      %v986 = vpack.c.b16 %v927, %v926
      %v987 = vpack.c.b16 %v929, %v928
      %v988 = vpack.c.b16 %v931, %v930
      %v989 = vpack.c.b16 %v933, %v932
      %v990 = vpack.c.b16 %v935, %v934
      %v991 = vpack.c.b16 %v937, %v936
      %v992 = vpack.c.b16 %v939, %v938
      %v993 = vpack.c.b16 %v941, %v940
      %v994 = vpack.c.b16 %v943, %v942
      %v995 = vpack.c.b16 %v945, %v944
      %v996 = vpack.c.b16 %v947, %v946
      %v997 = vpack.c.b16 %v949, %v948
      %v998 = vpack.c.b16 %v951, %v950
      %v999 = vpack.c.b16 %v953, %v952
      %v1000 = vpack.c.b16 %v955, %v954
      %v1001 = vpack.c.b16 %v957, %v956
      %v1002 = vpack.c.b16 %v959, %v958
      %v1003 = vpack.c.b16 %v961, %v960
      %v1004 = vpack.c.b16 %v963, %v962
      %v1005 = vpack.c.b16 %v965, %v964
      %v1006 = vpack.c.b16 %v967, %v966
      %v1007 = vpack.c.b16 %v969, %v968
      %v1008 = vpack.c.b16 %v971, %v970
      %v1009 = vpack.c.b16 %v973, %v972
      %v1047 = vsel %vm527, %v735, 0
      %v1050 = vsel %vm527, %v740, 0
      %v1053 = vsel %vm527, %v745, 0
      %v1056 = vsel %vm527, %v750, 0
      %1058 = vmatprep.subr.bf16.mxu0 0
      %1059 = vmatpush1.bf16.msra.mxu0 %v974
      %1060 = vmatprep.subr.bf16.mxu0 0
      %1061 = vmatpush1.bf16.msra.mxu0 %v975
      %1062 = vmatprep.subr.bf16.mxu0 0
      %1063 = vmatpush1.bf16.msra.mxu0 %v976
      %1064 = vmatprep.subr.bf16.mxu0 0
      %1065 = vmatpush1.bf16.msra.mxu0 %v977
      %1066 = vmatprep.subr.bf16.mxu0 0
      %1067 = vmatpush1.bf16.msra.mxu0 %v978
      %1068 = vmatprep.subr.bf16.mxu0 0
      %1069 = vmatpush1.bf16.msra.mxu0 %v979
      %1070 = vmatprep.subr.bf16.mxu0 0
      %1071 = vmatpush1.bf16.msra.mxu0 %v980
      %1072 = vmatprep.subr.bf16.mxu0 0
      %1073 = vmatpush1.bf16.msra.mxu0 %v981
      %1074 = vmatprep.subr.bf16.mxu0 0
      %1075 = vmatpush1.bf16.msra.mxu0 %v982
      %1076 = vmatprep.subr.bf16.mxu0 0
      %1077 = vmatpush1.bf16.msra.mxu0 %v983
      %1078 = vmatprep.subr.bf16.mxu0 0
      %1079 = vmatpush1.bf16.msra.mxu0 %v984
      %1080 = vmatprep.subr.bf16.mxu0 0
      %1081 = vmatpush1.bf16.msra.mxu0 %v985
      %1082 = vmatprep.subr.bf16.mxu0 0
      %1083 = vmatpush1.bf16.msra.mxu0 %v986
      %1084 = vmatprep.subr.bf16.mxu0 0
      %1085 = vmatpush1.bf16.msra.mxu0 %v987
      %1086 = vmatprep.subr.bf16.mxu0 0
      %1087 = vmatpush1.bf16.msra.mxu0 %v988
      %1088 = vmatprep.subr.bf16.mxu0 0
      %1089 = vmatpush1.bf16.msra.mxu0 %v989
      %1090 = vmatprep.mubr.bf16.mxu0 %v732
      %1091 = vmatmul.mubr.bf16.gmra.mrb[0].mxu0 %v731
      %v1092 = vpop.f32.mrb[0].mxu0
      %v1093 = vadd.f32 %v828, %v1092
      %v1094 = vpop.f32.mrb[0].mxu0
      %v1095 = vpop.f32.mrb[0].mxu0
      %v1096 = vadd.f32 %v828, %v1095
      %v1097 = vpop.f32.mrb[0].mxu0
      %1098 = vmatprep.mubr.bf16.mxu0 %v737
      %1099 = vmatmul.mubr.bf16.gmra.mrb[0].mxu0 %v736
      %v1100 = vpop.f32.mrb[0].mxu0
      %v1101 = vadd.f32 %v828, %v1100
      %v1102 = vpop.f32.mrb[0].mxu0
      %v1103 = vpop.f32.mrb[0].mxu0
      %v1104 = vadd.f32 %v828, %v1103
      %v1105 = vpop.f32.mrb[0].mxu0
      %1106 = vmatprep.mubr.bf16.mxu0 %v742
      %1107 = vmatmul.mubr.bf16.gmra.mrb[0].mxu0 %v741
      %v1108 = vpop.f32.mrb[0].mxu0
      %v1109 = vadd.f32 %v828, %v1108
      %v1110 = vpop.f32.mrb[0].mxu0
      %v1111 = vpop.f32.mrb[0].mxu0
      %v1112 = vadd.f32 %v828, %v1111
      %v1113 = vpop.f32.mrb[0].mxu0
      %1114 = vmatprep.mubr.bf16.mxu0 %v747
      %1115 = vmatmul.mubr.bf16.gmra.mrb[0].mxu0 %v746
      %v1116 = vpop.f32.mrb[0].mxu0
      %v1117 = vadd.f32 %v828, %v1116
      %v1118 = vpop.f32.mrb[0].mxu0
      %v1119 = vpop.f32.mrb[0].mxu0
      %v1120 = vadd.f32 %v828, %v1119
      %v1121 = vpop.f32.mrb[0].mxu0
      %1122 = vdwg.mxu0
      %1123 = vmatprep.subr.bf16.mxu0 0
      %1124 = vmatpush1.bf16.msra.mxu0 %v990
      %1125 = vmatprep.subr.bf16.mxu0 0
      %1126 = vmatpush1.bf16.msra.mxu0 %v991
      %1127 = vmatprep.subr.bf16.mxu0 0
      %1128 = vmatpush1.bf16.msra.mxu0 %v992
      %1129 = vmatprep.subr.bf16.mxu0 0
      %1130 = vmatpush1.bf16.msra.mxu0 %v993
      %1131 = vmatprep.subr.bf16.mxu0 0
      %1132 = vmatpush1.bf16.msra.mxu0 %v994
      %1133 = vmatprep.subr.bf16.mxu0 0
      %1134 = vmatpush1.bf16.msra.mxu0 %v995
      %1135 = vmatprep.subr.bf16.mxu0 0
      %1136 = vmatpush1.bf16.msra.mxu0 %v996
      %1137 = vmatprep.subr.bf16.mxu0 0
      %1138 = vmatpush1.bf16.msra.mxu0 %v997
      %1139 = vmatprep.subr.bf16.mxu0 0
      %1140 = vmatpush1.bf16.msra.mxu0 %v998
      %1141 = vmatprep.subr.bf16.mxu0 0
      %1142 = vmatpush1.bf16.msra.mxu0 %v999
      %1143 = vmatprep.subr.bf16.mxu0 0
      %1144 = vmatpush1.bf16.msra.mxu0 %v1000
      %1145 = vmatprep.subr.bf16.mxu0 0
      %1146 = vmatpush1.bf16.msra.mxu0 %v1001
      %1147 = vmatprep.subr.bf16.mxu0 0
      %1148 = vmatpush1.bf16.msra.mxu0 %v1002
      %1149 = vmatprep.subr.bf16.mxu0 0
      %1150 = vmatpush1.bf16.msra.mxu0 %v1003
      %1151 = vmatprep.subr.bf16.mxu0 0
      %1152 = vmatpush1.bf16.msra.mxu0 %v1004
      %1153 = vmatprep.subr.bf16.mxu0 0
      %1154 = vmatpush1.bf16.msra.mxu0 %v1005
      %1155 = vmatprep.mubr.bf16.mxu0 %v734
      %1156 = vmatmul.mubr.bf16.gmra.mrb[0].mxu0 %v733
      %v1157 = vpop.f32.mrb[0].mxu0
      %v1158 = vadd.f32 %v1093, %v1157
      %v1159 = vpop.f32.mrb[0].mxu0
      %v1160 = vpop.f32.mrb[0].mxu0
      %v1161 = vadd.f32 %v1096, %v1160
      %v1162 = vpop.f32.mrb[0].mxu0
      %1163 = vmatprep.mubr.bf16.mxu0 %v739
      %1164 = vmatmul.mubr.bf16.gmra.mrb[0].mxu0 %v738
      %v1165 = vpop.f32.mrb[0].mxu0
      %v1166 = vadd.f32 %v1101, %v1165
      %v1167 = vpop.f32.mrb[0].mxu0
      %v1168 = vpop.f32.mrb[0].mxu0
      %v1169 = vadd.f32 %v1104, %v1168
      %v1170 = vpop.f32.mrb[0].mxu0
      %1171 = vmatprep.mubr.bf16.mxu0 %v744
      %1172 = vmatmul.mubr.bf16.gmra.mrb[0].mxu0 %v743
      %v1173 = vpop.f32.mrb[0].mxu0
      %v1174 = vadd.f32 %v1109, %v1173
      %v1175 = vpop.f32.mrb[0].mxu0
      %v1176 = vpop.f32.mrb[0].mxu0
      %v1177 = vadd.f32 %v1112, %v1176
      %v1178 = vpop.f32.mrb[0].mxu0
      %1179 = vmatprep.mubr.bf16.mxu0 %v749
      %1180 = vmatmul.mubr.bf16.gmra.mrb[0].mxu0 %v748
      %v1181 = vpop.f32.mrb[0].mxu0
      %v1182 = vadd.f32 %v1117, %v1181
      %v1183 = vpop.f32.mrb[0].mxu0
      %v1184 = vpop.f32.mrb[0].mxu0
      %v1185 = vadd.f32 %v1120, %v1184
      %v1186 = vpop.f32.mrb[0].mxu0
      %1187 = vdwg.mxu0
      %1188 = vmatprep.subr.bf16.mxu0 0
      %1189 = vmatpush1.bf16.msra.mxu0 %v1006
      %1190 = vmatprep.subr.bf16.mxu0 0
      %1191 = vmatpush1.bf16.msra.mxu0 %v1007
      %1192 = vmatprep.subr.bf16.mxu0 0
      %1193 = vmatpush1.bf16.msra.mxu0 %v1008
      %1194 = vmatprep.subr.bf16.mxu0 0
      %1195 = vmatpush1.bf16.msra.mxu0 %v1009
      %1196 = vmatprep.subr.bf16.mxu0 0
      %1197 = vmatpush1.bf16.msra.mxu0 0
      %1198 = vmatprep.subr.bf16.mxu0 0
      %1199 = vmatpush1.bf16.msra.mxu0 0
      %1200 = vmatprep.subr.bf16.mxu0 0
      %1201 = vmatpush1.bf16.msra.mxu0 0
      %1202 = vmatprep.subr.bf16.mxu0 0
      %1203 = vmatpush1.bf16.msra.mxu0 0
      %1204 = vmatprep.subr.bf16.mxu0 0
      %1205 = vmatpush1.bf16.msra.mxu0 0
      %1206 = vmatprep.subr.bf16.mxu0 0
      %1207 = vmatpush1.bf16.msra.mxu0 0
      %1208 = vmatprep.subr.bf16.mxu0 0
      %1209 = vmatpush1.bf16.msra.mxu0 0
      %1210 = vmatprep.subr.bf16.mxu0 0
      %1211 = vmatpush1.bf16.msra.mxu0 0
      %1212 = vmatprep.subr.bf16.mxu0 0
      %1213 = vmatpush1.bf16.msra.mxu0 0
      %1214 = vmatprep.subr.bf16.mxu0 0
      %1215 = vmatpush1.bf16.msra.mxu0 0
      %1216 = vmatprep.subr.bf16.mxu0 0
      %1217 = vmatpush1.bf16.msra.mxu0 0
      %1218 = vmatprep.subr.bf16.mxu0 0
      %1219 = vmatpush1.bf16.msra.mxu0 0
      %1220 = vmatprep.mubr.bf16.mxu0 0
      %1221 = vmatmul.mubr.bf16.gmra.mrb[0].mxu0 %v1047
      %v1222 = vpop.f32.mrb[0].mxu0
      %v1223 = vadd.f32 %v1158, %v1222
      %v1224 = vpop.f32.mrb[0].mxu0
      %v1225 = vpop.f32.mrb[0].mxu0
      %v1226 = vadd.f32 %v1161, %v1225
      %v1227 = vpop.f32.mrb[0].mxu0
      %1228 = vmatprep.mubr.bf16.mxu0 0
      %1229 = vmatmul.mubr.bf16.gmra.mrb[0].mxu0 %v1050
      %v1230 = vpop.f32.mrb[0].mxu0
      %v1231 = vadd.f32 %v1166, %v1230
      %v1232 = vpop.f32.mrb[0].mxu0
      %v1233 = vpop.f32.mrb[0].mxu0
      %v1234 = vadd.f32 %v1169, %v1233
      %v1235 = vpop.f32.mrb[0].mxu0
      %1236 = vmatprep.mubr.bf16.mxu0 0
      %1237 = vmatmul.mubr.bf16.gmra.mrb[0].mxu0 %v1053
      %v1238 = vpop.f32.mrb[0].mxu0
      %v1239 = vadd.f32 %v1174, %v1238
      %v1240 = vpop.f32.mrb[0].mxu0
      %v1241 = vpop.f32.mrb[0].mxu0
      %v1242 = vadd.f32 %v1177, %v1241
      %v1243 = vpop.f32.mrb[0].mxu0
      %1244 = vmatprep.mubr.bf16.mxu0 0
      %1245 = vmatmul.mubr.bf16.gmra.mrb[0].mxu0 %v1056
      %v1246 = vpop.f32.mrb[0].mxu0
      %v1247 = vadd.f32 %v1182, %v1246
      %v1248 = vpop.f32.mrb[0].mxu0
      %v1249 = vpop.f32.mrb[0].mxu0
      %v1250 = vadd.f32 %v1185, %v1249
      %v1251 = vpop.f32.mrb[0].mxu0
      %1252 = vdwg.mxu0
      %v1253 = vld [vmem:[%s371] sm:$0x1]
      %v1255 = vlaneseq
      %v1256 = vshrl.u32 %v1255, 7
      %v1257 = vsub.s32 0, %v1256
      %v1258 = vrot.slane %v1253, %v1257
      %v1260 = vadd.f32 %v1223, %v1258
      %v1261 = vadd.f32 %v1226, %v1258
      %v1262 = vadd.f32 %v1231, %v1258
      %v1263 = vadd.f32 %v1234, %v1258
      %v1264 = vadd.f32 %v1239, %v1258
      %v1265 = vadd.f32 %v1242, %v1258
      %v1266 = vadd.f32 %v1247, %v1258
      %v1267 = vadd.f32 %v1250, %v1258
      %1268 = vst [vmem:[%s380] sm:$0xff] %v1260
      %1269 = vst [vmem:[%s380 + $0x8] sm:$0xff] %v1261
      %1270 = vst [vmem:[%s380 + $0x10] sm:$0xff] %v1262
      %1271 = vst [vmem:[%s380 + $0x18] sm:$0xff] %v1263
      %1272 = vst [vmem:[%s380 + $0x20] sm:$0xff] %v1264
      %1273 = vst [vmem:[%s380 + $0x28] sm:$0xff] %v1265
      %1274 = vst [vmem:[%s380 + $0x30] sm:$0xff] %v1266
      %1275 = vst [vmem:[%s380 + $0x38] sm:$0xff] %v1267
      %v1276 = vld [vmem:[%s384] sm:$0x1]
      %v1277 = vadd.f32 %v1260, %v1261
      %v1278 = vadd.f32 %v1277, %v1262
      %v1279 = vadd.f32 %v1278, %v1263
      %v1280 = vadd.f32 %v1279, %v1264
      %v1281 = vadd.f32 %v1280, %v1265
      %v1282 = vadd.f32 %v1281, %v1266
      %v1283 = vadd.f32 %v1282, %v1267
      %v1284 = vrot.slane %v1283, 4
      %v1285 = vadd.f32 %v1283, %v1284
      %v1286 = vrot.slane %v1285, 2
      %v1287 = vadd.f32 %v1285, %v1286
      %v1288 = vrot.slane %v1287, 1
      %v1289 = vadd.f32 %v1287, %v1288
      %v1290 = vadd.f32 %v1276, %v1289
      %1291 = vst [vmem:[%s384] sm:$0x1] %v1290
      %v1292 = vld [vmem:[%s387] sm:$0x1]
      %v1293 = vmul.f32 %v1260, %v1260
      %v1294 = vmul.f32 %v1261, %v1261
      %v1295 = vmul.f32 %v1262, %v1262
      %v1296 = vmul.f32 %v1263, %v1263
      %v1297 = vmul.f32 %v1264, %v1264
      %v1298 = vmul.f32 %v1265, %v1265
      %v1299 = vmul.f32 %v1266, %v1266
      %v1300 = vmul.f32 %v1267, %v1267
      %v1301 = vadd.f32 %v1293, %v1294
      %v1302 = vadd.f32 %v1301, %v1295
      %v1303 = vadd.f32 %v1302, %v1296
      %v1304 = vadd.f32 %v1303, %v1297
      %v1305 = vadd.f32 %v1304, %v1298
      %v1306 = vadd.f32 %v1305, %v1299
      %v1307 = vadd.f32 %v1306, %v1300
      %v1308 = vrot.slane %v1307, 4
      %v1309 = vadd.f32 %v1307, %v1308
      %v1310 = vrot.slane %v1309, 2
      %v1311 = vadd.f32 %v1309, %v1310
      %v1312 = vrot.slane %v1311, 1
      %v1313 = vadd.f32 %v1311, %v1312
      %v1314 = vadd.f32 %v1292, %v1313
      %1315 = vst [vmem:[%s387] sm:$0x1] %v1314
      %s1316 = smul.u32 8, %s25
      %p1317 = scmp.lt.s32.totalorder %s24, 1
      %s1318 = scalar_select %p1317, %s24, 1
      %p1319 = scmp.lt.s32.totalorder %s1316, 7
      %s1320 = scalar_select %p1319, %s1316, 7
      %s1321 = smul.addr %s1318, 8
      %s1322 = sadd.s32 %s1320, %s1321
      %s1323 = smul.addr %s1322, 8
      %s1324 = scalar_lea.vmem %s6, %s1323
      %p1325 = scmp.lt.s32.totalorder %s24, 1
      %s1326 = scalar_select %p1325, %s24, 1
      %s1327 = scalar_lea.vmem %s7, %s1326
      %p1328 = scmp.lt.s32.totalorder %s24, 1
      %s1329 = scalar_select %p1328, %s24, 1
      %s1330 = scalar_lea.vmem %s8, %s1329
      // Predicated region
      $region49: #{down_block_forward.11} parent=43 // pred_check
        %p1331 = pneg %p198
      $region50: #{down_block_forward.11} parent=43 // pred_check_branch
        %1333 = sbr.rel (%p1331) target = $region52
      $region51: #{down_block_forward.11} parent=43 // pred_region
        %s1334 = smul.u32 8, %s25
      $region52: #{down_block_forward.11} parent=43 // pred_fallthru
        _
      // Predicated region
      $region53: #{down_block_forward.11} parent=43 // pred_check
        %p1335 = pneg %p224
      $region54: #{down_block_forward.11} parent=43 // pred_check_branch
        %1337 = sbr.rel (%p1335) target = $region56
      $region55: #{down_block_forward.11} parent=43 // pred_region
        _
      $region56: #{down_block_forward.11} parent=43 // pred_fallthru
        _
      // Predicated region
      $region57: #{down_block_forward.11} parent=43 // pred_check
        %p1338 = pneg %p250
      $region58: #{down_block_forward.11} parent=43 // pred_check_branch
        %1340 = sbr.rel (%p1338) target = $region60
      $region59: #{down_block_forward.11} parent=43 // pred_region
        _
      $region60: #{down_block_forward.11} parent=43 // pred_fallthru
        _
    $region44: #{down_block_forward.11} parent=5 // pred_fallthru
      _
    %p1341 = scmp.le.s32.totalorder 2, %s15
    // Predicated region
    $region61: #{down_block_forward.11} parent=5 // pred_check
      %p1342 = pneg %p1341
    $region62: #{down_block_forward.11} parent=5 // pred_check_branch
      %1344 = sbr.rel (%p1342) target = $region64
    $region63: #{down_block_forward.11} parent=5 // pred_region
      %s1345 = ssub.s32 %s15, 2
      // Predicated region
      $region65: #{down_block_forward.11} parent=63 // pred_check
        %p1346 = pneg %p204
      $region66: #{down_block_forward.11} parent=63 // pred_check_branch
        %1348 = sbr.rel (%p1346) target = $region68
      $region67: #{down_block_forward.11} parent=63 // pred_region
        %s1349 = smul.u32 8, %s27
        %p1350 = scmp.lt.s32.totalorder %s26, 1
        %s1351 = scalar_select %p1350, %s26, 1
        %p1352 = scmp.lt.s32.totalorder %s1349, 7
        %s1353 = scalar_select %p1352, %s1349, 7
        %s1354 = smul.addr %s1351, 8
        %s1355 = sadd.s32 %s1353, %s1354
        %s1356 = smul.addr %s1355, 8
        %s1357 = scalar_lea.vmem %s6, %s1356
      $region68: #{down_block_forward.11} parent=63 // pred_fallthru
        _
      // Predicated region
      $region69: #{down_block_forward.11} parent=63 // pred_check
        %p1358 = pneg %p230
      $region70: #{down_block_forward.11} parent=63 // pred_check_branch
        %1360 = sbr.rel (%p1358) target = $region72
      $region71: #{down_block_forward.11} parent=63 // pred_region
        %p1361 = scmp.lt.s32.totalorder %s26, 1
        %s1362 = scalar_select %p1361, %s26, 1
        %s1363 = scalar_lea.vmem %s7, %s1362
      $region72: #{down_block_forward.11} parent=63 // pred_fallthru
        _
      // Predicated region
      $region73: #{down_block_forward.11} parent=63 // pred_check
        %p1364 = pneg %p256
      $region74: #{down_block_forward.11} parent=63 // pred_check_branch
        %1366 = sbr.rel (%p1364) target = $region76
      $region75: #{down_block_forward.11} parent=63 // pred_region
        %p1367 = scmp.lt.s32.totalorder %s26, 1
        %s1368 = scalar_select %p1367, %s26, 1
        %s1369 = scalar_lea.vmem %s8, %s1368
      $region76: #{down_block_forward.11} parent=63 // pred_fallthru
        _
    $region64: #{down_block_forward.11} parent=5 // pred_fallthru
      _
  $region6: #{down_block_forward.11} parent=0 // loop_footer
    %s19 = sadd.s32 1, %s15
  $region7: #{down_block_forward.11} parent=0 // loop_footer_branch
    %14 = sbr.rel target = $region3
  $region8: #{down_block_forward.11} parent=0 // loop_exit
    _

// kernel: down_block_forward.14
$region0: #{down_block_forward.14}
  #allocation0 [shape = 'u32[]', space=smem, size = 0x4, offset = 0x4, fixed_abs, tag = 'smem constant byte address 0x4 - core index']
  #allocation1 [shape = 'u32[144,128]{1,0:T(1,128)}', space=vmem, size = 0x12000, scoped, tag = 'internal scratch']
  %s0 = inlined_call_operand.vmem [shape: f32[2,64,128], index: 0, kind: input, shape index: {}]
  %s1 = inlined_call_operand.vmem [shape: bf16[128,384], index: 1, kind: input, shape index: {}]
  %s2 = inlined_call_operand.vmem [shape: f32[1,384], index: 2, kind: input, shape index: {}]
  %s3 = inlined_call_operand.vmem [shape: bf16[2,64,128], index: 3, kind: output, shape index: {0}]
  %s4 = inlined_call_operand.vmem [shape: bf16[2,64,128], index: 4, kind: output, shape index: {1}]
  %s5 = inlined_call_operand.vmem [shape: bf16[2,64,128], index: 5, kind: output, shape index: {2}]
  %6 = xla_tuple %s3, %s4, %s5
  %s7 = sld [smem:[#allocation0]]
  $region61: #{down_block_forward.14} parent=0
    _
  %s9 = ssub.s32 1, %s7
  %s10 = scalar_select 0, %s9, %s7
  loop: start=0, step=1, limit=4
  $region2: #{down_block_forward.14} parent=0 // loop_pre_header
    _
  $region3: #{down_block_forward.14} parent=0 // loop_header
    %s12 = sphi 0, %s16
    %p13 = scmp.ge.s32.totalorder %s12, 4
    %s19 = sphi 0, %s31
    %s20 = sphi 0, %s27
    %s21 = sphi 0, %s19
    %s22 = sphi 0, %s20
    %s23 = sphi 0, %s21
    %s24 = sphi 0, %s22
    %s36 = sphi 0, %s38
    %s39 = sphi 0, %s36
    %s40 = sphi 0, %s39
    %s56 = sphi 0, %s40
    %s60 = sphi 0, %s60
    %s62 = sphi 0, %s60
    %s63 = sphi 0, %s62
    %s77 = sphi 0, %s63
    %s81 = sphi 0, %s81
    %s83 = sphi 0, %s81
    %s84 = sphi 0, %s83
    %s98 = sphi 0, %s84
    %s106 = sphi 0, %s108
    %s109 = sphi 0, %s106
    %s110 = sphi 0, %s109
    %s126 = sphi 0, %s110
    %s134 = sphi 0, %s136
    %s137 = sphi 0, %s134
    %s138 = sphi 0, %s137
    %s154 = sphi 0, %s138
    %s162 = sphi 0, %s164
    %s165 = sphi 0, %s162
    %s166 = sphi 0, %s165
    %s182 = sphi 0, %s166
  $region4: #{down_block_forward.14} parent=0 // loop_header_branch
    %15 = sbr.rel (%p13) target = $region8
  $region5: #{down_block_forward.14} parent=0 // loop_body
    %s17 = ssub.s32 %s12, 1
    %s18 = ssub.s32 %s12, 2
    %s25 = sadd.s32 1, %s20
    %p26 = scmp.ge.s32.totalorder %s25, 1
    %s27 = scalar_select %p26, 0, %s25
    %s28 = sadd.s32 1, %s19
    %s29 = scalar_select %p26, %s28, %s19
    %p30 = scmp.ge.s32.totalorder %s29, 2
    %s31 = scalar_select %p30, 0, %s29
    %s32 = ssub.s32 %s19, %s31
    %s33 = ssub.s32 %s20, %s27
    %s34 = sor.u32 %s32, %s33
    %p35 = scmp.eq.s32.totalorder %s34, 0
    %s37 = sadd.s32 %s36, 1
    %s38 = scalar_select %p35, %s36, %s37
    %p41 = pneg %p35
    %p42 = scmp.eq.s32.totalorder %s12, 1
    %p43 = por %p41, %p42
    %p44 = scmp.ne.s32.totalorder %s36, %s39
    %p45 = scmp.eq.s32.totalorder %s12, 0
    %p46 = por %p44, %p45
    %p47 = scmp.ne.s32.totalorder %s36, %s39
    %p48 = scmp.eq.s32.totalorder %s17, 1
    %p49 = por %p47, %p48
    %p50 = scmp.ne.s32.totalorder %s39, %s40
    %p51 = scmp.eq.s32.totalorder %s17, 0
    %p52 = por %p50, %p51
    %p53 = scmp.ne.s32.totalorder %s39, %s40
    %p54 = scmp.eq.s32.totalorder %s18, 1
    %p55 = por %p53, %p54
    %p57 = scmp.ne.s32.totalorder %s40, %s56
    %p58 = scmp.eq.s32.totalorder %s18, 0
    %p59 = por %p57, %p58
    %s61 = sadd.s32 %s60, 1
    %p64 = scmp.eq.s32.totalorder %s12, 1
    %p65 = scmp.ne.s32.totalorder %s60, %s62
    %p66 = scmp.eq.s32.totalorder %s12, 0
    %p67 = por %p65, %p66
    %p68 = scmp.ne.s32.totalorder %s60, %s62
    %p69 = scmp.eq.s32.totalorder %s17, 1
    %p70 = por %p68, %p69
    %p71 = scmp.ne.s32.totalorder %s62, %s63
    %p72 = scmp.eq.s32.totalorder %s17, 0
    %p73 = por %p71, %p72
    %p74 = scmp.ne.s32.totalorder %s62, %s63
    %p75 = scmp.eq.s32.totalorder %s18, 1
    %p76 = por %p74, %p75
    %p78 = scmp.ne.s32.totalorder %s63, %s77
    %p79 = scmp.eq.s32.totalorder %s18, 0
    %p80 = por %p78, %p79
    %s82 = sadd.s32 %s81, 1
    %p85 = scmp.eq.s32.totalorder %s12, 1
    %p86 = scmp.ne.s32.totalorder %s81, %s83
    %p87 = scmp.eq.s32.totalorder %s12, 0
    %p88 = por %p86, %p87
    %p89 = scmp.ne.s32.totalorder %s81, %s83
    %p90 = scmp.eq.s32.totalorder %s17, 1
    %p91 = por %p89, %p90
    %p92 = scmp.ne.s32.totalorder %s83, %s84
    %p93 = scmp.eq.s32.totalorder %s17, 0
    %p94 = por %p92, %p93
    %p95 = scmp.ne.s32.totalorder %s83, %s84
    %p96 = scmp.eq.s32.totalorder %s18, 1
    %p97 = por %p95, %p96
    %p99 = scmp.ne.s32.totalorder %s84, %s98
    %p100 = scmp.eq.s32.totalorder %s18, 0
    %p101 = por %p99, %p100
    %s102 = ssub.s32 %s19, %s31
    %s103 = ssub.s32 %s20, %s27
    %s104 = sor.u32 %s102, %s103
    %p105 = scmp.eq.s32.totalorder %s104, 0
    %s107 = sadd.s32 %s106, 1
    %s108 = scalar_select %p105, %s106, %s107
    %p111 = pneg %p105
    %p112 = scmp.eq.s32.totalorder %s12, 1
    %p113 = por %p111, %p112
    %p114 = scmp.ne.s32.totalorder %s106, %s109
    %p115 = scmp.eq.s32.totalorder %s12, 0
    %p116 = por %p114, %p115
    %p117 = scmp.ne.s32.totalorder %s106, %s109
    %p118 = scmp.eq.s32.totalorder %s17, 1
    %p119 = por %p117, %p118
    %p120 = scmp.ne.s32.totalorder %s109, %s110
    %p121 = scmp.eq.s32.totalorder %s17, 0
    %p122 = por %p120, %p121
    %p123 = scmp.ne.s32.totalorder %s109, %s110
    %p124 = scmp.eq.s32.totalorder %s18, 1
    %p125 = por %p123, %p124
    %p127 = scmp.ne.s32.totalorder %s110, %s126
    %p128 = scmp.eq.s32.totalorder %s18, 0
    %p129 = por %p127, %p128
    %s130 = ssub.s32 %s19, %s31
    %s131 = ssub.s32 %s20, %s27
    %s132 = sor.u32 %s130, %s131
    %p133 = scmp.eq.s32.totalorder %s132, 0
    %s135 = sadd.s32 %s134, 1
    %s136 = scalar_select %p133, %s134, %s135
    %p139 = pneg %p133
    %p140 = scmp.eq.s32.totalorder %s12, 1
    %p141 = por %p139, %p140
    %p142 = scmp.ne.s32.totalorder %s134, %s137
    %p143 = scmp.eq.s32.totalorder %s12, 0
    %p144 = por %p142, %p143
    %p145 = scmp.ne.s32.totalorder %s134, %s137
    %p146 = scmp.eq.s32.totalorder %s17, 1
    %p147 = por %p145, %p146
    %p148 = scmp.ne.s32.totalorder %s137, %s138
    %p149 = scmp.eq.s32.totalorder %s17, 0
    %p150 = por %p148, %p149
    %p151 = scmp.ne.s32.totalorder %s137, %s138
    %p152 = scmp.eq.s32.totalorder %s18, 1
    %p153 = por %p151, %p152
    %p155 = scmp.ne.s32.totalorder %s138, %s154
    %p156 = scmp.eq.s32.totalorder %s18, 0
    %p157 = por %p155, %p156
    %s158 = ssub.s32 %s19, %s31
    %s159 = ssub.s32 %s20, %s27
    %s160 = sor.u32 %s158, %s159
    %p161 = scmp.eq.s32.totalorder %s160, 0
    %s163 = sadd.s32 %s162, 1
    %s164 = scalar_select %p161, %s162, %s163
    %p167 = pneg %p161
    %p168 = scmp.eq.s32.totalorder %s12, 1
    %p169 = por %p167, %p168
    %p170 = scmp.ne.s32.totalorder %s162, %s165
    %p171 = scmp.eq.s32.totalorder %s12, 0
    %p172 = por %p170, %p171
    %p173 = scmp.ne.s32.totalorder %s162, %s165
    %p174 = scmp.eq.s32.totalorder %s17, 1
    %p175 = por %p173, %p174
    %p176 = scmp.ne.s32.totalorder %s165, %s166
    %p177 = scmp.eq.s32.totalorder %s17, 0
    %p178 = por %p176, %p177
    %p179 = scmp.ne.s32.totalorder %s165, %s166
    %p180 = scmp.eq.s32.totalorder %s18, 1
    %p181 = por %p179, %p180
    %p183 = scmp.ne.s32.totalorder %s166, %s182
    %p184 = scmp.eq.s32.totalorder %s18, 0
    %p185 = por %p183, %p184
    %p186 = scmp.le.s32.totalorder 1, %s12
    %p187 = scmp.lt.s32.totalorder %s12, 3
    %p188 = pnand %p186, %p187
    %p189 = pneg %p188
    // Predicated region
    $region9: #{down_block_forward.14} parent=5 // pred_check
      _
    $region10: #{down_block_forward.14} parent=5 // pred_check_branch
      %191 = sbr.rel (%p188) target = $region12
    $region11: #{down_block_forward.14} parent=5 // pred_region
      %s192 = ssub.s32 %s12, 1
      // Predicated region
      $region13: #{down_block_forward.14} parent=11 // pred_check
        %p193 = pneg %p73
      $region14: #{down_block_forward.14} parent=11 // pred_check_branch
        %195 = sbr.rel (%p193) target = $region16
      $region15: #{down_block_forward.14} parent=11 // pred_region
        _
      $region16: #{down_block_forward.14} parent=11 // pred_fallthru
        _
      // Predicated region
      $region17: #{down_block_forward.14} parent=11 // pred_check
        %p196 = pneg %p94
      $region18: #{down_block_forward.14} parent=11 // pred_check_branch
        %198 = sbr.rel (%p196) target = $region20
      $region19: #{down_block_forward.14} parent=11 // pred_region
        _
      $region20: #{down_block_forward.14} parent=11 // pred_fallthru
        _
    $region12: #{down_block_forward.14} parent=5 // pred_fallthru
      _
    %p199 = scmp.lt.s32.totalorder %s12, 2
    // Predicated region
    $region21: #{down_block_forward.14} parent=5 // pred_check
      %p200 = pneg %p199
    $region22: #{down_block_forward.14} parent=5 // pred_check_branch
      %202 = sbr.rel (%p200) target = $region24
    $region23: #{down_block_forward.14} parent=5 // pred_region
      // Predicated region
      $region25: #{down_block_forward.14} parent=23 // pred_check
        %p203 = pneg %p46
      $region26: #{down_block_forward.14} parent=23 // pred_check_branch
        %205 = sbr.rel (%p203) target = $region28
      $region27: #{down_block_forward.14} parent=23 // pred_region
        %s206 = smul.u32 8, %s20
        %p207 = scmp.lt.s32.totalorder %s19, 1
        %s208 = scalar_select %p207, %s19, 1
        %p209 = scmp.lt.s32.totalorder %s206, 7
        %s210 = scalar_select %p209, %s206, 7
        %s211 = smul.addr %s208, 8
        %s212 = sadd.s32 %s210, %s211
        %s213 = smul.addr %s212, 8
        %s214 = scalar_lea.vmem %s0, %s213
        %s215 = smul.u32 8, %s20
      $region28: #{down_block_forward.14} parent=23 // pred_fallthru
        _
    $region24: #{down_block_forward.14} parent=5 // pred_fallthru
      _
    %p216 = scmp.le.s32.totalorder 1, %s12
    %p217 = scmp.lt.s32.totalorder %s12, 3
    %p218 = pnand %p216, %p217
    %p219 = pneg %p218
    // Predicated region
    $region29: #{down_block_forward.14} parent=5 // pred_check
      _
    $region30: #{down_block_forward.14} parent=5 // pred_check_branch
      %221 = sbr.rel (%p218) target = $region32
    $region31: #{down_block_forward.14} parent=5 // pred_region
      %s222 = ssub.s32 %s12, 1
      %s223 = smul.u32 8, %s22
      %p224 = scmp.lt.s32.totalorder %s21, 1
      %s225 = scalar_select %p224, %s21, 1
      %p226 = scmp.lt.s32.totalorder %s223, 7
      %s227 = scalar_select %p226, %s223, 7
      %s228 = smul.addr %s225, 8
      %s229 = sadd.s32 %s227, %s228
      %s230 = smul.addr %s229, 8
      %s231 = scalar_lea.vmem %s0, %s230
      %p232 = pneg %p52
      %p233 = pneg %p49
      %p234 = pneg %p73
      %p235 = pneg %p70
      %p236 = pneg %p94
      %p237 = pneg %p91
      %p238 = pneg %p122
      %p239 = pneg %p119
      %s240 = smul.u32 8, %s22
      %p241 = scmp.lt.s32.totalorder %s21, 1
      %s242 = scalar_select %p241, %s21, 1
      %p243 = scmp.lt.s32.totalorder %s240, 7
      %s244 = scalar_select %p243, %s240, 7
      %s245 = smul.addr %s242, 8
      %s246 = sadd.s32 %s244, %s245
      %s247 = smul.addr %s246, 4
      %s248 = scalar_lea.vmem %s3, %s247
      %p249 = pneg %p150
      %p250 = pneg %p147
      %s251 = smul.u32 8, %s22
      %p252 = scmp.lt.s32.totalorder %s21, 1
      %s253 = scalar_select %p252, %s21, 1
      %p254 = scmp.lt.s32.totalorder %s251, 7
      %s255 = scalar_select %p254, %s251, 7
      %s256 = smul.addr %s253, 8
      %s257 = sadd.s32 %s255, %s256
      %s258 = smul.addr %s257, 4
      %s259 = scalar_lea.vmem %s4, %s258
      %p260 = pneg %p178
      %p261 = pneg %p175
      %s262 = smul.u32 8, %s22
      %p263 = scmp.lt.s32.totalorder %s21, 1
      %s264 = scalar_select %p263, %s21, 1
      %p265 = scmp.lt.s32.totalorder %s262, 7
      %s266 = scalar_select %p265, %s262, 7
      %s267 = smul.addr %s264, 8
      %s268 = sadd.s32 %s266, %s267
      %s269 = smul.addr %s268, 4
      %s270 = scalar_lea.vmem %s5, %s269
      %s271 = smul.u32 8, %s22
      %p272 = scmp.lt.s32.totalorder %s21, 1
      %s273 = scalar_select %p272, %s21, 1
      %p274 = scmp.lt.s32.totalorder %s271, 7
      %s275 = scalar_select %p274, %s271, 7
      %s276 = smul.addr %s273, 8
      %s277 = sadd.s32 %s275, %s276
      %s278 = smul.addr %s277, 8
      %s279 = scalar_lea.vmem %s0, %s278
      %s280 = smul.u32 8, %s22
      %s281 = smul.u32 8, %s22
      %p282 = scmp.lt.s32.totalorder %s21, 1
      %s283 = scalar_select %p282, %s21, 1
      %p284 = scmp.lt.s32.totalorder %s281, 7
      %s285 = scalar_select %p284, %s281, 7
      %s286 = smul.addr %s283, 8
      %s287 = sadd.s32 %s285, %s286
      %s288 = smul.addr %s287, 4
      %s289 = scalar_lea.vmem %s3, %s288
      %s290 = smul.u32 8, %s22
      %s291 = smul.u32 8, %s22
      %p292 = scmp.lt.s32.totalorder %s21, 1
      %s293 = scalar_select %p292, %s21, 1
      %p294 = scmp.lt.s32.totalorder %s291, 7
      %s295 = scalar_select %p294, %s291, 7
      %s296 = smul.addr %s293, 8
      %s297 = sadd.s32 %s295, %s296
      %s298 = smul.addr %s297, 4
      %s299 = scalar_lea.vmem %s4, %s298
      %s300 = smul.u32 8, %s22
      %s301 = smul.u32 8, %s22
      %p302 = scmp.lt.s32.totalorder %s21, 1
      %s303 = scalar_select %p302, %s21, 1
      %p304 = scmp.lt.s32.totalorder %s301, 7
      %s305 = scalar_select %p304, %s301, 7
      %s306 = smul.addr %s303, 8
      %s307 = sadd.s32 %s305, %s306
      %s308 = smul.addr %s307, 4
      %s309 = scalar_lea.vmem %s5, %s308
      %s310 = smul.u32 8, %s22
      %v312 = vld [vmem:[%s279] sm:$0xff]
      %v313 = vld [vmem:[%s279 + $0x8] sm:$0xff]
      %v314 = vld [vmem:[%s279 + $0x10] sm:$0xff]
      %v315 = vld [vmem:[%s279 + $0x18] sm:$0xff]
      %v316 = vld [vmem:[%s279 + $0x20] sm:$0xff]
      %v317 = vld [vmem:[%s279 + $0x28] sm:$0xff]
      %v318 = vld [vmem:[%s279 + $0x30] sm:$0xff]
      %v319 = vld [vmem:[%s279 + $0x38] sm:$0xff]
      %v320 = vpack.c.bf16 %v313, %v312
      %v321 = vpack.c.bf16 %v315, %v314
      %v322 = vpack.c.bf16 %v317, %v316
      %v323 = vpack.c.bf16 %v319, %v318
      %v324 = vld [vmem:[%s1] sm:$0xff]
      %v325 = vld [vmem:[%s1 + $0x8] sm:$0xf]
      %v326 = vld [vmem:[%s1 + $0xc] sm:$0xff]
      %v327 = vld [vmem:[%s1 + $0x14] sm:$0xf]
      %v328 = vld [vmem:[%s1 + $0x18] sm:$0xff]
      %v329 = vld [vmem:[%s1 + $0x20] sm:$0xf]
      %v330 = vld [vmem:[%s1 + $0x24] sm:$0xff]
      %v331 = vld [vmem:[%s1 + $0x2c] sm:$0xf]
      %v332 = vld [vmem:[%s1 + $0x30] sm:$0xff]
      %v333 = vld [vmem:[%s1 + $0x38] sm:$0xf]
      %v334 = vld [vmem:[%s1 + $0x3c] sm:$0xff]
      %v335 = vld [vmem:[%s1 + $0x44] sm:$0xf]
      %v336 = vld [vmem:[%s1 + $0x48] sm:$0xff]
      %v337 = vld [vmem:[%s1 + $0x50] sm:$0xf]
      %v338 = vld [vmem:[%s1 + $0x54] sm:$0xff]
      %v339 = vld [vmem:[%s1 + $0x5c] sm:$0xf]
      %v340 = vld [vmem:[%s1 + $0x60] sm:$0xff]
      %v341 = vld [vmem:[%s1 + $0x68] sm:$0xf]
      %v342 = vld [vmem:[%s1 + $0x6c] sm:$0xff]
      %v343 = vld [vmem:[%s1 + $0x74] sm:$0xf]
      %v344 = vld [vmem:[%s1 + $0x78] sm:$0xff]
      %v345 = vld [vmem:[%s1 + $0x80] sm:$0xf]
      %v346 = vld [vmem:[%s1 + $0x84] sm:$0xff]
      %v347 = vld [vmem:[%s1 + $0x8c] sm:$0xf]
      %v348 = vld [vmem:[%s1 + $0x90] sm:$0xff]
      %v349 = vld [vmem:[%s1 + $0x98] sm:$0xf]
      %v350 = vld [vmem:[%s1 + $0x9c] sm:$0xff]
      %v351 = vld [vmem:[%s1 + $0xa4] sm:$0xf]
      %v352 = vld [vmem:[%s1 + $0xa8] sm:$0xff]
      %v353 = vld [vmem:[%s1 + $0xb0] sm:$0xf]
      %v354 = vld [vmem:[%s1 + $0xb4] sm:$0xff]
      %v355 = vld [vmem:[%s1 + $0xbc] sm:$0xf]
      %v356 = vld [vmem:[%s2] sm:$0x7]
      %v358 = vlaneseq
      %v359 = vshrl.u32 %v358, 7
      %v360 = vsub.s32 0, %v359
      %v361 = vrot.slane %v356, %v360
      %v362 = vlaneseq
      %v363 = vshrl.u32 %v362, 7
      %v364 = vsub.s32 1, %v363
      %v365 = vrot.slane %v356, %v364
      %v366 = vlaneseq
      %v367 = vshrl.u32 %v366, 7
      %v368 = vsub.s32 2, %v367
      %v369 = vrot.slane %v356, %v368
      %v405 = vunpack.c.l.b16 %v324
      %v406 = vunpack.c.h.b16 %v324
      %v407 = vunpack.c.l.b16 %v325
      %v408 = vunpack.c.l.b16 %v326
      %v409 = vunpack.c.h.b16 %v326
      %v410 = vunpack.c.l.b16 %v327
      %v411 = vunpack.c.l.b16 %v328
      %v412 = vunpack.c.h.b16 %v328
      %v413 = vunpack.c.l.b16 %v329
      %v414 = vunpack.c.l.b16 %v330
      %v415 = vunpack.c.h.b16 %v330
      %v416 = vunpack.c.l.b16 %v331
      %v417 = vunpack.c.l.b16 %v332
      %v418 = vunpack.c.h.b16 %v332
      %v419 = vunpack.c.l.b16 %v333
      %v420 = vunpack.c.l.b16 %v334
      %v421 = vunpack.c.h.b16 %v334
      %v422 = vunpack.c.l.b16 %v335
      %v423 = vunpack.c.l.b16 %v336
      %v424 = vunpack.c.h.b16 %v336
      %v425 = vunpack.c.l.b16 %v337
      %v426 = vunpack.c.l.b16 %v338
      %v427 = vunpack.c.h.b16 %v338
      %v428 = vunpack.c.l.b16 %v339
      %v429 = vunpack.c.l.b16 %v340
      %v430 = vunpack.c.h.b16 %v340
      %v431 = vunpack.c.l.b16 %v341
      %v432 = vunpack.c.l.b16 %v342
      %v433 = vunpack.c.h.b16 %v342
      %v434 = vunpack.c.l.b16 %v343
      %v435 = vunpack.c.l.b16 %v344
      %v436 = vunpack.c.h.b16 %v344
      %v437 = vunpack.c.l.b16 %v345
      %v438 = vunpack.c.l.b16 %v346
      %v439 = vunpack.c.h.b16 %v346
      %v440 = vunpack.c.l.b16 %v347
      %v441 = vunpack.c.l.b16 %v348
      %v442 = vunpack.c.h.b16 %v348
      %v443 = vunpack.c.l.b16 %v349
      %v444 = vunpack.c.l.b16 %v350
      %v445 = vunpack.c.h.b16 %v350
      %v446 = vunpack.c.l.b16 %v351
      %v447 = vunpack.c.l.b16 %v352
      %v448 = vunpack.c.h.b16 %v352
      %v449 = vunpack.c.l.b16 %v353
      %v450 = vunpack.c.l.b16 %v354
      %v451 = vunpack.c.h.b16 %v354
      %v452 = vunpack.c.l.b16 %v355
      %v453 = vpack.c.b16 %v408, %v405
      %v454 = vpack.c.b16 %v409, %v406
      %v455 = vpack.c.b16 %v410, %v407
      %v456 = vpack.c.b16 %v414, %v411
      %v457 = vpack.c.b16 %v415, %v412
      %v458 = vpack.c.b16 %v416, %v413
      %v459 = vpack.c.b16 %v420, %v417
      %v460 = vpack.c.b16 %v421, %v418
      %v461 = vpack.c.b16 %v422, %v419
      %v462 = vpack.c.b16 %v426, %v423
      %v463 = vpack.c.b16 %v427, %v424
      %v464 = vpack.c.b16 %v428, %v425
      %v465 = vpack.c.b16 %v432, %v429
      %v466 = vpack.c.b16 %v433, %v430
      %v467 = vpack.c.b16 %v434, %v431
      %v468 = vpack.c.b16 %v438, %v435
      %v469 = vpack.c.b16 %v439, %v436
      %v470 = vpack.c.b16 %v440, %v437
      %v471 = vpack.c.b16 %v444, %v441
      %v472 = vpack.c.b16 %v445, %v442
      %v473 = vpack.c.b16 %v446, %v443
      %v474 = vpack.c.b16 %v450, %v447
      %v475 = vpack.c.b16 %v451, %v448
      %v476 = vpack.c.b16 %v452, %v449
      %501 = vmatprep.subr.bf16.mxu0 %v454
      %502 = vmatpush1.bf16.msra.mxu0 %v453
      %503 = vmatprep.subr.bf16.mxu0 %v457
      %504 = vmatpush1.bf16.msra.mxu0 %v456
      %505 = vmatprep.subr.bf16.mxu0 %v460
      %506 = vmatpush1.bf16.msra.mxu0 %v459
      %507 = vmatprep.subr.bf16.mxu0 %v463
      %508 = vmatpush1.bf16.msra.mxu0 %v462
      %509 = vmatprep.subr.bf16.mxu0 %v466
      %510 = vmatpush1.bf16.msra.mxu0 %v465
      %511 = vmatprep.subr.bf16.mxu0 %v469
      %512 = vmatpush1.bf16.msra.mxu0 %v468
      %513 = vmatprep.subr.bf16.mxu0 %v472
      %514 = vmatpush1.bf16.msra.mxu0 %v471
      %515 = vmatprep.subr.bf16.mxu0 %v475
      %516 = vmatpush1.bf16.msra.mxu0 %v474
      %517 = vmatprep.subr.bf16.mxu0 0
      %518 = vmatpush1.bf16.msra.mxu0 0
      %519 = vmatprep.subr.bf16.mxu0 0
      %520 = vmatpush1.bf16.msra.mxu0 0
      %521 = vmatprep.subr.bf16.mxu0 0
      %522 = vmatpush1.bf16.msra.mxu0 0
      %523 = vmatprep.subr.bf16.mxu0 0
      %524 = vmatpush1.bf16.msra.mxu0 0
      %525 = vmatprep.subr.bf16.mxu0 0
      %526 = vmatpush1.bf16.msra.mxu0 0
      %527 = vmatprep.subr.bf16.mxu0 0
      %528 = vmatpush1.bf16.msra.mxu0 0
      %529 = vmatprep.subr.bf16.mxu0 0
      %530 = vmatpush1.bf16.msra.mxu0 0
      %531 = vmatprep.subr.bf16.mxu0 0
      %532 = vmatpush1.bf16.msra.mxu0 0
      %533 = vmatprep.mubr.bf16.mxu0 0
      %534 = vmatmul.mubr.bf16.gmra.mrb[0].mxu0 %v320
      %v535 = vpop.f32.mrb[0].mxu0
      %v536 = vadd.f32 %v361, %v535
      %v537 = vpop.f32.mrb[0].mxu0
      %v538 = vadd.f32 %v365, %v537
      %v539 = vpop.f32.mrb[0].mxu0
      %v540 = vadd.f32 %v361, %v539
      %v541 = vpop.f32.mrb[0].mxu0
      %v542 = vadd.f32 %v365, %v541
      %543 = vmatprep.mubr.bf16.mxu0 0
      %544 = vmatmul.mubr.bf16.gmra.mrb[0].mxu0 %v321
      %v545 = vpop.f32.mrb[0].mxu0
      %v546 = vadd.f32 %v361, %v545
      %v547 = vpop.f32.mrb[0].mxu0
      %v548 = vadd.f32 %v365, %v547
      %v549 = vpop.f32.mrb[0].mxu0
      %v550 = vadd.f32 %v361, %v549
      %v551 = vpop.f32.mrb[0].mxu0
      %v552 = vadd.f32 %v365, %v551
      %553 = vmatprep.mubr.bf16.mxu0 0
      %554 = vmatmul.mubr.bf16.gmra.mrb[0].mxu0 %v322
      %v555 = vpop.f32.mrb[0].mxu0
      %v556 = vadd.f32 %v361, %v555
      %v557 = vpop.f32.mrb[0].mxu0
      %v558 = vadd.f32 %v365, %v557
      %v559 = vpop.f32.mrb[0].mxu0
      %v560 = vadd.f32 %v361, %v559
      %v561 = vpop.f32.mrb[0].mxu0
      %v562 = vadd.f32 %v365, %v561
      %563 = vmatprep.mubr.bf16.mxu0 0
      %564 = vmatmul.mubr.bf16.gmra.mrb[0].mxu0 %v323
      %v565 = vpop.f32.mrb[0].mxu0
      %v566 = vadd.f32 %v361, %v565
      %v567 = vpop.f32.mrb[0].mxu0
      %v568 = vadd.f32 %v365, %v567
      %v569 = vpop.f32.mrb[0].mxu0
      %v570 = vadd.f32 %v361, %v569
      %v571 = vpop.f32.mrb[0].mxu0
      %v572 = vadd.f32 %v365, %v571
      %573 = vdwg.mxu0
      %574 = vmatprep.subr.bf16.mxu0 0
      %575 = vmatpush1.bf16.msra.mxu0 %v455
      %576 = vmatprep.subr.bf16.mxu0 0
      %577 = vmatpush1.bf16.msra.mxu0 %v458
      %578 = vmatprep.subr.bf16.mxu0 0
      %579 = vmatpush1.bf16.msra.mxu0 %v461
      %580 = vmatprep.subr.bf16.mxu0 0
      %581 = vmatpush1.bf16.msra.mxu0 %v464
      %582 = vmatprep.subr.bf16.mxu0 0
      %583 = vmatpush1.bf16.msra.mxu0 %v467
      %584 = vmatprep.subr.bf16.mxu0 0
      %585 = vmatpush1.bf16.msra.mxu0 %v470
      %586 = vmatprep.subr.bf16.mxu0 0
      %587 = vmatpush1.bf16.msra.mxu0 %v473
      %588 = vmatprep.subr.bf16.mxu0 0
      %589 = vmatpush1.bf16.msra.mxu0 %v476
      %590 = vmatprep.subr.bf16.mxu0 0
      %591 = vmatpush1.bf16.msra.mxu0 0
      %592 = vmatprep.subr.bf16.mxu0 0
      %593 = vmatpush1.bf16.msra.mxu0 0
      %594 = vmatprep.subr.bf16.mxu0 0
      %595 = vmatpush1.bf16.msra.mxu0 0
      %596 = vmatprep.subr.bf16.mxu0 0
      %597 = vmatpush1.bf16.msra.mxu0 0
      %598 = vmatprep.subr.bf16.mxu0 0
      %599 = vmatpush1.bf16.msra.mxu0 0
      %600 = vmatprep.subr.bf16.mxu0 0
      %601 = vmatpush1.bf16.msra.mxu0 0
      %602 = vmatprep.subr.bf16.mxu0 0
      %603 = vmatpush1.bf16.msra.mxu0 0
      %604 = vmatprep.subr.bf16.mxu0 0
      %605 = vmatpush1.bf16.msra.mxu0 0
      %606 = vmatprep.mubr.bf16.mxu0 0
      %607 = vmatmul.mubr.bf16.gmra.mrb[0].mxu0 %v320
      %v608 = vpop.f32.mrb[0].mxu0
      %v609 = vadd.f32 %v369, %v608
      %v610 = vpop.f32.mrb[0].mxu0
      %v611 = vpop.f32.mrb[0].mxu0
      %v612 = vadd.f32 %v369, %v611
      %v613 = vpop.f32.mrb[0].mxu0
      %614 = vmatprep.mubr.bf16.mxu0 0
      %615 = vmatmul.mubr.bf16.gmra.mrb[0].mxu0 %v321
      %v616 = vpop.f32.mrb[0].mxu0
      %v617 = vadd.f32 %v369, %v616
      %v618 = vpop.f32.mrb[0].mxu0
      %v619 = vpop.f32.mrb[0].mxu0
      %v620 = vadd.f32 %v369, %v619
      %v621 = vpop.f32.mrb[0].mxu0
      %622 = vmatprep.mubr.bf16.mxu0 0
      %623 = vmatmul.mubr.bf16.gmra.mrb[0].mxu0 %v322
      %v624 = vpop.f32.mrb[0].mxu0
      %v625 = vadd.f32 %v369, %v624
      %v626 = vpop.f32.mrb[0].mxu0
      %v627 = vpop.f32.mrb[0].mxu0
      %v628 = vadd.f32 %v369, %v627
      %v629 = vpop.f32.mrb[0].mxu0
      %630 = vmatprep.mubr.bf16.mxu0 0
      %631 = vmatmul.mubr.bf16.gmra.mrb[0].mxu0 %v323
      %v632 = vpop.f32.mrb[0].mxu0
      %v633 = vadd.f32 %v369, %v632
      %v634 = vpop.f32.mrb[0].mxu0
      %v635 = vpop.f32.mrb[0].mxu0
      %v636 = vadd.f32 %v369, %v635
      %v637 = vpop.f32.mrb[0].mxu0
      %638 = vdwg.mxu0
      %v639 = vpack.c.bf16 %v540, %v536
      %v640 = vpack.c.bf16 %v550, %v546
      %v641 = vpack.c.bf16 %v560, %v556
      %v642 = vpack.c.bf16 %v570, %v566
      %v647 = vunpack.c.l.b16 %v639
      %v648 = vunpack.c.h.b16 %v639
      %v649 = vunpack.c.l.b16 %v640
      %v650 = vunpack.c.h.b16 %v640
      %v651 = vunpack.c.l.b16 %v641
      %v652 = vunpack.c.h.b16 %v641
      %v653 = vunpack.c.l.b16 %v642
      %v654 = vunpack.c.h.b16 %v642
      %v655 = vpack.c.b16 %v647, %v647
      %v656 = vpack.c.b16 %v648, %v648
      %v657 = vpack.c.b16 %v649, %v649
      %v658 = vpack.c.b16 %v650, %v650
      %v659 = vpack.c.b16 %v651, %v651
      %v660 = vpack.c.b16 %v652, %v652
      %v661 = vpack.c.b16 %v653, %v653
      %v662 = vpack.c.b16 %v654, %v654
      %671 = vst [vmem:[%s289] sm:$0xf] %v655
      %672 = vst [vmem:[%s289 + $0x4] sm:$0xf] %v656
      %673 = vst [vmem:[%s289 + $0x8] sm:$0xf] %v657
      %674 = vst [vmem:[%s289 + $0xc] sm:$0xf] %v658
      %675 = vst [vmem:[%s289 + $0x10] sm:$0xf] %v659
      %676 = vst [vmem:[%s289 + $0x14] sm:$0xf] %v660
      %677 = vst [vmem:[%s289 + $0x18] sm:$0xf] %v661
      %678 = vst [vmem:[%s289 + $0x1c] sm:$0xf] %v662
      %v679 = vpack.c.bf16 %v542, %v538
      %v680 = vpack.c.bf16 %v552, %v548
      %v681 = vpack.c.bf16 %v562, %v558
      %v682 = vpack.c.bf16 %v572, %v568
      %v687 = vunpack.c.l.b16 %v679
      %v688 = vunpack.c.h.b16 %v679
      %v689 = vunpack.c.l.b16 %v680
      %v690 = vunpack.c.h.b16 %v680
      %v691 = vunpack.c.l.b16 %v681
      %v692 = vunpack.c.h.b16 %v681
      %v693 = vunpack.c.l.b16 %v682
      %v694 = vunpack.c.h.b16 %v682
      %v695 = vpack.c.b16 %v687, %v687
      %v696 = vpack.c.b16 %v688, %v688
      %v697 = vpack.c.b16 %v689, %v689
      %v698 = vpack.c.b16 %v690, %v690
      %v699 = vpack.c.b16 %v691, %v691
      %v700 = vpack.c.b16 %v692, %v692
      %v701 = vpack.c.b16 %v693, %v693
      %v702 = vpack.c.b16 %v694, %v694
      %711 = vst [vmem:[%s299] sm:$0xf] %v695
      %712 = vst [vmem:[%s299 + $0x4] sm:$0xf] %v696
      %713 = vst [vmem:[%s299 + $0x8] sm:$0xf] %v697
      %714 = vst [vmem:[%s299 + $0xc] sm:$0xf] %v698
      %715 = vst [vmem:[%s299 + $0x10] sm:$0xf] %v699
      %716 = vst [vmem:[%s299 + $0x14] sm:$0xf] %v700
      %717 = vst [vmem:[%s299 + $0x18] sm:$0xf] %v701
      %718 = vst [vmem:[%s299 + $0x1c] sm:$0xf] %v702
      %v719 = vpack.c.bf16 %v612, %v609
      %v720 = vpack.c.bf16 %v620, %v617
      %v721 = vpack.c.bf16 %v628, %v625
      %v722 = vpack.c.bf16 %v636, %v633
      %v727 = vunpack.c.l.b16 %v719
      %v728 = vunpack.c.h.b16 %v719
      %v729 = vunpack.c.l.b16 %v720
      %v730 = vunpack.c.h.b16 %v720
      %v731 = vunpack.c.l.b16 %v721
      %v732 = vunpack.c.h.b16 %v721
      %v733 = vunpack.c.l.b16 %v722
      %v734 = vunpack.c.h.b16 %v722
      %v735 = vpack.c.b16 %v727, %v727
      %v736 = vpack.c.b16 %v728, %v728
      %v737 = vpack.c.b16 %v729, %v729
      %v738 = vpack.c.b16 %v730, %v730
      %v739 = vpack.c.b16 %v731, %v731
      %v740 = vpack.c.b16 %v732, %v732
      %v741 = vpack.c.b16 %v733, %v733
      %v742 = vpack.c.b16 %v734, %v734
      %751 = vst [vmem:[%s309] sm:$0xf] %v735
      %752 = vst [vmem:[%s309 + $0x4] sm:$0xf] %v736
      %753 = vst [vmem:[%s309 + $0x8] sm:$0xf] %v737
      %754 = vst [vmem:[%s309 + $0xc] sm:$0xf] %v738
      %755 = vst [vmem:[%s309 + $0x10] sm:$0xf] %v739
      %756 = vst [vmem:[%s309 + $0x14] sm:$0xf] %v740
      %757 = vst [vmem:[%s309 + $0x18] sm:$0xf] %v741
      %758 = vst [vmem:[%s309 + $0x1c] sm:$0xf] %v742
      %s759 = smul.u32 8, %s22
      %p760 = scmp.lt.s32.totalorder %s21, 1
      %s761 = scalar_select %p760, %s21, 1
      %p762 = scmp.lt.s32.totalorder %s759, 7
      %s763 = scalar_select %p762, %s759, 7
      %s764 = smul.addr %s761, 8
      %s765 = sadd.s32 %s763, %s764
      %s766 = smul.addr %s765, 4
      %s767 = scalar_lea.vmem %s3, %s766
      %s768 = smul.u32 8, %s22
      %p769 = scmp.lt.s32.totalorder %s21, 1
      %s770 = scalar_select %p769, %s21, 1
      %p771 = scmp.lt.s32.totalorder %s768, 7
      %s772 = scalar_select %p771, %s768, 7
      %s773 = smul.addr %s770, 8
      %s774 = sadd.s32 %s772, %s773
      %s775 = smul.addr %s774, 4
      %s776 = scalar_lea.vmem %s4, %s775
      %s777 = smul.u32 8, %s22
      %p778 = scmp.lt.s32.totalorder %s21, 1
      %s779 = scalar_select %p778, %s21, 1
      %p780 = scmp.lt.s32.totalorder %s777, 7
      %s781 = scalar_select %p780, %s777, 7
      %s782 = smul.addr %s779, 8
      %s783 = sadd.s32 %s781, %s782
      %s784 = smul.addr %s783, 4
      %s785 = scalar_lea.vmem %s5, %s784
      // Predicated region
      $region33: #{down_block_forward.14} parent=31 // pred_check
        %p786 = pneg %p119
      $region34: #{down_block_forward.14} parent=31 // pred_check_branch
        %788 = sbr.rel (%p786) target = $region36
      $region35: #{down_block_forward.14} parent=31 // pred_region
        %s789 = smul.u32 8, %s22
      $region36: #{down_block_forward.14} parent=31 // pred_fallthru
        _
      // Predicated region
      $region37: #{down_block_forward.14} parent=31 // pred_check
        %p790 = pneg %p147
      $region38: #{down_block_forward.14} parent=31 // pred_check_branch
        %792 = sbr.rel (%p790) target = $region40
      $region39: #{down_block_forward.14} parent=31 // pred_region
        %s793 = smul.u32 8, %s22
      $region40: #{down_block_forward.14} parent=31 // pred_fallthru
        _
      // Predicated region
      $region41: #{down_block_forward.14} parent=31 // pred_check
        %p794 = pneg %p175
      $region42: #{down_block_forward.14} parent=31 // pred_check_branch
        %796 = sbr.rel (%p794) target = $region44
      $region43: #{down_block_forward.14} parent=31 // pred_region
        %s797 = smul.u32 8, %s22
      $region44: #{down_block_forward.14} parent=31 // pred_fallthru
        _
    $region32: #{down_block_forward.14} parent=5 // pred_fallthru
      _
    %p798 = scmp.le.s32.totalorder 2, %s12
    // Predicated region
    $region45: #{down_block_forward.14} parent=5 // pred_check
      %p799 = pneg %p798
    $region46: #{down_block_forward.14} parent=5 // pred_check_branch
      %801 = sbr.rel (%p799) target = $region48
    $region47: #{down_block_forward.14} parent=5 // pred_region
      %s802 = ssub.s32 %s12, 2
      // Predicated region
      $region49: #{down_block_forward.14} parent=47 // pred_check
        %p803 = pneg %p125
      $region50: #{down_block_forward.14} parent=47 // pred_check_branch
        %805 = sbr.rel (%p803) target = $region52
      $region51: #{down_block_forward.14} parent=47 // pred_region
        %s806 = smul.u32 8, %s24
        %p807 = scmp.lt.s32.totalorder %s23, 1
        %s808 = scalar_select %p807, %s23, 1
        %p809 = scmp.lt.s32.totalorder %s806, 7
        %s810 = scalar_select %p809, %s806, 7
        %s811 = smul.addr %s808, 8
        %s812 = sadd.s32 %s810, %s811
        %s813 = smul.addr %s812, 4
        %s814 = scalar_lea.vmem %s3, %s813
      $region52: #{down_block_forward.14} parent=47 // pred_fallthru
        _
      // Predicated region
      $region53: #{down_block_forward.14} parent=47 // pred_check
        %p815 = pneg %p153
      $region54: #{down_block_forward.14} parent=47 // pred_check_branch
        %817 = sbr.rel (%p815) target = $region56
      $region55: #{down_block_forward.14} parent=47 // pred_region
        %s818 = smul.u32 8, %s24
        %p819 = scmp.lt.s32.totalorder %s23, 1
        %s820 = scalar_select %p819, %s23, 1
        %p821 = scmp.lt.s32.totalorder %s818, 7
        %s822 = scalar_select %p821, %s818, 7
        %s823 = smul.addr %s820, 8
        %s824 = sadd.s32 %s822, %s823
        %s825 = smul.addr %s824, 4
        %s826 = scalar_lea.vmem %s4, %s825
      $region56: #{down_block_forward.14} parent=47 // pred_fallthru
        _
      // Predicated region
      $region57: #{down_block_forward.14} parent=47 // pred_check
        %p827 = pneg %p181
      $region58: #{down_block_forward.14} parent=47 // pred_check_branch
        %829 = sbr.rel (%p827) target = $region60
      $region59: #{down_block_forward.14} parent=47 // pred_region
        %s830 = smul.u32 8, %s24
        %p831 = scmp.lt.s32.totalorder %s23, 1
        %s832 = scalar_select %p831, %s23, 1
        %p833 = scmp.lt.s32.totalorder %s830, 7
        %s834 = scalar_select %p833, %s830, 7
        %s835 = smul.addr %s832, 8
        %s836 = sadd.s32 %s834, %s835
        %s837 = smul.addr %s836, 4
        %s838 = scalar_lea.vmem %s5, %s837
      $region60: #{down_block_forward.14} parent=47 // pred_fallthru
        _
    $region48: #{down_block_forward.14} parent=5 // pred_fallthru
      _
  $region6: #{down_block_forward.14} parent=0 // loop_footer
    %s16 = sadd.s32 1, %s12
  $region7: #{down_block_forward.14} parent=0 // loop_footer_branch
    %11 = sbr.rel target = $region3
  $region8: #{down_block_forward.14} parent=0 // loop_exit
    _

// kernel: down_block_forward.13
$region0: #{down_block_forward.13}
  #allocation0 [shape = 'u32[]', space=smem, size = 0x4, offset = 0x4, fixed_abs, tag = 'smem constant byte address 0x4 - core index']
  #allocation1 [shape = 'u32[144,128]{1,0:T(1,128)}', space=vmem, size = 0x12000, scoped, tag = 'internal scratch']
  #allocation2 [shape = 'f32[10,10,128]{2,1,0:T(8,128)}', space=vmem, size = 0x14000, scoped, tag = 'scratch operand']
  #allocation3 [shape = 'bf16[64,1152]{1,0:T(16,128)(2,1)}', space=vmem, size = 0x24000, scoped, tag = 'scratch operand']
  %s0 = inlined_call_operand.vmem [shape: f32[2,8,8,128], index: 0, kind: input, shape index: {}]
  %s1 = inlined_call_operand.vmem [shape: f32[2,1,128], index: 1, kind: input, shape index: {}]
  %s2 = inlined_call_operand.vmem [shape: f32[2,1,128], index: 2, kind: input, shape index: {}]
  %s3 = inlined_call_operand.vmem [shape: bf16[1152,128], index: 3, kind: input, shape index: {}]
  %s4 = inlined_call_operand.vmem [shape: f32[1,128], index: 4, kind: input, shape index: {}]
  %s5 = inlined_call_operand.vmem [shape: f32[2,64,64], index: 5, kind: input, shape index: {}]
  %s6 = inlined_call_operand.vmem [shape: bf16[64,128], index: 6, kind: input, shape index: {}]
  %s7 = inlined_call_operand.vmem [shape: f32[1,128], index: 7, kind: input, shape index: {}]
  %s8 = inlined_call_operand.vmem [shape: f32[2,64,128], index: 8, kind: output, shape index: {}]
  %s9 = sld [smem:[#allocation0]]
  $region69: #{down_block_forward.13} parent=0
    _
  %s11 = ssub.s32 1, %s9
  %s12 = scalar_select 0, %s11, %s9
  loop: start=0, step=1, limit=4
  $region2: #{down_block_forward.13} parent=0 // loop_pre_header
    _
  $region3: #{down_block_forward.13} parent=0 // loop_header
    %s14 = sphi 0, %s18
    %p15 = scmp.ge.s32.totalorder %s14, 4
    %s21 = sphi 0, %s33
    %s22 = sphi 0, %s29
    %s23 = sphi 0, %s21
    %s24 = sphi 0, %s22
    %s25 = sphi 0, %s23
    %s26 = sphi 0, %s24
    %s36 = sphi 0, %s38
    %s39 = sphi 0, %s36
    %s40 = sphi 0, %s39
    %s56 = sphi 0, %s40
    %s62 = sphi 0, %s64
    %s65 = sphi 0, %s62
    %s66 = sphi 0, %s65
    %s82 = sphi 0, %s66
    %s88 = sphi 0, %s90
    %s91 = sphi 0, %s88
    %s92 = sphi 0, %s91
    %s108 = sphi 0, %s92
    %s112 = sphi 0, %s112
    %s114 = sphi 0, %s112
    %s115 = sphi 0, %s114
    %s129 = sphi 0, %s115
    %s133 = sphi 0, %s133
    %s135 = sphi 0, %s133
    %s136 = sphi 0, %s135
    %s150 = sphi 0, %s136
    %s158 = sphi 0, %s160
    %s161 = sphi 0, %s158
    %s162 = sphi 0, %s161
    %s178 = sphi 0, %s162
    %s182 = sphi 0, %s182
    %s184 = sphi 0, %s182
    %s185 = sphi 0, %s184
    %s199 = sphi 0, %s185
    %s203 = sphi 0, %s203
    %s205 = sphi 0, %s203
    %s206 = sphi 0, %s205
    %s220 = sphi 0, %s206
    %s228 = sphi 0, %s230
    %s231 = sphi 0, %s228
    %s232 = sphi 0, %s231
    %s248 = sphi 0, %s232
  $region4: #{down_block_forward.13} parent=0 // loop_header_branch
    %17 = sbr.rel (%p15) target = $region8
  $region5: #{down_block_forward.13} parent=0 // loop_body
    %s19 = ssub.s32 %s14, 1
    %s20 = ssub.s32 %s14, 2
    %s27 = sadd.s32 1, %s22
    %p28 = scmp.ge.s32.totalorder %s27, 1
    %s29 = scalar_select %p28, 0, %s27
    %s30 = sadd.s32 1, %s21
    %s31 = scalar_select %p28, %s30, %s21
    %p32 = scmp.ge.s32.totalorder %s31, 2
    %s33 = scalar_select %p32, 0, %s31
    %s34 = ssub.s32 %s21, %s33
    %p35 = scmp.eq.s32.totalorder %s34, 0
    %s37 = sadd.s32 %s36, 1
    %s38 = scalar_select %p35, %s36, %s37
    %p41 = pneg %p35
    %p42 = scmp.eq.s32.totalorder %s14, 1
    %p43 = por %p41, %p42
    %p44 = scmp.ne.s32.totalorder %s36, %s39
    %p45 = scmp.eq.s32.totalorder %s14, 0
    %p46 = por %p44, %p45
    %p47 = scmp.ne.s32.totalorder %s36, %s39
    %p48 = scmp.eq.s32.totalorder %s19, 1
    %p49 = por %p47, %p48
    %p50 = scmp.ne.s32.totalorder %s39, %s40
    %p51 = scmp.eq.s32.totalorder %s19, 0
    %p52 = por %p50, %p51
    %p53 = scmp.ne.s32.totalorder %s39, %s40
    %p54 = scmp.eq.s32.totalorder %s20, 1
    %p55 = por %p53, %p54
    %p57 = scmp.ne.s32.totalorder %s40, %s56
    %p58 = scmp.eq.s32.totalorder %s20, 0
    %p59 = por %p57, %p58
    %s60 = ssub.s32 %s21, %s33
    %p61 = scmp.eq.s32.totalorder %s60, 0
    %s63 = sadd.s32 %s62, 1
    %s64 = scalar_select %p61, %s62, %s63
    %p67 = pneg %p61
    %p68 = scmp.eq.s32.totalorder %s14, 1
    %p69 = por %p67, %p68
    %p70 = scmp.ne.s32.totalorder %s62, %s65
    %p71 = scmp.eq.s32.totalorder %s14, 0
    %p72 = por %p70, %p71
    %p73 = scmp.ne.s32.totalorder %s62, %s65
    %p74 = scmp.eq.s32.totalorder %s19, 1
    %p75 = por %p73, %p74
    %p76 = scmp.ne.s32.totalorder %s65, %s66
    %p77 = scmp.eq.s32.totalorder %s19, 0
    %p78 = por %p76, %p77
    %p79 = scmp.ne.s32.totalorder %s65, %s66
    %p80 = scmp.eq.s32.totalorder %s20, 1
    %p81 = por %p79, %p80
    %p83 = scmp.ne.s32.totalorder %s66, %s82
    %p84 = scmp.eq.s32.totalorder %s20, 0
    %p85 = por %p83, %p84
    %s86 = ssub.s32 %s21, %s33
    %p87 = scmp.eq.s32.totalorder %s86, 0
    %s89 = sadd.s32 %s88, 1
    %s90 = scalar_select %p87, %s88, %s89
    %p93 = pneg %p87
    %p94 = scmp.eq.s32.totalorder %s14, 1
    %p95 = por %p93, %p94
    %p96 = scmp.ne.s32.totalorder %s88, %s91
    %p97 = scmp.eq.s32.totalorder %s14, 0
    %p98 = por %p96, %p97
    %p99 = scmp.ne.s32.totalorder %s88, %s91
    %p100 = scmp.eq.s32.totalorder %s19, 1
    %p101 = por %p99, %p100
    %p102 = scmp.ne.s32.totalorder %s91, %s92
    %p103 = scmp.eq.s32.totalorder %s19, 0
    %p104 = por %p102, %p103
    %p105 = scmp.ne.s32.totalorder %s91, %s92
    %p106 = scmp.eq.s32.totalorder %s20, 1
    %p107 = por %p105, %p106
    %p109 = scmp.ne.s32.totalorder %s92, %s108
    %p110 = scmp.eq.s32.totalorder %s20, 0
    %p111 = por %p109, %p110
    %s113 = sadd.s32 %s112, 1
    %p116 = scmp.eq.s32.totalorder %s14, 1
    %p117 = scmp.ne.s32.totalorder %s112, %s114
    %p118 = scmp.eq.s32.totalorder %s14, 0
    %p119 = por %p117, %p118
    %p120 = scmp.ne.s32.totalorder %s112, %s114
    %p121 = scmp.eq.s32.totalorder %s19, 1
    %p122 = por %p120, %p121
    %p123 = scmp.ne.s32.totalorder %s114, %s115
    %p124 = scmp.eq.s32.totalorder %s19, 0
    %p125 = por %p123, %p124
    %p126 = scmp.ne.s32.totalorder %s114, %s115
    %p127 = scmp.eq.s32.totalorder %s20, 1
    %p128 = por %p126, %p127
    %p130 = scmp.ne.s32.totalorder %s115, %s129
    %p131 = scmp.eq.s32.totalorder %s20, 0
    %p132 = por %p130, %p131
    %s134 = sadd.s32 %s133, 1
    %p137 = scmp.eq.s32.totalorder %s14, 1
    %p138 = scmp.ne.s32.totalorder %s133, %s135
    %p139 = scmp.eq.s32.totalorder %s14, 0
    %p140 = por %p138, %p139
    %p141 = scmp.ne.s32.totalorder %s133, %s135
    %p142 = scmp.eq.s32.totalorder %s19, 1
    %p143 = por %p141, %p142
    %p144 = scmp.ne.s32.totalorder %s135, %s136
    %p145 = scmp.eq.s32.totalorder %s19, 0
    %p146 = por %p144, %p145
    %p147 = scmp.ne.s32.totalorder %s135, %s136
    %p148 = scmp.eq.s32.totalorder %s20, 1
    %p149 = por %p147, %p148
    %p151 = scmp.ne.s32.totalorder %s136, %s150
    %p152 = scmp.eq.s32.totalorder %s20, 0
    %p153 = por %p151, %p152
    %s154 = ssub.s32 %s21, %s33
    %s155 = ssub.s32 %s22, %s29
    %s156 = sor.u32 %s154, %s155
    %p157 = scmp.eq.s32.totalorder %s156, 0
    %s159 = sadd.s32 %s158, 1
    %s160 = scalar_select %p157, %s158, %s159
    %p163 = pneg %p157
    %p164 = scmp.eq.s32.totalorder %s14, 1
    %p165 = por %p163, %p164
    %p166 = scmp.ne.s32.totalorder %s158, %s161
    %p167 = scmp.eq.s32.totalorder %s14, 0
    %p168 = por %p166, %p167
    %p169 = scmp.ne.s32.totalorder %s158, %s161
    %p170 = scmp.eq.s32.totalorder %s19, 1
    %p171 = por %p169, %p170
    %p172 = scmp.ne.s32.totalorder %s161, %s162
    %p173 = scmp.eq.s32.totalorder %s19, 0
    %p174 = por %p172, %p173
    %p175 = scmp.ne.s32.totalorder %s161, %s162
    %p176 = scmp.eq.s32.totalorder %s20, 1
    %p177 = por %p175, %p176
    %p179 = scmp.ne.s32.totalorder %s162, %s178
    %p180 = scmp.eq.s32.totalorder %s20, 0
    %p181 = por %p179, %p180
    %s183 = sadd.s32 %s182, 1
    %p186 = scmp.eq.s32.totalorder %s14, 1
    %p187 = scmp.ne.s32.totalorder %s182, %s184
    %p188 = scmp.eq.s32.totalorder %s14, 0
    %p189 = por %p187, %p188
    %p190 = scmp.ne.s32.totalorder %s182, %s184
    %p191 = scmp.eq.s32.totalorder %s19, 1
    %p192 = por %p190, %p191
    %p193 = scmp.ne.s32.totalorder %s184, %s185
    %p194 = scmp.eq.s32.totalorder %s19, 0
    %p195 = por %p193, %p194
    %p196 = scmp.ne.s32.totalorder %s184, %s185
    %p197 = scmp.eq.s32.totalorder %s20, 1
    %p198 = por %p196, %p197
    %p200 = scmp.ne.s32.totalorder %s185, %s199
    %p201 = scmp.eq.s32.totalorder %s20, 0
    %p202 = por %p200, %p201
    %s204 = sadd.s32 %s203, 1
    %p207 = scmp.eq.s32.totalorder %s14, 1
    %p208 = scmp.ne.s32.totalorder %s203, %s205
    %p209 = scmp.eq.s32.totalorder %s14, 0
    %p210 = por %p208, %p209
    %p211 = scmp.ne.s32.totalorder %s203, %s205
    %p212 = scmp.eq.s32.totalorder %s19, 1
    %p213 = por %p211, %p212
    %p214 = scmp.ne.s32.totalorder %s205, %s206
    %p215 = scmp.eq.s32.totalorder %s19, 0
    %p216 = por %p214, %p215
    %p217 = scmp.ne.s32.totalorder %s205, %s206
    %p218 = scmp.eq.s32.totalorder %s20, 1
    %p219 = por %p217, %p218
    %p221 = scmp.ne.s32.totalorder %s206, %s220
    %p222 = scmp.eq.s32.totalorder %s20, 0
    %p223 = por %p221, %p222
    %s224 = ssub.s32 %s21, %s33
    %s225 = ssub.s32 %s22, %s29
    %s226 = sor.u32 %s224, %s225
    %p227 = scmp.eq.s32.totalorder %s226, 0
    %s229 = sadd.s32 %s228, 1
    %s230 = scalar_select %p227, %s228, %s229
    %p233 = pneg %p227
    %p234 = scmp.eq.s32.totalorder %s14, 1
    %p235 = por %p233, %p234
    %p236 = scmp.ne.s32.totalorder %s228, %s231
    %p237 = scmp.eq.s32.totalorder %s14, 0
    %p238 = por %p236, %p237
    %p239 = scmp.ne.s32.totalorder %s228, %s231
    %p240 = scmp.eq.s32.totalorder %s19, 1
    %p241 = por %p239, %p240
    %p242 = scmp.ne.s32.totalorder %s231, %s232
    %p243 = scmp.eq.s32.totalorder %s19, 0
    %p244 = por %p242, %p243
    %p245 = scmp.ne.s32.totalorder %s231, %s232
    %p246 = scmp.eq.s32.totalorder %s20, 1
    %p247 = por %p245, %p246
    %p249 = scmp.ne.s32.totalorder %s232, %s248
    %p250 = scmp.eq.s32.totalorder %s20, 0
    %p251 = por %p249, %p250
    %p252 = scmp.le.s32.totalorder 1, %s14
    %p253 = scmp.lt.s32.totalorder %s14, 3
    %p254 = pnand %p252, %p253
    %p255 = pneg %p254
    // Predicated region
    $region9: #{down_block_forward.13} parent=5 // pred_check
      _
    $region10: #{down_block_forward.13} parent=5 // pred_check_branch
      %257 = sbr.rel (%p254) target = $region12
    $region11: #{down_block_forward.13} parent=5 // pred_region
      %s258 = ssub.s32 %s14, 1
      // Predicated region
      $region13: #{down_block_forward.13} parent=11 // pred_check
        %p259 = pneg %p125
      $region14: #{down_block_forward.13} parent=11 // pred_check_branch
        %261 = sbr.rel (%p259) target = $region16
      $region15: #{down_block_forward.13} parent=11 // pred_region
        _
      $region16: #{down_block_forward.13} parent=11 // pred_fallthru
        _
      // Predicated region
      $region17: #{down_block_forward.13} parent=11 // pred_check
        %p262 = pneg %p146
      $region18: #{down_block_forward.13} parent=11 // pred_check_branch
        %264 = sbr.rel (%p262) target = $region20
      $region19: #{down_block_forward.13} parent=11 // pred_region
        _
      $region20: #{down_block_forward.13} parent=11 // pred_fallthru
        _
      // Predicated region
      $region21: #{down_block_forward.13} parent=11 // pred_check
        %p265 = pneg %p195
      $region22: #{down_block_forward.13} parent=11 // pred_check_branch
        %267 = sbr.rel (%p265) target = $region24
      $region23: #{down_block_forward.13} parent=11 // pred_region
        _
      $region24: #{down_block_forward.13} parent=11 // pred_fallthru
        _
      // Predicated region
      $region25: #{down_block_forward.13} parent=11 // pred_check
        %p268 = pneg %p216
      $region26: #{down_block_forward.13} parent=11 // pred_check_branch
        %270 = sbr.rel (%p268) target = $region28
      $region27: #{down_block_forward.13} parent=11 // pred_region
        _
      $region28: #{down_block_forward.13} parent=11 // pred_fallthru
        _
    $region12: #{down_block_forward.13} parent=5 // pred_fallthru
      _
    %p271 = scmp.lt.s32.totalorder %s14, 2
    // Predicated region
    $region29: #{down_block_forward.13} parent=5 // pred_check
      %p272 = pneg %p271
    $region30: #{down_block_forward.13} parent=5 // pred_check_branch
      %274 = sbr.rel (%p272) target = $region32
    $region31: #{down_block_forward.13} parent=5 // pred_region
      // Predicated region
      $region33: #{down_block_forward.13} parent=31 // pred_check
        %p275 = pneg %p46
      $region34: #{down_block_forward.13} parent=31 // pred_check_branch
        %277 = sbr.rel (%p275) target = $region36
      $region35: #{down_block_forward.13} parent=31 // pred_region
        %p278 = scmp.lt.s32.totalorder %s21, 1
        %s279 = scalar_select %p278, %s21, 1
        %s280 = smul.addr %s279, 8
        %s281 = smul.addr %s280, 8
        %s282 = scalar_lea.vmem %s0, %s281
      $region36: #{down_block_forward.13} parent=31 // pred_fallthru
        _
      // Predicated region
      $region37: #{down_block_forward.13} parent=31 // pred_check
        %p283 = pneg %p72
      $region38: #{down_block_forward.13} parent=31 // pred_check_branch
        %285 = sbr.rel (%p283) target = $region40
      $region39: #{down_block_forward.13} parent=31 // pred_region
        %p286 = scmp.lt.s32.totalorder %s21, 1
        %s287 = scalar_select %p286, %s21, 1
        %s288 = scalar_lea.vmem %s1, %s287
      $region40: #{down_block_forward.13} parent=31 // pred_fallthru
        _
      // Predicated region
      $region41: #{down_block_forward.13} parent=31 // pred_check
        %p289 = pneg %p98
      $region42: #{down_block_forward.13} parent=31 // pred_check_branch
        %291 = sbr.rel (%p289) target = $region44
      $region43: #{down_block_forward.13} parent=31 // pred_region
        %p292 = scmp.lt.s32.totalorder %s21, 1
        %s293 = scalar_select %p292, %s21, 1
        %s294 = scalar_lea.vmem %s2, %s293
      $region44: #{down_block_forward.13} parent=31 // pred_fallthru
        _
      // Predicated region
      $region45: #{down_block_forward.13} parent=31 // pred_check
        %p295 = pneg %p168
      $region46: #{down_block_forward.13} parent=31 // pred_check_branch
        %297 = sbr.rel (%p295) target = $region48
      $region47: #{down_block_forward.13} parent=31 // pred_region
        %s298 = smul.u32 8, %s22
        %p299 = scmp.lt.s32.totalorder %s21, 1
        %s300 = scalar_select %p299, %s21, 1
        %p301 = scmp.lt.s32.totalorder %s298, 7
        %s302 = scalar_select %p301, %s298, 7
        %s303 = smul.addr %s300, 8
        %s304 = sadd.s32 %s302, %s303
        %s305 = smul.addr %s304, 8
        %s306 = scalar_lea.vmem %s5, %s305
        %s307 = smul.u32 8, %s22
      $region48: #{down_block_forward.13} parent=31 // pred_fallthru
        _
    $region32: #{down_block_forward.13} parent=5 // pred_fallthru
      _
    %p308 = scmp.le.s32.totalorder 1, %s14
    %p309 = scmp.lt.s32.totalorder %s14, 3
    %p310 = pnand %p308, %p309
    %p311 = pneg %p310
    // Predicated region
    $region49: #{down_block_forward.13} parent=5 // pred_check
      _
    $region50: #{down_block_forward.13} parent=5 // pred_check_branch
      %313 = sbr.rel (%p310) target = $region52
    $region51: #{down_block_forward.13} parent=5 // pred_region
      %s314 = ssub.s32 %s14, 1
      %p315 = scmp.lt.s32.totalorder %s23, 1
      %s316 = scalar_select %p315, %s23, 1
      %s317 = smul.addr %s316, 8
      %s318 = smul.addr %s317, 8
      %s319 = scalar_lea.vmem %s0, %s318
      %p320 = pneg %p52
      %p321 = pneg %p49
      %p322 = scmp.lt.s32.totalorder %s23, 1
      %s323 = scalar_select %p322, %s23, 1
      %s324 = scalar_lea.vmem %s1, %s323
      %p325 = pneg %p78
      %p326 = pneg %p75
      %p327 = scmp.lt.s32.totalorder %s23, 1
      %s328 = scalar_select %p327, %s23, 1
      %s329 = scalar_lea.vmem %s2, %s328
      %p330 = pneg %p104
      %p331 = pneg %p101
      %p332 = pneg %p125
      %p333 = pneg %p122
      %p334 = pneg %p146
      %p335 = pneg %p143
      %s336 = smul.u32 8, %s24
      %p337 = scmp.lt.s32.totalorder %s23, 1
      %s338 = scalar_select %p337, %s23, 1
      %p339 = scmp.lt.s32.totalorder %s336, 7
      %s340 = scalar_select %p339, %s336, 7
      %s341 = smul.addr %s338, 8
      %s342 = sadd.s32 %s340, %s341
      %s343 = smul.addr %s342, 8
      %s344 = scalar_lea.vmem %s5, %s343
      %p345 = pneg %p174
      %p346 = pneg %p171
      %p347 = pneg %p195
      %p348 = pneg %p192
      %p349 = pneg %p216
      %p350 = pneg %p213
      %p351 = pneg %p244
      %p352 = pneg %p241
      %s353 = smul.u32 8, %s24
      %p354 = scmp.lt.s32.totalorder %s23, 1
      %s355 = scalar_select %p354, %s23, 1
      %p356 = scmp.lt.s32.totalorder %s353, 7
      %s357 = scalar_select %p356, %s353, 7
      %s358 = smul.addr %s355, 8
      %s359 = sadd.s32 %s357, %s358
      %s360 = smul.addr %s359, 8
      %s361 = scalar_lea.vmem %s8, %s360
      %p362 = scmp.lt.s32.totalorder %s23, 1
      %s363 = scalar_select %p362, %s23, 1
      %s364 = smul.addr %s363, 8
      %s365 = smul.addr %s364, 8
      %s366 = scalar_lea.vmem %s0, %s365
      %p367 = scmp.lt.s32.totalorder %s23, 1
      %s368 = scalar_select %p367, %s23, 1
      %s369 = scalar_lea.vmem %s1, %s368
      %p370 = scmp.lt.s32.totalorder %s23, 1
      %s371 = scalar_select %p370, %s23, 1
      %s372 = scalar_lea.vmem %s2, %s371
      %s373 = smul.u32 8, %s24
      %p374 = scmp.lt.s32.totalorder %s23, 1
      %s375 = scalar_select %p374, %s23, 1
      %p376 = scmp.lt.s32.totalorder %s373, 7
      %s377 = scalar_select %p376, %s373, 7
      %s378 = smul.addr %s375, 8
      %s379 = sadd.s32 %s377, %s378
      %s380 = smul.addr %s379, 8
      %s381 = scalar_lea.vmem %s5, %s380
      %s382 = smul.u32 8, %s24
      %s383 = smul.u32 8, %s24
      %p384 = scmp.lt.s32.totalorder %s23, 1
      %s385 = scalar_select %p384, %s23, 1
      %p386 = scmp.lt.s32.totalorder %s383, 7
      %s387 = scalar_select %p386, %s383, 7
      %s388 = smul.addr %s385, 8
      %s389 = sadd.s32 %s387, %s388
      %s390 = smul.addr %s389, 8
      %s391 = scalar_lea.vmem %s8, %s390
      %s392 = smul.u32 8, %s24
      %p394 = scmp.eq.s32.totalorder %s24, 0
      // Predicated region
      $region53: #{down_block_forward.13} parent=51 // pred_check
        %p395 = pneg %p394
      $region54: #{down_block_forward.13} parent=51 // pred_check_branch
        %397 = sbr.rel (%p395) target = $region56
      $region55: #{down_block_forward.13} parent=51 // pred_region
        %398 = vst [vmem:[#allocation2] sm:$0xff] 0.0
        %399 = vst [vmem:[#allocation2 + $0x8] sm:$0x3] 0.0
        %400 = vst [vmem:[#allocation2 + $0x10] sm:$0xff] 0.0
        %401 = vst [vmem:[#allocation2 + $0x18] sm:$0x3] 0.0
        %402 = vst [vmem:[#allocation2 + $0x20] sm:$0xff] 0.0
        %403 = vst [vmem:[#allocation2 + $0x28] sm:$0x3] 0.0
        %404 = vst [vmem:[#allocation2 + $0x30] sm:$0xff] 0.0
        %405 = vst [vmem:[#allocation2 + $0x38] sm:$0x3] 0.0
        %406 = vst [vmem:[#allocation2 + $0x40] sm:$0xff] 0.0
        %407 = vst [vmem:[#allocation2 + $0x48] sm:$0x3] 0.0
        %408 = vst [vmem:[#allocation2 + $0x50] sm:$0xff] 0.0
        %409 = vst [vmem:[#allocation2 + $0x58] sm:$0x3] 0.0
        %410 = vst [vmem:[#allocation2 + $0x60] sm:$0xff] 0.0
        %411 = vst [vmem:[#allocation2 + $0x68] sm:$0x3] 0.0
        %412 = vst [vmem:[#allocation2 + $0x70] sm:$0xff] 0.0
        %413 = vst [vmem:[#allocation2 + $0x78] sm:$0x3] 0.0
        %414 = vst [vmem:[#allocation2 + $0x80] sm:$0xff] 0.0
        %415 = vst [vmem:[#allocation2 + $0x88] sm:$0x3] 0.0
        %416 = vst [vmem:[#allocation2 + $0x90] sm:$0xff] 0.0
        %417 = vst [vmem:[#allocation2 + $0x98] sm:$0x3] 0.0
        %v418 = vld [vmem:[%s366] sm:$0xff]
        %v419 = vld [vmem:[%s366 + $0x8] sm:$0xff]
        %v420 = vld [vmem:[%s366 + $0x10] sm:$0xff]
        %v421 = vld [vmem:[%s366 + $0x18] sm:$0xff]
        %v422 = vld [vmem:[%s366 + $0x20] sm:$0xff]
        %v423 = vld [vmem:[%s366 + $0x28] sm:$0xff]
        %v424 = vld [vmem:[%s366 + $0x30] sm:$0xff]
        %v425 = vld [vmem:[%s366 + $0x38] sm:$0xff]
        %v426 = vld [vmem:[%s369] sm:$0x1]
        %v428 = vlaneseq
        %v429 = vshrl.u32 %v428, 7
        %v430 = vsub.s32 0, %v429
        %v431 = vrot.slane %v426, %v430
        %v433 = vmul.f32 %v418, %v431
        %v434 = vmul.f32 %v419, %v431
        %v435 = vmul.f32 %v420, %v431
        %v436 = vmul.f32 %v421, %v431
        %v437 = vmul.f32 %v422, %v431
        %v438 = vmul.f32 %v423, %v431
        %v439 = vmul.f32 %v424, %v431
        %v440 = vmul.f32 %v425, %v431
        %v441 = vld [vmem:[%s372] sm:$0x1]
        %v443 = vlaneseq
        %v444 = vshrl.u32 %v443, 7
        %v445 = vsub.s32 0, %v444
        %v446 = vrot.slane %v441, %v445
        %v448 = vadd.f32 %v433, %v446
        %v449 = vadd.f32 %v434, %v446
        %v450 = vadd.f32 %v435, %v446
        %v451 = vadd.f32 %v436, %v446
        %v452 = vadd.f32 %v437, %v446
        %v453 = vadd.f32 %v438, %v446
        %v454 = vadd.f32 %v439, %v446
        %v455 = vadd.f32 %v440, %v446
        %v456 = vsub.f32 0.0, %v448
        %v457 = vsub.f32 0.0, %v449
        %v458 = vsub.f32 0.0, %v450
        %v459 = vsub.f32 0.0, %v451
        %v460 = vsub.f32 0.0, %v452
        %v461 = vsub.f32 0.0, %v453
        %v462 = vsub.f32 0.0, %v454
        %v463 = vsub.f32 0.0, %v455
        %v464 = vmul.f32 %v456, 1.442695
        %v465 = vpow.pop %v464
        %v466 = vmul.f32 %v457, 1.442695
        %v467 = vpow.pop %v466
        %v468 = vmul.f32 %v458, 1.442695
        %v469 = vpow.pop %v468
        %v470 = vmul.f32 %v459, 1.442695
        %v471 = vpow.pop %v470
        %v472 = vmul.f32 %v460, 1.442695
        %v473 = vpow.pop %v472
        %v474 = vmul.f32 %v461, 1.442695
        %v475 = vpow.pop %v474
        %v476 = vmul.f32 %v462, 1.442695
        %v477 = vpow.pop %v476
        %v478 = vmul.f32 %v463, 1.442695
        %v479 = vpow.pop %v478
        %v480 = vadd.f32 %v465, 1.0
        %v481 = vadd.f32 %v467, 1.0
        %v482 = vadd.f32 %v469, 1.0
        %v483 = vadd.f32 %v471, 1.0
        %v484 = vadd.f32 %v473, 1.0
        %v485 = vadd.f32 %v475, 1.0
        %v486 = vadd.f32 %v477, 1.0
        %v487 = vadd.f32 %v479, 1.0
        %v488 = vrcp.pop %v480
        %v489 = vmul.f32 %v448, %v488
        %v490 = vrcp.pop %v481
        %v491 = vmul.f32 %v449, %v490
        %v492 = vrcp.pop %v482
        %v493 = vmul.f32 %v450, %v492
        %v494 = vrcp.pop %v483
        %v495 = vmul.f32 %v451, %v494
        %v496 = vrcp.pop %v484
        %v497 = vmul.f32 %v452, %v496
        %v498 = vrcp.pop %v485
        %v499 = vmul.f32 %v453, %v498
        %v500 = vrcp.pop %v486
        %v501 = vmul.f32 %v454, %v500
        %v502 = vrcp.pop %v487
        %v503 = vmul.f32 %v455, %v502
        %s504 = scalar_lea.vmem [#allocation2], 16
        %505 = vst [vmem:[%s504 + $0x1] sm:$0xff] %v489
        %506 = vst [vmem:[%s504 + $0x11] sm:$0xff] %v491
        %507 = vst [vmem:[%s504 + $0x21] sm:$0xff] %v493
        %508 = vst [vmem:[%s504 + $0x31] sm:$0xff] %v495
        %509 = vst [vmem:[%s504 + $0x41] sm:$0xff] %v497
        %510 = vst [vmem:[%s504 + $0x51] sm:$0xff] %v499
        %511 = vst [vmem:[%s504 + $0x61] sm:$0xff] %v501
        %512 = vst [vmem:[%s504 + $0x71] sm:$0xff] %v503
      $region56: #{down_block_forward.13} parent=51 // pred_fallthru
        _
      %s513 = smul.u32 %s24, 8
      %s514 = smul.u32 %s513, 16
      %s515 = scalar_lea.vmem [#allocation2], %s514
      %v516 = vld [vmem:[%s515] sm:$0xff]
      %v517 = vld [vmem:[%s515 + $0x10] sm:$0xff]
      %v518 = vld [vmem:[%s515 + $0x20] sm:$0xff]
      %v519 = vld [vmem:[%s515 + $0x30] sm:$0xff]
      %v520 = vld [vmem:[%s515 + $0x40] sm:$0xff]
      %v521 = vld [vmem:[%s515 + $0x50] sm:$0xff]
      %v522 = vld [vmem:[%s515 + $0x60] sm:$0xff]
      %v523 = vld [vmem:[%s515 + $0x70] sm:$0xff]
      %v524 = vpack.c.bf16 %v517, %v516
      %v525 = vpack.c.bf16 %v519, %v518
      %v526 = vpack.c.bf16 %v521, %v520
      %v527 = vpack.c.bf16 %v523, %v522
      %528 = vst [vmem:[#allocation3] sm:$0xff] %v524
      %529 = vst [vmem:[#allocation3 + $0x48] sm:$0xff] %v525
      %530 = vst [vmem:[#allocation3 + $0x90] sm:$0xff] %v526
      %531 = vst [vmem:[#allocation3 + $0xd8] sm:$0xff] %v527
      %v532 = vld [vmem:[%s515 + $0x1] sm:$0xff]
      %v533 = vld [vmem:[%s515 + $0x11] sm:$0xff]
      %v534 = vld [vmem:[%s515 + $0x21] sm:$0xff]
      %v535 = vld [vmem:[%s515 + $0x31] sm:$0xff]
      %v536 = vld [vmem:[%s515 + $0x41] sm:$0xff]
      %v537 = vld [vmem:[%s515 + $0x51] sm:$0xff]
      %v538 = vld [vmem:[%s515 + $0x61] sm:$0xff]
      %v539 = vld [vmem:[%s515 + $0x71] sm:$0xff]
      %v540 = vpack.c.bf16 %v533, %v532
      %v541 = vpack.c.bf16 %v535, %v534
      %v542 = vpack.c.bf16 %v537, %v536
      %v543 = vpack.c.bf16 %v539, %v538
      %544 = vst [vmem:[#allocation3 + $0x8] sm:$0xff] %v540
      %545 = vst [vmem:[#allocation3 + $0x50] sm:$0xff] %v541
      %546 = vst [vmem:[#allocation3 + $0x98] sm:$0xff] %v542
      %547 = vst [vmem:[#allocation3 + $0xe0] sm:$0xff] %v543
      %v548 = vld [vmem:[%s515 + $0x2] sm:$0xff]
      %v549 = vld [vmem:[%s515 + $0x12] sm:$0xff]
      %v550 = vld [vmem:[%s515 + $0x22] sm:$0xff]
      %v551 = vld [vmem:[%s515 + $0x32] sm:$0xff]
      %v552 = vld [vmem:[%s515 + $0x42] sm:$0xff]
      %v553 = vld [vmem:[%s515 + $0x52] sm:$0xff]
      %v554 = vld [vmem:[%s515 + $0x62] sm:$0xff]
      %v555 = vld [vmem:[%s515 + $0x72] sm:$0xff]
      %v556 = vpack.c.bf16 %v549, %v548
      %v557 = vpack.c.bf16 %v551, %v550
      %v558 = vpack.c.bf16 %v553, %v552
      %v559 = vpack.c.bf16 %v555, %v554
      %560 = vst [vmem:[#allocation3 + $0x10] sm:$0xff] %v556
      %561 = vst [vmem:[#allocation3 + $0x58] sm:$0xff] %v557
      %562 = vst [vmem:[#allocation3 + $0xa0] sm:$0xff] %v558
      %563 = vst [vmem:[#allocation3 + $0xe8] sm:$0xff] %v559
      %s564 = sadd.s32 %s513, 1
      %s565 = smul.u32 %s564, 16
      %s566 = scalar_lea.vmem [#allocation2], %s565
      %v567 = vld [vmem:[%s566] sm:$0xff]
      %v568 = vld [vmem:[%s566 + $0x10] sm:$0xff]
      %v569 = vld [vmem:[%s566 + $0x20] sm:$0xff]
      %v570 = vld [vmem:[%s566 + $0x30] sm:$0xff]
      %v571 = vld [vmem:[%s566 + $0x40] sm:$0xff]
      %v572 = vld [vmem:[%s566 + $0x50] sm:$0xff]
      %v573 = vld [vmem:[%s566 + $0x60] sm:$0xff]
      %v574 = vld [vmem:[%s566 + $0x70] sm:$0xff]
      %v575 = vpack.c.bf16 %v568, %v567
      %v576 = vpack.c.bf16 %v570, %v569
      %v577 = vpack.c.bf16 %v572, %v571
      %v578 = vpack.c.bf16 %v574, %v573
      %579 = vst [vmem:[#allocation3 + $0x18] sm:$0xff] %v575
      %580 = vst [vmem:[#allocation3 + $0x60] sm:$0xff] %v576
      %581 = vst [vmem:[#allocation3 + $0xa8] sm:$0xff] %v577
      %582 = vst [vmem:[#allocation3 + $0xf0] sm:$0xff] %v578
      %v583 = vld [vmem:[%s566 + $0x1] sm:$0xff]
      %v584 = vld [vmem:[%s566 + $0x11] sm:$0xff]
      %v585 = vld [vmem:[%s566 + $0x21] sm:$0xff]
      %v586 = vld [vmem:[%s566 + $0x31] sm:$0xff]
      %v587 = vld [vmem:[%s566 + $0x41] sm:$0xff]
      %v588 = vld [vmem:[%s566 + $0x51] sm:$0xff]
      %v589 = vld [vmem:[%s566 + $0x61] sm:$0xff]
      %v590 = vld [vmem:[%s566 + $0x71] sm:$0xff]
      %v591 = vpack.c.bf16 %v584, %v583
      %v592 = vpack.c.bf16 %v586, %v585
      %v593 = vpack.c.bf16 %v588, %v587
      %v594 = vpack.c.bf16 %v590, %v589
      %595 = vst [vmem:[#allocation3 + $0x20] sm:$0xff] %v591
      %596 = vst [vmem:[#allocation3 + $0x68] sm:$0xff] %v592
      %597 = vst [vmem:[#allocation3 + $0xb0] sm:$0xff] %v593
      %598 = vst [vmem:[#allocation3 + $0xf8] sm:$0xff] %v594
      %v599 = vld [vmem:[%s566 + $0x2] sm:$0xff]
      %v600 = vld [vmem:[%s566 + $0x12] sm:$0xff]
      %v601 = vld [vmem:[%s566 + $0x22] sm:$0xff]
      %v602 = vld [vmem:[%s566 + $0x32] sm:$0xff]
      %v603 = vld [vmem:[%s566 + $0x42] sm:$0xff]
      %v604 = vld [vmem:[%s566 + $0x52] sm:$0xff]
      %v605 = vld [vmem:[%s566 + $0x62] sm:$0xff]
      %v606 = vld [vmem:[%s566 + $0x72] sm:$0xff]
      %v607 = vpack.c.bf16 %v600, %v599
      %v608 = vpack.c.bf16 %v602, %v601
      %v609 = vpack.c.bf16 %v604, %v603
      %v610 = vpack.c.bf16 %v606, %v605
      %611 = vst [vmem:[#allocation3 + $0x28] sm:$0xff] %v607
      %612 = vst [vmem:[#allocation3 + $0x70] sm:$0xff] %v608
      %613 = vst [vmem:[#allocation3 + $0xb8] sm:$0xff] %v609
      %614 = vst [vmem:[#allocation3 + $0x100] sm:$0xff] %v610
      %s615 = sadd.s32 %s513, 2
      %s616 = smul.u32 %s615, 16
      %s617 = scalar_lea.vmem [#allocation2], %s616
      %v618 = vld [vmem:[%s617] sm:$0xff]
      %v619 = vld [vmem:[%s617 + $0x10] sm:$0xff]
      %v620 = vld [vmem:[%s617 + $0x20] sm:$0xff]
      %v621 = vld [vmem:[%s617 + $0x30] sm:$0xff]
      %v622 = vld [vmem:[%s617 + $0x40] sm:$0xff]
      %v623 = vld [vmem:[%s617 + $0x50] sm:$0xff]
      %v624 = vld [vmem:[%s617 + $0x60] sm:$0xff]
      %v625 = vld [vmem:[%s617 + $0x70] sm:$0xff]
      %v626 = vpack.c.bf16 %v619, %v618
      %v627 = vpack.c.bf16 %v621, %v620
      %v628 = vpack.c.bf16 %v623, %v622
      %v629 = vpack.c.bf16 %v625, %v624
      %630 = vst [vmem:[#allocation3 + $0x30] sm:$0xff] %v626
      %631 = vst [vmem:[#allocation3 + $0x78] sm:$0xff] %v627
      %632 = vst [vmem:[#allocation3 + $0xc0] sm:$0xff] %v628
      %633 = vst [vmem:[#allocation3 + $0x108] sm:$0xff] %v629
      %v634 = vld [vmem:[%s617 + $0x1] sm:$0xff]
      %v635 = vld [vmem:[%s617 + $0x11] sm:$0xff]
      %v636 = vld [vmem:[%s617 + $0x21] sm:$0xff]
      %v637 = vld [vmem:[%s617 + $0x31] sm:$0xff]
      %v638 = vld [vmem:[%s617 + $0x41] sm:$0xff]
      %v639 = vld [vmem:[%s617 + $0x51] sm:$0xff]
      %v640 = vld [vmem:[%s617 + $0x61] sm:$0xff]
      %v641 = vld [vmem:[%s617 + $0x71] sm:$0xff]
      %v642 = vpack.c.bf16 %v635, %v634
      %v643 = vpack.c.bf16 %v637, %v636
      %v644 = vpack.c.bf16 %v639, %v638
      %v645 = vpack.c.bf16 %v641, %v640
      %646 = vst [vmem:[#allocation3 + $0x38] sm:$0xff] %v642
      %647 = vst [vmem:[#allocation3 + $0x80] sm:$0xff] %v643
      %648 = vst [vmem:[#allocation3 + $0xc8] sm:$0xff] %v644
      %649 = vst [vmem:[#allocation3 + $0x110] sm:$0xff] %v645
      %v650 = vld [vmem:[%s617 + $0x2] sm:$0xff]
      %v651 = vld [vmem:[%s617 + $0x12] sm:$0xff]
      %v652 = vld [vmem:[%s617 + $0x22] sm:$0xff]
      %v653 = vld [vmem:[%s617 + $0x32] sm:$0xff]
      %v654 = vld [vmem:[%s617 + $0x42] sm:$0xff]
      %v655 = vld [vmem:[%s617 + $0x52] sm:$0xff]
      %v656 = vld [vmem:[%s617 + $0x62] sm:$0xff]
      %v657 = vld [vmem:[%s617 + $0x72] sm:$0xff]
      %v658 = vpack.c.bf16 %v651, %v650
      %v659 = vpack.c.bf16 %v653, %v652
      %v660 = vpack.c.bf16 %v655, %v654
      %v661 = vpack.c.bf16 %v657, %v656
      %662 = vst [vmem:[#allocation3 + $0x40] sm:$0xff] %v658
      %663 = vst [vmem:[#allocation3 + $0x88] sm:$0xff] %v659
      %664 = vst [vmem:[#allocation3 + $0xd0] sm:$0xff] %v660
      %665 = vst [vmem:[#allocation3 + $0x118] sm:$0xff] %v661
      %v666 = vld [vmem:[#allocation3] sm:$0xff]
      %v667 = vld [vmem:[#allocation3 + $0x8] sm:$0xff]
      %v668 = vld [vmem:[#allocation3 + $0x10] sm:$0xff]
      %v669 = vld [vmem:[#allocation3 + $0x18] sm:$0xff]
      %v670 = vld [vmem:[#allocation3 + $0x20] sm:$0xff]
      %v671 = vld [vmem:[#allocation3 + $0x28] sm:$0xff]
      %v672 = vld [vmem:[#allocation3 + $0x30] sm:$0xff]
      %v673 = vld [vmem:[#allocation3 + $0x38] sm:$0xff]
      %v674 = vld [vmem:[#allocation3 + $0x40] sm:$0xff]
      %v675 = vld [vmem:[#allocation3 + $0x48] sm:$0xff]
      %v676 = vld [vmem:[#allocation3 + $0x50] sm:$0xff]
      %v677 = vld [vmem:[#allocation3 + $0x58] sm:$0xff]
      %v678 = vld [vmem:[#allocation3 + $0x60] sm:$0xff]
      %v679 = vld [vmem:[#allocation3 + $0x68] sm:$0xff]
      %v680 = vld [vmem:[#allocation3 + $0x70] sm:$0xff]
      %v681 = vld [vmem:[#allocation3 + $0x78] sm:$0xff]
      %v682 = vld [vmem:[#allocation3 + $0x80] sm:$0xff]
      %v683 = vld [vmem:[#allocation3 + $0x88] sm:$0xff]
      %v684 = vld [vmem:[#allocation3 + $0x90] sm:$0xff]
      %v685 = vld [vmem:[#allocation3 + $0x98] sm:$0xff]
      %v686 = vld [vmem:[#allocation3 + $0xa0] sm:$0xff]
      %v687 = vld [vmem:[#allocation3 + $0xa8] sm:$0xff]
      %v688 = vld [vmem:[#allocation3 + $0xb0] sm:$0xff]
      %v689 = vld [vmem:[#allocation3 + $0xb8] sm:$0xff]
      %v690 = vld [vmem:[#allocation3 + $0xc0] sm:$0xff]
      %v691 = vld [vmem:[#allocation3 + $0xc8] sm:$0xff]
      %v692 = vld [vmem:[#allocation3 + $0xd0] sm:$0xff]
      %v693 = vld [vmem:[#allocation3 + $0xd8] sm:$0xff]
      %v694 = vld [vmem:[#allocation3 + $0xe0] sm:$0xff]
      %v695 = vld [vmem:[#allocation3 + $0xe8] sm:$0xff]
      %v696 = vld [vmem:[#allocation3 + $0xf0] sm:$0xff]
      %v697 = vld [vmem:[#allocation3 + $0xf8] sm:$0xff]
      %v698 = vld [vmem:[#allocation3 + $0x100] sm:$0xff]
      %v699 = vld [vmem:[#allocation3 + $0x108] sm:$0xff]
      %v700 = vld [vmem:[#allocation3 + $0x110] sm:$0xff]
      %v701 = vld [vmem:[#allocation3 + $0x118] sm:$0xff]
      %v702 = vld [vmem:[%s3] sm:$0xf]
      %v703 = vld [vmem:[%s3 + $0x4] sm:$0xf]
      %v704 = vld [vmem:[%s3 + $0x8] sm:$0xf]
      %v705 = vld [vmem:[%s3 + $0xc] sm:$0xf]
      %v706 = vld [vmem:[%s3 + $0x10] sm:$0xf]
      %v707 = vld [vmem:[%s3 + $0x14] sm:$0xf]
      %v708 = vld [vmem:[%s3 + $0x18] sm:$0xf]
      %v709 = vld [vmem:[%s3 + $0x1c] sm:$0xf]
      %v710 = vld [vmem:[%s3 + $0x20] sm:$0xf]
      %v711 = vld [vmem:[%s3 + $0x24] sm:$0xf]
      %v712 = vld [vmem:[%s3 + $0x28] sm:$0xf]
      %v713 = vld [vmem:[%s3 + $0x2c] sm:$0xf]
      %v714 = vld [vmem:[%s3 + $0x30] sm:$0xf]
      %v715 = vld [vmem:[%s3 + $0x34] sm:$0xf]
      %v716 = vld [vmem:[%s3 + $0x38] sm:$0xf]
      %v717 = vld [vmem:[%s3 + $0x3c] sm:$0xf]
      %v718 = vld [vmem:[%s3 + $0x40] sm:$0xf]
      %v719 = vld [vmem:[%s3 + $0x44] sm:$0xf]
      %v720 = vld [vmem:[%s3 + $0x48] sm:$0xf]
      %v721 = vld [vmem:[%s3 + $0x4c] sm:$0xf]
      %v722 = vld [vmem:[%s3 + $0x50] sm:$0xf]
      %v723 = vld [vmem:[%s3 + $0x54] sm:$0xf]
      %v724 = vld [vmem:[%s3 + $0x58] sm:$0xf]
      %v725 = vld [vmem:[%s3 + $0x5c] sm:$0xf]
      %v726 = vld [vmem:[%s3 + $0x60] sm:$0xf]
      %v727 = vld [vmem:[%s3 + $0x64] sm:$0xf]
      %v728 = vld [vmem:[%s3 + $0x68] sm:$0xf]
      %v729 = vld [vmem:[%s3 + $0x6c] sm:$0xf]
      %v730 = vld [vmem:[%s3 + $0x70] sm:$0xf]
      %v731 = vld [vmem:[%s3 + $0x74] sm:$0xf]
      %v732 = vld [vmem:[%s3 + $0x78] sm:$0xf]
      %v733 = vld [vmem:[%s3 + $0x7c] sm:$0xf]
      %v734 = vld [vmem:[%s3 + $0x80] sm:$0xf]
      %v735 = vld [vmem:[%s3 + $0x84] sm:$0xf]
      %v736 = vld [vmem:[%s3 + $0x88] sm:$0xf]
      %v737 = vld [vmem:[%s3 + $0x8c] sm:$0xf]
      %v738 = vld [vmem:[%s3 + $0x90] sm:$0xf]
      %v739 = vld [vmem:[%s3 + $0x94] sm:$0xf]
      %v740 = vld [vmem:[%s3 + $0x98] sm:$0xf]
      %v741 = vld [vmem:[%s3 + $0x9c] sm:$0xf]
      %v742 = vld [vmem:[%s3 + $0xa0] sm:$0xf]
      %v743 = vld [vmem:[%s3 + $0xa4] sm:$0xf]
      %v744 = vld [vmem:[%s3 + $0xa8] sm:$0xf]
      %v745 = vld [vmem:[%s3 + $0xac] sm:$0xf]
      %v746 = vld [vmem:[%s3 + $0xb0] sm:$0xf]
      %v747 = vld [vmem:[%s3 + $0xb4] sm:$0xf]
      %v748 = vld [vmem:[%s3 + $0xb8] sm:$0xf]
      %v749 = vld [vmem:[%s3 + $0xbc] sm:$0xf]
      %v750 = vld [vmem:[%s3 + $0xc0] sm:$0xf]
      %v751 = vld [vmem:[%s3 + $0xc4] sm:$0xf]
      %v752 = vld [vmem:[%s3 + $0xc8] sm:$0xf]
      %v753 = vld [vmem:[%s3 + $0xcc] sm:$0xf]
      %v754 = vld [vmem:[%s3 + $0xd0] sm:$0xf]
      %v755 = vld [vmem:[%s3 + $0xd4] sm:$0xf]
      %v756 = vld [vmem:[%s3 + $0xd8] sm:$0xf]
      %v757 = vld [vmem:[%s3 + $0xdc] sm:$0xf]
      %v758 = vld [vmem:[%s3 + $0xe0] sm:$0xf]
      %v759 = vld [vmem:[%s3 + $0xe4] sm:$0xf]
      %v760 = vld [vmem:[%s3 + $0xe8] sm:$0xf]
      %v761 = vld [vmem:[%s3 + $0xec] sm:$0xf]
      %v762 = vld [vmem:[%s3 + $0xf0] sm:$0xf]
      %v763 = vld [vmem:[%s3 + $0xf4] sm:$0xf]
      %v764 = vld [vmem:[%s3 + $0xf8] sm:$0xf]
      %v765 = vld [vmem:[%s3 + $0xfc] sm:$0xf]
      %v766 = vld [vmem:[%s3 + $0x100] sm:$0xf]
      %v767 = vld [vmem:[%s3 + $0x104] sm:$0xf]
      %v768 = vld [vmem:[%s3 + $0x108] sm:$0xf]
      %v769 = vld [vmem:[%s3 + $0x10c] sm:$0xf]
      %v770 = vld [vmem:[%s3 + $0x110] sm:$0xf]
      %v771 = vld [vmem:[%s3 + $0x114] sm:$0xf]
      %v772 = vld [vmem:[%s3 + $0x118] sm:$0xf]
      %v773 = vld [vmem:[%s3 + $0x11c] sm:$0xf]
      %v774 = vld [vmem:[%s3 + $0x120] sm:$0xf]
      %v775 = vld [vmem:[%s3 + $0x124] sm:$0xf]
      %v776 = vld [vmem:[%s3 + $0x128] sm:$0xf]
      %v777 = vld [vmem:[%s3 + $0x12c] sm:$0xf]
      %v778 = vld [vmem:[%s3 + $0x130] sm:$0xf]
      %v779 = vld [vmem:[%s3 + $0x134] sm:$0xf]
      %v780 = vld [vmem:[%s3 + $0x138] sm:$0xf]
      %v781 = vld [vmem:[%s3 + $0x13c] sm:$0xf]
      %v782 = vld [vmem:[%s3 + $0x140] sm:$0xf]
      %v783 = vld [vmem:[%s3 + $0x144] sm:$0xf]
      %v784 = vld [vmem:[%s3 + $0x148] sm:$0xf]
      %v785 = vld [vmem:[%s3 + $0x14c] sm:$0xf]
      %v786 = vld [vmem:[%s3 + $0x150] sm:$0xf]
      %v787 = vld [vmem:[%s3 + $0x154] sm:$0xf]
      %v788 = vld [vmem:[%s3 + $0x158] sm:$0xf]
      %v789 = vld [vmem:[%s3 + $0x15c] sm:$0xf]
      %v790 = vld [vmem:[%s3 + $0x160] sm:$0xf]
      %v791 = vld [vmem:[%s3 + $0x164] sm:$0xf]
      %v792 = vld [vmem:[%s3 + $0x168] sm:$0xf]
      %v793 = vld [vmem:[%s3 + $0x16c] sm:$0xf]
      %v794 = vld [vmem:[%s3 + $0x170] sm:$0xf]
      %v795 = vld [vmem:[%s3 + $0x174] sm:$0xf]
      %v796 = vld [vmem:[%s3 + $0x178] sm:$0xf]
      %v797 = vld [vmem:[%s3 + $0x17c] sm:$0xf]
      %v798 = vld [vmem:[%s3 + $0x180] sm:$0xf]
      %v799 = vld [vmem:[%s3 + $0x184] sm:$0xf]
      %v800 = vld [vmem:[%s3 + $0x188] sm:$0xf]
      %v801 = vld [vmem:[%s3 + $0x18c] sm:$0xf]
      %v802 = vld [vmem:[%s3 + $0x190] sm:$0xf]
      %v803 = vld [vmem:[%s3 + $0x194] sm:$0xf]
      %v804 = vld [vmem:[%s3 + $0x198] sm:$0xf]
      %v805 = vld [vmem:[%s3 + $0x19c] sm:$0xf]
      %v806 = vld [vmem:[%s3 + $0x1a0] sm:$0xf]
      %v807 = vld [vmem:[%s3 + $0x1a4] sm:$0xf]
      %v808 = vld [vmem:[%s3 + $0x1a8] sm:$0xf]
      %v809 = vld [vmem:[%s3 + $0x1ac] sm:$0xf]
      %v810 = vld [vmem:[%s3 + $0x1b0] sm:$0xf]
      %v811 = vld [vmem:[%s3 + $0x1b4] sm:$0xf]
      %v812 = vld [vmem:[%s3 + $0x1b8] sm:$0xf]
      %v813 = vld [vmem:[%s3 + $0x1bc] sm:$0xf]
      %v814 = vld [vmem:[%s3 + $0x1c0] sm:$0xf]
      %v815 = vld [vmem:[%s3 + $0x1c4] sm:$0xf]
      %v816 = vld [vmem:[%s3 + $0x1c8] sm:$0xf]
      %v817 = vld [vmem:[%s3 + $0x1cc] sm:$0xf]
      %v818 = vld [vmem:[%s3 + $0x1d0] sm:$0xf]
      %v819 = vld [vmem:[%s3 + $0x1d4] sm:$0xf]
      %v820 = vld [vmem:[%s3 + $0x1d8] sm:$0xf]
      %v821 = vld [vmem:[%s3 + $0x1dc] sm:$0xf]
      %v822 = vld [vmem:[%s3 + $0x1e0] sm:$0xf]
      %v823 = vld [vmem:[%s3 + $0x1e4] sm:$0xf]
      %v824 = vld [vmem:[%s3 + $0x1e8] sm:$0xf]
      %v825 = vld [vmem:[%s3 + $0x1ec] sm:$0xf]
      %v826 = vld [vmem:[%s3 + $0x1f0] sm:$0xf]
      %v827 = vld [vmem:[%s3 + $0x1f4] sm:$0xf]
      %v828 = vld [vmem:[%s3 + $0x1f8] sm:$0xf]
      %v829 = vld [vmem:[%s3 + $0x1fc] sm:$0xf]
      %v830 = vld [vmem:[%s3 + $0x200] sm:$0xf]
      %v831 = vld [vmem:[%s3 + $0x204] sm:$0xf]
      %v832 = vld [vmem:[%s3 + $0x208] sm:$0xf]
      %v833 = vld [vmem:[%s3 + $0x20c] sm:$0xf]
      %v834 = vld [vmem:[%s3 + $0x210] sm:$0xf]
      %v835 = vld [vmem:[%s3 + $0x214] sm:$0xf]
      %v836 = vld [vmem:[%s3 + $0x218] sm:$0xf]
      %v837 = vld [vmem:[%s3 + $0x21c] sm:$0xf]
      %v838 = vld [vmem:[%s3 + $0x220] sm:$0xf]
      %v839 = vld [vmem:[%s3 + $0x224] sm:$0xf]
      %v840 = vld [vmem:[%s3 + $0x228] sm:$0xf]
      %v841 = vld [vmem:[%s3 + $0x22c] sm:$0xf]
      %v842 = vld [vmem:[%s3 + $0x230] sm:$0xf]
      %v843 = vld [vmem:[%s3 + $0x234] sm:$0xf]
      %v844 = vld [vmem:[%s3 + $0x238] sm:$0xf]
      %v845 = vld [vmem:[%s3 + $0x23c] sm:$0xf]
      %v846 = vld [vmem:[%s4] sm:$0x1]
      %v848 = vlaneseq
      %v849 = vshrl.u32 %v848, 7
      %v850 = vsub.s32 0, %v849
      %v851 = vrot.slane %v846, %v850
      %v997 = vunpack.c.l.b16 %v702
      %v998 = vunpack.c.l.b16 %v703
      %v999 = vunpack.c.l.b16 %v704
      %v1000 = vunpack.c.l.b16 %v705
      %v1001 = vunpack.c.l.b16 %v706
      %v1002 = vunpack.c.l.b16 %v707
      %v1003 = vunpack.c.l.b16 %v708
      %v1004 = vunpack.c.l.b16 %v709
      %v1005 = vunpack.c.l.b16 %v710
      %v1006 = vunpack.c.l.b16 %v711
      %v1007 = vunpack.c.l.b16 %v712
      %v1008 = vunpack.c.l.b16 %v713
      %v1009 = vunpack.c.l.b16 %v714
      %v1010 = vunpack.c.l.b16 %v715
      %v1011 = vunpack.c.l.b16 %v716
      %v1012 = vunpack.c.l.b16 %v717
      %v1013 = vunpack.c.l.b16 %v718
      %v1014 = vunpack.c.l.b16 %v719
      %v1015 = vunpack.c.l.b16 %v720
      %v1016 = vunpack.c.l.b16 %v721
      %v1017 = vunpack.c.l.b16 %v722
      %v1018 = vunpack.c.l.b16 %v723
      %v1019 = vunpack.c.l.b16 %v724
      %v1020 = vunpack.c.l.b16 %v725
      %v1021 = vunpack.c.l.b16 %v726
      %v1022 = vunpack.c.l.b16 %v727
      %v1023 = vunpack.c.l.b16 %v728
      %v1024 = vunpack.c.l.b16 %v729
      %v1025 = vunpack.c.l.b16 %v730
      %v1026 = vunpack.c.l.b16 %v731
      %v1027 = vunpack.c.l.b16 %v732
      %v1028 = vunpack.c.l.b16 %v733
      %v1029 = vunpack.c.l.b16 %v734
      %v1030 = vunpack.c.l.b16 %v735
      %v1031 = vunpack.c.l.b16 %v736
      %v1032 = vunpack.c.l.b16 %v737
      %v1033 = vunpack.c.l.b16 %v738
      %v1034 = vunpack.c.l.b16 %v739
      %v1035 = vunpack.c.l.b16 %v740
      %v1036 = vunpack.c.l.b16 %v741
      %v1037 = vunpack.c.l.b16 %v742
      %v1038 = vunpack.c.l.b16 %v743
      %v1039 = vunpack.c.l.b16 %v744
      %v1040 = vunpack.c.l.b16 %v745
      %v1041 = vunpack.c.l.b16 %v746
      %v1042 = vunpack.c.l.b16 %v747
      %v1043 = vunpack.c.l.b16 %v748
      %v1044 = vunpack.c.l.b16 %v749
      %v1045 = vunpack.c.l.b16 %v750
      %v1046 = vunpack.c.l.b16 %v751
      %v1047 = vunpack.c.l.b16 %v752
      %v1048 = vunpack.c.l.b16 %v753
      %v1049 = vunpack.c.l.b16 %v754
      %v1050 = vunpack.c.l.b16 %v755
      %v1051 = vunpack.c.l.b16 %v756
      %v1052 = vunpack.c.l.b16 %v757
      %v1053 = vunpack.c.l.b16 %v758
      %v1054 = vunpack.c.l.b16 %v759
      %v1055 = vunpack.c.l.b16 %v760
      %v1056 = vunpack.c.l.b16 %v761
      %v1057 = vunpack.c.l.b16 %v762
      %v1058 = vunpack.c.l.b16 %v763
      %v1059 = vunpack.c.l.b16 %v764
      %v1060 = vunpack.c.l.b16 %v765
      %v1061 = vunpack.c.l.b16 %v766
      %v1062 = vunpack.c.l.b16 %v767
      %v1063 = vunpack.c.l.b16 %v768
      %v1064 = vunpack.c.l.b16 %v769
      %v1065 = vunpack.c.l.b16 %v770
      %v1066 = vunpack.c.l.b16 %v771
      %v1067 = vunpack.c.l.b16 %v772
      %v1068 = vunpack.c.l.b16 %v773
      %v1069 = vunpack.c.l.b16 %v774
      %v1070 = vunpack.c.l.b16 %v775
      %v1071 = vunpack.c.l.b16 %v776
      %v1072 = vunpack.c.l.b16 %v777
      %v1073 = vunpack.c.l.b16 %v778
      %v1074 = vunpack.c.l.b16 %v779
      %v1075 = vunpack.c.l.b16 %v780
      %v1076 = vunpack.c.l.b16 %v781
      %v1077 = vunpack.c.l.b16 %v782
      %v1078 = vunpack.c.l.b16 %v783
      %v1079 = vunpack.c.l.b16 %v784
      %v1080 = vunpack.c.l.b16 %v785
      %v1081 = vunpack.c.l.b16 %v786
      %v1082 = vunpack.c.l.b16 %v787
      %v1083 = vunpack.c.l.b16 %v788
      %v1084 = vunpack.c.l.b16 %v789
      %v1085 = vunpack.c.l.b16 %v790
      %v1086 = vunpack.c.l.b16 %v791
      %v1087 = vunpack.c.l.b16 %v792
      %v1088 = vunpack.c.l.b16 %v793
      %v1089 = vunpack.c.l.b16 %v794
      %v1090 = vunpack.c.l.b16 %v795
      %v1091 = vunpack.c.l.b16 %v796
      %v1092 = vunpack.c.l.b16 %v797
      %v1093 = vunpack.c.l.b16 %v798
      %v1094 = vunpack.c.l.b16 %v799
      %v1095 = vunpack.c.l.b16 %v800
      %v1096 = vunpack.c.l.b16 %v801
      %v1097 = vunpack.c.l.b16 %v802
      %v1098 = vunpack.c.l.b16 %v803
      %v1099 = vunpack.c.l.b16 %v804
      %v1100 = vunpack.c.l.b16 %v805
      %v1101 = vunpack.c.l.b16 %v806
      %v1102 = vunpack.c.l.b16 %v807
      %v1103 = vunpack.c.l.b16 %v808
      %v1104 = vunpack.c.l.b16 %v809
      %v1105 = vunpack.c.l.b16 %v810
      %v1106 = vunpack.c.l.b16 %v811
      %v1107 = vunpack.c.l.b16 %v812
      %v1108 = vunpack.c.l.b16 %v813
      %v1109 = vunpack.c.l.b16 %v814
      %v1110 = vunpack.c.l.b16 %v815
      %v1111 = vunpack.c.l.b16 %v816
      %v1112 = vunpack.c.l.b16 %v817
      %v1113 = vunpack.c.l.b16 %v818
      %v1114 = vunpack.c.l.b16 %v819
      %v1115 = vunpack.c.l.b16 %v820
      %v1116 = vunpack.c.l.b16 %v821
      %v1117 = vunpack.c.l.b16 %v822
      %v1118 = vunpack.c.l.b16 %v823
      %v1119 = vunpack.c.l.b16 %v824
      %v1120 = vunpack.c.l.b16 %v825
      %v1121 = vunpack.c.l.b16 %v826
      %v1122 = vunpack.c.l.b16 %v827
      %v1123 = vunpack.c.l.b16 %v828
      %v1124 = vunpack.c.l.b16 %v829
      %v1125 = vunpack.c.l.b16 %v830
      %v1126 = vunpack.c.l.b16 %v831
      %v1127 = vunpack.c.l.b16 %v832
      %v1128 = vunpack.c.l.b16 %v833
      %v1129 = vunpack.c.l.b16 %v834
      %v1130 = vunpack.c.l.b16 %v835
      %v1131 = vunpack.c.l.b16 %v836
      %v1132 = vunpack.c.l.b16 %v837
      %v1133 = vunpack.c.l.b16 %v838
      %v1134 = vunpack.c.l.b16 %v839
      %v1135 = vunpack.c.l.b16 %v840
      %v1136 = vunpack.c.l.b16 %v841
      %v1137 = vunpack.c.l.b16 %v842
      %v1138 = vunpack.c.l.b16 %v843
      %v1139 = vunpack.c.l.b16 %v844
      %v1140 = vunpack.c.l.b16 %v845
      %v1141 = vpack.c.b16 %v998, %v997
      %v1142 = vpack.c.b16 %v1000, %v999
      %v1143 = vpack.c.b16 %v1002, %v1001
      %v1144 = vpack.c.b16 %v1004, %v1003
      %v1145 = vpack.c.b16 %v1006, %v1005
      %v1146 = vpack.c.b16 %v1008, %v1007
      %v1147 = vpack.c.b16 %v1010, %v1009
      %v1148 = vpack.c.b16 %v1012, %v1011
      %v1149 = vpack.c.b16 %v1014, %v1013
      %v1150 = vpack.c.b16 %v1016, %v1015
      %v1151 = vpack.c.b16 %v1018, %v1017
      %v1152 = vpack.c.b16 %v1020, %v1019
      %v1153 = vpack.c.b16 %v1022, %v1021
      %v1154 = vpack.c.b16 %v1024, %v1023
      %v1155 = vpack.c.b16 %v1026, %v1025
      %v1156 = vpack.c.b16 %v1028, %v1027
      %v1157 = vpack.c.b16 %v1030, %v1029
      %v1158 = vpack.c.b16 %v1032, %v1031
      %v1159 = vpack.c.b16 %v1034, %v1033
      %v1160 = vpack.c.b16 %v1036, %v1035
      %v1161 = vpack.c.b16 %v1038, %v1037
      %v1162 = vpack.c.b16 %v1040, %v1039
      %v1163 = vpack.c.b16 %v1042, %v1041
      %v1164 = vpack.c.b16 %v1044, %v1043
      %v1165 = vpack.c.b16 %v1046, %v1045
      %v1166 = vpack.c.b16 %v1048, %v1047
      %v1167 = vpack.c.b16 %v1050, %v1049
      %v1168 = vpack.c.b16 %v1052, %v1051
      %v1169 = vpack.c.b16 %v1054, %v1053
      %v1170 = vpack.c.b16 %v1056, %v1055
      %v1171 = vpack.c.b16 %v1058, %v1057
      %v1172 = vpack.c.b16 %v1060, %v1059
      %v1173 = vpack.c.b16 %v1062, %v1061
      %v1174 = vpack.c.b16 %v1064, %v1063
      %v1175 = vpack.c.b16 %v1066, %v1065
      %v1176 = vpack.c.b16 %v1068, %v1067
      %v1177 = vpack.c.b16 %v1070, %v1069
      %v1178 = vpack.c.b16 %v1072, %v1071
      %v1179 = vpack.c.b16 %v1074, %v1073
      %v1180 = vpack.c.b16 %v1076, %v1075
      %v1181 = vpack.c.b16 %v1078, %v1077
      %v1182 = vpack.c.b16 %v1080, %v1079
      %v1183 = vpack.c.b16 %v1082, %v1081
      %v1184 = vpack.c.b16 %v1084, %v1083
      %v1185 = vpack.c.b16 %v1086, %v1085
      %v1186 = vpack.c.b16 %v1088, %v1087
      %v1187 = vpack.c.b16 %v1090, %v1089
      %v1188 = vpack.c.b16 %v1092, %v1091
      %v1189 = vpack.c.b16 %v1094, %v1093
      %v1190 = vpack.c.b16 %v1096, %v1095
      %v1191 = vpack.c.b16 %v1098, %v1097
      %v1192 = vpack.c.b16 %v1100, %v1099
      %v1193 = vpack.c.b16 %v1102, %v1101
      %v1194 = vpack.c.b16 %v1104, %v1103
      %v1195 = vpack.c.b16 %v1106, %v1105
      %v1196 = vpack.c.b16 %v1108, %v1107
      %v1197 = vpack.c.b16 %v1110, %v1109
      %v1198 = vpack.c.b16 %v1112, %v1111
      %v1199 = vpack.c.b16 %v1114, %v1113
      %v1200 = vpack.c.b16 %v1116, %v1115
      %v1201 = vpack.c.b16 %v1118, %v1117
      %v1202 = vpack.c.b16 %v1120, %v1119
      %v1203 = vpack.c.b16 %v1122, %v1121
      %v1204 = vpack.c.b16 %v1124, %v1123
      %v1205 = vpack.c.b16 %v1126, %v1125
      %v1206 = vpack.c.b16 %v1128, %v1127
      %v1207 = vpack.c.b16 %v1130, %v1129
      %v1208 = vpack.c.b16 %v1132, %v1131
      %v1209 = vpack.c.b16 %v1134, %v1133
      %v1210 = vpack.c.b16 %v1136, %v1135
      %v1211 = vpack.c.b16 %v1138, %v1137
      %v1212 = vpack.c.b16 %v1140, %v1139
      %1285 = vmatprep.subr.bf16.mxu0 0
      %1286 = vmatpush1.bf16.msra.mxu0 %v1141
      %1287 = vmatprep.subr.bf16.mxu0 0
      %1288 = vmatpush1.bf16.msra.mxu0 %v1142
      %1289 = vmatprep.subr.bf16.mxu0 0
      %1290 = vmatpush1.bf16.msra.mxu0 %v1143
      %1291 = vmatprep.subr.bf16.mxu0 0
      %1292 = vmatpush1.bf16.msra.mxu0 %v1144
      %1293 = vmatprep.subr.bf16.mxu0 0
      %1294 = vmatpush1.bf16.msra.mxu0 %v1145
      %1295 = vmatprep.subr.bf16.mxu0 0
      %1296 = vmatpush1.bf16.msra.mxu0 %v1146
      %1297 = vmatprep.subr.bf16.mxu0 0
      %1298 = vmatpush1.bf16.msra.mxu0 %v1147
      %1299 = vmatprep.subr.bf16.mxu0 0
      %1300 = vmatpush1.bf16.msra.mxu0 %v1148
      %1301 = vmatprep.subr.bf16.mxu0 0
      %1302 = vmatpush1.bf16.msra.mxu0 %v1149
      %1303 = vmatprep.subr.bf16.mxu0 0
      %1304 = vmatpush1.bf16.msra.mxu0 %v1150
      %1305 = vmatprep.subr.bf16.mxu0 0
      %1306 = vmatpush1.bf16.msra.mxu0 %v1151
      %1307 = vmatprep.subr.bf16.mxu0 0
      %1308 = vmatpush1.bf16.msra.mxu0 %v1152
      %1309 = vmatprep.subr.bf16.mxu0 0
      %1310 = vmatpush1.bf16.msra.mxu0 %v1153
      %1311 = vmatprep.subr.bf16.mxu0 0
      %1312 = vmatpush1.bf16.msra.mxu0 %v1154
      %1313 = vmatprep.subr.bf16.mxu0 0
      %1314 = vmatpush1.bf16.msra.mxu0 %v1155
      %1315 = vmatprep.subr.bf16.mxu0 0
      %1316 = vmatpush1.bf16.msra.mxu0 %v1156
      %1317 = vmatprep.mubr.bf16.mxu0 %v667
      %1318 = vmatmul.mubr.bf16.gmra.mrb[0].mxu0 %v666
      %v1319 = vpop.f32.mrb[0].mxu0
      %v1320 = vadd.f32 %v851, %v1319
      %v1321 = vpop.f32.mrb[0].mxu0
      %v1322 = vpop.f32.mrb[0].mxu0
      %v1323 = vadd.f32 %v851, %v1322
      %v1324 = vpop.f32.mrb[0].mxu0
      %1325 = vmatprep.mubr.bf16.mxu0 %v676
      %1326 = vmatmul.mubr.bf16.gmra.mrb[0].mxu0 %v675
      %v1327 = vpop.f32.mrb[0].mxu0
      %v1328 = vadd.f32 %v851, %v1327
      %v1329 = vpop.f32.mrb[0].mxu0
      %v1330 = vpop.f32.mrb[0].mxu0
      %v1331 = vadd.f32 %v851, %v1330
      %v1332 = vpop.f32.mrb[0].mxu0
      %1333 = vmatprep.mubr.bf16.mxu0 %v685
      %1334 = vmatmul.mubr.bf16.gmra.mrb[0].mxu0 %v684
      %v1335 = vpop.f32.mrb[0].mxu0
      %v1336 = vadd.f32 %v851, %v1335
      %v1337 = vpop.f32.mrb[0].mxu0
      %v1338 = vpop.f32.mrb[0].mxu0
      %v1339 = vadd.f32 %v851, %v1338
      %v1340 = vpop.f32.mrb[0].mxu0
      %1341 = vmatprep.mubr.bf16.mxu0 %v694
      %1342 = vmatmul.mubr.bf16.gmra.mrb[0].mxu0 %v693
      %v1343 = vpop.f32.mrb[0].mxu0
      %v1344 = vadd.f32 %v851, %v1343
      %v1345 = vpop.f32.mrb[0].mxu0
      %v1346 = vpop.f32.mrb[0].mxu0
      %v1347 = vadd.f32 %v851, %v1346
      %v1348 = vpop.f32.mrb[0].mxu0
      %1349 = vdwg.mxu0
      %1350 = vmatprep.subr.bf16.mxu0 0
      %1351 = vmatpush1.bf16.msra.mxu0 %v1157
      %1352 = vmatprep.subr.bf16.mxu0 0
      %1353 = vmatpush1.bf16.msra.mxu0 %v1158
      %1354 = vmatprep.subr.bf16.mxu0 0
      %1355 = vmatpush1.bf16.msra.mxu0 %v1159
      %1356 = vmatprep.subr.bf16.mxu0 0
      %1357 = vmatpush1.bf16.msra.mxu0 %v1160
      %1358 = vmatprep.subr.bf16.mxu0 0
      %1359 = vmatpush1.bf16.msra.mxu0 %v1161
      %1360 = vmatprep.subr.bf16.mxu0 0
      %1361 = vmatpush1.bf16.msra.mxu0 %v1162
      %1362 = vmatprep.subr.bf16.mxu0 0
      %1363 = vmatpush1.bf16.msra.mxu0 %v1163
      %1364 = vmatprep.subr.bf16.mxu0 0
      %1365 = vmatpush1.bf16.msra.mxu0 %v1164
      %1366 = vmatprep.subr.bf16.mxu0 0
      %1367 = vmatpush1.bf16.msra.mxu0 %v1165
      %1368 = vmatprep.subr.bf16.mxu0 0
      %1369 = vmatpush1.bf16.msra.mxu0 %v1166
      %1370 = vmatprep.subr.bf16.mxu0 0
      %1371 = vmatpush1.bf16.msra.mxu0 %v1167
      %1372 = vmatprep.subr.bf16.mxu0 0
      %1373 = vmatpush1.bf16.msra.mxu0 %v1168
      %1374 = vmatprep.subr.bf16.mxu0 0
      %1375 = vmatpush1.bf16.msra.mxu0 %v1169
      %1376 = vmatprep.subr.bf16.mxu0 0
      %1377 = vmatpush1.bf16.msra.mxu0 %v1170
      %1378 = vmatprep.subr.bf16.mxu0 0
      %1379 = vmatpush1.bf16.msra.mxu0 %v1171
      %1380 = vmatprep.subr.bf16.mxu0 0
      %1381 = vmatpush1.bf16.msra.mxu0 %v1172
      %1382 = vmatprep.mubr.bf16.mxu0 %v669
      %1383 = vmatmul.mubr.bf16.gmra.mrb[0].mxu0 %v668
      %v1384 = vpop.f32.mrb[0].mxu0
      %v1385 = vadd.f32 %v1320, %v1384
      %v1386 = vpop.f32.mrb[0].mxu0
      %v1387 = vpop.f32.mrb[0].mxu0
      %v1388 = vadd.f32 %v1323, %v1387
      %v1389 = vpop.f32.mrb[0].mxu0
      %1390 = vmatprep.mubr.bf16.mxu0 %v678
      %1391 = vmatmul.mubr.bf16.gmra.mrb[0].mxu0 %v677
      %v1392 = vpop.f32.mrb[0].mxu0
      %v1393 = vadd.f32 %v1328, %v1392
      %v1394 = vpop.f32.mrb[0].mxu0
      %v1395 = vpop.f32.mrb[0].mxu0
      %v1396 = vadd.f32 %v1331, %v1395
      %v1397 = vpop.f32.mrb[0].mxu0
      %1398 = vmatprep.mubr.bf16.mxu0 %v687
      %1399 = vmatmul.mubr.bf16.gmra.mrb[0].mxu0 %v686
      %v1400 = vpop.f32.mrb[0].mxu0
      %v1401 = vadd.f32 %v1336, %v1400
      %v1402 = vpop.f32.mrb[0].mxu0
      %v1403 = vpop.f32.mrb[0].mxu0
      %v1404 = vadd.f32 %v1339, %v1403
      %v1405 = vpop.f32.mrb[0].mxu0
      %1406 = vmatprep.mubr.bf16.mxu0 %v696
      %1407 = vmatmul.mubr.bf16.gmra.mrb[0].mxu0 %v695
      %v1408 = vpop.f32.mrb[0].mxu0
      %v1409 = vadd.f32 %v1344, %v1408
      %v1410 = vpop.f32.mrb[0].mxu0
      %v1411 = vpop.f32.mrb[0].mxu0
      %v1412 = vadd.f32 %v1347, %v1411
      %v1413 = vpop.f32.mrb[0].mxu0
      %1414 = vdwg.mxu0
      %1415 = vmatprep.subr.bf16.mxu0 0
      %1416 = vmatpush1.bf16.msra.mxu0 %v1173
      %1417 = vmatprep.subr.bf16.mxu0 0
      %1418 = vmatpush1.bf16.msra.mxu0 %v1174
      %1419 = vmatprep.subr.bf16.mxu0 0
      %1420 = vmatpush1.bf16.msra.mxu0 %v1175
      %1421 = vmatprep.subr.bf16.mxu0 0
      %1422 = vmatpush1.bf16.msra.mxu0 %v1176
      %1423 = vmatprep.subr.bf16.mxu0 0
      %1424 = vmatpush1.bf16.msra.mxu0 %v1177
      %1425 = vmatprep.subr.bf16.mxu0 0
      %1426 = vmatpush1.bf16.msra.mxu0 %v1178
      %1427 = vmatprep.subr.bf16.mxu0 0
      %1428 = vmatpush1.bf16.msra.mxu0 %v1179
      %1429 = vmatprep.subr.bf16.mxu0 0
      %1430 = vmatpush1.bf16.msra.mxu0 %v1180
      %1431 = vmatprep.subr.bf16.mxu0 0
      %1432 = vmatpush1.bf16.msra.mxu0 %v1181
      %1433 = vmatprep.subr.bf16.mxu0 0
      %1434 = vmatpush1.bf16.msra.mxu0 %v1182
      %1435 = vmatprep.subr.bf16.mxu0 0
      %1436 = vmatpush1.bf16.msra.mxu0 %v1183
      %1437 = vmatprep.subr.bf16.mxu0 0
      %1438 = vmatpush1.bf16.msra.mxu0 %v1184
      %1439 = vmatprep.subr.bf16.mxu0 0
      %1440 = vmatpush1.bf16.msra.mxu0 %v1185
      %1441 = vmatprep.subr.bf16.mxu0 0
      %1442 = vmatpush1.bf16.msra.mxu0 %v1186
      %1443 = vmatprep.subr.bf16.mxu0 0
      %1444 = vmatpush1.bf16.msra.mxu0 %v1187
      %1445 = vmatprep.subr.bf16.mxu0 0
      %1446 = vmatpush1.bf16.msra.mxu0 %v1188
      %1447 = vmatprep.mubr.bf16.mxu0 %v671
      %1448 = vmatmul.mubr.bf16.gmra.mrb[0].mxu0 %v670
      %v1449 = vpop.f32.mrb[0].mxu0
      %v1450 = vadd.f32 %v1385, %v1449
      %v1451 = vpop.f32.mrb[0].mxu0
      %v1452 = vpop.f32.mrb[0].mxu0
      %v1453 = vadd.f32 %v1388, %v1452
      %v1454 = vpop.f32.mrb[0].mxu0
      %1455 = vmatprep.mubr.bf16.mxu0 %v680
      %1456 = vmatmul.mubr.bf16.gmra.mrb[0].mxu0 %v679
      %v1457 = vpop.f32.mrb[0].mxu0
      %v1458 = vadd.f32 %v1393, %v1457
      %v1459 = vpop.f32.mrb[0].mxu0
      %v1460 = vpop.f32.mrb[0].mxu0
      %v1461 = vadd.f32 %v1396, %v1460
      %v1462 = vpop.f32.mrb[0].mxu0
      %1463 = vmatprep.mubr.bf16.mxu0 %v689
      %1464 = vmatmul.mubr.bf16.gmra.mrb[0].mxu0 %v688
      %v1465 = vpop.f32.mrb[0].mxu0
      %v1466 = vadd.f32 %v1401, %v1465
      %v1467 = vpop.f32.mrb[0].mxu0
      %v1468 = vpop.f32.mrb[0].mxu0
      %v1469 = vadd.f32 %v1404, %v1468
      %v1470 = vpop.f32.mrb[0].mxu0
      %1471 = vmatprep.mubr.bf16.mxu0 %v698
      %1472 = vmatmul.mubr.bf16.gmra.mrb[0].mxu0 %v697
      %v1473 = vpop.f32.mrb[0].mxu0
      %v1474 = vadd.f32 %v1409, %v1473
      %v1475 = vpop.f32.mrb[0].mxu0
      %v1476 = vpop.f32.mrb[0].mxu0
      %v1477 = vadd.f32 %v1412, %v1476
      %v1478 = vpop.f32.mrb[0].mxu0
      %1479 = vdwg.mxu0
      %1480 = vmatprep.subr.bf16.mxu0 0
      %1481 = vmatpush1.bf16.msra.mxu0 %v1189
      %1482 = vmatprep.subr.bf16.mxu0 0
      %1483 = vmatpush1.bf16.msra.mxu0 %v1190
      %1484 = vmatprep.subr.bf16.mxu0 0
      %1485 = vmatpush1.bf16.msra.mxu0 %v1191
      %1486 = vmatprep.subr.bf16.mxu0 0
      %1487 = vmatpush1.bf16.msra.mxu0 %v1192
      %1488 = vmatprep.subr.bf16.mxu0 0
      %1489 = vmatpush1.bf16.msra.mxu0 %v1193
      %1490 = vmatprep.subr.bf16.mxu0 0
      %1491 = vmatpush1.bf16.msra.mxu0 %v1194
      %1492 = vmatprep.subr.bf16.mxu0 0
      %1493 = vmatpush1.bf16.msra.mxu0 %v1195
      %1494 = vmatprep.subr.bf16.mxu0 0
      %1495 = vmatpush1.bf16.msra.mxu0 %v1196
      %1496 = vmatprep.subr.bf16.mxu0 0
      %1497 = vmatpush1.bf16.msra.mxu0 %v1197
      %1498 = vmatprep.subr.bf16.mxu0 0
      %1499 = vmatpush1.bf16.msra.mxu0 %v1198
      %1500 = vmatprep.subr.bf16.mxu0 0
      %1501 = vmatpush1.bf16.msra.mxu0 %v1199
      %1502 = vmatprep.subr.bf16.mxu0 0
      %1503 = vmatpush1.bf16.msra.mxu0 %v1200
      %1504 = vmatprep.subr.bf16.mxu0 0
      %1505 = vmatpush1.bf16.msra.mxu0 %v1201
      %1506 = vmatprep.subr.bf16.mxu0 0
      %1507 = vmatpush1.bf16.msra.mxu0 %v1202
      %1508 = vmatprep.subr.bf16.mxu0 0
      %1509 = vmatpush1.bf16.msra.mxu0 %v1203
      %1510 = vmatprep.subr.bf16.mxu0 0
      %1511 = vmatpush1.bf16.msra.mxu0 %v1204
      %1512 = vmatprep.mubr.bf16.mxu0 %v673
      %1513 = vmatmul.mubr.bf16.gmra.mrb[0].mxu0 %v672
      %v1514 = vpop.f32.mrb[0].mxu0
      %v1515 = vadd.f32 %v1450, %v1514
      %v1516 = vpop.f32.mrb[0].mxu0
      %v1517 = vpop.f32.mrb[0].mxu0
      %v1518 = vadd.f32 %v1453, %v1517
      %v1519 = vpop.f32.mrb[0].mxu0
      %1520 = vmatprep.mubr.bf16.mxu0 %v682
      %1521 = vmatmul.mubr.bf16.gmra.mrb[0].mxu0 %v681
      %v1522 = vpop.f32.mrb[0].mxu0
      %v1523 = vadd.f32 %v1458, %v1522
      %v1524 = vpop.f32.mrb[0].mxu0
      %v1525 = vpop.f32.mrb[0].mxu0
      %v1526 = vadd.f32 %v1461, %v1525
      %v1527 = vpop.f32.mrb[0].mxu0
      %1528 = vmatprep.mubr.bf16.mxu0 %v691
      %1529 = vmatmul.mubr.bf16.gmra.mrb[0].mxu0 %v690
      %v1530 = vpop.f32.mrb[0].mxu0
      %v1531 = vadd.f32 %v1466, %v1530
      %v1532 = vpop.f32.mrb[0].mxu0
      %v1533 = vpop.f32.mrb[0].mxu0
      %v1534 = vadd.f32 %v1469, %v1533
      %v1535 = vpop.f32.mrb[0].mxu0
      %1536 = vmatprep.mubr.bf16.mxu0 %v700
      %1537 = vmatmul.mubr.bf16.gmra.mrb[0].mxu0 %v699
      %v1538 = vpop.f32.mrb[0].mxu0
      %v1539 = vadd.f32 %v1474, %v1538
      %v1540 = vpop.f32.mrb[0].mxu0
      %v1541 = vpop.f32.mrb[0].mxu0
      %v1542 = vadd.f32 %v1477, %v1541
      %v1543 = vpop.f32.mrb[0].mxu0
      %1544 = vdwg.mxu0
      %1545 = vmatprep.subr.bf16.mxu0 0
      %1546 = vmatpush1.bf16.msra.mxu0 %v1205
      %1547 = vmatprep.subr.bf16.mxu0 0
      %1548 = vmatpush1.bf16.msra.mxu0 %v1206
      %1549 = vmatprep.subr.bf16.mxu0 0
      %1550 = vmatpush1.bf16.msra.mxu0 %v1207
      %1551 = vmatprep.subr.bf16.mxu0 0
      %1552 = vmatpush1.bf16.msra.mxu0 %v1208
      %1553 = vmatprep.subr.bf16.mxu0 0
      %1554 = vmatpush1.bf16.msra.mxu0 %v1209
      %1555 = vmatprep.subr.bf16.mxu0 0
      %1556 = vmatpush1.bf16.msra.mxu0 %v1210
      %1557 = vmatprep.subr.bf16.mxu0 0
      %1558 = vmatpush1.bf16.msra.mxu0 %v1211
      %1559 = vmatprep.subr.bf16.mxu0 0
      %1560 = vmatpush1.bf16.msra.mxu0 %v1212
      %1561 = vmatprep.subr.bf16.mxu0 0
      %1562 = vmatpush1.bf16.msra.mxu0 0
      %1563 = vmatprep.subr.bf16.mxu0 0
      %1564 = vmatpush1.bf16.msra.mxu0 0
      %1565 = vmatprep.subr.bf16.mxu0 0
      %1566 = vmatpush1.bf16.msra.mxu0 0
      %1567 = vmatprep.subr.bf16.mxu0 0
      %1568 = vmatpush1.bf16.msra.mxu0 0
      %1569 = vmatprep.subr.bf16.mxu0 0
      %1570 = vmatpush1.bf16.msra.mxu0 0
      %1571 = vmatprep.subr.bf16.mxu0 0
      %1572 = vmatpush1.bf16.msra.mxu0 0
      %1573 = vmatprep.subr.bf16.mxu0 0
      %1574 = vmatpush1.bf16.msra.mxu0 0
      %1575 = vmatprep.subr.bf16.mxu0 0
      %1576 = vmatpush1.bf16.msra.mxu0 0
      %1577 = vmatprep.mubr.bf16.mxu0 0
      %1578 = vmatmul.mubr.bf16.gmra.mrb[0].mxu0 %v674
      %v1579 = vpop.f32.mrb[0].mxu0
      %v1580 = vadd.f32 %v1515, %v1579
      %v1581 = vpop.f32.mrb[0].mxu0
      %v1582 = vpop.f32.mrb[0].mxu0
      %v1583 = vadd.f32 %v1518, %v1582
      %v1584 = vpop.f32.mrb[0].mxu0
      %1585 = vmatprep.mubr.bf16.mxu0 0
      %1586 = vmatmul.mubr.bf16.gmra.mrb[0].mxu0 %v683
      %v1587 = vpop.f32.mrb[0].mxu0
      %v1588 = vadd.f32 %v1523, %v1587
      %v1589 = vpop.f32.mrb[0].mxu0
      %v1590 = vpop.f32.mrb[0].mxu0
      %v1591 = vadd.f32 %v1526, %v1590
      %v1592 = vpop.f32.mrb[0].mxu0
      %1593 = vmatprep.mubr.bf16.mxu0 0
      %1594 = vmatmul.mubr.bf16.gmra.mrb[0].mxu0 %v692
      %v1595 = vpop.f32.mrb[0].mxu0
      %v1596 = vadd.f32 %v1531, %v1595
      %v1597 = vpop.f32.mrb[0].mxu0
      %v1598 = vpop.f32.mrb[0].mxu0
      %v1599 = vadd.f32 %v1534, %v1598
      %v1600 = vpop.f32.mrb[0].mxu0
      %1601 = vmatprep.mubr.bf16.mxu0 0
      %1602 = vmatmul.mubr.bf16.gmra.mrb[0].mxu0 %v701
      %v1603 = vpop.f32.mrb[0].mxu0
      %v1604 = vadd.f32 %v1539, %v1603
      %v1605 = vpop.f32.mrb[0].mxu0
      %v1606 = vpop.f32.mrb[0].mxu0
      %v1607 = vadd.f32 %v1542, %v1606
      %v1608 = vpop.f32.mrb[0].mxu0
      %1609 = vdwg.mxu0
      %v1610 = vld [vmem:[%s381] sm:$0xff]
      %v1611 = vld [vmem:[%s381 + $0x8] sm:$0xff]
      %v1612 = vld [vmem:[%s381 + $0x10] sm:$0xff]
      %v1613 = vld [vmem:[%s381 + $0x18] sm:$0xff]
      %v1614 = vld [vmem:[%s381 + $0x20] sm:$0xff]
      %v1615 = vld [vmem:[%s381 + $0x28] sm:$0xff]
      %v1616 = vld [vmem:[%s381 + $0x30] sm:$0xff]
      %v1617 = vld [vmem:[%s381 + $0x38] sm:$0xff]
      %v1618 = vpack.c.bf16 %v1611, %v1610
      %v1619 = vpack.c.bf16 %v1613, %v1612
      %v1620 = vpack.c.bf16 %v1615, %v1614
      %v1621 = vpack.c.bf16 %v1617, %v1616
      %v1622 = vld [vmem:[%s6] sm:$0xf]
      %v1623 = vld [vmem:[%s6 + $0x4] sm:$0xf]
      %v1624 = vld [vmem:[%s6 + $0x8] sm:$0xf]
      %v1625 = vld [vmem:[%s6 + $0xc] sm:$0xf]
      %v1626 = vld [vmem:[%s6 + $0x10] sm:$0xf]
      %v1627 = vld [vmem:[%s6 + $0x14] sm:$0xf]
      %v1628 = vld [vmem:[%s6 + $0x18] sm:$0xf]
      %v1629 = vld [vmem:[%s6 + $0x1c] sm:$0xf]
      %v1638 = vunpack.c.l.b16 %v1622
      %v1639 = vunpack.c.l.b16 %v1623
      %v1640 = vunpack.c.l.b16 %v1624
      %v1641 = vunpack.c.l.b16 %v1625
      %v1642 = vunpack.c.l.b16 %v1626
      %v1643 = vunpack.c.l.b16 %v1627
      %v1644 = vunpack.c.l.b16 %v1628
      %v1645 = vunpack.c.l.b16 %v1629
      %v1646 = vpack.c.b16 %v1639, %v1638
      %v1647 = vpack.c.b16 %v1641, %v1640
      %v1648 = vpack.c.b16 %v1643, %v1642
      %v1649 = vpack.c.b16 %v1645, %v1644
      %vm1654 = vcmask 523264
      %v1656 = vsel %vm1654, %v1618, 0
      %v1659 = vsel %vm1654, %v1619, 0
      %v1662 = vsel %vm1654, %v1620, 0
      %v1665 = vsel %vm1654, %v1621, 0
      %1667 = vmatprep.subr.bf16.mxu0 0
      %1668 = vmatpush1.bf16.msra.mxu0 %v1646
      %1669 = vmatprep.subr.bf16.mxu0 0
      %1670 = vmatpush1.bf16.msra.mxu0 %v1647
      %1671 = vmatprep.subr.bf16.mxu0 0
      %1672 = vmatpush1.bf16.msra.mxu0 %v1648
      %1673 = vmatprep.subr.bf16.mxu0 0
      %1674 = vmatpush1.bf16.msra.mxu0 %v1649
      %1675 = vmatprep.subr.bf16.mxu0 0
      %1676 = vmatpush1.bf16.msra.mxu0 0
      %1677 = vmatprep.subr.bf16.mxu0 0
      %1678 = vmatpush1.bf16.msra.mxu0 0
      %1679 = vmatprep.subr.bf16.mxu0 0
      %1680 = vmatpush1.bf16.msra.mxu0 0
      %1681 = vmatprep.subr.bf16.mxu0 0
      %1682 = vmatpush1.bf16.msra.mxu0 0
      %1683 = vmatprep.subr.bf16.mxu0 0
      %1684 = vmatpush1.bf16.msra.mxu0 0
      %1685 = vmatprep.subr.bf16.mxu0 0
      %1686 = vmatpush1.bf16.msra.mxu0 0
      %1687 = vmatprep.subr.bf16.mxu0 0
      %1688 = vmatpush1.bf16.msra.mxu0 0
      %1689 = vmatprep.subr.bf16.mxu0 0
      %1690 = vmatpush1.bf16.msra.mxu0 0
      %1691 = vmatprep.subr.bf16.mxu0 0
      %1692 = vmatpush1.bf16.msra.mxu0 0
      %1693 = vmatprep.subr.bf16.mxu0 0
      %1694 = vmatpush1.bf16.msra.mxu0 0
      %1695 = vmatprep.subr.bf16.mxu0 0
      %1696 = vmatpush1.bf16.msra.mxu0 0
      %1697 = vmatprep.subr.bf16.mxu0 0
      %1698 = vmatpush1.bf16.msra.mxu0 0
      %1699 = vmatprep.mubr.bf16.mxu0 0
      %1700 = vmatmul.mubr.bf16.gmra.mrb[0].mxu0 %v1656
      %v1701 = vpop.f32.mrb[0].mxu0
      %v1702 = vadd.f32 0.0, %v1701
      %v1703 = vpop.f32.mrb[0].mxu0
      %v1704 = vpop.f32.mrb[0].mxu0
      %v1705 = vadd.f32 0.0, %v1704
      %v1706 = vpop.f32.mrb[0].mxu0
      %1707 = vmatprep.mubr.bf16.mxu0 0
      %1708 = vmatmul.mubr.bf16.gmra.mrb[0].mxu0 %v1659
      %v1709 = vpop.f32.mrb[0].mxu0
      %v1710 = vadd.f32 0.0, %v1709
      %v1711 = vpop.f32.mrb[0].mxu0
      %v1712 = vpop.f32.mrb[0].mxu0
      %v1713 = vadd.f32 0.0, %v1712
      %v1714 = vpop.f32.mrb[0].mxu0
      %1715 = vmatprep.mubr.bf16.mxu0 0
      %1716 = vmatmul.mubr.bf16.gmra.mrb[0].mxu0 %v1662
      %v1717 = vpop.f32.mrb[0].mxu0
      %v1718 = vadd.f32 0.0, %v1717
      %v1719 = vpop.f32.mrb[0].mxu0
      %v1720 = vpop.f32.mrb[0].mxu0
      %v1721 = vadd.f32 0.0, %v1720
      %v1722 = vpop.f32.mrb[0].mxu0
      %1723 = vmatprep.mubr.bf16.mxu0 0
      %1724 = vmatmul.mubr.bf16.gmra.mrb[0].mxu0 %v1665
      %v1725 = vpop.f32.mrb[0].mxu0
      %v1726 = vadd.f32 0.0, %v1725
      %v1727 = vpop.f32.mrb[0].mxu0
      %v1728 = vpop.f32.mrb[0].mxu0
      %v1729 = vadd.f32 0.0, %v1728
      %v1730 = vpop.f32.mrb[0].mxu0
      %1731 = vdwg.mxu0
      %v1732 = vadd.f32 %v1580, %v1702
      %v1733 = vadd.f32 %v1583, %v1705
      %v1734 = vadd.f32 %v1588, %v1710
      %v1735 = vadd.f32 %v1591, %v1713
      %v1736 = vadd.f32 %v1596, %v1718
      %v1737 = vadd.f32 %v1599, %v1721
      %v1738 = vadd.f32 %v1604, %v1726
      %v1739 = vadd.f32 %v1607, %v1729
      %v1740 = vld [vmem:[%s7] sm:$0x1]
      %v1742 = vlaneseq
      %v1743 = vshrl.u32 %v1742, 7
      %v1744 = vsub.s32 0, %v1743
      %v1745 = vrot.slane %v1740, %v1744
      %v1747 = vadd.f32 %v1732, %v1745
      %v1748 = vadd.f32 %v1733, %v1745
      %v1749 = vadd.f32 %v1734, %v1745
      %v1750 = vadd.f32 %v1735, %v1745
      %v1751 = vadd.f32 %v1736, %v1745
      %v1752 = vadd.f32 %v1737, %v1745
      %v1753 = vadd.f32 %v1738, %v1745
      %v1754 = vadd.f32 %v1739, %v1745
      %1755 = vst [vmem:[%s391] sm:$0xff] %v1747
      %1756 = vst [vmem:[%s391 + $0x8] sm:$0xff] %v1748
      %1757 = vst [vmem:[%s391 + $0x10] sm:$0xff] %v1749
      %1758 = vst [vmem:[%s391 + $0x18] sm:$0xff] %v1750
      %1759 = vst [vmem:[%s391 + $0x20] sm:$0xff] %v1751
      %1760 = vst [vmem:[%s391 + $0x28] sm:$0xff] %v1752
      %1761 = vst [vmem:[%s391 + $0x30] sm:$0xff] %v1753
      %1762 = vst [vmem:[%s391 + $0x38] sm:$0xff] %v1754
      %s1763 = smul.u32 8, %s24
      %p1764 = scmp.lt.s32.totalorder %s23, 1
      %s1765 = scalar_select %p1764, %s23, 1
      %p1766 = scmp.lt.s32.totalorder %s1763, 7
      %s1767 = scalar_select %p1766, %s1763, 7
      %s1768 = smul.addr %s1765, 8
      %s1769 = sadd.s32 %s1767, %s1768
      %s1770 = smul.addr %s1769, 8
      %s1771 = scalar_lea.vmem %s8, %s1770
      // Predicated region
      $region57: #{down_block_forward.13} parent=51 // pred_check
        %p1772 = pneg %p241
      $region58: #{down_block_forward.13} parent=51 // pred_check_branch
        %1774 = sbr.rel (%p1772) target = $region60
      $region59: #{down_block_forward.13} parent=51 // pred_region
        %s1775 = smul.u32 8, %s24
      $region60: #{down_block_forward.13} parent=51 // pred_fallthru
        _
    $region52: #{down_block_forward.13} parent=5 // pred_fallthru
      _
    %p1776 = scmp.le.s32.totalorder 2, %s14
    // Predicated region
    $region61: #{down_block_forward.13} parent=5 // pred_check
      %p1777 = pneg %p1776
    $region62: #{down_block_forward.13} parent=5 // pred_check_branch
      %1779 = sbr.rel (%p1777) target = $region64
    $region63: #{down_block_forward.13} parent=5 // pred_region
      %s1780 = ssub.s32 %s14, 2
      // Predicated region
      $region65: #{down_block_forward.13} parent=63 // pred_check
        %p1781 = pneg %p247
      $region66: #{down_block_forward.13} parent=63 // pred_check_branch
        %1783 = sbr.rel (%p1781) target = $region68
      $region67: #{down_block_forward.13} parent=63 // pred_region
        %s1784 = smul.u32 8, %s26
        %p1785 = scmp.lt.s32.totalorder %s25, 1
        %s1786 = scalar_select %p1785, %s25, 1
        %p1787 = scmp.lt.s32.totalorder %s1784, 7
        %s1788 = scalar_select %p1787, %s1784, 7
        %s1789 = smul.addr %s1786, 8
        %s1790 = sadd.s32 %s1788, %s1789
        %s1791 = smul.addr %s1790, 8
        %s1792 = scalar_lea.vmem %s8, %s1791
      $region68: #{down_block_forward.13} parent=63 // pred_fallthru
        _
    $region64: #{down_block_forward.13} parent=5 // pred_fallthru
      _
  $region6: #{down_block_forward.13} parent=0 // loop_footer
    %s18 = sadd.s32 1, %s14
  $region7: #{down_block_forward.13} parent=0 // loop_footer_branch
    %13 = sbr.rel target = $region3
  $region8: #{down_block_forward.13} parent=0 // loop_exit
    _

// kernel: down_block_forward.15
$region0: #{down_block_forward.15}
  #allocation0 [shape = 'u32[]', space=smem, size = 0x4, offset = 0x4, fixed_abs, tag = 'smem constant byte address 0x4 - core index']
  #allocation1 [shape = 'u32[144,128]{1,0:T(1,128)}', space=vmem, size = 0x12000, scoped, tag = 'internal scratch']
  #allocation2 [shape = 'f32[64,1]{1,0:T(8,128)}', space=vmem, size = 0x8000, scoped, tag = 'scratch operand']
  #allocation3 [shape = 'f32[64,1]{1,0:T(8,128)}', space=vmem, size = 0x8000, scoped, tag = 'scratch operand']
  #allocation4 [shape = 'f32[64,128]{1,0:T(8,128)}', space=vmem, size = 0x8000, scoped, tag = 'scratch operand']
  %s0 = inlined_call_operand.vmem [shape: bf16[2,64,128], index: 0, kind: input, shape index: {}]
  %s1 = inlined_call_operand.vmem [shape: bf16[2,64,128], index: 1, kind: input, shape index: {}]
  %s2 = inlined_call_operand.vmem [shape: bf16[2,64,128], index: 2, kind: input, shape index: {}]
  %s3 = inlined_call_operand.vmem [shape: bf16[128,128], index: 3, kind: input, shape index: {}]
  %s4 = inlined_call_operand.vmem [shape: f32[1,128], index: 4, kind: input, shape index: {}]
  %s5 = inlined_call_operand.vmem [shape: f32[2,64,128], index: 5, kind: input, shape index: {}]
  %s6 = inlined_call_operand.hbm [shape: f32[2,64,128], index: 6, kind: output, shape index: {}]
  %s7 = sld [smem:[#allocation0]]
  $region65: #{down_block_forward.15} parent=0
    _
  %s9 = ssub.s32 1, %s7
  %s10 = scalar_select 0, %s9, %s7
  $region1: #{down_block_forward.15} parent=0
    #allocation5 [shape = 'u8[65536]{0}', space=vmem, size = 0x10000, scoped, tag = 'output window, operand 0']
    #allocation6 [shape = 's32[2]{0}', space=sflag, size = 0x8, scoped, tag = 'scoped memory for down_block_forward.15']
    %11 = vsyncpa [#allocation6], 0
    %s12 = scalar_lea.sflag [#allocation6], 1
    %13 = vsyncpa %s12, 0
    loop: start=0, step=1, limit=4
    $region2: #{down_block_forward.15} parent=1 // loop_pre_header
      _
    $region3: #{down_block_forward.15} parent=1 // loop_header
      %s15 = sphi 0, %s19
      %p16 = scmp.ge.s32.totalorder %s15, 4
      %s22 = sphi 0, %s41
      %s23 = sphi 0, %s37
      %s24 = sphi 0, %s33
      %s25 = sphi 0, %s22
      %s26 = sphi 0, %s23
      %s27 = sphi 0, %s24
      %s28 = sphi 0, %s25
      %s29 = sphi 0, %s26
      %s30 = sphi 0, %s27
      %s46 = sphi 0, %s48
      %s49 = sphi 0, %s46
      %s50 = sphi 0, %s49
      %s66 = sphi 0, %s50
      %s74 = sphi 0, %s76
      %s77 = sphi 0, %s74
      %s78 = sphi 0, %s77
      %s94 = sphi 0, %s78
      %s102 = sphi 0, %s104
      %s105 = sphi 0, %s102
      %s106 = sphi 0, %s105
      %s122 = sphi 0, %s106
      %s126 = sphi 0, %s126
      %s128 = sphi 0, %s126
      %s129 = sphi 0, %s128
      %s143 = sphi 0, %s129
      %s147 = sphi 0, %s147
      %s149 = sphi 0, %s147
      %s150 = sphi 0, %s149
      %s164 = sphi 0, %s150
      %s172 = sphi 0, %s174
      %s175 = sphi 0, %s172
      %s176 = sphi 0, %s175
      %s192 = sphi 0, %s176
      %s200 = sphi 0, %s202
      %s203 = sphi 0, %s200
      %s204 = sphi 0, %s203
      %s220 = sphi 0, %s204
    $region4: #{down_block_forward.15} parent=1 // loop_header_branch
      %18 = sbr.rel (%p16) target = $region8
    $region5: #{down_block_forward.15} parent=1 // loop_body
      %s20 = ssub.s32 %s15, 1
      %s21 = ssub.s32 %s15, 2
      %s31 = sadd.s32 1, %s24
      %p32 = scmp.ge.s32.totalorder %s31, 1
      %s33 = scalar_select %p32, 0, %s31
      %s34 = sadd.s32 1, %s23
      %s35 = scalar_select %p32, %s34, %s23
      %p36 = scmp.ge.s32.totalorder %s35, 1
      %s37 = scalar_select %p36, 0, %s35
      %s38 = sadd.s32 1, %s22
      %s39 = scalar_select %p36, %s38, %s22
      %p40 = scmp.ge.s32.totalorder %s39, 2
      %s41 = scalar_select %p40, 0, %s39
      %s42 = ssub.s32 %s22, %s41
      %s43 = ssub.s32 %s23, %s37
      %s44 = sor.u32 %s42, %s43
      %p45 = scmp.eq.s32.totalorder %s44, 0
      %s47 = sadd.s32 %s46, 1
      %s48 = scalar_select %p45, %s46, %s47
      %p51 = pneg %p45
      %p52 = scmp.eq.s32.totalorder %s15, 1
      %p53 = por %p51, %p52
      %p54 = scmp.ne.s32.totalorder %s46, %s49
      %p55 = scmp.eq.s32.totalorder %s15, 0
      %p56 = por %p54, %p55
      %p57 = scmp.ne.s32.totalorder %s46, %s49
      %p58 = scmp.eq.s32.totalorder %s20, 1
      %p59 = por %p57, %p58
      %p60 = scmp.ne.s32.totalorder %s49, %s50
      %p61 = scmp.eq.s32.totalorder %s20, 0
      %p62 = por %p60, %p61
      %p63 = scmp.ne.s32.totalorder %s49, %s50
      %p64 = scmp.eq.s32.totalorder %s21, 1
      %p65 = por %p63, %p64
      %p67 = scmp.ne.s32.totalorder %s50, %s66
      %p68 = scmp.eq.s32.totalorder %s21, 0
      %p69 = por %p67, %p68
      %s70 = ssub.s32 %s22, %s41
      %s71 = ssub.s32 %s24, %s33
      %s72 = sor.u32 %s70, %s71
      %p73 = scmp.eq.s32.totalorder %s72, 0
      %s75 = sadd.s32 %s74, 1
      %s76 = scalar_select %p73, %s74, %s75
      %p79 = pneg %p73
      %p80 = scmp.eq.s32.totalorder %s15, 1
      %p81 = por %p79, %p80
      %p82 = scmp.ne.s32.totalorder %s74, %s77
      %p83 = scmp.eq.s32.totalorder %s15, 0
      %p84 = por %p82, %p83
      %p85 = scmp.ne.s32.totalorder %s74, %s77
      %p86 = scmp.eq.s32.totalorder %s20, 1
      %p87 = por %p85, %p86
      %p88 = scmp.ne.s32.totalorder %s77, %s78
      %p89 = scmp.eq.s32.totalorder %s20, 0
      %p90 = por %p88, %p89
      %p91 = scmp.ne.s32.totalorder %s77, %s78
      %p92 = scmp.eq.s32.totalorder %s21, 1
      %p93 = por %p91, %p92
      %p95 = scmp.ne.s32.totalorder %s78, %s94
      %p96 = scmp.eq.s32.totalorder %s21, 0
      %p97 = por %p95, %p96
      %s98 = ssub.s32 %s22, %s41
      %s99 = ssub.s32 %s24, %s33
      %s100 = sor.u32 %s98, %s99
      %p101 = scmp.eq.s32.totalorder %s100, 0
      %s103 = sadd.s32 %s102, 1
      %s104 = scalar_select %p101, %s102, %s103
      %p107 = pneg %p101
      %p108 = scmp.eq.s32.totalorder %s15, 1
      %p109 = por %p107, %p108
      %p110 = scmp.ne.s32.totalorder %s102, %s105
      %p111 = scmp.eq.s32.totalorder %s15, 0
      %p112 = por %p110, %p111
      %p113 = scmp.ne.s32.totalorder %s102, %s105
      %p114 = scmp.eq.s32.totalorder %s20, 1
      %p115 = por %p113, %p114
      %p116 = scmp.ne.s32.totalorder %s105, %s106
      %p117 = scmp.eq.s32.totalorder %s20, 0
      %p118 = por %p116, %p117
      %p119 = scmp.ne.s32.totalorder %s105, %s106
      %p120 = scmp.eq.s32.totalorder %s21, 1
      %p121 = por %p119, %p120
      %p123 = scmp.ne.s32.totalorder %s106, %s122
      %p124 = scmp.eq.s32.totalorder %s21, 0
      %p125 = por %p123, %p124
      %s127 = sadd.s32 %s126, 1
      %p130 = scmp.eq.s32.totalorder %s15, 1
      %p131 = scmp.ne.s32.totalorder %s126, %s128
      %p132 = scmp.eq.s32.totalorder %s15, 0
      %p133 = por %p131, %p132
      %p134 = scmp.ne.s32.totalorder %s126, %s128
      %p135 = scmp.eq.s32.totalorder %s20, 1
      %p136 = por %p134, %p135
      %p137 = scmp.ne.s32.totalorder %s128, %s129
      %p138 = scmp.eq.s32.totalorder %s20, 0
      %p139 = por %p137, %p138
      %p140 = scmp.ne.s32.totalorder %s128, %s129
      %p141 = scmp.eq.s32.totalorder %s21, 1
      %p142 = por %p140, %p141
      %p144 = scmp.ne.s32.totalorder %s129, %s143
      %p145 = scmp.eq.s32.totalorder %s21, 0
      %p146 = por %p144, %p145
      %s148 = sadd.s32 %s147, 1
      %p151 = scmp.eq.s32.totalorder %s15, 1
      %p152 = scmp.ne.s32.totalorder %s147, %s149
      %p153 = scmp.eq.s32.totalorder %s15, 0
      %p154 = por %p152, %p153
      %p155 = scmp.ne.s32.totalorder %s147, %s149
      %p156 = scmp.eq.s32.totalorder %s20, 1
      %p157 = por %p155, %p156
      %p158 = scmp.ne.s32.totalorder %s149, %s150
      %p159 = scmp.eq.s32.totalorder %s20, 0
      %p160 = por %p158, %p159
      %p161 = scmp.ne.s32.totalorder %s149, %s150
      %p162 = scmp.eq.s32.totalorder %s21, 1
      %p163 = por %p161, %p162
      %p165 = scmp.ne.s32.totalorder %s150, %s164
      %p166 = scmp.eq.s32.totalorder %s21, 0
      %p167 = por %p165, %p166
      %s168 = ssub.s32 %s22, %s41
      %s169 = ssub.s32 %s23, %s37
      %s170 = sor.u32 %s168, %s169
      %p171 = scmp.eq.s32.totalorder %s170, 0
      %s173 = sadd.s32 %s172, 1
      %s174 = scalar_select %p171, %s172, %s173
      %p177 = pneg %p171
      %p178 = scmp.eq.s32.totalorder %s15, 1
      %p179 = por %p177, %p178
      %p180 = scmp.ne.s32.totalorder %s172, %s175
      %p181 = scmp.eq.s32.totalorder %s15, 0
      %p182 = por %p180, %p181
      %p183 = scmp.ne.s32.totalorder %s172, %s175
      %p184 = scmp.eq.s32.totalorder %s20, 1
      %p185 = por %p183, %p184
      %p186 = scmp.ne.s32.totalorder %s175, %s176
      %p187 = scmp.eq.s32.totalorder %s20, 0
      %p188 = por %p186, %p187
      %p189 = scmp.ne.s32.totalorder %s175, %s176
      %p190 = scmp.eq.s32.totalorder %s21, 1
      %p191 = por %p189, %p190
      %p193 = scmp.ne.s32.totalorder %s176, %s192
      %p194 = scmp.eq.s32.totalorder %s21, 0
      %p195 = por %p193, %p194
      %s196 = ssub.s32 %s22, %s41
      %s197 = ssub.s32 %s23, %s37
      %s198 = sor.u32 %s196, %s197
      %p199 = scmp.eq.s32.totalorder %s198, 0
      %s201 = sadd.s32 %s200, 1
      %s202 = scalar_select %p199, %s200, %s201
      %p205 = pneg %p199
      %p206 = scmp.eq.s32.totalorder %s15, 1
      %p207 = por %p205, %p206
      %p208 = scmp.ne.s32.totalorder %s200, %s203
      %p209 = scmp.eq.s32.totalorder %s15, 0
      %p210 = por %p208, %p209
      %p211 = scmp.ne.s32.totalorder %s200, %s203
      %p212 = scmp.eq.s32.totalorder %s20, 1
      %p213 = por %p211, %p212
      %p214 = scmp.ne.s32.totalorder %s203, %s204
      %p215 = scmp.eq.s32.totalorder %s20, 0
      %p216 = por %p214, %p215
      %p217 = scmp.ne.s32.totalorder %s203, %s204
      %p218 = scmp.eq.s32.totalorder %s21, 1
      %p219 = por %p217, %p218
      %p221 = scmp.ne.s32.totalorder %s204, %s220
      %p222 = scmp.eq.s32.totalorder %s21, 0
      %p223 = por %p221, %p222
      %p224 = scmp.le.s32.totalorder 1, %s15
      %p225 = scmp.lt.s32.totalorder %s15, 3
      %p226 = pnand %p224, %p225
      %p227 = pneg %p226
      // Predicated region
      $region9: #{down_block_forward.15} parent=5 // pred_check
        _
      $region10: #{down_block_forward.15} parent=5 // pred_check_branch
        %229 = sbr.rel (%p226) target = $region12
      $region11: #{down_block_forward.15} parent=5 // pred_region
        %s230 = ssub.s32 %s15, 1
        // Predicated region
        $region13: #{down_block_forward.15} parent=11 // pred_check
          %p231 = pneg %p139
        $region14: #{down_block_forward.15} parent=11 // pred_check_branch
          %233 = sbr.rel (%p231) target = $region16
        $region15: #{down_block_forward.15} parent=11 // pred_region
          _
        $region16: #{down_block_forward.15} parent=11 // pred_fallthru
          _
        // Predicated region
        $region17: #{down_block_forward.15} parent=11 // pred_check
          %p234 = pneg %p160
        $region18: #{down_block_forward.15} parent=11 // pred_check_branch
          %236 = sbr.rel (%p234) target = $region20
        $region19: #{down_block_forward.15} parent=11 // pred_region
          _
        $region20: #{down_block_forward.15} parent=11 // pred_fallthru
          _
      $region12: #{down_block_forward.15} parent=5 // pred_fallthru
        _
      %p237 = scmp.lt.s32.totalorder %s15, 2
      // Predicated region
      $region21: #{down_block_forward.15} parent=5 // pred_check
        %p238 = pneg %p237
      $region22: #{down_block_forward.15} parent=5 // pred_check_branch
        %240 = sbr.rel (%p238) target = $region24
      $region23: #{down_block_forward.15} parent=5 // pred_region
        // Predicated region
        $region25: #{down_block_forward.15} parent=23 // pred_check
          %p241 = pneg %p56
        $region26: #{down_block_forward.15} parent=23 // pred_check_branch
          %243 = sbr.rel (%p241) target = $region28
        $region27: #{down_block_forward.15} parent=23 // pred_region
          %s244 = smul.u32 8, %s23
          %p245 = scmp.lt.s32.totalorder %s22, 1
          %s246 = scalar_select %p245, %s22, 1
          %p247 = scmp.lt.s32.totalorder %s244, 7
          %s248 = scalar_select %p247, %s244, 7
          %s249 = smul.addr %s246, 8
          %s250 = sadd.s32 %s248, %s249
          %s251 = smul.addr %s250, 4
          %s252 = scalar_lea.vmem %s0, %s251
          %s253 = smul.u32 8, %s23
        $region28: #{down_block_forward.15} parent=23 // pred_fallthru
          _
        // Predicated region
        $region29: #{down_block_forward.15} parent=23 // pred_check
          %p254 = pneg %p84
        $region30: #{down_block_forward.15} parent=23 // pred_check_branch
          %256 = sbr.rel (%p254) target = $region32
        $region31: #{down_block_forward.15} parent=23 // pred_region
          %s257 = smul.u32 8, %s24
          %p258 = scmp.lt.s32.totalorder %s22, 1
          %s259 = scalar_select %p258, %s22, 1
          %p260 = scmp.lt.s32.totalorder %s257, 7
          %s261 = scalar_select %p260, %s257, 7
          %s262 = smul.addr %s259, 8
          %s263 = sadd.s32 %s261, %s262
          %s264 = smul.addr %s263, 4
          %s265 = scalar_lea.vmem %s1, %s264
          %s266 = smul.u32 8, %s24
        $region32: #{down_block_forward.15} parent=23 // pred_fallthru
          _
        // Predicated region
        $region33: #{down_block_forward.15} parent=23 // pred_check
          %p267 = pneg %p112
        $region34: #{down_block_forward.15} parent=23 // pred_check_branch
          %269 = sbr.rel (%p267) target = $region36
        $region35: #{down_block_forward.15} parent=23 // pred_region
          %s270 = smul.u32 8, %s24
          %p271 = scmp.lt.s32.totalorder %s22, 1
          %s272 = scalar_select %p271, %s22, 1
          %p273 = scmp.lt.s32.totalorder %s270, 7
          %s274 = scalar_select %p273, %s270, 7
          %s275 = smul.addr %s272, 8
          %s276 = sadd.s32 %s274, %s275
          %s277 = smul.addr %s276, 4
          %s278 = scalar_lea.vmem %s2, %s277
          %s279 = smul.u32 8, %s24
        $region36: #{down_block_forward.15} parent=23 // pred_fallthru
          _
        // Predicated region
        $region37: #{down_block_forward.15} parent=23 // pred_check
          %p280 = pneg %p182
        $region38: #{down_block_forward.15} parent=23 // pred_check_branch
          %282 = sbr.rel (%p280) target = $region40
        $region39: #{down_block_forward.15} parent=23 // pred_region
          %s283 = smul.u32 8, %s23
          %p284 = scmp.lt.s32.totalorder %s22, 1
          %s285 = scalar_select %p284, %s22, 1
          %p286 = scmp.lt.s32.totalorder %s283, 7
          %s287 = scalar_select %p286, %s283, 7
          %s288 = smul.addr %s285, 8
          %s289 = sadd.s32 %s287, %s288
          %s290 = smul.addr %s289, 8
          %s291 = scalar_lea.vmem %s5, %s290
          %s292 = smul.u32 8, %s23
        $region40: #{down_block_forward.15} parent=23 // pred_fallthru
          _
      $region24: #{down_block_forward.15} parent=5 // pred_fallthru
        _
      %p293 = scmp.le.s32.totalorder 1, %s15
      %p294 = scmp.lt.s32.totalorder %s15, 3
      %p295 = pnand %p293, %p294
      %p296 = pneg %p295
      // Predicated region
      $region41: #{down_block_forward.15} parent=5 // pred_check
        _
      $region42: #{down_block_forward.15} parent=5 // pred_check_branch
        %298 = sbr.rel (%p295) target = $region44
      $region43: #{down_block_forward.15} parent=5 // pred_region
        %s299 = ssub.s32 %s15, 1
        %s300 = smul.u32 8, %s26
        %p301 = scmp.lt.s32.totalorder %s25, 1
        %s302 = scalar_select %p301, %s25, 1
        %p303 = scmp.lt.s32.totalorder %s300, 7
        %s304 = scalar_select %p303, %s300, 7
        %s305 = smul.addr %s302, 8
        %s306 = sadd.s32 %s304, %s305
        %s307 = smul.addr %s306, 4
        %s308 = scalar_lea.vmem %s0, %s307
        %p309 = pneg %p62
        %p310 = pneg %p59
        %s311 = smul.u32 8, %s27
        %p312 = scmp.lt.s32.totalorder %s25, 1
        %s313 = scalar_select %p312, %s25, 1
        %p314 = scmp.lt.s32.totalorder %s311, 7
        %s315 = scalar_select %p314, %s311, 7
        %s316 = smul.addr %s313, 8
        %s317 = sadd.s32 %s315, %s316
        %s318 = smul.addr %s317, 4
        %s319 = scalar_lea.vmem %s1, %s318
        %p320 = pneg %p90
        %p321 = pneg %p87
        %s322 = smul.u32 8, %s27
        %p323 = scmp.lt.s32.totalorder %s25, 1
        %s324 = scalar_select %p323, %s25, 1
        %p325 = scmp.lt.s32.totalorder %s322, 7
        %s326 = scalar_select %p325, %s322, 7
        %s327 = smul.addr %s324, 8
        %s328 = sadd.s32 %s326, %s327
        %s329 = smul.addr %s328, 4
        %s330 = scalar_lea.vmem %s2, %s329
        %p331 = pneg %p118
        %p332 = pneg %p115
        %p333 = pneg %p139
        %p334 = pneg %p136
        %p335 = pneg %p160
        %p336 = pneg %p157
        %s337 = smul.u32 8, %s26
        %p338 = scmp.lt.s32.totalorder %s25, 1
        %s339 = scalar_select %p338, %s25, 1
        %p340 = scmp.lt.s32.totalorder %s337, 7
        %s341 = scalar_select %p340, %s337, 7
        %s342 = smul.addr %s339, 8
        %s343 = sadd.s32 %s341, %s342
        %s344 = smul.addr %s343, 8
        %s345 = scalar_lea.vmem %s5, %s344
        %p346 = pneg %p188
        %p347 = pneg %p185
        %p348 = pneg %p216
        %p349 = pneg %p213
        %s350 = sand.u32 %s203, 1
        %s351 = scalar_lea.sflag [#allocation6], %s350
        %s352 = sand.u32 %s203, 1
        %s353 = smul.addr %s352, 64
        %s354 = scalar_lea.vmem [#allocation5], %s353
        %s355 = smul.u32 8, %s26
        %p356 = scmp.lt.s32.totalorder %s25, 1
        %s357 = scalar_select %p356, %s25, 1
        %p358 = scmp.lt.s32.totalorder %s355, 7
        %s359 = scalar_select %p358, %s355, 7
        %s360 = smul.addr %s357, 8
        %s361 = sadd.s32 %s359, %s360
        %s362 = smul.addr %s361, 4
        %s363 = scalar_lea.vmem %s0, %s362
        %s364 = smul.u32 8, %s26
        %s365 = smul.u32 8, %s27
        %p366 = scmp.lt.s32.totalorder %s25, 1
        %s367 = scalar_select %p366, %s25, 1
        %p368 = scmp.lt.s32.totalorder %s365, 7
        %s369 = scalar_select %p368, %s365, 7
        %s370 = smul.addr %s367, 8
        %s371 = sadd.s32 %s369, %s370
        %s372 = smul.addr %s371, 4
        %s373 = scalar_lea.vmem %s1, %s372
        %s374 = smul.u32 8, %s27
        %s375 = smul.u32 8, %s27
        %p376 = scmp.lt.s32.totalorder %s25, 1
        %s377 = scalar_select %p376, %s25, 1
        %p378 = scmp.lt.s32.totalorder %s375, 7
        %s379 = scalar_select %p378, %s375, 7
        %s380 = smul.addr %s377, 8
        %s381 = sadd.s32 %s379, %s380
        %s382 = smul.addr %s381, 4
        %s383 = scalar_lea.vmem %s2, %s382
        %s384 = smul.u32 8, %s27
        %s385 = smul.u32 8, %s26
        %p386 = scmp.lt.s32.totalorder %s25, 1
        %s387 = scalar_select %p386, %s25, 1
        %p388 = scmp.lt.s32.totalorder %s385, 7
        %s389 = scalar_select %p388, %s385, 7
        %s390 = smul.addr %s387, 8
        %s391 = sadd.s32 %s389, %s390
        %s392 = smul.addr %s391, 8
        %s393 = scalar_lea.vmem %s5, %s392
        %s394 = smul.u32 8, %s26
        %s395 = smul.u32 8, %s26
        %p397 = scmp.eq.s32.totalorder %s27, 0
        // Predicated region
        $region45: #{down_block_forward.15} parent=43 // pred_check
          %p398 = pneg %p397
        $region46: #{down_block_forward.15} parent=43 // pred_check_branch
          %400 = sbr.rel (%p398) target = $region48
        $region47: #{down_block_forward.15} parent=43 // pred_region
          %vm401 = vcmask 7168
          %402 = vst.msk [vmem:[#allocation2] sm:$0xff] %vm401, -inf
          %403 = vst.msk [vmem:[#allocation2 + $0x8] sm:$0xff] %vm401, -inf
          %404 = vst.msk [vmem:[#allocation2 + $0x10] sm:$0xff] %vm401, -inf
          %405 = vst.msk [vmem:[#allocation2 + $0x18] sm:$0xff] %vm401, -inf
          %406 = vst.msk [vmem:[#allocation2 + $0x20] sm:$0xff] %vm401, -inf
          %407 = vst.msk [vmem:[#allocation2 + $0x28] sm:$0xff] %vm401, -inf
          %408 = vst.msk [vmem:[#allocation2 + $0x30] sm:$0xff] %vm401, -inf
          %409 = vst.msk [vmem:[#allocation2 + $0x38] sm:$0xff] %vm401, -inf
          %410 = vst.msk [vmem:[#allocation3] sm:$0xff] %vm401, 0.0
          %411 = vst.msk [vmem:[#allocation3 + $0x8] sm:$0xff] %vm401, 0.0
          %412 = vst.msk [vmem:[#allocation3 + $0x10] sm:$0xff] %vm401, 0.0
          %413 = vst.msk [vmem:[#allocation3 + $0x18] sm:$0xff] %vm401, 0.0
          %414 = vst.msk [vmem:[#allocation3 + $0x20] sm:$0xff] %vm401, 0.0
          %415 = vst.msk [vmem:[#allocation3 + $0x28] sm:$0xff] %vm401, 0.0
          %416 = vst.msk [vmem:[#allocation3 + $0x30] sm:$0xff] %vm401, 0.0
          %417 = vst.msk [vmem:[#allocation3 + $0x38] sm:$0xff] %vm401, 0.0
          %418 = vst [vmem:[#allocation4] sm:$0xff] 0.0
          %419 = vst [vmem:[#allocation4 + $0x8] sm:$0xff] 0.0
          %420 = vst [vmem:[#allocation4 + $0x10] sm:$0xff] 0.0
          %421 = vst [vmem:[#allocation4 + $0x18] sm:$0xff] 0.0
          %422 = vst [vmem:[#allocation4 + $0x20] sm:$0xff] 0.0
          %423 = vst [vmem:[#allocation4 + $0x28] sm:$0xff] 0.0
          %424 = vst [vmem:[#allocation4 + $0x30] sm:$0xff] 0.0
          %425 = vst [vmem:[#allocation4 + $0x38] sm:$0xff] 0.0
        $region48: #{down_block_forward.15} parent=43 // pred_fallthru
          _
        %v426 = vld [vmem:[%s363] sm:$0xf]
        %v427 = vld [vmem:[%s363 + $0x4] sm:$0xf]
        %v428 = vld [vmem:[%s363 + $0x8] sm:$0xf]
        %v429 = vld [vmem:[%s363 + $0xc] sm:$0xf]
        %v430 = vld [vmem:[%s363 + $0x10] sm:$0xf]
        %v431 = vld [vmem:[%s363 + $0x14] sm:$0xf]
        %v432 = vld [vmem:[%s363 + $0x18] sm:$0xf]
        %v433 = vld [vmem:[%s363 + $0x1c] sm:$0xf]
        %v434 = vld [vmem:[%s373] sm:$0xf]
        %v435 = vld [vmem:[%s373 + $0x4] sm:$0xf]
        %v436 = vld [vmem:[%s373 + $0x8] sm:$0xf]
        %v437 = vld [vmem:[%s373 + $0xc] sm:$0xf]
        %v438 = vld [vmem:[%s373 + $0x10] sm:$0xf]
        %v439 = vld [vmem:[%s373 + $0x14] sm:$0xf]
        %v440 = vld [vmem:[%s373 + $0x18] sm:$0xf]
        %v441 = vld [vmem:[%s373 + $0x1c] sm:$0xf]
        %v450 = vunpack.c.l.b16 %v426
        %v451 = vunpack.c.l.b16 %v427
        %v452 = vunpack.c.l.b16 %v428
        %v453 = vunpack.c.l.b16 %v429
        %v454 = vunpack.c.l.b16 %v430
        %v455 = vunpack.c.l.b16 %v431
        %v456 = vunpack.c.l.b16 %v432
        %v457 = vunpack.c.l.b16 %v433
        %v458 = vpack.c.b16 %v451, %v450
        %v459 = vpack.c.b16 %v453, %v452
        %v460 = vpack.c.b16 %v455, %v454
        %v461 = vpack.c.b16 %v457, %v456
        %v474 = vunpack.c.l.b16 %v434
        %v475 = vunpack.c.l.b16 %v435
        %v476 = vunpack.c.l.b16 %v436
        %v477 = vunpack.c.l.b16 %v437
        %v478 = vunpack.c.l.b16 %v438
        %v479 = vunpack.c.l.b16 %v439
        %v480 = vunpack.c.l.b16 %v440
        %v481 = vunpack.c.l.b16 %v441
        %v482 = vpack.c.b16 %v475, %v474
        %v483 = vpack.c.b16 %v477, %v476
        %v484 = vpack.c.b16 %v479, %v478
        %v485 = vpack.c.b16 %v481, %v480
        %490 = vmatprep.subr.bf16.mxu0 0
        %491 = vmatpush1.bf16.xpose.msra.mxu0 %v482
        %492 = vmatprep.subr.bf16.mxu0 0
        %493 = vmatpush1.bf16.xpose.msra.mxu0 %v483
        %494 = vmatprep.subr.bf16.mxu0 0
        %495 = vmatpush1.bf16.xpose.msra.mxu0 %v484
        %496 = vmatprep.subr.bf16.mxu0 0
        %497 = vmatpush1.bf16.xpose.msra.mxu0 %v485
        %498 = vmatprep.subr.bf16.mxu0 0
        %499 = vmatpush1.bf16.xpose.msra.mxu0 0
        %500 = vmatprep.subr.bf16.mxu0 0
        %501 = vmatpush1.bf16.xpose.msra.mxu0 0
        %502 = vmatprep.subr.bf16.mxu0 0
        %503 = vmatpush1.bf16.xpose.msra.mxu0 0
        %504 = vmatprep.subr.bf16.mxu0 0
        %505 = vmatpush1.bf16.xpose.msra.mxu0 0
        %506 = vmatprep.subr.bf16.mxu0 0
        %507 = vmatpush1.bf16.xpose.msra.mxu0 0
        %508 = vmatprep.subr.bf16.mxu0 0
        %509 = vmatpush1.bf16.xpose.msra.mxu0 0
        %510 = vmatprep.subr.bf16.mxu0 0
        %511 = vmatpush1.bf16.xpose.msra.mxu0 0
        %512 = vmatprep.subr.bf16.mxu0 0
        %513 = vmatpush1.bf16.xpose.msra.mxu0 0
        %514 = vmatprep.subr.bf16.mxu0 0
        %515 = vmatpush1.bf16.xpose.msra.mxu0 0
        %516 = vmatprep.subr.bf16.mxu0 0
        %517 = vmatpush1.bf16.xpose.msra.mxu0 0
        %518 = vmatprep.subr.bf16.mxu0 0
        %519 = vmatpush1.bf16.xpose.msra.mxu0 0
        %520 = vmatprep.subr.bf16.mxu0 0
        %521 = vmatpush1.bf16.xpose.msra.mxu0 0
        %522 = vmatprep.mubr.bf16.mxu0 0
        %523 = vmatmul.mubr.bf16.gmra.mrb[0].mxu0 %v458
        %v524 = vpop.f32.mrb[0].mxu0
        %v525 = vadd.f32 0.0, %v524
        %v526 = vpop.f32.mrb[0].mxu0
        %v527 = vpop.f32.mrb[0].mxu0
        %v528 = vadd.f32 0.0, %v527
        %v529 = vpop.f32.mrb[0].mxu0
        %530 = vmatprep.mubr.bf16.mxu0 0
        %531 = vmatmul.mubr.bf16.gmra.mrb[0].mxu0 %v459
        %v532 = vpop.f32.mrb[0].mxu0
        %v533 = vadd.f32 0.0, %v532
        %v534 = vpop.f32.mrb[0].mxu0
        %v535 = vpop.f32.mrb[0].mxu0
        %v536 = vadd.f32 0.0, %v535
        %v537 = vpop.f32.mrb[0].mxu0
        %538 = vmatprep.mubr.bf16.mxu0 0
        %539 = vmatmul.mubr.bf16.gmra.mrb[0].mxu0 %v460
        %v540 = vpop.f32.mrb[0].mxu0
        %v541 = vadd.f32 0.0, %v540
        %v542 = vpop.f32.mrb[0].mxu0
        %v543 = vpop.f32.mrb[0].mxu0
        %v544 = vadd.f32 0.0, %v543
        %v545 = vpop.f32.mrb[0].mxu0
        %546 = vmatprep.mubr.bf16.mxu0 0
        %547 = vmatmul.mubr.bf16.gmra.mrb[0].mxu0 %v461
        %v548 = vpop.f32.mrb[0].mxu0
        %v549 = vadd.f32 0.0, %v548
        %v550 = vpop.f32.mrb[0].mxu0
        %v551 = vpop.f32.mrb[0].mxu0
        %v552 = vadd.f32 0.0, %v551
        %v553 = vpop.f32.mrb[0].mxu0
        %554 = vdwg.mxu0
        %v555 = vld [vmem:[#allocation2] sm:$0xff]
        %v556 = vld [vmem:[#allocation2 + $0x8] sm:$0xff]
        %v557 = vld [vmem:[#allocation2 + $0x10] sm:$0xff]
        %v558 = vld [vmem:[#allocation2 + $0x18] sm:$0xff]
        %v559 = vld [vmem:[#allocation2 + $0x20] sm:$0xff]
        %v560 = vld [vmem:[#allocation2 + $0x28] sm:$0xff]
        %v561 = vld [vmem:[#allocation2 + $0x30] sm:$0xff]
        %v562 = vld [vmem:[#allocation2 + $0x38] sm:$0xff]
        %vm563 = vcmask 523264
        %v564 = vsel %vm563, %v525, -inf
        %565 = vmax.xlane.f32.xlu0 %v564
        %v566 = vpop.xlane.xlu0 %565
        %v567 = vsel %vm563, %v528, -inf
        %568 = vmax.xlane.f32.xlu0 %v567
        %v569 = vpop.xlane.xlu0 %568
        %v570 = vsel %vm563, %v533, -inf
        %571 = vmax.xlane.f32.xlu0 %v570
        %v572 = vpop.xlane.xlu0 %571
        %v573 = vsel %vm563, %v536, -inf
        %574 = vmax.xlane.f32.xlu0 %v573
        %v575 = vpop.xlane.xlu0 %574
        %v576 = vsel %vm563, %v541, -inf
        %577 = vmax.xlane.f32.xlu0 %v576
        %v578 = vpop.xlane.xlu0 %577
        %v579 = vsel %vm563, %v544, -inf
        %580 = vmax.xlane.f32.xlu0 %v579
        %v581 = vpop.xlane.xlu0 %580
        %v582 = vsel %vm563, %v549, -inf
        %583 = vmax.xlane.f32.xlu0 %v582
        %v584 = vpop.xlane.xlu0 %583
        %v585 = vsel %vm563, %v552, -inf
        %586 = vmax.xlane.f32.xlu0 %v585
        %v587 = vpop.xlane.xlu0 %586
        %v588 = vmax.f32 %v555, %v566
        %v589 = vmax.f32 %v556, %v569
        %v590 = vmax.f32 %v557, %v572
        %v591 = vmax.f32 %v558, %v575
        %v592 = vmax.f32 %v559, %v578
        %v593 = vmax.f32 %v560, %v581
        %v594 = vmax.f32 %v561, %v584
        %v595 = vmax.f32 %v562, %v587
        %v596 = vsub.f32 %v555, %v588
        %v597 = vsub.f32 %v556, %v589
        %v598 = vsub.f32 %v557, %v590
        %v599 = vsub.f32 %v558, %v591
        %v600 = vsub.f32 %v559, %v592
        %v601 = vsub.f32 %v560, %v593
        %v602 = vsub.f32 %v561, %v594
        %v603 = vsub.f32 %v562, %v595
        %v604 = vmul.f32 %v596, 1.442695
        %v605 = vpow.pop %v604
        %v606 = vmul.f32 %v597, 1.442695
        %v607 = vpow.pop %v606
        %v608 = vmul.f32 %v598, 1.442695
        %v609 = vpow.pop %v608
        %v610 = vmul.f32 %v599, 1.442695
        %v611 = vpow.pop %v610
        %v612 = vmul.f32 %v600, 1.442695
        %v613 = vpow.pop %v612
        %v614 = vmul.f32 %v601, 1.442695
        %v615 = vpow.pop %v614
        %v616 = vmul.f32 %v602, 1.442695
        %v617 = vpow.pop %v616
        %v618 = vmul.f32 %v603, 1.442695
        %v619 = vpow.pop %v618
        %621 = vset.pattern.permute.xlu0 0
        %622 = vperm.xlu0 %621, %v588
        %v623 = vpop.permute.xlu0 %622
        %626 = vset.pattern.permute.xlu0 0
        %627 = vperm.xlu0 %626, %v589
        %v628 = vpop.permute.xlu0 %627
        %631 = vset.pattern.permute.xlu0 0
        %632 = vperm.xlu0 %631, %v590
        %v633 = vpop.permute.xlu0 %632
        %636 = vset.pattern.permute.xlu0 0
        %637 = vperm.xlu0 %636, %v591
        %v638 = vpop.permute.xlu0 %637
        %641 = vset.pattern.permute.xlu0 0
        %642 = vperm.xlu0 %641, %v592
        %v643 = vpop.permute.xlu0 %642
        %646 = vset.pattern.permute.xlu0 0
        %647 = vperm.xlu0 %646, %v593
        %v648 = vpop.permute.xlu0 %647
        %651 = vset.pattern.permute.xlu0 0
        %652 = vperm.xlu0 %651, %v594
        %v653 = vpop.permute.xlu0 %652
        %656 = vset.pattern.permute.xlu0 0
        %657 = vperm.xlu0 %656, %v595
        %v658 = vpop.permute.xlu0 %657
        %v660 = vsub.f32 %v525, %v623
        %v661 = vsub.f32 %v528, %v628
        %v662 = vsub.f32 %v533, %v633
        %v663 = vsub.f32 %v536, %v638
        %v664 = vsub.f32 %v541, %v643
        %v665 = vsub.f32 %v544, %v648
        %v666 = vsub.f32 %v549, %v653
        %v667 = vsub.f32 %v552, %v658
        %v668 = vmul.f32 %v660, 1.442695
        %v669 = vpow.pop %v668
        %v670 = vmul.f32 %v661, 1.442695
        %v671 = vpow.pop %v670
        %v672 = vmul.f32 %v662, 1.442695
        %v673 = vpow.pop %v672
        %v674 = vmul.f32 %v663, 1.442695
        %v675 = vpow.pop %v674
        %v676 = vmul.f32 %v664, 1.442695
        %v677 = vpow.pop %v676
        %v678 = vmul.f32 %v665, 1.442695
        %v679 = vpow.pop %v678
        %v680 = vmul.f32 %v666, 1.442695
        %v681 = vpow.pop %v680
        %v682 = vmul.f32 %v667, 1.442695
        %v683 = vpow.pop %v682
        %v684 = vld [vmem:[#allocation3] sm:$0xff]
        %v685 = vld [vmem:[#allocation3 + $0x8] sm:$0xff]
        %v686 = vld [vmem:[#allocation3 + $0x10] sm:$0xff]
        %v687 = vld [vmem:[#allocation3 + $0x18] sm:$0xff]
        %v688 = vld [vmem:[#allocation3 + $0x20] sm:$0xff]
        %v689 = vld [vmem:[#allocation3 + $0x28] sm:$0xff]
        %v690 = vld [vmem:[#allocation3 + $0x30] sm:$0xff]
        %v691 = vld [vmem:[#allocation3 + $0x38] sm:$0xff]
        %v692 = vmul.f32 %v605, %v684
        %v693 = vmul.f32 %v607, %v685
        %v694 = vmul.f32 %v609, %v686
        %v695 = vmul.f32 %v611, %v687
        %v696 = vmul.f32 %v613, %v688
        %v697 = vmul.f32 %v615, %v689
        %v698 = vmul.f32 %v617, %v690
        %v699 = vmul.f32 %v619, %v691
        %v700 = vsel %vm563, %v669, 0.0
        %701 = vadd.xlane.f32.xlu0 %v700
        %v702 = vpop.xlane.xlu0 %701
        %v703 = vsel %vm563, %v671, 0.0
        %704 = vadd.xlane.f32.xlu0 %v703
        %v705 = vpop.xlane.xlu0 %704
        %v706 = vsel %vm563, %v673, 0.0
        %707 = vadd.xlane.f32.xlu0 %v706
        %v708 = vpop.xlane.xlu0 %707
        %v709 = vsel %vm563, %v675, 0.0
        %710 = vadd.xlane.f32.xlu0 %v709
        %v711 = vpop.xlane.xlu0 %710
        %v712 = vsel %vm563, %v677, 0.0
        %713 = vadd.xlane.f32.xlu0 %v712
        %v714 = vpop.xlane.xlu0 %713
        %v715 = vsel %vm563, %v679, 0.0
        %716 = vadd.xlane.f32.xlu0 %v715
        %v717 = vpop.xlane.xlu0 %716
        %v718 = vsel %vm563, %v681, 0.0
        %719 = vadd.xlane.f32.xlu0 %v718
        %v720 = vpop.xlane.xlu0 %719
        %v721 = vsel %vm563, %v683, 0.0
        %722 = vadd.xlane.f32.xlu0 %v721
        %v723 = vpop.xlane.xlu0 %722
        %v724 = vadd.f32 %v692, %v702
        %v725 = vadd.f32 %v693, %v705
        %v726 = vadd.f32 %v694, %v708
        %v727 = vadd.f32 %v695, %v711
        %v728 = vadd.f32 %v696, %v714
        %v729 = vadd.f32 %v697, %v717
        %v730 = vadd.f32 %v698, %v720
        %v731 = vadd.f32 %v699, %v723
        %vm732 = vcmask 7168
        %733 = vst.msk [vmem:[#allocation3] sm:$0xff] %vm732, %v724
        %734 = vst.msk [vmem:[#allocation3 + $0x8] sm:$0xff] %vm732, %v725
        %735 = vst.msk [vmem:[#allocation3 + $0x10] sm:$0xff] %vm732, %v726
        %736 = vst.msk [vmem:[#allocation3 + $0x18] sm:$0xff] %vm732, %v727
        %737 = vst.msk [vmem:[#allocation3 + $0x20] sm:$0xff] %vm732, %v728
        %738 = vst.msk [vmem:[#allocation3 + $0x28] sm:$0xff] %vm732, %v729
        %739 = vst.msk [vmem:[#allocation3 + $0x30] sm:$0xff] %vm732, %v730
        %740 = vst.msk [vmem:[#allocation3 + $0x38] sm:$0xff] %vm732, %v731
        %v741 = vld [vmem:[#allocation4] sm:$0xff]
        %v742 = vld [vmem:[#allocation4 + $0x8] sm:$0xff]
        %v743 = vld [vmem:[#allocation4 + $0x10] sm:$0xff]
        %v744 = vld [vmem:[#allocation4 + $0x18] sm:$0xff]
        %v745 = vld [vmem:[#allocation4 + $0x20] sm:$0xff]
        %v746 = vld [vmem:[#allocation4 + $0x28] sm:$0xff]
        %v747 = vld [vmem:[#allocation4 + $0x30] sm:$0xff]
        %v748 = vld [vmem:[#allocation4 + $0x38] sm:$0xff]
        %750 = vset.pattern.permute.xlu0 0
        %751 = vperm.xlu0 %750, %v605
        %v752 = vpop.permute.xlu0 %751
        %755 = vset.pattern.permute.xlu0 0
        %756 = vperm.xlu0 %755, %v607
        %v757 = vpop.permute.xlu0 %756
        %760 = vset.pattern.permute.xlu0 0
        %761 = vperm.xlu0 %760, %v609
        %v762 = vpop.permute.xlu0 %761
        %765 = vset.pattern.permute.xlu0 0
        %766 = vperm.xlu0 %765, %v611
        %v767 = vpop.permute.xlu0 %766
        %770 = vset.pattern.permute.xlu0 0
        %771 = vperm.xlu0 %770, %v613
        %v772 = vpop.permute.xlu0 %771
        %775 = vset.pattern.permute.xlu0 0
        %776 = vperm.xlu0 %775, %v615
        %v777 = vpop.permute.xlu0 %776
        %780 = vset.pattern.permute.xlu0 0
        %781 = vperm.xlu0 %780, %v617
        %v782 = vpop.permute.xlu0 %781
        %785 = vset.pattern.permute.xlu0 0
        %786 = vperm.xlu0 %785, %v619
        %v787 = vpop.permute.xlu0 %786
        %v789 = vmul.f32 %v752, %v741
        %v790 = vmul.f32 %v757, %v742
        %v791 = vmul.f32 %v762, %v743
        %v792 = vmul.f32 %v767, %v744
        %v793 = vmul.f32 %v772, %v745
        %v794 = vmul.f32 %v777, %v746
        %v795 = vmul.f32 %v782, %v747
        %v796 = vmul.f32 %v787, %v748
        %v797 = vpack.c.bf16 %v671, %v669
        %v798 = vpack.c.bf16 %v675, %v673
        %v799 = vpack.c.bf16 %v679, %v677
        %v800 = vpack.c.bf16 %v683, %v681
        %v801 = vld [vmem:[%s383] sm:$0xf]
        %v802 = vld [vmem:[%s383 + $0x4] sm:$0xf]
        %v803 = vld [vmem:[%s383 + $0x8] sm:$0xf]
        %v804 = vld [vmem:[%s383 + $0xc] sm:$0xf]
        %v805 = vld [vmem:[%s383 + $0x10] sm:$0xf]
        %v806 = vld [vmem:[%s383 + $0x14] sm:$0xf]
        %v807 = vld [vmem:[%s383 + $0x18] sm:$0xf]
        %v808 = vld [vmem:[%s383 + $0x1c] sm:$0xf]
        %v817 = vunpack.c.l.b16 %v801
        %v818 = vunpack.c.l.b16 %v802
        %v819 = vunpack.c.l.b16 %v803
        %v820 = vunpack.c.l.b16 %v804
        %v821 = vunpack.c.l.b16 %v805
        %v822 = vunpack.c.l.b16 %v806
        %v823 = vunpack.c.l.b16 %v807
        %v824 = vunpack.c.l.b16 %v808
        %v825 = vpack.c.b16 %v818, %v817
        %v826 = vpack.c.b16 %v820, %v819
        %v827 = vpack.c.b16 %v822, %v821
        %v828 = vpack.c.b16 %v824, %v823
        %v834 = vsel %vm563, %v797, 0
        %v837 = vsel %vm563, %v798, 0
        %v840 = vsel %vm563, %v799, 0
        %v843 = vsel %vm563, %v800, 0
        %845 = vmatprep.subr.bf16.mxu0 0
        %846 = vmatpush1.bf16.msra.mxu0 %v825
        %847 = vmatprep.subr.bf16.mxu0 0
        %848 = vmatpush1.bf16.msra.mxu0 %v826
        %849 = vmatprep.subr.bf16.mxu0 0
        %850 = vmatpush1.bf16.msra.mxu0 %v827
        %851 = vmatprep.subr.bf16.mxu0 0
        %852 = vmatpush1.bf16.msra.mxu0 %v828
        %853 = vmatprep.subr.bf16.mxu0 0
        %854 = vmatpush1.bf16.msra.mxu0 0
        %855 = vmatprep.subr.bf16.mxu0 0
        %856 = vmatpush1.bf16.msra.mxu0 0
        %857 = vmatprep.subr.bf16.mxu0 0
        %858 = vmatpush1.bf16.msra.mxu0 0
        %859 = vmatprep.subr.bf16.mxu0 0
        %860 = vmatpush1.bf16.msra.mxu0 0
        %861 = vmatprep.subr.bf16.mxu0 0
        %862 = vmatpush1.bf16.msra.mxu0 0
        %863 = vmatprep.subr.bf16.mxu0 0
        %864 = vmatpush1.bf16.msra.mxu0 0
        %865 = vmatprep.subr.bf16.mxu0 0
        %866 = vmatpush1.bf16.msra.mxu0 0
        %867 = vmatprep.subr.bf16.mxu0 0
        %868 = vmatpush1.bf16.msra.mxu0 0
        %869 = vmatprep.subr.bf16.mxu0 0
        %870 = vmatpush1.bf16.msra.mxu0 0
        %871 = vmatprep.subr.bf16.mxu0 0
        %872 = vmatpush1.bf16.msra.mxu0 0
        %873 = vmatprep.subr.bf16.mxu0 0
        %874 = vmatpush1.bf16.msra.mxu0 0
        %875 = vmatprep.subr.bf16.mxu0 0
        %876 = vmatpush1.bf16.msra.mxu0 0
        %877 = vmatprep.mubr.bf16.mxu0 0
        %878 = vmatmul.mubr.bf16.gmra.mrb[0].mxu0 %v834
        %v879 = vpop.f32.mrb[0].mxu0
        %v880 = vadd.f32 0.0, %v879
        %v881 = vpop.f32.mrb[0].mxu0
        %v882 = vpop.f32.mrb[0].mxu0
        %v883 = vadd.f32 0.0, %v882
        %v884 = vpop.f32.mrb[0].mxu0
        %885 = vmatprep.mubr.bf16.mxu0 0
        %886 = vmatmul.mubr.bf16.gmra.mrb[0].mxu0 %v837
        %v887 = vpop.f32.mrb[0].mxu0
        %v888 = vadd.f32 0.0, %v887
        %v889 = vpop.f32.mrb[0].mxu0
        %v890 = vpop.f32.mrb[0].mxu0
        %v891 = vadd.f32 0.0, %v890
        %v892 = vpop.f32.mrb[0].mxu0
        %893 = vmatprep.mubr.bf16.mxu0 0
        %894 = vmatmul.mubr.bf16.gmra.mrb[0].mxu0 %v840
        %v895 = vpop.f32.mrb[0].mxu0
        %v896 = vadd.f32 0.0, %v895
        %v897 = vpop.f32.mrb[0].mxu0
        %v898 = vpop.f32.mrb[0].mxu0
        %v899 = vadd.f32 0.0, %v898
        %v900 = vpop.f32.mrb[0].mxu0
        %901 = vmatprep.mubr.bf16.mxu0 0
        %902 = vmatmul.mubr.bf16.gmra.mrb[0].mxu0 %v843
        %v903 = vpop.f32.mrb[0].mxu0
        %v904 = vadd.f32 0.0, %v903
        %v905 = vpop.f32.mrb[0].mxu0
        %v906 = vpop.f32.mrb[0].mxu0
        %v907 = vadd.f32 0.0, %v906
        %v908 = vpop.f32.mrb[0].mxu0
        %909 = vdwg.mxu0
        %v910 = vadd.f32 %v789, %v880
        %v911 = vadd.f32 %v790, %v883
        %v912 = vadd.f32 %v791, %v888
        %v913 = vadd.f32 %v792, %v891
        %v914 = vadd.f32 %v793, %v896
        %v915 = vadd.f32 %v794, %v899
        %v916 = vadd.f32 %v795, %v904
        %v917 = vadd.f32 %v796, %v907
        %918 = vst [vmem:[#allocation4] sm:$0xff] %v910
        %919 = vst [vmem:[#allocation4 + $0x8] sm:$0xff] %v911
        %920 = vst [vmem:[#allocation4 + $0x10] sm:$0xff] %v912
        %921 = vst [vmem:[#allocation4 + $0x18] sm:$0xff] %v913
        %922 = vst [vmem:[#allocation4 + $0x20] sm:$0xff] %v914
        %923 = vst [vmem:[#allocation4 + $0x28] sm:$0xff] %v915
        %924 = vst [vmem:[#allocation4 + $0x30] sm:$0xff] %v916
        %925 = vst [vmem:[#allocation4 + $0x38] sm:$0xff] %v917
        %926 = vst.msk [vmem:[#allocation2] sm:$0xff] %vm732, %v588
        %927 = vst.msk [vmem:[#allocation2 + $0x8] sm:$0xff] %vm732, %v589
        %928 = vst.msk [vmem:[#allocation2 + $0x10] sm:$0xff] %vm732, %v590
        %929 = vst.msk [vmem:[#allocation2 + $0x18] sm:$0xff] %vm732, %v591
        %930 = vst.msk [vmem:[#allocation2 + $0x20] sm:$0xff] %vm732, %v592
        %931 = vst.msk [vmem:[#allocation2 + $0x28] sm:$0xff] %vm732, %v593
        %932 = vst.msk [vmem:[#allocation2 + $0x30] sm:$0xff] %vm732, %v594
        %933 = vst.msk [vmem:[#allocation2 + $0x38] sm:$0xff] %vm732, %v595
        // Predicated region
        $region49: #{down_block_forward.15} parent=43 // pred_check
          %p934 = pneg %p397
        $region50: #{down_block_forward.15} parent=43 // pred_check_branch
          %936 = sbr.rel (%p934) target = $region52
        $region51: #{down_block_forward.15} parent=43 // pred_region
          %v937 = vld [vmem:[#allocation4] sm:$0xff]
          %v938 = vld [vmem:[#allocation4 + $0x8] sm:$0xff]
          %v939 = vld [vmem:[#allocation4 + $0x10] sm:$0xff]
          %v940 = vld [vmem:[#allocation4 + $0x18] sm:$0xff]
          %v941 = vld [vmem:[#allocation4 + $0x20] sm:$0xff]
          %v942 = vld [vmem:[#allocation4 + $0x28] sm:$0xff]
          %v943 = vld [vmem:[#allocation4 + $0x30] sm:$0xff]
          %v944 = vld [vmem:[#allocation4 + $0x38] sm:$0xff]
          %v945 = vld [vmem:[#allocation3] sm:$0xff]
          %v946 = vld [vmem:[#allocation3 + $0x8] sm:$0xff]
          %v947 = vld [vmem:[#allocation3 + $0x10] sm:$0xff]
          %v948 = vld [vmem:[#allocation3 + $0x18] sm:$0xff]
          %v949 = vld [vmem:[#allocation3 + $0x20] sm:$0xff]
          %v950 = vld [vmem:[#allocation3 + $0x28] sm:$0xff]
          %v951 = vld [vmem:[#allocation3 + $0x30] sm:$0xff]
          %v952 = vld [vmem:[#allocation3 + $0x38] sm:$0xff]
          %954 = vset.pattern.permute.xlu0 0
          %955 = vperm.xlu0 %954, %v945
          %v956 = vpop.permute.xlu0 %955
          %959 = vset.pattern.permute.xlu0 0
          %960 = vperm.xlu0 %959, %v946
          %v961 = vpop.permute.xlu0 %960
          %964 = vset.pattern.permute.xlu0 0
          %965 = vperm.xlu0 %964, %v947
          %v966 = vpop.permute.xlu0 %965
          %969 = vset.pattern.permute.xlu0 0
          %970 = vperm.xlu0 %969, %v948
          %v971 = vpop.permute.xlu0 %970
          %974 = vset.pattern.permute.xlu0 0
          %975 = vperm.xlu0 %974, %v949
          %v976 = vpop.permute.xlu0 %975
          %979 = vset.pattern.permute.xlu0 0
          %980 = vperm.xlu0 %979, %v950
          %v981 = vpop.permute.xlu0 %980
          %984 = vset.pattern.permute.xlu0 0
          %985 = vperm.xlu0 %984, %v951
          %v986 = vpop.permute.xlu0 %985
          %989 = vset.pattern.permute.xlu0 0
          %990 = vperm.xlu0 %989, %v952
          %v991 = vpop.permute.xlu0 %990
          %v993 = vrcp.pop %v956
          %v994 = vmul.f32 %v937, %v993
          %v995 = vrcp.pop %v961
          %v996 = vmul.f32 %v938, %v995
          %v997 = vrcp.pop %v966
          %v998 = vmul.f32 %v939, %v997
          %v999 = vrcp.pop %v971
          %v1000 = vmul.f32 %v940, %v999
          %v1001 = vrcp.pop %v976
          %v1002 = vmul.f32 %v941, %v1001
          %v1003 = vrcp.pop %v981
          %v1004 = vmul.f32 %v942, %v1003
          %v1005 = vrcp.pop %v986
          %v1006 = vmul.f32 %v943, %v1005
          %v1007 = vrcp.pop %v991
          %v1008 = vmul.f32 %v944, %v1007
          %v1009 = vpack.c.bf16 %v996, %v994
          %v1010 = vpack.c.bf16 %v1000, %v998
          %v1011 = vpack.c.bf16 %v1004, %v1002
          %v1012 = vpack.c.bf16 %v1008, %v1006
          %v1013 = vld [vmem:[%s3] sm:$0xf]
          %v1014 = vld [vmem:[%s3 + $0x4] sm:$0xf]
          %v1015 = vld [vmem:[%s3 + $0x8] sm:$0xf]
          %v1016 = vld [vmem:[%s3 + $0xc] sm:$0xf]
          %v1017 = vld [vmem:[%s3 + $0x10] sm:$0xf]
          %v1018 = vld [vmem:[%s3 + $0x14] sm:$0xf]
          %v1019 = vld [vmem:[%s3 + $0x18] sm:$0xf]
          %v1020 = vld [vmem:[%s3 + $0x1c] sm:$0xf]
          %v1021 = vld [vmem:[%s3 + $0x20] sm:$0xf]
          %v1022 = vld [vmem:[%s3 + $0x24] sm:$0xf]
          %v1023 = vld [vmem:[%s3 + $0x28] sm:$0xf]
          %v1024 = vld [vmem:[%s3 + $0x2c] sm:$0xf]
          %v1025 = vld [vmem:[%s3 + $0x30] sm:$0xf]
          %v1026 = vld [vmem:[%s3 + $0x34] sm:$0xf]
          %v1027 = vld [vmem:[%s3 + $0x38] sm:$0xf]
          %v1028 = vld [vmem:[%s3 + $0x3c] sm:$0xf]
          %v1029 = vld [vmem:[%s4] sm:$0x1]
          %v1031 = vlaneseq
          %v1032 = vshrl.u32 %v1031, 7
          %v1033 = vsub.s32 0, %v1032
          %v1034 = vrot.slane %v1029, %v1033
          %v1052 = vunpack.c.l.b16 %v1013
          %v1053 = vunpack.c.l.b16 %v1014
          %v1054 = vunpack.c.l.b16 %v1015
          %v1055 = vunpack.c.l.b16 %v1016
          %v1056 = vunpack.c.l.b16 %v1017
          %v1057 = vunpack.c.l.b16 %v1018
          %v1058 = vunpack.c.l.b16 %v1019
          %v1059 = vunpack.c.l.b16 %v1020
          %v1060 = vunpack.c.l.b16 %v1021
          %v1061 = vunpack.c.l.b16 %v1022
          %v1062 = vunpack.c.l.b16 %v1023
          %v1063 = vunpack.c.l.b16 %v1024
          %v1064 = vunpack.c.l.b16 %v1025
          %v1065 = vunpack.c.l.b16 %v1026
          %v1066 = vunpack.c.l.b16 %v1027
          %v1067 = vunpack.c.l.b16 %v1028
          %v1068 = vpack.c.b16 %v1053, %v1052
          %v1069 = vpack.c.b16 %v1055, %v1054
          %v1070 = vpack.c.b16 %v1057, %v1056
          %v1071 = vpack.c.b16 %v1059, %v1058
          %v1072 = vpack.c.b16 %v1061, %v1060
          %v1073 = vpack.c.b16 %v1063, %v1062
          %v1074 = vpack.c.b16 %v1065, %v1064
          %v1075 = vpack.c.b16 %v1067, %v1066
          %1084 = vmatprep.subr.bf16.mxu0 0
          %1085 = vmatpush1.bf16.msra.mxu0 %v1068
          %1086 = vmatprep.subr.bf16.mxu0 0
          %1087 = vmatpush1.bf16.msra.mxu0 %v1069
          %1088 = vmatprep.subr.bf16.mxu0 0
          %1089 = vmatpush1.bf16.msra.mxu0 %v1070
          %1090 = vmatprep.subr.bf16.mxu0 0
          %1091 = vmatpush1.bf16.msra.mxu0 %v1071
          %1092 = vmatprep.subr.bf16.mxu0 0
          %1093 = vmatpush1.bf16.msra.mxu0 %v1072
          %1094 = vmatprep.subr.bf16.mxu0 0
          %1095 = vmatpush1.bf16.msra.mxu0 %v1073
          %1096 = vmatprep.subr.bf16.mxu0 0
          %1097 = vmatpush1.bf16.msra.mxu0 %v1074
          %1098 = vmatprep.subr.bf16.mxu0 0
          %1099 = vmatpush1.bf16.msra.mxu0 %v1075
          %1100 = vmatprep.subr.bf16.mxu0 0
          %1101 = vmatpush1.bf16.msra.mxu0 0
          %1102 = vmatprep.subr.bf16.mxu0 0
          %1103 = vmatpush1.bf16.msra.mxu0 0
          %1104 = vmatprep.subr.bf16.mxu0 0
          %1105 = vmatpush1.bf16.msra.mxu0 0
          %1106 = vmatprep.subr.bf16.mxu0 0
          %1107 = vmatpush1.bf16.msra.mxu0 0
          %1108 = vmatprep.subr.bf16.mxu0 0
          %1109 = vmatpush1.bf16.msra.mxu0 0
          %1110 = vmatprep.subr.bf16.mxu0 0
          %1111 = vmatpush1.bf16.msra.mxu0 0
          %1112 = vmatprep.subr.bf16.mxu0 0
          %1113 = vmatpush1.bf16.msra.mxu0 0
          %1114 = vmatprep.subr.bf16.mxu0 0
          %1115 = vmatpush1.bf16.msra.mxu0 0
          %1116 = vmatprep.mubr.bf16.mxu0 0
          %1117 = vmatmul.mubr.bf16.gmra.mrb[0].mxu0 %v1009
          %v1118 = vpop.f32.mrb[0].mxu0
          %v1119 = vadd.f32 %v1034, %v1118
          %v1120 = vpop.f32.mrb[0].mxu0
          %v1121 = vpop.f32.mrb[0].mxu0
          %v1122 = vadd.f32 %v1034, %v1121
          %v1123 = vpop.f32.mrb[0].mxu0
          %1124 = vmatprep.mubr.bf16.mxu0 0
          %1125 = vmatmul.mubr.bf16.gmra.mrb[0].mxu0 %v1010
          %v1126 = vpop.f32.mrb[0].mxu0
          %v1127 = vadd.f32 %v1034, %v1126
          %v1128 = vpop.f32.mrb[0].mxu0
          %v1129 = vpop.f32.mrb[0].mxu0
          %v1130 = vadd.f32 %v1034, %v1129
          %v1131 = vpop.f32.mrb[0].mxu0
          %1132 = vmatprep.mubr.bf16.mxu0 0
          %1133 = vmatmul.mubr.bf16.gmra.mrb[0].mxu0 %v1011
          %v1134 = vpop.f32.mrb[0].mxu0
          %v1135 = vadd.f32 %v1034, %v1134
          %v1136 = vpop.f32.mrb[0].mxu0
          %v1137 = vpop.f32.mrb[0].mxu0
          %v1138 = vadd.f32 %v1034, %v1137
          %v1139 = vpop.f32.mrb[0].mxu0
          %1140 = vmatprep.mubr.bf16.mxu0 0
          %1141 = vmatmul.mubr.bf16.gmra.mrb[0].mxu0 %v1012
          %v1142 = vpop.f32.mrb[0].mxu0
          %v1143 = vadd.f32 %v1034, %v1142
          %v1144 = vpop.f32.mrb[0].mxu0
          %v1145 = vpop.f32.mrb[0].mxu0
          %v1146 = vadd.f32 %v1034, %v1145
          %v1147 = vpop.f32.mrb[0].mxu0
          %1148 = vdwg.mxu0
          %v1149 = vld [vmem:[%s393] sm:$0xff]
          %v1150 = vld [vmem:[%s393 + $0x8] sm:$0xff]
          %v1151 = vld [vmem:[%s393 + $0x10] sm:$0xff]
          %v1152 = vld [vmem:[%s393 + $0x18] sm:$0xff]
          %v1153 = vld [vmem:[%s393 + $0x20] sm:$0xff]
          %v1154 = vld [vmem:[%s393 + $0x28] sm:$0xff]
          %v1155 = vld [vmem:[%s393 + $0x30] sm:$0xff]
          %v1156 = vld [vmem:[%s393 + $0x38] sm:$0xff]
          %v1157 = vadd.f32 %v1119, %v1149
          %v1158 = vadd.f32 %v1122, %v1150
          %v1159 = vadd.f32 %v1127, %v1151
          %v1160 = vadd.f32 %v1130, %v1152
          %v1161 = vadd.f32 %v1135, %v1153
          %v1162 = vadd.f32 %v1138, %v1154
          %v1163 = vadd.f32 %v1143, %v1155
          %v1164 = vadd.f32 %v1146, %v1156
          %1165 = vst [vmem:[%s354] sm:$0xff] %v1157
          %1166 = vst [vmem:[%s354 + $0x8] sm:$0xff] %v1158
          %1167 = vst [vmem:[%s354 + $0x10] sm:$0xff] %v1159
          %1168 = vst [vmem:[%s354 + $0x18] sm:$0xff] %v1160
          %1169 = vst [vmem:[%s354 + $0x20] sm:$0xff] %v1161
          %1170 = vst [vmem:[%s354 + $0x28] sm:$0xff] %v1162
          %1171 = vst [vmem:[%s354 + $0x30] sm:$0xff] %v1163
          %1172 = vst [vmem:[%s354 + $0x38] sm:$0xff] %v1164
        $region52: #{down_block_forward.15} parent=43 // pred_fallthru
          _
        %s1173 = sand.u32 %s203, 1
        %s1174 = scalar_lea.sflag [#allocation6], %s1173
        %s1175 = sand.u32 %s203, 1
        %s1176 = smul.addr %s1175, 64
        %s1177 = scalar_lea.vmem [#allocation5], %s1176
        // Predicated region
        $region53: #{down_block_forward.15} parent=43 // pred_check
          %p1178 = pneg %p213
        $region54: #{down_block_forward.15} parent=43 // pred_check_branch
          %1180 = sbr.rel (%p1178) target = $region56
        $region55: #{down_block_forward.15} parent=43 // pred_region
          %s1181 = smul.u32 8, %s26
          %s1183 = ssub.s32 1024, 1024
          %1184 = vsyncadd %s1174, %s1183
          %s1185 = smul.addr %s25, 8
          %s1186 = sadd.s32 %s1181, %s1185
          %s1187 = smul.addr %s1186, 128
          %s1188 = scalar_lea.hbm %s6, %s1187
          %s1189 = sshll.u32 %s1177, 4
          %s1190 = int_to_ptr.vmem [resolvable:$true] %s1189
          %1195 = dma.vmem_to_hbm [thread:$0]  %s1190, 1024, %s1188, %s1174, 128, 128, 8
        $region56: #{down_block_forward.15} parent=43 // pred_fallthru
          _
      $region44: #{down_block_forward.15} parent=5 // pred_fallthru
        _
      %p1196 = scmp.le.s32.totalorder 2, %s15
      // Predicated region
      $region57: #{down_block_forward.15} parent=5 // pred_check
        %p1197 = pneg %p1196
      $region58: #{down_block_forward.15} parent=5 // pred_check_branch
        %1199 = sbr.rel (%p1197) target = $region60
      $region59: #{down_block_forward.15} parent=5 // pred_region
        %s1200 = ssub.s32 %s15, 2
        // Predicated region
        $region61: #{down_block_forward.15} parent=59 // pred_check
          %p1201 = pneg %p219
        $region62: #{down_block_forward.15} parent=59 // pred_check_branch
          %1203 = sbr.rel (%p1201) target = $region64
        $region63: #{down_block_forward.15} parent=59 // pred_region
          %s1204 = sand.u32 %s204, 1
          %s1205 = scalar_lea.sflag [#allocation6], %s1204
          %s1206 = sand.u32 %s204, 1
          %s1207 = smul.addr %s1206, 64
          %s1208 = scalar_lea.vmem [#allocation5], %s1207
          %1209 = dma.done %s1205, 1024
        $region64: #{down_block_forward.15} parent=59 // pred_fallthru
          _
      $region60: #{down_block_forward.15} parent=5 // pred_fallthru
        _
    $region6: #{down_block_forward.15} parent=1 // loop_footer
      %s19 = sadd.s32 1, %s15
    $region7: #{down_block_forward.15} parent=1 // loop_footer_branch
      %14 = sbr.rel target = $region3
    $region8: #{down_block_forward.15} parent=1 // loop_exit
      _
    %1210 = vsyncpa [#allocation6], 1
    %s1211 = scalar_lea.sflag [#allocation6], 1
    %1212 = vsyncpa %s1211, 1

</llo_original>
